<compile_context>
chip_gen: v7x
topology: tpu7x:2x2x1
jax: 0.10.0
libtpu: 0.0.40
codegen_flags: <defaults>
</compile_context>

<pallas_src>
import functools

import jax
import jax.numpy as jnp
from jax.experimental import pallas as pl
from jax.experimental.pallas import tpu as pltpu

F32 = jnp.float32
BF16 = jnp.bfloat16
_EPS = 1e-5


def _round_up(x, m):
    return ((x + m - 1) // m) * m


# ----------------------------- in-kernel helpers ---------------------------

def _layernorm(x, g, b, eps=_EPS):
    mean = jnp.mean(x, axis=-1, keepdims=True)
    var = jnp.mean(jnp.square(x - mean), axis=-1, keepdims=True)
    return (x - mean) * jax.lax.rsqrt(var + eps) * g + b


def _erf_poly(x):
    # Abramowitz & Stegun 7.1.26 (max abs err ~1.5e-7); divide -> EUP reciprocal.
    sign = jnp.where(x >= 0.0, 1.0, -1.0)
    ax = jnp.abs(x)
    t = pl.reciprocal(1.0 + 0.3275911 * ax, approx=True)
    poly = t * (0.254829592 + t * (-0.284496736 + t * (1.421413741
             + t * (-1.453152027 + t * 1.061405429))))
    return sign * (1.0 - poly * jnp.exp(-ax * ax))


def _gelu(x):
    # torch.nn.GELU() default = exact erf GELU; f32 epilogue (v5e-safe).
    return 0.5 * x * (1.0 + _erf_poly(x * 0.7071067811865476))


# ------------------- fused ViT trunk kernel (per model) --------------------
# grid = (depth,), 'arbitrary'.  The (B*N, D) output block is revisited across
# depth and used as the layer-to-layer carry (stays resident in VMEM).
# Layer 0 additionally runs the patch embedding (LN -> Linear -> LN), prepends
# the cls token, adds pos embeddings and appends the distill token (student).

def _vit_trunk_kernel(*refs, heads, dh, n, B, eps, has_distill):
    if has_distill:
        (patches_ref, g1_ref, b1_ref, pw_ref, pb_ref, g2_ref, b2_ref,
         cls_ref, pos_ref, dt_ref,
         aln_g, aln_b, wqkv_ref, wo_ref, ob_ref,
         fln_g, fln_b, w1_ref, fb1_ref, w2_ref, fb2_ref,
         o_ref, ctx_scr) = refs
    else:
        (patches_ref, g1_ref, b1_ref, pw_ref, pb_ref, g2_ref, b2_ref,
         cls_ref, pos_ref,
         aln_g, aln_b, wqkv_ref, wo_ref, ob_ref,
         fln_g, fln_b, w1_ref, fb1_ref, w2_ref, fb2_ref,
         o_ref, ctx_scr) = refs
        dt_ref = None

    N = n + 1 + (1 if has_distill else 0)
    Hdh = heads * dh
    layer = pl.program_id(0)

    @pl.when(layer == 0)
    def _init_carry():
        # to_patch_embedding = LN -> Linear -> LN on all (B*n) patch rows at once.
        xp = _layernorm(patches_ref[...], g1_ref[...], b1_ref[...], eps)
        emb = jnp.dot(xp.astype(BF16), pw_ref[...],
                      preferred_element_type=jnp.float32) + pb_ref[...]
        emb = _layernorm(emb, g2_ref[...], b2_ref[...], eps)       # (B*n, D)
        cls_row = cls_ref[...] + pos_ref[0:1, :]                   # (1, D)
        pos_tok = pos_ref[1:, :]                                   # (n, D)
        for b in range(B):                                         # B static
            base = b * N
            o_ref[base:base + 1, :] = cls_row
            o_ref[base + 1:base + 1 + n, :] = emb[b * n:(b + 1) * n, :] + pos_tok
            if has_distill:
                o_ref[base + n + 1:base + n + 2, :] = dt_ref[...]

    x = o_ref[...]                                                 # (B*N, D) carry

    # ---- Attention: pre-LN -> fused QKV matmul -> per-image/per-head softmax
    #      -> contexts gathered in VMEM scratch -> single out-projection.
    xn = _layernorm(x, aln_g[0], aln_b[0], eps).astype(BF16)
    qkv = jnp.dot(xn, wqkv_ref[0], preferred_element_type=jnp.float32)
    q = qkv[:, :Hdh]            # scale already folded into wqkv's Q columns
    k = qkv[:, Hdh:2 * Hdh]
    v = qkv[:, 2 * Hdh:]
    for b in range(B):                                             # static, small
        r0 = b * N
        for h in range(heads):
            c0 = h * dh
            qh = q[r0:r0 + N, c0:c0 + dh].astype(BF16)
            kh = k[r0:r0 + N, c0:c0 + dh].astype(BF16)
            vh = v[r0:r0 + N, c0:c0 + dh].astype(BF16)
            s = jax.lax.dot_general(qh, kh, (((1,), (1,)), ((), ())),
                                    preferred_element_type=jnp.float32)  # (N,N)
            s = s - jnp.max(s, axis=-1, keepdims=True)
            e = jnp.exp(s)
            pattn = e * pl.reciprocal(jnp.sum(e, axis=-1, keepdims=True),
                                      approx=True)
            ctx_scr[r0:r0 + N, c0:c0 + dh] = jnp.dot(
                pattn.astype(BF16), vh, preferred_element_type=jnp.float32)
    attn = jnp.dot(ctx_scr[...].astype(BF16), wo_ref[0],
                   preferred_element_type=jnp.float32) + ob_ref[0]
    x = x + attn

    # ---- FeedForward: pre-LN -> W1 + b1 -> GELU -> W2 + b2 (+ residual)
    xn2 = _layernorm(x, fln_g[0], fln_b[0], eps).astype(BF16)
    h1 = jnp.dot(xn2, w1_ref[0], preferred_element_type=jnp.float32) + fb1_ref[0]
    h1 = _gelu(h1)
    ff = jnp.dot(h1.astype(BF16), w2_ref[0],
                 preferred_element_type=jnp.float32) + fb2_ref[0]
    o_ref[...] = x + ff                                            # carry forward


def pallas_vit_trunk(patches, p, *, B, n, heads, dh, distill_token=None):
    pd = patches.shape[1]
    dim = p["pe_w"].shape[1]
    depth = p["wqkv"].shape[0]
    mlp = p["ff_w1"].shape[2]
    Hdh = heads * dh
    has_distill = distill_token is not None
    N = n + 1 + (1 if has_distill else 0)

    def inv(shape):                 # invariant inputs (fetched once)
        nd = len(shape)
        return pl.BlockSpec(shape, lambda l, nd=nd: (0,) * nd)

    def per_layer(shape):           # per-layer stacked weights
        nd = len(shape)
        return pl.BlockSpec((1,) + shape, lambda l, nd=nd: (l,) + (0,) * nd)

    in_specs = [
        inv((B * n, pd)),                       # rearranged patches
        inv((1, pd)), inv((1, pd)),             # pe LN1
        inv((pd, dim)), inv((1, dim)),          # pe Linear
        inv((1, dim)), inv((1, dim)),           # pe LN2
        inv((1, dim)),                          # cls token
        inv((n + 1, dim)),                      # pos embedding
    ]
    args = [patches, p["pe_ln1_g"], p["pe_ln1_b"], p["pe_w"], p["pe_b"],
            p["pe_ln2_g"], p["pe_ln2_b"], p["cls_token"], p["pos_embedding"]]
    if has_distill:
        in_specs.append(inv((1, dim)))
        args.append(distill_token)
    in_specs += [
        per_layer((1, dim)), per_layer((1, dim)),           # attn LN
        per_layer((dim, 3 * Hdh)),                          # fused wqkv (bias=False)
        per_layer((Hdh, dim)), per_layer((1, dim)),         # out proj + bias
        per_layer((1, dim)), per_layer((1, dim)),           # ff LN
        per_layer((dim, mlp)), per_layer((1, mlp)),         # ff W1 + b1
        per_layer((mlp, dim)), per_layer((1, dim)),         # ff W2 + b2
    ]
    args += [p["attn_ln_g"], p["attn_ln_b"], p["wqkv"], p["wo"], p["out_b"],
             p["ff_ln_g"], p["ff_ln_b"], p["ff_w1"], p["ff_b1"],
             p["ff_w2"], p["ff_b2"]]

    return pl.pallas_call(
        functools.partial(_vit_trunk_kernel, heads=heads, dh=dh, n=n, B=B,
                          eps=_EPS, has_distill=has_distill),
        out_shape=jax.ShapeDtypeStruct((B * N, dim), F32),
        grid=(depth,),
        in_specs=in_specs,
        out_specs=pl.BlockSpec((B * N, dim), lambda l: (0, 0)),
        scratch_shapes=[pltpu.VMEM((B * N, Hdh), F32)],
        compiler_params=pltpu.CompilerParams(
            dimension_semantics=("arbitrary",),
            vmem_limit_bytes=64 * 1024 * 1024),
    )(*args)


# --------------- fused head kernels: final LN -> pool -> Linear -------------
# Whole batch in one grid step: pool into a (B, D) scratch, one lane-dense
# (B, D) x (D, Cp) matmul.  Student variant also emits the distill_mlp logits.

def _head_kernel(x_ref, g_ref, b_ref, hw_ref, hb_ref, o_ref, pooled_scr, *,
                 pool, B, N, eps):
    xn = _layernorm(x_ref[...], g_ref[...], b_ref[...], eps)       # (B*N, D)
    for bi in range(B):
        base = bi * N
        if pool == "mean":
            pooled_scr[bi:bi + 1, :] = jnp.mean(xn[base:base + N, :],
                                                axis=0, keepdims=True)
        else:
            pooled_scr[bi:bi + 1, :] = xn[base:base + 1, :]
    o_ref[...] = jnp.dot(pooled_scr[...].astype(BF16), hw_ref[...],
                         preferred_element_type=jnp.float32) + hb_ref[...]


def _head_distill_kernel(x_ref, g_ref, b_ref, hw_ref, hb_ref, dw_ref, db_ref,
                         o_ref, d_ref, pooled_scr, dist_scr, *, pool, B, N, eps):
    xn = _layernorm(x_ref[...], g_ref[...], b_ref[...], eps)       # (B*N, D)
    for bi in range(B):
        base = bi * N
        if pool == "mean":   # drop the distill token (last of the N rows)
            pooled_scr[bi:bi + 1, :] = jnp.mean(xn[base:base + N - 1, :],
                                                axis=0, keepdims=True)
        else:
            pooled_scr[bi:bi + 1, :] = xn[base:base + 1, :]
        dist_scr[bi:bi + 1, :] = xn[base + N - 1:base + N, :]
    o_ref[...] = jnp.dot(pooled_scr[...].astype(BF16), hw_ref[...],
                         preferred_element_type=jnp.float32) + hb_ref[...]
    d_ref[...] = jnp.dot(dist_scr[...].astype(BF16), dw_ref[...],
                         preferred_element_type=jnp.float32) + db_ref[...]


def pallas_head(x, p, *, pool, B, N):
    D = x.shape[1]
    Cp = p["head_w"].shape[1]

    def full(shape):
        nd = len(shape)
        return pl.BlockSpec(shape, lambda i, nd=nd: (0,) * nd)

    return pl.pallas_call(
        functools.partial(_head_kernel, pool=pool, B=B, N=N, eps=_EPS),
        out_shape=jax.ShapeDtypeStruct((B, Cp), F32),
        grid=(1,),
        in_specs=[full((B * N, D)), full((1, D)), full((1, D)),
                  full((D, Cp)), full((1, Cp))],
        out_specs=full((B, Cp)),
        scratch_shapes=[pltpu.VMEM((B, D), F32)],
    )(x, p["final_ln_g"], p["final_ln_b"], p["head_w"], p["head_b"])


def pallas_head_distill(x, p, distill_head, *, pool, B, N):
    D = x.shape[1]
    dw, db = distill_head
    Cp = p["head_w"].shape[1]

    def full(shape):
        nd = len(shape)
        return pl.BlockSpec(shape, lambda i, nd=nd: (0,) * nd)

    logits, dlogits = pl.pallas_call(
        functools.partial(_head_distill_kernel, pool=pool, B=B, N=N, eps=_EPS),
        out_shape=(jax.ShapeDtypeStruct((B, Cp), F32),
                   jax.ShapeDtypeStruct((B, Cp), F32)),
        grid=(1,),
        in_specs=[full((B * N, D)), full((1, D)), full((1, D)),
                  full((D, Cp)), full((1, Cp)), full((D, Cp)), full((1, Cp))],
        out_specs=(full((B, Cp)), full((B, Cp))),
        scratch_shapes=[pltpu.VMEM((B, D), F32), pltpu.VMEM((B, D), F32)],
    )(x, p["final_ln_g"], p["final_ln_b"], p["head_w"], p["head_b"], dw, db)
    return logits, dlogits


# ------------------------------- loss kernel -------------------------------
# CE(student, labels) * (1-alpha) + T^2 * KL(log_softmax(d/T) || softmax(t/T)) * alpha
# Logits arrive lane-padded to Cp (multiple of 128); padded columns are masked.
# Labels arrive as a (B, 1) int32 VMEM column; CE is vectorized over batch.

def _distill_loss_kernel(lab_ref, s_ref, d_ref, t_ref, o_ref, *, T, alpha,
                         num_classes):
    s = s_ref[...]
    d = d_ref[...]
    t = t_ref[...]
    B, Cp = s.shape
    col = jax.lax.broadcasted_iota(jnp.int32, (B, Cp), 1)
    valid = col < num_classes
    neg = jnp.float32(-1e30)

    s = jnp.where(valid, s, neg)
    dT = jnp.where(valid, d * (1.0 / T), neg)
    tT = jnp.where(valid, t * (1.0 / T), neg)

    # F.cross_entropy(student_logits, labels), reduction='mean'  (vectorized)
    s_max = jnp.max(s, axis=-1, keepdims=True)
    s_lse = jnp.log(jnp.sum(jnp.exp(s - s_max), axis=-1, keepdims=True))
    s_logp = s - s_max - s_lse
    onehot = (col == lab_ref[...]).astype(jnp.float32)          # (B, Cp)
    ce = -jnp.sum(onehot * s_logp) / B

    # F.kl_div(log_softmax(d/T), softmax(t/T), reduction='batchmean') * T**2
    d_max = jnp.max(dT, axis=-1, keepdims=True)
    d_lse = jnp.log(jnp.sum(jnp.exp(dT - d_max), axis=-1, keepdims=True))
    d_logp = dT - d_max - d_lse
    t_max = jnp.max(tT, axis=-1, keepdims=True)
    t_exp = jnp.exp(tT - t_max)
    t_sum = jnp.sum(t_exp, axis=-1, keepdims=True)
    t_p = t_exp / t_sum
    t_logp = tT - t_max - jnp.log(t_sum)
    kl = jnp.sum(jnp.where(valid, t_p * (t_logp - d_logp), 0.0)) / B
    distill_loss = kl * (T ** 2)

    o_ref[...] = jnp.reshape(ce * (1.0 - alpha) + distill_loss * alpha, (1, 1))


def pallas_distill_loss(student_logits, distill_logits, teacher_logits, labels,
                        *, T, alpha, num_classes):
    B = student_logits.shape[0]
    out = pl.pallas_call(
        functools.partial(_distill_loss_kernel, T=float(T), alpha=float(alpha),
                          num_classes=int(num_classes)),
        out_shape=jax.ShapeDtypeStruct((1, 1), F32),
        in_specs=[
            pl.BlockSpec(memory_space=pltpu.MemorySpace.VMEM),   # labels (B,1)
            pl.BlockSpec(memory_space=pltpu.MemorySpace.VMEM),
            pl.BlockSpec(memory_space=pltpu.MemorySpace.VMEM),
            pl.BlockSpec(memory_space=pltpu.MemorySpace.VMEM),
        ],
        out_specs=pl.BlockSpec(memory_space=pltpu.MemorySpace.VMEM),
    )(labels.astype(jnp.int32).reshape(B, 1),
      student_logits, distill_logits, teacher_logits)
    return out[0, 0]


# ----------------------------- ViT forward (glue + kernels) ----------------

def vit_forward(p, img, *, cfg, distill_token=None, distill_head=None):
    """vit_pytorch.ViT forward (DistillMixin path when distill_token is given)."""
    B, C, H, W = img.shape
    ps = cfg["patch_size"]
    heads, dh = cfg["heads"], cfg["dim_head"]

    # Rearrange 'b c (h p1) (w p2) -> (b h w) (p1 p2 c)'  (cheap glue)
    gh, gw = H // ps, W // ps
    n = gh * gw
    patches = img.reshape(B, C, gh, ps, gw, ps).transpose(0, 2, 4, 3, 5, 1)
    patches = patches.reshape(B * n, ps * ps * C)

    # Fused: patch-embed + cls/pos/distill assembly + all transformer layers.
    # self.dropout: p = 0.0 (default) -> identity.
    x = pallas_vit_trunk(patches, p, B=B, n=n, heads=heads, dh=dh,
                         distill_token=distill_token)              # (B*N, dim)

    if distill_token is not None:
        return pallas_head_distill(x, p, distill_head, pool=cfg["pool"],
                                   B=B, N=n + 2)
    return pallas_head(x, p, pool=cfg["pool"], B=B, N=n + 1)


def distill_wrapper_forward(teacher_p, student_p, wrapper_p, img, labels,
                            *, cfg, T, alpha):
    # with torch.no_grad(): teacher forward
    teacher_logits = jax.lax.stop_gradient(vit_forward(teacher_p, img, cfg=cfg))
    student_logits, distill_logits = vit_forward(
        student_p, img, cfg=cfg,
        distill_token=wrapper_p["distillation_token"],
        distill_head=(wrapper_p["dmlp_w"], wrapper_p["dmlp_b"]))
    # TODO(synk): hard=True branch (teacher argmax + CE) not implemented;
    # default soft-KD (hard=False) path only.
    return pallas_distill_loss(student_logits, distill_logits, teacher_logits,
                               labels, T=T, alpha=alpha,
                               num_classes=cfg["num_classes"])


# ----------------------------- parameter init ------------------------------

def init_vit_params(key, cfg, num_patches):
    dim, depth = cfg["dim"], cfg["depth"]
    heads, dh, mlp_dim = cfg["heads"], cfg["dim_head"], cfg["mlp_dim"]
    patch_dim = cfg["patch_size"] ** 2 * cfg["channels"]
    nc = cfg["num_classes"]
    nc_pad = _round_up(nc, 128)
    Hdh = heads * dh
    scale = dh ** -0.5

    state = {"key": key}

    def nxt():
        state["key"], sub = jax.random.split(state["key"])
        return sub

    def w(shape, s=0.02):
        return jax.random.normal(nxt(), shape, F32) * s

    # Fused QKV weight (bias=False); attention scale folded into the Q columns.
    wq = w((depth, dim, Hdh)) * scale
    wk = w((depth, dim, Hdh))
    wv = w((depth, dim, Hdh))
    wqkv = jnp.concatenate([wq, wk, wv], axis=-1).astype(BF16)

    head_w = jnp.pad(w((dim, nc)), ((0, 0), (0, nc_pad - nc)))  # lane-pad classes

    return {
        # to_patch_embedding = LN -> Linear -> LN
        "pe_ln1_g": jnp.ones((1, patch_dim), F32),
        "pe_ln1_b": jnp.zeros((1, patch_dim), F32),
        "pe_w": w((patch_dim, dim)).astype(BF16),
        "pe_b": jnp.zeros((1, dim), F32),
        "pe_ln2_g": jnp.ones((1, dim), F32),
        "pe_ln2_b": jnp.zeros((1, dim), F32),
        "cls_token": w((1, dim), 1.0),
        "pos_embedding": w((num_patches + 1, dim), 1.0),
        # transformer layers, weights stacked over depth (one pallas_call/model)
        "attn_ln_g": jnp.ones((depth, 1, dim), F32),
        "attn_ln_b": jnp.zeros((depth, 1, dim), F32),
        "wqkv": wqkv,
        "wo": w((depth, Hdh, dim)).astype(BF16),       # to_out Linear
        "out_b": jnp.zeros((depth, 1, dim), F32),
        "ff_ln_g": jnp.ones((depth, 1, dim), F32),
        "ff_ln_b": jnp.zeros((depth, 1, dim), F32),
        "ff_w1": w((depth, dim, mlp_dim)).astype(BF16),
        "ff_b1": jnp.zeros((depth, 1, mlp_dim), F32),
        "ff_w2": w((depth, mlp_dim, dim)).astype(BF16),
        "ff_b2": jnp.zeros((depth, 1, dim), F32),
        # final LayerNorm + mlp_head (class dim padded to 128 lanes)
        "final_ln_g": jnp.ones((1, dim), F32),
        "final_ln_b": jnp.zeros((1, dim), F32),
        "head_w": head_w.astype(BF16),
        "head_b": jnp.zeros((1, nc_pad), F32),
    }


# ----------------------------- main -----------------------------------------

if __name__ == "__main__":
    cfg = dict(patch_size=8, channels=3, dim=32, depth=2, heads=4, dim_head=8,
               mlp_dim=64, num_classes=10, pool="cls")
    B, C, H, W = 2, 3, 16, 16
    num_patches = (H // cfg["patch_size"]) * (W // cfg["patch_size"])
    nc, nc_pad = cfg["num_classes"], _round_up(cfg["num_classes"], 128)

    key = jax.random.PRNGKey(0)
    k_img, k_lab, k_t, k_s, k_dt, k_dw = jax.random.split(key, 6)

    img = jax.random.normal(k_img, (B, C, H, W), F32)             # NCHW
    labels = jax.random.randint(k_lab, (B,), 0, nc, jnp.int32)

    teacher_p = init_vit_params(k_t, cfg, num_patches)   # teacher modeled as ViT
    student_p = init_vit_params(k_s, cfg, num_patches)
    dmlp_w = jax.random.normal(k_dw, (cfg["dim"], nc), F32) * 0.02
    wrapper_p = {
        "distillation_token": jax.random.normal(k_dt, (1, cfg["dim"]), F32),
        "dmlp_w": jnp.pad(dmlp_w, ((0, 0), (0, nc_pad - nc))).astype(BF16),
        "dmlp_b": jnp.zeros((1, nc_pad), F32),
    }

    T, alpha = 1.0, 0.5
    fwd = jax.jit(functools.partial(distill_wrapper_forward,
                                    cfg=cfg, T=T, alpha=alpha))
    loss = fwd(teacher_p, student_p, wrapper_p, img, labels)
    jax.block_until_ready(loss)
    assert loss.shape == () and bool(jnp.isfinite(loss))
    print("KERNEL_OK")
</pallas_src>

<mosaic_0001>
module attributes {stable_mosaic.version = 11 : i64} {
  func.func @_head_distill_kernel(%arg0: i32, %arg1: memref<12x32xf32, #tpu.memory_space<vmem>>, %arg2: memref<1x32xf32, #tpu.memory_space<vmem>>, %arg3: memref<1x32xf32, #tpu.memory_space<vmem>>, %arg4: memref<32x128xbf16, #tpu.memory_space<vmem>>, %arg5: memref<1x128xf32, #tpu.memory_space<vmem>>, %arg6: memref<32x128xbf16, #tpu.memory_space<vmem>>, %arg7: memref<1x128xf32, #tpu.memory_space<vmem>>, %arg8: memref<2x128xf32, #tpu.memory_space<vmem>>, %arg9: memref<2x128xf32, #tpu.memory_space<vmem>>, %arg10: memref<2x32xf32, #tpu.memory_space<vmem>>, %arg11: memref<2x32xf32, #tpu.memory_space<vmem>>) attributes {dimension_semantics = [#tpu.dimension_semantics<arbitrary>], iteration_bounds = array<i64: 1>, scalar_prefetch = 0 : i64, scratch_operands = 2 : i64, tpu.core_type = #tpu.core_type<tc>, window_params = [{pipeline_mode = #tpu.pipeline_mode<synchronous>, transform_indices = @transform_0, window_bounds = array<i64: 12, 32>}, {pipeline_mode = #tpu.pipeline_mode<synchronous>, transform_indices = @transform_1, window_bounds = array<i64: 1, 32>}, {pipeline_mode = #tpu.pipeline_mode<synchronous>, transform_indices = @transform_2, window_bounds = array<i64: 1, 32>}, {pipeline_mode = #tpu.pipeline_mode<synchronous>, transform_indices = @transform_3, window_bounds = array<i64: 32, 128>}, {pipeline_mode = #tpu.pipeline_mode<synchronous>, transform_indices = @transform_4, window_bounds = array<i64: 1, 128>}, {pipeline_mode = #tpu.pipeline_mode<synchronous>, transform_indices = @transform_5, window_bounds = array<i64: 32, 128>}, {pipeline_mode = #tpu.pipeline_mode<synchronous>, transform_indices = @transform_6, window_bounds = array<i64: 1, 128>}, {pipeline_mode = #tpu.pipeline_mode<synchronous>, transform_indices = @transform_7, window_bounds = array<i64: 2, 128>}, {pipeline_mode = #tpu.pipeline_mode<synchronous>, transform_indices = @transform_8, window_bounds = array<i64: 2, 128>}]} {
    %c0 = arith.constant 0 : index
    %c0_0 = arith.constant 0 : index
    %0 = vector.load %arg1[%c0, %c0_0] : memref<12x32xf32, #tpu.memory_space<vmem>>, vector<12x32xf32>
    %c0_1 = arith.constant 0 : index
    %c0_2 = arith.constant 0 : index
    %1 = vector.load %arg2[%c0_1, %c0_2] : memref<1x32xf32, #tpu.memory_space<vmem>>, vector<1x32xf32>
    %c0_3 = arith.constant 0 : index
    %c0_4 = arith.constant 0 : index
    %2 = vector.load %arg3[%c0_3, %c0_4] : memref<1x32xf32, #tpu.memory_space<vmem>>, vector<1x32xf32>
    %cst = arith.constant dense<0.000000e+00> : vector<12xf32>
    %3 = vector.multi_reduction <add>, %0, %cst [1] : vector<12x32xf32> to vector<12xf32>
    %4 = vector.shape_cast %3 : vector<12xf32> to vector<12x1xf32>
    %cst_5 = arith.constant 3.200000e+01 : f32
    %5 = vector.broadcast %cst_5 : f32 to vector<12x1xf32>
    %6 = arith.divf %4, %5 : vector<12x1xf32>
    %7 = vector.broadcast %6 : vector<12x1xf32> to vector<12x32xf32>
    %8 = arith.subf %0, %7 : vector<12x32xf32>
    %9 = arith.mulf %8, %8 : vector<12x32xf32>
    %cst_6 = arith.constant dense<0.000000e+00> : vector<12xf32>
    %10 = vector.multi_reduction <add>, %9, %cst_6 [1] : vector<12x32xf32> to vector<12xf32>
    %11 = vector.shape_cast %10 : vector<12xf32> to vector<12x1xf32>
    %cst_7 = arith.constant 3.200000e+01 : f32
    %12 = vector.broadcast %cst_7 : f32 to vector<12x1xf32>
    %13 = arith.divf %11, %12 : vector<12x1xf32>
    %14 = vector.broadcast %6 : vector<12x1xf32> to vector<12x32xf32>
    %15 = arith.subf %0, %14 : vector<12x32xf32>
    %cst_8 = arith.constant 9.99999974E-6 : f32
    %16 = vector.broadcast %cst_8 : f32 to vector<12x1xf32>
    %17 = arith.addf %13, %16 : vector<12x1xf32>
    %18 = math.rsqrt %17 : vector<12x1xf32>
    %19 = vector.broadcast %18 : vector<12x1xf32> to vector<12x32xf32>
    %20 = arith.mulf %15, %19 : vector<12x32xf32>
    %21 = vector.broadcast %1 : vector<1x32xf32> to vector<12x32xf32>
    %22 = arith.mulf %20, %21 : vector<12x32xf32>
    %23 = vector.broadcast %2 : vector<1x32xf32> to vector<12x32xf32>
    %24 = arith.addf %22, %23 : vector<12x32xf32>
    %25 = vector.extract_strided_slice %24 {offsets = [0, 0], sizes = [1, 32], strides = [1, 1]} : vector<12x32xf32> to vector<1x32xf32>
    %c0_9 = arith.constant 0 : index
    %c0_10 = arith.constant 0 : index
    %26 = vector.load %arg10[%c0_9, %c0_10] : memref<2x32xf32, #tpu.memory_space<vmem>>, vector<1x32xf32>
    tpu.vector_store %arg10[%c0_9, %c0_10], %25 {strides = array<i32>} : memref<2x32xf32, #tpu.memory_space<vmem>>, vector<1x32xf32>,
    %27 = vector.extract_strided_slice %24 {offsets = [5, 0], sizes = [1, 32], strides = [1, 1]} : vector<12x32xf32> to vector<1x32xf32>
    %c0_11 = arith.constant 0 : index
    %c0_12 = arith.constant 0 : index
    %28 = vector.load %arg11[%c0_11, %c0_12] : memref<2x32xf32, #tpu.memory_space<vmem>>, vector<1x32xf32>
    tpu.vector_store %arg11[%c0_11, %c0_12], %27 {strides = array<i32>} : memref<2x32xf32, #tpu.memory_space<vmem>>, vector<1x32xf32>,
    %29 = vector.extract_strided_slice %24 {offsets = [6, 0], sizes = [1, 32], strides = [1, 1]} : vector<12x32xf32> to vector<1x32xf32>
    %c1 = arith.constant 1 : index
    %c0_13 = arith.constant 0 : index
    %30 = vector.load %arg10[%c1, %c0_13] : memref<2x32xf32, #tpu.memory_space<vmem>>, vector<1x32xf32>
    tpu.vector_store %arg10[%c1, %c0_13], %29 {strides = array<i32>} : memref<2x32xf32, #tpu.memory_space<vmem>>, vector<1x32xf32>,
    %31 = vector.extract_strided_slice %24 {offsets = [11, 0], sizes = [1, 32], strides = [1, 1]} : vector<12x32xf32> to vector<1x32xf32>
    %c1_14 = arith.constant 1 : index
    %c0_15 = arith.constant 0 : index
    %32 = vector.load %arg11[%c1_14, %c0_15] : memref<2x32xf32, #tpu.memory_space<vmem>>, vector<1x32xf32>
    tpu.vector_store %arg11[%c1_14, %c0_15], %31 {strides = array<i32>} : memref<2x32xf32, #tpu.memory_space<vmem>>, vector<1x32xf32>,
    %c0_16 = arith.constant 0 : index
    %c0_17 = arith.constant 0 : index
    %33 = vector.load %arg10[%c0_16, %c0_17] : memref<2x32xf32, #tpu.memory_space<vmem>>, vector<2x32xf32>
    %34 = arith.truncf %33 : vector<2x32xf32> to vector<2x32xbf16>
    %c0_18 = arith.constant 0 : index
    %c0_19 = arith.constant 0 : index
    %35 = vector.load %arg4[%c0_18, %c0_19] : memref<32x128xbf16, #tpu.memory_space<vmem>>, vector<32x128xbf16>
    %cst_20 = arith.constant dense<0.000000e+00> : vector<2x128xf32>
    %36 = tpu.matmul %34, %35, %cst_20 {dimension_numbers = #tpu.dot_dimension_numbers<[1], [0], [0], [1], [0, 0, 1, 1], [], []>} : vector<2x32xbf16>, vector<32x128xbf16>, vector<2x128xf32> -> vector<2x128xf32>
    %c0_21 = arith.constant 0 : index
    %c0_22 = arith.constant 0 : index
    %37 = vector.load %arg5[%c0_21, %c0_22] : memref<1x128xf32, #tpu.memory_space<vmem>>, vector<1x128xf32>
    %38 = vector.broadcast %37 : vector<1x128xf32> to vector<2x128xf32>
    %39 = arith.addf %36, %38 : vector<2x128xf32>
    %c0_23 = arith.constant 0 : index
    %c0_24 = arith.constant 0 : index
    %40 = vector.load %arg8[%c0_23, %c0_24] : memref<2x128xf32, #tpu.memory_space<vmem>>, vector<2x128xf32>
    tpu.vector_store %arg8[%c0_23, %c0_24], %39 {strides = array<i32>} : memref<2x128xf32, #tpu.memory_space<vmem>>, vector<2x128xf32>,
    %c0_25 = arith.constant 0 : index
    %c0_26 = arith.constant 0 : index
    %41 = vector.load %arg11[%c0_25, %c0_26] : memref<2x32xf32, #tpu.memory_space<vmem>>, vector<2x32xf32>
    %42 = arith.truncf %41 : vector<2x32xf32> to vector<2x32xbf16>
    %c0_27 = arith.constant 0 : index
    %c0_28 = arith.constant 0 : index
    %43 = vector.load %arg6[%c0_27, %c0_28] : memref<32x128xbf16, #tpu.memory_space<vmem>>, vector<32x128xbf16>
    %cst_29 = arith.constant dense<0.000000e+00> : vector<2x128xf32>
    %44 = tpu.matmul %42, %43, %cst_29 {dimension_numbers = #tpu.dot_dimension_numbers<[1], [0], [0], [1], [0, 0, 1, 1], [], []>} : vector<2x32xbf16>, vector<32x128xbf16>, vector<2x128xf32> -> vector<2x128xf32>
    %c0_30 = arith.constant 0 : index
    %c0_31 = arith.constant 0 : index
    %45 = vector.load %arg7[%c0_30, %c0_31] : memref<1x128xf32, #tpu.memory_space<vmem>>, vector<1x128xf32>
    %46 = vector.broadcast %45 : vector<1x128xf32> to vector<2x128xf32>
    %47 = arith.addf %44, %46 : vector<2x128xf32>
    %c0_32 = arith.constant 0 : index
    %c0_33 = arith.constant 0 : index
    %48 = vector.load %arg9[%c0_32, %c0_33] : memref<2x128xf32, #tpu.memory_space<vmem>>, vector<2x128xf32>
    tpu.vector_store %arg9[%c0_32, %c0_33], %47 {strides = array<i32>} : memref<2x128xf32, #tpu.memory_space<vmem>>, vector<2x128xf32>,
    return
  }
  func.func @transform_0(%arg0: i32) -> (i32, i32) {
    %c0_i32 = arith.constant 0 : i32
    %c0_i32_0 = arith.constant 0 : i32
    %c0_i32_1 = arith.constant 0 : i32
    return %c0_i32, %c0_i32_0 : i32, i32
  }
  func.func @transform_1(%arg0: i32) -> (i32, i32) {
    %c0_i32 = arith.constant 0 : i32
    %c0_i32_0 = arith.constant 0 : i32
    %c0_i32_1 = arith.constant 0 : i32
    return %c0_i32, %c0_i32_0 : i32, i32
  }
  func.func @transform_2(%arg0: i32) -> (i32, i32) {
    %c0_i32 = arith.constant 0 : i32
    %c0_i32_0 = arith.constant 0 : i32
    %c0_i32_1 = arith.constant 0 : i32
    return %c0_i32, %c0_i32_0 : i32, i32
  }
  func.func @transform_3(%arg0: i32) -> (i32, i32) {
    %c0_i32 = arith.constant 0 : i32
    %c0_i32_0 = arith.constant 0 : i32
    %c0_i32_1 = arith.constant 0 : i32
    return %c0_i32, %c0_i32_0 : i32, i32
  }
  func.func @transform_4(%arg0: i32) -> (i32, i32) {
    %c0_i32 = arith.constant 0 : i32
    %c0_i32_0 = arith.constant 0 : i32
    %c0_i32_1 = arith.constant 0 : i32
    return %c0_i32, %c0_i32_0 : i32, i32
  }
  func.func @transform_5(%arg0: i32) -> (i32, i32) {
    %c0_i32 = arith.constant 0 : i32
    %c0_i32_0 = arith.constant 0 : i32
    %c0_i32_1 = arith.constant 0 : i32
    return %c0_i32, %c0_i32_0 : i32, i32
  }
  func.func @transform_6(%arg0: i32) -> (i32, i32) {
    %c0_i32 = arith.constant 0 : i32
    %c0_i32_0 = arith.constant 0 : i32
    %c0_i32_1 = arith.constant 0 : i32
    return %c0_i32, %c0_i32_0 : i32, i32
  }
  func.func @transform_7(%arg0: i32) -> (i32, i32) {
    %c0_i32 = arith.constant 0 : i32
    %c0_i32_0 = arith.constant 0 : i32
    %c0_i32_1 = arith.constant 0 : i32
    return %c0_i32, %c0_i32_0 : i32, i32
  }
  func.func @transform_8(%arg0: i32) -> (i32, i32) {
    %c0_i32 = arith.constant 0 : i32
    %c0_i32_0 = arith.constant 0 : i32
    %c0_i32_1 = arith.constant 0 : i32
    return %c0_i32, %c0_i32_0 : i32, i32
  }
}

module attributes {stable_mosaic.version = 11 : i64} {
  func.func @_vit_trunk_kernel(%arg0: i32, %arg1: memref<8x192xf32, #tpu.memory_space<vmem>>, %arg2: memref<1x192xf32, #tpu.memory_space<vmem>>, %arg3: memref<1x192xf32, #tpu.memory_space<vmem>>, %arg4: memref<192x32xbf16, #tpu.memory_space<vmem>>, %arg5: memref<1x32xf32, #tpu.memory_space<vmem>>, %arg6: memref<1x32xf32, #tpu.memory_space<vmem>>, %arg7: memref<1x32xf32, #tpu.memory_space<vmem>>, %arg8: memref<1x32xf32, #tpu.memory_space<vmem>>, %arg9: memref<5x32xf32, #tpu.memory_space<vmem>>, %arg10: memref<1x32xf32, #tpu.memory_space<vmem>>, %arg11: memref<1x1x32xf32, #tpu.memory_space<vmem>>, %arg12: memref<1x1x32xf32, #tpu.memory_space<vmem>>, %arg13: memref<1x32x96xbf16, #tpu.memory_space<vmem>>, %arg14: memref<1x32x32xbf16, #tpu.memory_space<vmem>>, %arg15: memref<1x1x32xf32, #tpu.memory_space<vmem>>, %arg16: memref<1x1x32xf32, #tpu.memory_space<vmem>>, %arg17: memref<1x1x32xf32, #tpu.memory_space<vmem>>, %arg18: memref<1x32x64xbf16, #tpu.memory_space<vmem>>, %arg19: memref<1x1x64xf32, #tpu.memory_space<vmem>>, %arg20: memref<1x64x32xbf16, #tpu.memory_space<vmem>>, %arg21: memref<1x1x32xf32, #tpu.memory_space<vmem>>, %arg22: memref<12x32xf32, #tpu.memory_space<vmem>>, %arg23: memref<12x32xf32, #tpu.memory_space<vmem>>) attributes {dimension_semantics = [#tpu.dimension_semantics<arbitrary>], iteration_bounds = array<i64: 2>, scalar_prefetch = 0 : i64, scratch_operands = 1 : i64, tpu.core_type = #tpu.core_type<tc>, window_params = [{pipeline_mode = #tpu.pipeline_mode<synchronous>, transform_indices = @transform_0, window_bounds = array<i64: 8, 192>}, {pipeline_mode = #tpu.pipeline_mode<synchronous>, transform_indices = @transform_1, window_bounds = array<i64: 1, 192>}, {pipeline_mode = #tpu.pipeline_mode<synchronous>, transform_indices = @transform_2, window_bounds = array<i64: 1, 192>}, {pipeline_mode = #tpu.pipeline_mode<synchronous>, transform_indices = @transform_3, window_bounds = array<i64: 192, 32>}, {pipeline_mode = #tpu.pipeline_mode<synchronous>, transform_indices = @transform_4, window_bounds = array<i64: 1, 32>}, {pipeline_mode = #tpu.pipeline_mode<synchronous>, transform_indices = @transform_5, window_bounds = array<i64: 1, 32>}, {pipeline_mode = #tpu.pipeline_mode<synchronous>, transform_indices = @transform_6, window_bounds = array<i64: 1, 32>}, {pipeline_mode = #tpu.pipeline_mode<synchronous>, transform_indices = @transform_7, window_bounds = array<i64: 1, 32>}, {pipeline_mode = #tpu.pipeline_mode<synchronous>, transform_indices = @transform_8, window_bounds = array<i64: 5, 32>}, {pipeline_mode = #tpu.pipeline_mode<synchronous>, transform_indices = @transform_9, window_bounds = array<i64: 1, 32>}, {transform_indices = @transform_10, window_bounds = array<i64: 1, 1, 32>}, {transform_indices = @transform_11, window_bounds = array<i64: 1, 1, 32>}, {transform_indices = @transform_12, window_bounds = array<i64: 1, 32, 96>}, {transform_indices = @transform_13, window_bounds = array<i64: 1, 32, 32>}, {transform_indices = @transform_14, window_bounds = array<i64: 1, 1, 32>}, {transform_indices = @transform_15, window_bounds = array<i64: 1, 1, 32>}, {transform_indices = @transform_16, window_bounds = array<i64: 1, 1, 32>}, {transform_indices = @transform_17, window_bounds = array<i64: 1, 32, 64>}, {transform_indices = @transform_18, window_bounds = array<i64: 1, 1, 64>}, {transform_indices = @transform_19, window_bounds = array<i64: 1, 64, 32>}, {transform_indices = @transform_20, window_bounds = array<i64: 1, 1, 32>}, {pipeline_mode = #tpu.pipeline_mode<synchronous>, transform_indices = @transform_21, window_bounds = array<i64: 12, 32>}]} {
    %c0_i32 = arith.constant 0 : i32
    %0 = arith.cmpi eq, %arg0, %c0_i32 : i32
    %1 = arith.extui %0 : i1 to i32
    %c0_i32_0 = arith.constant 0 : i32
    %2 = arith.cmpi ne, %1, %c0_i32_0 : i32
    scf.if %2 {
      %c0_111 = arith.constant 0 : index
      %c0_112 = arith.constant 0 : index
      %291 = vector.load %arg1[%c0_111, %c0_112] : memref<8x192xf32, #tpu.memory_space<vmem>>, vector<8x192xf32>
      %c0_113 = arith.constant 0 : index
      %c0_114 = arith.constant 0 : index
      %292 = vector.load %arg2[%c0_113, %c0_114] : memref<1x192xf32, #tpu.memory_space<vmem>>, vector<1x192xf32>
      %c0_115 = arith.constant 0 : index
      %c0_116 = arith.constant 0 : index
      %293 = vector.load %arg3[%c0_115, %c0_116] : memref<1x192xf32, #tpu.memory_space<vmem>>, vector<1x192xf32>
      %cst_117 = arith.constant dense<0.000000e+00> : vector<8xf32>
      %294 = vector.multi_reduction <add>, %291, %cst_117 [1] : vector<8x192xf32> to vector<8xf32>
      %295 = vector.shape_cast %294 : vector<8xf32> to vector<8x1xf32>
      %cst_118 = arith.constant 1.920000e+02 : f32
      %296 = vector.broadcast %cst_118 : f32 to vector<8x1xf32>
      %297 = arith.divf %295, %296 : vector<8x1xf32>
      %298 = vector.broadcast %297 : vector<8x1xf32> to vector<8x192xf32>
      %299 = arith.subf %291, %298 : vector<8x192xf32>
      %300 = arith.mulf %299, %299 : vector<8x192xf32>
      %cst_119 = arith.constant dense<0.000000e+00> : vector<8xf32>
      %301 = vector.multi_reduction <add>, %300, %cst_119 [1] : vector<8x192xf32> to vector<8xf32>
      %302 = vector.shape_cast %301 : vector<8xf32> to vector<8x1xf32>
      %cst_120 = arith.constant 1.920000e+02 : f32
      %303 = vector.broadcast %cst_120 : f32 to vector<8x1xf32>
      %304 = arith.divf %302, %303 : vector<8x1xf32>
      %305 = vector.broadcast %297 : vector<8x1xf32> to vector<8x192xf32>
      %306 = arith.subf %291, %305 : vector<8x192xf32>
      %cst_121 = arith.constant 9.99999974E-6 : f32
      %307 = vector.broadcast %cst_121 : f32 to vector<8x1xf32>
      %308 = arith.addf %304, %307 : vector<8x1xf32>
      %309 = math.rsqrt %308 : vector<8x1xf32>
      %310 = vector.broadcast %309 : vector<8x1xf32> to vector<8x192xf32>
      %311 = arith.mulf %306, %310 : vector<8x192xf32>
      %312 = vector.broadcast %292 : vector<1x192xf32> to vector<8x192xf32>
      %313 = arith.mulf %311, %312 : vector<8x192xf32>
      %314 = vector.broadcast %293 : vector<1x192xf32> to vector<8x192xf32>
      %315 = arith.addf %313, %314 : vector<8x192xf32>
      %316 = arith.truncf %315 : vector<8x192xf32> to vector<8x192xbf16>
      %c0_122 = arith.constant 0 : index
      %c0_123 = arith.constant 0 : index
      %317 = vector.load %arg4[%c0_122, %c0_123] : memref<192x32xbf16, #tpu.memory_space<vmem>>, vector<192x32xbf16>
      %cst_124 = arith.constant dense<0.000000e+00> : vector<8x32xf32>
      %318 = tpu.matmul %316, %317, %cst_124 {dimension_numbers = #tpu.dot_dimension_numbers<[1], [0], [0], [1], [0, 0, 1, 1], [], []>} : vector<8x192xbf16>, vector<192x32xbf16>, vector<8x32xf32> -> vector<8x32xf32>
      %c0_125 = arith.constant 0 : index
      %c0_126 = arith.constant 0 : index
      %319 = vector.load %arg5[%c0_125, %c0_126] : memref<1x32xf32, #tpu.memory_space<vmem>>, vector<1x32xf32>
      %320 = vector.broadcast %319 : vector<1x32xf32> to vector<8x32xf32>
      %321 = arith.addf %318, %320 : vector<8x32xf32>
      %c0_127 = arith.constant 0 : index
      %c0_128 = arith.constant 0 : index
      %322 = vector.load %arg6[%c0_127, %c0_128] : memref<1x32xf32, #tpu.memory_space<vmem>>, vector<1x32xf32>
      %c0_129 = arith.constant 0 : index
      %c0_130 = arith.constant 0 : index
      %323 = vector.load %arg7[%c0_129, %c0_130] : memref<1x32xf32, #tpu.memory_space<vmem>>, vector<1x32xf32>
      %cst_131 = arith.constant dense<0.000000e+00> : vector<8xf32>
      %324 = vector.multi_reduction <add>, %321, %cst_131 [1] : vector<8x32xf32> to vector<8xf32>
      %325 = vector.shape_cast %324 : vector<8xf32> to vector<8x1xf32>
      %cst_132 = arith.constant 3.200000e+01 : f32
      %326 = vector.broadcast %cst_132 : f32 to vector<8x1xf32>
      %327 = arith.divf %325, %326 : vector<8x1xf32>
      %328 = vector.broadcast %327 : vector<8x1xf32> to vector<8x32xf32>
      %329 = arith.subf %321, %328 : vector<8x32xf32>
      %330 = arith.mulf %329, %329 : vector<8x32xf32>
      %cst_133 = arith.constant dense<0.000000e+00> : vector<8xf32>
      %331 = vector.multi_reduction <add>, %330, %cst_133 [1] : vector<8x32xf32> to vector<8xf32>
      %332 = vector.shape_cast %331 : vector<8xf32> to vector<8x1xf32>
      %cst_134 = arith.constant 3.200000e+01 : f32
      %333 = vector.broadcast %cst_134 : f32 to vector<8x1xf32>
      %334 = arith.divf %332, %333 : vector<8x1xf32>
      %335 = vector.broadcast %327 : vector<8x1xf32> to vector<8x32xf32>
      %336 = arith.subf %321, %335 : vector<8x32xf32>
      %cst_135 = arith.constant 9.99999974E-6 : f32
      %337 = vector.broadcast %cst_135 : f32 to vector<8x1xf32>
      %338 = arith.addf %334, %337 : vector<8x1xf32>
      %339 = math.rsqrt %338 : vector<8x1xf32>
      %340 = vector.broadcast %339 : vector<8x1xf32> to vector<8x32xf32>
      %341 = arith.mulf %336, %340 : vector<8x32xf32>
      %342 = vector.broadcast %322 : vector<1x32xf32> to vector<8x32xf32>
      %343 = arith.mulf %341, %342 : vector<8x32xf32>
      %344 = vector.broadcast %323 : vector<1x32xf32> to vector<8x32xf32>
      %345 = arith.addf %343, %344 : vector<8x32xf32>
      %c0_136 = arith.constant 0 : index
      %c0_137 = arith.constant 0 : index
      %346 = vector.load %arg8[%c0_136, %c0_137] : memref<1x32xf32, #tpu.memory_space<vmem>>, vector<1x32xf32>
      %c0_138 = arith.constant 0 : index
      %c0_139 = arith.constant 0 : index
      %347 = vector.load %arg9[%c0_138, %c0_139] : memref<5x32xf32, #tpu.memory_space<vmem>>, vector<1x32xf32>
      %348 = arith.addf %346, %347 : vector<1x32xf32>
      %c1 = arith.constant 1 : index
      %c0_140 = arith.constant 0 : index
      %349 = vector.load %arg9[%c1, %c0_140] : memref<5x32xf32, #tpu.memory_space<vmem>>, vector<4x32xf32>
      %c0_141 = arith.constant 0 : index
      %c0_142 = arith.constant 0 : index
      %350 = vector.load %arg22[%c0_141, %c0_142] : memref<12x32xf32, #tpu.memory_space<vmem>>, vector<1x32xf32>
      tpu.vector_store %arg22[%c0_141, %c0_142], %348 {strides = array<i32>} : memref<12x32xf32, #tpu.memory_space<vmem>>, vector<1x32xf32>,
      %351 = vector.extract_strided_slice %345 {offsets = [0, 0], sizes = [4, 32], strides = [1, 1]} : vector<8x32xf32> to vector<4x32xf32>
      %352 = arith.addf %351, %349 : vector<4x32xf32>
      %c1_143 = arith.constant 1 : index
      %c0_144 = arith.constant 0 : index
      %353 = vector.load %arg22[%c1_143, %c0_144] : memref<12x32xf32, #tpu.memory_space<vmem>>, vector<4x32xf32>
      tpu.vector_store %arg22[%c1_143, %c0_144], %352 {strides = array<i32>} : memref<12x32xf32, #tpu.memory_space<vmem>>, vector<4x32xf32>,
      %c0_145 = arith.constant 0 : index
      %c0_146 = arith.constant 0 : index
      %354 = vector.load %arg10[%c0_145, %c0_146] : memref<1x32xf32, #tpu.memory_space<vmem>>, vector<1x32xf32>
      %c5 = arith.constant 5 : index
      %c0_147 = arith.constant 0 : index
      %355 = vector.load %arg22[%c5, %c0_147] : memref<12x32xf32, #tpu.memory_space<vmem>>, vector<1x32xf32>
      tpu.vector_store %arg22[%c5, %c0_147], %354 {strides = array<i32>} : memref<12x32xf32, #tpu.memory_space<vmem>>, vector<1x32xf32>,
      %c6_148 = arith.constant 6 : index
      %c0_149 = arith.constant 0 : index
      %356 = vector.load %arg22[%c6_148, %c0_149] : memref<12x32xf32, #tpu.memory_space<vmem>>, vector<1x32xf32>
      tpu.vector_store %arg22[%c6_148, %c0_149], %348 {strides = array<i32>} : memref<12x32xf32, #tpu.memory_space<vmem>>, vector<1x32xf32>,
      %357 = vector.extract_strided_slice %345 {offsets = [4, 0], sizes = [4, 32], strides = [1, 1]} : vector<8x32xf32> to vector<4x32xf32>
      %358 = arith.addf %357, %349 : vector<4x32xf32>
      %c7 = arith.constant 7 : index
      %c0_150 = arith.constant 0 : index
      %359 = vector.load %arg22[%c7, %c0_150] : memref<12x32xf32, #tpu.memory_space<vmem>>, vector<4x32xf32>
      tpu.vector_store %arg22[%c7, %c0_150], %358 {strides = array<i32>} : memref<12x32xf32, #tpu.memory_space<vmem>>, vector<4x32xf32>,
      %c0_151 = arith.constant 0 : index
      %c0_152 = arith.constant 0 : index
      %360 = vector.load %arg10[%c0_151, %c0_152] : memref<1x32xf32, #tpu.memory_space<vmem>>, vector<1x32xf32>
      %c11 = arith.constant 11 : index
      %c0_153 = arith.constant 0 : index
      %361 = vector.load %arg22[%c11, %c0_153] : memref<12x32xf32, #tpu.memory_space<vmem>>, vector<1x32xf32>
      tpu.vector_store %arg22[%c11, %c0_153], %360 {strides = array<i32>} : memref<12x32xf32, #tpu.memory_space<vmem>>, vector<1x32xf32>,
    } else {
    }
    %c0 = arith.constant 0 : index
    %c0_1 = arith.constant 0 : index
    %3 = vector.load %arg22[%c0, %c0_1] : memref<12x32xf32, #tpu.memory_space<vmem>>, vector<12x32xf32>
    %c0_2 = arith.constant 0 : index
    %c0_3 = arith.constant 0 : index
    %c0_4 = arith.constant 0 : index
    %4 = vector.load %arg11[%c0_2, %c0_3, %c0_4] : memref<1x1x32xf32, #tpu.memory_space<vmem>>, vector<1x1x32xf32>
    %5 = vector.shape_cast %4 : vector<1x1x32xf32> to vector<1x32xf32>
    %c0_5 = arith.constant 0 : index
    %c0_6 = arith.constant 0 : index
    %c0_7 = arith.constant 0 : index
    %6 = vector.load %arg12[%c0_5, %c0_6, %c0_7] : memref<1x1x32xf32, #tpu.memory_space<vmem>>, vector<1x1x32xf32>
    %7 = vector.shape_cast %6 : vector<1x1x32xf32> to vector<1x32xf32>
    %cst = arith.constant dense<0.000000e+00> : vector<12xf32>
    %8 = vector.multi_reduction <add>, %3, %cst [1] : vector<12x32xf32> to vector<12xf32>
    %9 = vector.shape_cast %8 : vector<12xf32> to vector<12x1xf32>
    %cst_8 = arith.constant 3.200000e+01 : f32
    %10 = vector.broadcast %cst_8 : f32 to vector<12x1xf32>
    %11 = arith.divf %9, %10 : vector<12x1xf32>
    %12 = vector.broadcast %11 : vector<12x1xf32> to vector<12x32xf32>
    %13 = arith.subf %3, %12 : vector<12x32xf32>
    %14 = arith.mulf %13, %13 : vector<12x32xf32>
    %cst_9 = arith.constant dense<0.000000e+00> : vector<12xf32>
    %15 = vector.multi_reduction <add>, %14, %cst_9 [1] : vector<12x32xf32> to vector<12xf32>
    %16 = vector.shape_cast %15 : vector<12xf32> to vector<12x1xf32>
    %cst_10 = arith.constant 3.200000e+01 : f32
    %17 = vector.broadcast %cst_10 : f32 to vector<12x1xf32>
    %18 = arith.divf %16, %17 : vector<12x1xf32>
    %19 = vector.broadcast %11 : vector<12x1xf32> to vector<12x32xf32>
    %20 = arith.subf %3, %19 : vector<12x32xf32>
    %cst_11 = arith.constant 9.99999974E-6 : f32
    %21 = vector.broadcast %cst_11 : f32 to vector<12x1xf32>
    %22 = arith.addf %18, %21 : vector<12x1xf32>
    %23 = math.rsqrt %22 : vector<12x1xf32>
    %24 = vector.broadcast %23 : vector<12x1xf32> to vector<12x32xf32>
    %25 = arith.mulf %20, %24 : vector<12x32xf32>
    %26 = vector.broadcast %5 : vector<1x32xf32> to vector<12x32xf32>
    %27 = arith.mulf %25, %26 : vector<12x32xf32>
    %28 = vector.broadcast %7 : vector<1x32xf32> to vector<12x32xf32>
    %29 = arith.addf %27, %28 : vector<12x32xf32>
    %30 = arith.truncf %29 : vector<12x32xf32> to vector<12x32xbf16>
    %c0_12 = arith.constant 0 : index
    %c0_13 = arith.constant 0 : index
    %c0_14 = arith.constant 0 : index
    %31 = vector.load %arg13[%c0_12, %c0_13, %c0_14] : memref<1x32x96xbf16, #tpu.memory_space<vmem>>, vector<1x32x96xbf16>
    %32 = vector.shape_cast %31 : vector<1x32x96xbf16> to vector<32x96xbf16>
    %cst_15 = arith.constant dense<0.000000e+00> : vector<12x96xf32>
    %33 = tpu.matmul %30, %32, %cst_15 {dimension_numbers = #tpu.dot_dimension_numbers<[1], [0], [0], [1], [0, 0, 1, 1], [], []>} : vector<12x32xbf16>, vector<32x96xbf16>, vector<12x96xf32> -> vector<12x96xf32>
    %34 = vector.extract_strided_slice %33 {offsets = [0, 0], sizes = [12, 32], strides = [1, 1]} : vector<12x96xf32> to vector<12x32xf32>
    %35 = vector.extract_strided_slice %33 {offsets = [0, 32], sizes = [12, 32], strides = [1, 1]} : vector<12x96xf32> to vector<12x32xf32>
    %36 = vector.extract_strided_slice %33 {offsets = [0, 64], sizes = [12, 32], strides = [1, 1]} : vector<12x96xf32> to vector<12x32xf32>
    %37 = vector.extract_strided_slice %34 {offsets = [0, 0], sizes = [6, 8], strides = [1, 1]} : vector<12x32xf32> to vector<6x8xf32>
    %38 = arith.truncf %37 : vector<6x8xf32> to vector<6x8xbf16>
    %39 = vector.extract_strided_slice %35 {offsets = [0, 0], sizes = [6, 8], strides = [1, 1]} : vector<12x32xf32> to vector<6x8xf32>
    %40 = arith.truncf %39 : vector<6x8xf32> to vector<6x8xbf16>
    %41 = vector.extract_strided_slice %36 {offsets = [0, 0], sizes = [6, 8], strides = [1, 1]} : vector<12x32xf32> to vector<6x8xf32>
    %42 = arith.truncf %41 : vector<6x8xf32> to vector<6x8xbf16>
    %cst_16 = arith.constant dense<0.000000e+00> : vector<6x6xf32>
    %43 = tpu.matmul %38, %40, %cst_16 {dimension_numbers = #tpu.dot_dimension_numbers<[1], [1], [0], [0], [0, 0, 1, 0], [], []>} : vector<6x8xbf16>, vector<6x8xbf16>, vector<6x6xf32> -> vector<6x6xf32>
    %cst_17 = arith.constant dense<0xFF800000> : vector<6xf32>
    %44 = vector.multi_reduction <maximumf>, %43, %cst_17 [1] : vector<6x6xf32> to vector<6xf32>
    %45 = vector.shape_cast %44 : vector<6xf32> to vector<6x1xf32>
    %46 = vector.broadcast %45 : vector<6x1xf32> to vector<6x6xf32>
    %47 = arith.subf %43, %46 : vector<6x6xf32>
    %48 = math.exp %47 : vector<6x6xf32>
    %cst_18 = arith.constant dense<0.000000e+00> : vector<6xf32>
    %49 = vector.multi_reduction <add>, %48, %cst_18 [1] : vector<6x6xf32> to vector<6xf32>
    %50 = vector.shape_cast %49 : vector<6xf32> to vector<6x1xf32>
    %51 = tpu.reciprocal %50 {approx = true} : vector<6x1xf32> -> vector<6x1xf32>
    %52 = vector.broadcast %51 : vector<6x1xf32> to vector<6x6xf32>
    %53 = arith.mulf %48, %52 : vector<6x6xf32>
    %54 = arith.truncf %53 : vector<6x6xf32> to vector<6x6xbf16>
    %cst_19 = arith.constant dense<0.000000e+00> : vector<6x8xf32>
    %55 = tpu.matmul %54, %42, %cst_19 {dimension_numbers = #tpu.dot_dimension_numbers<[1], [0], [0], [1], [0, 0, 1, 1], [], []>} : vector<6x6xbf16>, vector<6x8xbf16>, vector<6x8xf32> -> vector<6x8xf32>
    %c0_20 = arith.constant 0 : index
    %c0_21 = arith.constant 0 : index
    %56 = vector.load %arg23[%c0_20, %c0_21] : memref<12x32xf32, #tpu.memory_space<vmem>>, vector<6x8xf32>
    tpu.vector_store %arg23[%c0_20, %c0_21], %55 {strides = array<i32>} : memref<12x32xf32, #tpu.memory_space<vmem>>, vector<6x8xf32>,
    %57 = vector.extract_strided_slice %34 {offsets = [0, 8], sizes = [6, 8], strides = [1, 1]} : vector<12x32xf32> to vector<6x8xf32>
    %58 = arith.truncf %57 : vector<6x8xf32> to vector<6x8xbf16>
    %59 = vector.extract_strided_slice %35 {offsets = [0, 8], sizes = [6, 8], strides = [1, 1]} : vector<12x32xf32> to vector<6x8xf32>
    %60 = arith.truncf %59 : vector<6x8xf32> to vector<6x8xbf16>
    %61 = vector.extract_strided_slice %36 {offsets = [0, 8], sizes = [6, 8], strides = [1, 1]} : vector<12x32xf32> to vector<6x8xf32>
    %62 = arith.truncf %61 : vector<6x8xf32> to vector<6x8xbf16>
    %cst_22 = arith.constant dense<0.000000e+00> : vector<6x6xf32>
    %63 = tpu.matmul %58, %60, %cst_22 {dimension_numbers = #tpu.dot_dimension_numbers<[1], [1], [0], [0], [0, 0, 1, 0], [], []>} : vector<6x8xbf16>, vector<6x8xbf16>, vector<6x6xf32> -> vector<6x6xf32>
    %cst_23 = arith.constant dense<0xFF800000> : vector<6xf32>
    %64 = vector.multi_reduction <maximumf>, %63, %cst_23 [1] : vector<6x6xf32> to vector<6xf32>
    %65 = vector.shape_cast %64 : vector<6xf32> to vector<6x1xf32>
    %66 = vector.broadcast %65 : vector<6x1xf32> to vector<6x6xf32>
    %67 = arith.subf %63, %66 : vector<6x6xf32>
    %68 = math.exp %67 : vector<6x6xf32>
    %cst_24 = arith.constant dense<0.000000e+00> : vector<6xf32>
    %69 = vector.multi_reduction <add>, %68, %cst_24 [1] : vector<6x6xf32> to vector<6xf32>
    %70 = vector.shape_cast %69 : vector<6xf32> to vector<6x1xf32>
    %71 = tpu.reciprocal %70 {approx = true} : vector<6x1xf32> -> vector<6x1xf32>
    %72 = vector.broadcast %71 : vector<6x1xf32> to vector<6x6xf32>
    %73 = arith.mulf %68, %72 : vector<6x6xf32>
    %74 = arith.truncf %73 : vector<6x6xf32> to vector<6x6xbf16>
    %cst_25 = arith.constant dense<0.000000e+00> : vector<6x8xf32>
    %75 = tpu.matmul %74, %62, %cst_25 {dimension_numbers = #tpu.dot_dimension_numbers<[1], [0], [0], [1], [0, 0, 1, 1], [], []>} : vector<6x6xbf16>, vector<6x8xbf16>, vector<6x8xf32> -> vector<6x8xf32>
    %c0_26 = arith.constant 0 : index
    %c8 = arith.constant 8 : index
    %76 = vector.load %arg23[%c0_26, %c8] : memref<12x32xf32, #tpu.memory_space<vmem>>, vector<6x8xf32>
    tpu.vector_store %arg23[%c0_26, %c8], %75 {strides = array<i32>} : memref<12x32xf32, #tpu.memory_space<vmem>>, vector<6x8xf32>,
    %77 = vector.extract_strided_slice %34 {offsets = [0, 16], sizes = [6, 8], strides = [1, 1]} : vector<12x32xf32> to vector<6x8xf32>
    %78 = arith.truncf %77 : vector<6x8xf32> to vector<6x8xbf16>
    %79 = vector.extract_strided_slice %35 {offsets = [0, 16], sizes = [6, 8], strides = [1, 1]} : vector<12x32xf32> to vector<6x8xf32>
    %80 = arith.truncf %79 : vector<6x8xf32> to vector<6x8xbf16>
    %81 = vector.extract_strided_slice %36 {offsets = [0, 16], sizes = [6, 8], strides = [1, 1]} : vector<12x32xf32> to vector<6x8xf32>
    %82 = arith.truncf %81 : vector<6x8xf32> to vector<6x8xbf16>
    %cst_27 = arith.constant dense<0.000000e+00> : vector<6x6xf32>
    %83 = tpu.matmul %78, %80, %cst_27 {dimension_numbers = #tpu.dot_dimension_numbers<[1], [1], [0], [0], [0, 0, 1, 0], [], []>} : vector<6x8xbf16>, vector<6x8xbf16>, vector<6x6xf32> -> vector<6x6xf32>
    %cst_28 = arith.constant dense<0xFF800000> : vector<6xf32>
    %84 = vector.multi_reduction <maximumf>, %83, %cst_28 [1] : vector<6x6xf32> to vector<6xf32>
    %85 = vector.shape_cast %84 : vector<6xf32> to vector<6x1xf32>
    %86 = vector.broadcast %85 : vector<6x1xf32> to vector<6x6xf32>
    %87 = arith.subf %83, %86 : vector<6x6xf32>
    %88 = math.exp %87 : vector<6x6xf32>
    %cst_29 = arith.constant dense<0.000000e+00> : vector<6xf32>
    %89 = vector.multi_reduction <add>, %88, %cst_29 [1] : vector<6x6xf32> to vector<6xf32>
    %90 = vector.shape_cast %89 : vector<6xf32> to vector<6x1xf32>
    %91 = tpu.reciprocal %90 {approx = true} : vector<6x1xf32> -> vector<6x1xf32>
    %92 = vector.broadcast %91 : vector<6x1xf32> to vector<6x6xf32>
    %93 = arith.mulf %88, %92 : vector<6x6xf32>
    %94 = arith.truncf %93 : vector<6x6xf32> to vector<6x6xbf16>
    %cst_30 = arith.constant dense<0.000000e+00> : vector<6x8xf32>
    %95 = tpu.matmul %94, %82, %cst_30 {dimension_numbers = #tpu.dot_dimension_numbers<[1], [0], [0], [1], [0, 0, 1, 1], [], []>} : vector<6x6xbf16>, vector<6x8xbf16>, vector<6x8xf32> -> vector<6x8xf32>
    %c0_31 = arith.constant 0 : index
    %c16 = arith.constant 16 : index
    %96 = vector.load %arg23[%c0_31, %c16] : memref<12x32xf32, #tpu.memory_space<vmem>>, vector<6x8xf32>
    tpu.vector_store %arg23[%c0_31, %c16], %95 {strides = array<i32>} : memref<12x32xf32, #tpu.memory_space<vmem>>, vector<6x8xf32>,
    %97 = vector.extract_strided_slice %34 {offsets = [0, 24], sizes = [6, 8], strides = [1, 1]} : vector<12x32xf32> to vector<6x8xf32>
    %98 = arith.truncf %97 : vector<6x8xf32> to vector<6x8xbf16>
    %99 = vector.extract_strided_slice %35 {offsets = [0, 24], sizes = [6, 8], strides = [1, 1]} : vector<12x32xf32> to vector<6x8xf32>
    %100 = arith.truncf %99 : vector<6x8xf32> to vector<6x8xbf16>
    %101 = vector.extract_strided_slice %36 {offsets = [0, 24], sizes = [6, 8], strides = [1, 1]} : vector<12x32xf32> to vector<6x8xf32>
    %102 = arith.truncf %101 : vector<6x8xf32> to vector<6x8xbf16>
    %cst_32 = arith.constant dense<0.000000e+00> : vector<6x6xf32>
    %103 = tpu.matmul %98, %100, %cst_32 {dimension_numbers = #tpu.dot_dimension_numbers<[1], [1], [0], [0], [0, 0, 1, 0], [], []>} : vector<6x8xbf16>, vector<6x8xbf16>, vector<6x6xf32> -> vector<6x6xf32>
    %cst_33 = arith.constant dense<0xFF800000> : vector<6xf32>
    %104 = vector.multi_reduction <maximumf>, %103, %cst_33 [1] : vector<6x6xf32> to vector<6xf32>
    %105 = vector.shape_cast %104 : vector<6xf32> to vector<6x1xf32>
    %106 = vector.broadcast %105 : vector<6x1xf32> to vector<6x6xf32>
    %107 = arith.subf %103, %106 : vector<6x6xf32>
    %108 = math.exp %107 : vector<6x6xf32>
    %cst_34 = arith.constant dense<0.000000e+00> : vector<6xf32>
    %109 = vector.multi_reduction <add>, %108, %cst_34 [1] : vector<6x6xf32> to vector<6xf32>
    %110 = vector.shape_cast %109 : vector<6xf32> to vector<6x1xf32>
    %111 = tpu.reciprocal %110 {approx = true} : vector<6x1xf32> -> vector<6x1xf32>
    %112 = vector.broadcast %111 : vector<6x1xf32> to vector<6x6xf32>
    %113 = arith.mulf %108, %112 : vector<6x6xf32>
    %114 = arith.truncf %113 : vector<6x6xf32> to vector<6x6xbf16>
    %cst_35 = arith.constant dense<0.000000e+00> : vector<6x8xf32>
    %115 = tpu.matmul %114, %102, %cst_35 {dimension_numbers = #tpu.dot_dimension_numbers<[1], [0], [0], [1], [0, 0, 1, 1], [], []>} : vector<6x6xbf16>, vector<6x8xbf16>, vector<6x8xf32> -> vector<6x8xf32>
    %c0_36 = arith.constant 0 : index
    %c24 = arith.constant 24 : index
    %116 = vector.load %arg23[%c0_36, %c24] : memref<12x32xf32, #tpu.memory_space<vmem>>, vector<6x8xf32>
    tpu.vector_store %arg23[%c0_36, %c24], %115 {strides = array<i32>} : memref<12x32xf32, #tpu.memory_space<vmem>>, vector<6x8xf32>,
    %117 = vector.extract_strided_slice %34 {offsets = [6, 0], sizes = [6, 8], strides = [1, 1]} : vector<12x32xf32> to vector<6x8xf32>
    %118 = arith.truncf %117 : vector<6x8xf32> to vector<6x8xbf16>
    %119 = vector.extract_strided_slice %35 {offsets = [6, 0], sizes = [6, 8], strides = [1, 1]} : vector<12x32xf32> to vector<6x8xf32>
    %120 = arith.truncf %119 : vector<6x8xf32> to vector<6x8xbf16>
    %121 = vector.extract_strided_slice %36 {offsets = [6, 0], sizes = [6, 8], strides = [1, 1]} : vector<12x32xf32> to vector<6x8xf32>
    %122 = arith.truncf %121 : vector<6x8xf32> to vector<6x8xbf16>
    %cst_37 = arith.constant dense<0.000000e+00> : vector<6x6xf32>
    %123 = tpu.matmul %118, %120, %cst_37 {dimension_numbers = #tpu.dot_dimension_numbers<[1], [1], [0], [0], [0, 0, 1, 0], [], []>} : vector<6x8xbf16>, vector<6x8xbf16>, vector<6x6xf32> -> vector<6x6xf32>
    %cst_38 = arith.constant dense<0xFF800000> : vector<6xf32>
    %124 = vector.multi_reduction <maximumf>, %123, %cst_38 [1] : vector<6x6xf32> to vector<6xf32>
    %125 = vector.shape_cast %124 : vector<6xf32> to vector<6x1xf32>
    %126 = vector.broadcast %125 : vector<6x1xf32> to vector<6x6xf32>
    %127 = arith.subf %123, %126 : vector<6x6xf32>
    %128 = math.exp %127 : vector<6x6xf32>
    %cst_39 = arith.constant dense<0.000000e+00> : vector<6xf32>
    %129 = vector.multi_reduction <add>, %128, %cst_39 [1] : vector<6x6xf32> to vector<6xf32>
    %130 = vector.shape_cast %129 : vector<6xf32> to vector<6x1xf32>
    %131 = tpu.reciprocal %130 {approx = true} : vector<6x1xf32> -> vector<6x1xf32>
    %132 = vector.broadcast %131 : vector<6x1xf32> to vector<6x6xf32>
    %133 = arith.mulf %128, %132 : vector<6x6xf32>
    %134 = arith.truncf %133 : vector<6x6xf32> to vector<6x6xbf16>
    %cst_40 = arith.constant dense<0.000000e+00> : vector<6x8xf32>
    %135 = tpu.matmul %134, %122, %cst_40 {dimension_numbers = #tpu.dot_dimension_numbers<[1], [0], [0], [1], [0, 0, 1, 1], [], []>} : vector<6x6xbf16>, vector<6x8xbf16>, vector<6x8xf32> -> vector<6x8xf32>
    %c6 = arith.constant 6 : index
    %c0_41 = arith.constant 0 : index
    %136 = vector.load %arg23[%c6, %c0_41] : memref<12x32xf32, #tpu.memory_space<vmem>>, vector<6x8xf32>
    tpu.vector_store %arg23[%c6, %c0_41], %135 {strides = array<i32>} : memref<12x32xf32, #tpu.memory_space<vmem>>, vector<6x8xf32>,
    %137 = vector.extract_strided_slice %34 {offsets = [6, 8], sizes = [6, 8], strides = [1, 1]} : vector<12x32xf32> to vector<6x8xf32>
    %138 = arith.truncf %137 : vector<6x8xf32> to vector<6x8xbf16>
    %139 = vector.extract_strided_slice %35 {offsets = [6, 8], sizes = [6, 8], strides = [1, 1]} : vector<12x32xf32> to vector<6x8xf32>
    %140 = arith.truncf %139 : vector<6x8xf32> to vector<6x8xbf16>
    %141 = vector.extract_strided_slice %36 {offsets = [6, 8], sizes = [6, 8], strides = [1, 1]} : vector<12x32xf32> to vector<6x8xf32>
    %142 = arith.truncf %141 : vector<6x8xf32> to vector<6x8xbf16>
    %cst_42 = arith.constant dense<0.000000e+00> : vector<6x6xf32>
    %143 = tpu.matmul %138, %140, %cst_42 {dimension_numbers = #tpu.dot_dimension_numbers<[1], [1], [0], [0], [0, 0, 1, 0], [], []>} : vector<6x8xbf16>, vector<6x8xbf16>, vector<6x6xf32> -> vector<6x6xf32>
    %cst_43 = arith.constant dense<0xFF800000> : vector<6xf32>
    %144 = vector.multi_reduction <maximumf>, %143, %cst_43 [1] : vector<6x6xf32> to vector<6xf32>
    %145 = vector.shape_cast %144 : vector<6xf32> to vector<6x1xf32>
    %146 = vector.broadcast %145 : vector<6x1xf32> to vector<6x6xf32>
    %147 = arith.subf %143, %146 : vector<6x6xf32>
    %148 = math.exp %147 : vector<6x6xf32>
    %cst_44 = arith.constant dense<0.000000e+00> : vector<6xf32>
    %149 = vector.multi_reduction <add>, %148, %cst_44 [1] : vector<6x6xf32> to vector<6xf32>
    %150 = vector.shape_cast %149 : vector<6xf32> to vector<6x1xf32>
    %151 = tpu.reciprocal %150 {approx = true} : vector<6x1xf32> -> vector<6x1xf32>
    %152 = vector.broadcast %151 : vector<6x1xf32> to vector<6x6xf32>
    %153 = arith.mulf %148, %152 : vector<6x6xf32>
    %154 = arith.truncf %153 : vector<6x6xf32> to vector<6x6xbf16>
    %cst_45 = arith.constant dense<0.000000e+00> : vector<6x8xf32>
    %155 = tpu.matmul %154, %142, %cst_45 {dimension_numbers = #tpu.dot_dimension_numbers<[1], [0], [0], [1], [0, 0, 1, 1], [], []>} : vector<6x6xbf16>, vector<6x8xbf16>, vector<6x8xf32> -> vector<6x8xf32>
    %c6_46 = arith.constant 6 : index
    %c8_47 = arith.constant 8 : index
    %156 = vector.load %arg23[%c6_46, %c8_47] : memref<12x32xf32, #tpu.memory_space<vmem>>, vector<6x8xf32>
    tpu.vector_store %arg23[%c6_46, %c8_47], %155 {strides = array<i32>} : memref<12x32xf32, #tpu.memory_space<vmem>>, vector<6x8xf32>,
    %157 = vector.extract_strided_slice %34 {offsets = [6, 16], sizes = [6, 8], strides = [1, 1]} : vector<12x32xf32> to vector<6x8xf32>
    %158 = arith.truncf %157 : vector<6x8xf32> to vector<6x8xbf16>
    %159 = vector.extract_strided_slice %35 {offsets = [6, 16], sizes = [6, 8], strides = [1, 1]} : vector<12x32xf32> to vector<6x8xf32>
    %160 = arith.truncf %159 : vector<6x8xf32> to vector<6x8xbf16>
    %161 = vector.extract_strided_slice %36 {offsets = [6, 16], sizes = [6, 8], strides = [1, 1]} : vector<12x32xf32> to vector<6x8xf32>
    %162 = arith.truncf %161 : vector<6x8xf32> to vector<6x8xbf16>
    %cst_48 = arith.constant dense<0.000000e+00> : vector<6x6xf32>
    %163 = tpu.matmul %158, %160, %cst_48 {dimension_numbers = #tpu.dot_dimension_numbers<[1], [1], [0], [0], [0, 0, 1, 0], [], []>} : vector<6x8xbf16>, vector<6x8xbf16>, vector<6x6xf32> -> vector<6x6xf32>
    %cst_49 = arith.constant dense<0xFF800000> : vector<6xf32>
    %164 = vector.multi_reduction <maximumf>, %163, %cst_49 [1] : vector<6x6xf32> to vector<6xf32>
    %165 = vector.shape_cast %164 : vector<6xf32> to vector<6x1xf32>
    %166 = vector.broadcast %165 : vector<6x1xf32> to vector<6x6xf32>
    %167 = arith.subf %163, %166 : vector<6x6xf32>
    %168 = math.exp %167 : vector<6x6xf32>
    %cst_50 = arith.constant dense<0.000000e+00> : vector<6xf32>
    %169 = vector.multi_reduction <add>, %168, %cst_50 [1] : vector<6x6xf32> to vector<6xf32>
    %170 = vector.shape_cast %169 : vector<6xf32> to vector<6x1xf32>
    %171 = tpu.reciprocal %170 {approx = true} : vector<6x1xf32> -> vector<6x1xf32>
    %172 = vector.broadcast %171 : vector<6x1xf32> to vector<6x6xf32>
    %173 = arith.mulf %168, %172 : vector<6x6xf32>
    %174 = arith.truncf %173 : vector<6x6xf32> to vector<6x6xbf16>
    %cst_51 = arith.constant dense<0.000000e+00> : vector<6x8xf32>
    %175 = tpu.matmul %174, %162, %cst_51 {dimension_numbers = #tpu.dot_dimension_numbers<[1], [0], [0], [1], [0, 0, 1, 1], [], []>} : vector<6x6xbf16>, vector<6x8xbf16>, vector<6x8xf32> -> vector<6x8xf32>
    %c6_52 = arith.constant 6 : index
    %c16_53 = arith.constant 16 : index
    %176 = vector.load %arg23[%c6_52, %c16_53] : memref<12x32xf32, #tpu.memory_space<vmem>>, vector<6x8xf32>
    tpu.vector_store %arg23[%c6_52, %c16_53], %175 {strides = array<i32>} : memref<12x32xf32, #tpu.memory_space<vmem>>, vector<6x8xf32>,
    %177 = vector.extract_strided_slice %34 {offsets = [6, 24], sizes = [6, 8], strides = [1, 1]} : vector<12x32xf32> to vector<6x8xf32>
    %178 = arith.truncf %177 : vector<6x8xf32> to vector<6x8xbf16>
    %179 = vector.extract_strided_slice %35 {offsets = [6, 24], sizes = [6, 8], strides = [1, 1]} : vector<12x32xf32> to vector<6x8xf32>
    %180 = arith.truncf %179 : vector<6x8xf32> to vector<6x8xbf16>
    %181 = vector.extract_strided_slice %36 {offsets = [6, 24], sizes = [6, 8], strides = [1, 1]} : vector<12x32xf32> to vector<6x8xf32>
    %182 = arith.truncf %181 : vector<6x8xf32> to vector<6x8xbf16>
    %cst_54 = arith.constant dense<0.000000e+00> : vector<6x6xf32>
    %183 = tpu.matmul %178, %180, %cst_54 {dimension_numbers = #tpu.dot_dimension_numbers<[1], [1], [0], [0], [0, 0, 1, 0], [], []>} : vector<6x8xbf16>, vector<6x8xbf16>, vector<6x6xf32> -> vector<6x6xf32>
    %cst_55 = arith.constant dense<0xFF800000> : vector<6xf32>
    %184 = vector.multi_reduction <maximumf>, %183, %cst_55 [1] : vector<6x6xf32> to vector<6xf32>
    %185 = vector.shape_cast %184 : vector<6xf32> to vector<6x1xf32>
    %186 = vector.broadcast %185 : vector<6x1xf32> to vector<6x6xf32>
    %187 = arith.subf %183, %186 : vector<6x6xf32>
    %188 = math.exp %187 : vector<6x6xf32>
    %cst_56 = arith.constant dense<0.000000e+00> : vector<6xf32>
    %189 = vector.multi_reduction <add>, %188, %cst_56 [1] : vector<6x6xf32> to vector<6xf32>
    %190 = vector.shape_cast %189 : vector<6xf32> to vector<6x1xf32>
    %191 = tpu.reciprocal %190 {approx = true} : vector<6x1xf32> -> vector<6x1xf32>
    %192 = vector.broadcast %191 : vector<6x1xf32> to vector<6x6xf32>
    %193 = arith.mulf %188, %192 : vector<6x6xf32>
    %194 = arith.truncf %193 : vector<6x6xf32> to vector<6x6xbf16>
    %cst_57 = arith.constant dense<0.000000e+00> : vector<6x8xf32>
    %195 = tpu.matmul %194, %182, %cst_57 {dimension_numbers = #tpu.dot_dimension_numbers<[1], [0], [0], [1], [0, 0, 1, 1], [], []>} : vector<6x6xbf16>, vector<6x8xbf16>, vector<6x8xf32> -> vector<6x8xf32>
    %c6_58 = arith.constant 6 : index
    %c24_59 = arith.constant 24 : index
    %196 = vector.load %arg23[%c6_58, %c24_59] : memref<12x32xf32, #tpu.memory_space<vmem>>, vector<6x8xf32>
    tpu.vector_store %arg23[%c6_58, %c24_59], %195 {strides = array<i32>} : memref<12x32xf32, #tpu.memory_space<vmem>>, vector<6x8xf32>,
    %c0_60 = arith.constant 0 : index
    %c0_61 = arith.constant 0 : index
    %197 = vector.load %arg23[%c0_60, %c0_61] : memref<12x32xf32, #tpu.memory_space<vmem>>, vector<12x32xf32>
    %198 = arith.truncf %197 : vector<12x32xf32> to vector<12x32xbf16>
    %c0_62 = arith.constant 0 : index
    %c0_63 = arith.constant 0 : index
    %c0_64 = arith.constant 0 : index
    %199 = vector.load %arg14[%c0_62, %c0_63, %c0_64] : memref<1x32x32xbf16, #tpu.memory_space<vmem>>, vector<1x32x32xbf16>
    %200 = vector.shape_cast %199 : vector<1x32x32xbf16> to vector<32x32xbf16>
    %cst_65 = arith.constant dense<0.000000e+00> : vector<12x32xf32>
    %201 = tpu.matmul %198, %200, %cst_65 {dimension_numbers = #tpu.dot_dimension_numbers<[1], [0], [0], [1], [0, 0, 1, 1], [], []>} : vector<12x32xbf16>, vector<32x32xbf16>, vector<12x32xf32> -> vector<12x32xf32>
    %c0_66 = arith.constant 0 : index
    %c0_67 = arith.constant 0 : index
    %c0_68 = arith.constant 0 : index
    %202 = vector.load %arg15[%c0_66, %c0_67, %c0_68] : memref<1x1x32xf32, #tpu.memory_space<vmem>>, vector<1x1x32xf32>
    %203 = vector.shape_cast %202 : vector<1x1x32xf32> to vector<1x32xf32>
    %204 = vector.broadcast %203 : vector<1x32xf32> to vector<12x32xf32>
    %205 = arith.addf %201, %204 : vector<12x32xf32>
    %206 = arith.addf %3, %205 : vector<12x32xf32>
    %c0_69 = arith.constant 0 : index
    %c0_70 = arith.constant 0 : index
    %c0_71 = arith.constant 0 : index
    %207 = vector.load %arg16[%c0_69, %c0_70, %c0_71] : memref<1x1x32xf32, #tpu.memory_space<vmem>>, vector<1x1x32xf32>
    %208 = vector.shape_cast %207 : vector<1x1x32xf32> to vector<1x32xf32>
    %c0_72 = arith.constant 0 : index
    %c0_73 = arith.constant 0 : index
    %c0_74 = arith.constant 0 : index
    %209 = vector.load %arg17[%c0_72, %c0_73, %c0_74] : memref<1x1x32xf32, #tpu.memory_space<vmem>>, vector<1x1x32xf32>
    %210 = vector.shape_cast %209 : vector<1x1x32xf32> to vector<1x32xf32>
    %cst_75 = arith.constant dense<0.000000e+00> : vector<12xf32>
    %211 = vector.multi_reduction <add>, %206, %cst_75 [1] : vector<12x32xf32> to vector<12xf32>
    %212 = vector.shape_cast %211 : vector<12xf32> to vector<12x1xf32>
    %cst_76 = arith.constant 3.200000e+01 : f32
    %213 = vector.broadcast %cst_76 : f32 to vector<12x1xf32>
    %214 = arith.divf %212, %213 : vector<12x1xf32>
    %215 = vector.broadcast %214 : vector<12x1xf32> to vector<12x32xf32>
    %216 = arith.subf %206, %215 : vector<12x32xf32>
    %217 = arith.mulf %216, %216 : vector<12x32xf32>
    %cst_77 = arith.constant dense<0.000000e+00> : vector<12xf32>
    %218 = vector.multi_reduction <add>, %217, %cst_77 [1] : vector<12x32xf32> to vector<12xf32>
    %219 = vector.shape_cast %218 : vector<12xf32> to vector<12x1xf32>
    %cst_78 = arith.constant 3.200000e+01 : f32
    %220 = vector.broadcast %cst_78 : f32 to vector<12x1xf32>
    %221 = arith.divf %219, %220 : vector<12x1xf32>
    %222 = vector.broadcast %214 : vector<12x1xf32> to vector<12x32xf32>
    %223 = arith.subf %206, %222 : vector<12x32xf32>
    %cst_79 = arith.constant 9.99999974E-6 : f32
    %224 = vector.broadcast %cst_79 : f32 to vector<12x1xf32>
    %225 = arith.addf %221, %224 : vector<12x1xf32>
    %226 = math.rsqrt %225 : vector<12x1xf32>
    %227 = vector.broadcast %226 : vector<12x1xf32> to vector<12x32xf32>
    %228 = arith.mulf %223, %227 : vector<12x32xf32>
    %229 = vector.broadcast %208 : vector<1x32xf32> to vector<12x32xf32>
    %230 = arith.mulf %228, %229 : vector<12x32xf32>
    %231 = vector.broadcast %210 : vector<1x32xf32> to vector<12x32xf32>
    %232 = arith.addf %230, %231 : vector<12x32xf32>
    %233 = arith.truncf %232 : vector<12x32xf32> to vector<12x32xbf16>
    %c0_80 = arith.constant 0 : index
    %c0_81 = arith.constant 0 : index
    %c0_82 = arith.constant 0 : index
    %234 = vector.load %arg18[%c0_80, %c0_81, %c0_82] : memref<1x32x64xbf16, #tpu.memory_space<vmem>>, vector<1x32x64xbf16>
    %235 = vector.shape_cast %234 : vector<1x32x64xbf16> to vector<32x64xbf16>
    %cst_83 = arith.constant dense<0.000000e+00> : vector<12x64xf32>
    %236 = tpu.matmul %233, %235, %cst_83 {dimension_numbers = #tpu.dot_dimension_numbers<[1], [0], [0], [1], [0, 0, 1, 1], [], []>} : vector<12x32xbf16>, vector<32x64xbf16>, vector<12x64xf32> -> vector<12x64xf32>
    %c0_84 = arith.constant 0 : index
    %c0_85 = arith.constant 0 : index
    %c0_86 = arith.constant 0 : index
    %237 = vector.load %arg19[%c0_84, %c0_85, %c0_86] : memref<1x1x64xf32, #tpu.memory_space<vmem>>, vector<1x1x64xf32>
    %238 = vector.shape_cast %237 : vector<1x1x64xf32> to vector<1x64xf32>
    %239 = vector.broadcast %238 : vector<1x64xf32> to vector<12x64xf32>
    %240 = arith.addf %236, %239 : vector<12x64xf32>
    %cst_87 = arith.constant 5.000000e-01 : f32
    %241 = vector.broadcast %cst_87 : f32 to vector<12x64xf32>
    %242 = arith.mulf %241, %240 : vector<12x64xf32>
    %cst_88 = arith.constant 0.707106769 : f32
    %243 = vector.broadcast %cst_88 : f32 to vector<12x64xf32>
    %244 = arith.mulf %240, %243 : vector<12x64xf32>
    %cst_89 = arith.constant 0.000000e+00 : f32
    %245 = vector.broadcast %cst_89 : f32 to vector<12x64xf32>
    %246 = arith.cmpf oge, %244, %245 : vector<12x64xf32>
    %cst_90 = arith.constant 1.000000e+00 : f32
    %cst_91 = arith.constant -1.000000e+00 : f32
    %247 = vector.broadcast %cst_90 : f32 to vector<12x64xf32>
    %248 = vector.broadcast %cst_91 : f32 to vector<12x64xf32>
    %249 = arith.select %246, %247, %248 : vector<12x64xi1>, vector<12x64xf32>
    %250 = math.absf %244 : vector<12x64xf32>
    %cst_92 = arith.constant 0.327591091 : f32
    %251 = vector.broadcast %cst_92 : f32 to vector<12x64xf32>
    %252 = arith.mulf %251, %250 : vector<12x64xf32>
    %cst_93 = arith.constant 1.000000e+00 : f32
    %253 = vector.broadcast %cst_93 : f32 to vector<12x64xf32>
    %254 = arith.addf %253, %252 : vector<12x64xf32>
    %255 = tpu.reciprocal %254 {approx = true} : vector<12x64xf32> -> vector<12x64xf32>
    %cst_94 = arith.constant 1.06140542 : f32
    %256 = vector.broadcast %cst_94 : f32 to vector<12x64xf32>
    %257 = arith.mulf %255, %256 : vector<12x64xf32>
    %cst_95 = arith.constant -1.45315206 : f32
    %258 = vector.broadcast %cst_95 : f32 to vector<12x64xf32>
    %259 = arith.addf %258, %257 : vector<12x64xf32>
    %260 = arith.mulf %255, %259 : vector<12x64xf32>
    %cst_96 = arith.constant 1.42141378 : f32
    %261 = vector.broadcast %cst_96 : f32 to vector<12x64xf32>
    %262 = arith.addf %261, %260 : vector<12x64xf32>
    %263 = arith.mulf %255, %262 : vector<12x64xf32>
    %cst_97 = arith.constant -0.284496725 : f32
    %264 = vector.broadcast %cst_97 : f32 to vector<12x64xf32>
    %265 = arith.addf %264, %263 : vector<12x64xf32>
    %266 = arith.mulf %255, %265 : vector<12x64xf32>
    %cst_98 = arith.constant 0.254829586 : f32
    %267 = vector.broadcast %cst_98 : f32 to vector<12x64xf32>
    %268 = arith.addf %267, %266 : vector<12x64xf32>
    %269 = arith.mulf %255, %268 : vector<12x64xf32>
    %cst_99 = arith.constant 0.000000e+00 : f32
    %270 = vector.broadcast %cst_99 : f32 to vector<12x64xf32>
    %271 = arith.subf %270, %250 : vector<12x64xf32>
    %272 = arith.mulf %271, %250 : vector<12x64xf32>
    %273 = math.exp %272 : vector<12x64xf32>
    %274 = arith.mulf %269, %273 : vector<12x64xf32>
    %cst_100 = arith.constant 1.000000e+00 : f32
    %275 = vector.broadcast %cst_100 : f32 to vector<12x64xf32>
    %276 = arith.subf %275, %274 : vector<12x64xf32>
    %277 = arith.mulf %249, %276 : vector<12x64xf32>
    %cst_101 = arith.constant 1.000000e+00 : f32
    %278 = vector.broadcast %cst_101 : f32 to vector<12x64xf32>
    %279 = arith.addf %278, %277 : vector<12x64xf32>
    %280 = arith.mulf %242, %279 : vector<12x64xf32>
    %281 = arith.truncf %280 : vector<12x64xf32> to vector<12x64xbf16>
    %c0_102 = arith.constant 0 : index
    %c0_103 = arith.constant 0 : index
    %c0_104 = arith.constant 0 : index
    %282 = vector.load %arg20[%c0_102, %c0_103, %c0_104] : memref<1x64x32xbf16, #tpu.memory_space<vmem>>, vector<1x64x32xbf16>
    %283 = vector.shape_cast %282 : vector<1x64x32xbf16> to vector<64x32xbf16>
    %cst_105 = arith.constant dense<0.000000e+00> : vector<12x32xf32>
    %284 = tpu.matmul %281, %283, %cst_105 {dimension_numbers = #tpu.dot_dimension_numbers<[1], [0], [0], [1], [0, 0, 1, 1], [], []>} : vector<12x64xbf16>, vector<64x32xbf16>, vector<12x32xf32> -> vector<12x32xf32>
    %c0_106 = arith.constant 0 : index
    %c0_107 = arith.constant 0 : index
    %c0_108 = arith.constant 0 : index
    %285 = vector.load %arg21[%c0_106, %c0_107, %c0_108] : memref<1x1x32xf32, #tpu.memory_space<vmem>>, vector<1x1x32xf32>
    %286 = vector.shape_cast %285 : vector<1x1x32xf32> to vector<1x32xf32>
    %287 = vector.broadcast %286 : vector<1x32xf32> to vector<12x32xf32>
    %288 = arith.addf %284, %287 : vector<12x32xf32>
    %289 = arith.addf %206, %288 : vector<12x32xf32>
    %c0_109 = arith.constant 0 : index
    %c0_110 = arith.constant 0 : index
    %290 = vector.load %arg22[%c0_109, %c0_110] : memref<12x32xf32, #tpu.memory_space<vmem>>, vector<12x32xf32>
    tpu.vector_store %arg22[%c0_109, %c0_110], %289 {strides = array<i32>} : memref<12x32xf32, #tpu.memory_space<vmem>>, vector<12x32xf32>,
    return
  }
  func.func @transform_0(%arg0: i32) -> (i32, i32) {
    %c0_i32 = arith.constant 0 : i32
    %c0_i32_0 = arith.constant 0 : i32
    %c0_i32_1 = arith.constant 0 : i32
    return %c0_i32, %c0_i32_0 : i32, i32
  }
  func.func @transform_1(%arg0: i32) -> (i32, i32) {
    %c0_i32 = arith.constant 0 : i32
    %c0_i32_0 = arith.constant 0 : i32
    %c0_i32_1 = arith.constant 0 : i32
    return %c0_i32, %c0_i32_0 : i32, i32
  }
  func.func @transform_2(%arg0: i32) -> (i32, i32) {
    %c0_i32 = arith.constant 0 : i32
    %c0_i32_0 = arith.constant 0 : i32
    %c0_i32_1 = arith.constant 0 : i32
    return %c0_i32, %c0_i32_0 : i32, i32
  }
  func.func @transform_3(%arg0: i32) -> (i32, i32) {
    %c0_i32 = arith.constant 0 : i32
    %c0_i32_0 = arith.constant 0 : i32
    %c0_i32_1 = arith.constant 0 : i32
    return %c0_i32, %c0_i32_0 : i32, i32
  }
  func.func @transform_4(%arg0: i32) -> (i32, i32) {
    %c0_i32 = arith.constant 0 : i32
    %c0_i32_0 = arith.constant 0 : i32
    %c0_i32_1 = arith.constant 0 : i32
    return %c0_i32, %c0_i32_0 : i32, i32
  }
  func.func @transform_5(%arg0: i32) -> (i32, i32) {
    %c0_i32 = arith.constant 0 : i32
    %c0_i32_0 = arith.constant 0 : i32
    %c0_i32_1 = arith.constant 0 : i32
    return %c0_i32, %c0_i32_0 : i32, i32
  }
  func.func @transform_6(%arg0: i32) -> (i32, i32) {
    %c0_i32 = arith.constant 0 : i32
    %c0_i32_0 = arith.constant 0 : i32
    %c0_i32_1 = arith.constant 0 : i32
    return %c0_i32, %c0_i32_0 : i32, i32
  }
  func.func @transform_7(%arg0: i32) -> (i32, i32) {
    %c0_i32 = arith.constant 0 : i32
    %c0_i32_0 = arith.constant 0 : i32
    %c0_i32_1 = arith.constant 0 : i32
    return %c0_i32, %c0_i32_0 : i32, i32
  }
  func.func @transform_8(%arg0: i32) -> (i32, i32) {
    %c0_i32 = arith.constant 0 : i32
    %c0_i32_0 = arith.constant 0 : i32
    %c0_i32_1 = arith.constant 0 : i32
    return %c0_i32, %c0_i32_0 : i32, i32
  }
  func.func @transform_9(%arg0: i32) -> (i32, i32) {
    %c0_i32 = arith.constant 0 : i32
    %c0_i32_0 = arith.constant 0 : i32
    %c0_i32_1 = arith.constant 0 : i32
    return %c0_i32, %c0_i32_0 : i32, i32
  }
  func.func @transform_10(%arg0: i32) -> (i32, i32, i32) {
    %c0_i32 = arith.constant 0 : i32
    %c0_i32_0 = arith.constant 0 : i32
    %c0_i32_1 = arith.constant 0 : i32
    return %arg0, %c0_i32, %c0_i32_0 : i32, i32, i32
  }
  func.func @transform_11(%arg0: i32) -> (i32, i32, i32) {
    %c0_i32 = arith.constant 0 : i32
    %c0_i32_0 = arith.constant 0 : i32
    %c0_i32_1 = arith.constant 0 : i32
    return %arg0, %c0_i32, %c0_i32_0 : i32, i32, i32
  }
  func.func @transform_12(%arg0: i32) -> (i32, i32, i32) {
    %c0_i32 = arith.constant 0 : i32
    %c0_i32_0 = arith.constant 0 : i32
    %c0_i32_1 = arith.constant 0 : i32
    return %arg0, %c0_i32, %c0_i32_0 : i32, i32, i32
  }
  func.func @transform_13(%arg0: i32) -> (i32, i32, i32) {
    %c0_i32 = arith.constant 0 : i32
    %c0_i32_0 = arith.constant 0 : i32
    %c0_i32_1 = arith.constant 0 : i32
    return %arg0, %c0_i32, %c0_i32_0 : i32, i32, i32
  }
  func.func @transform_14(%arg0: i32) -> (i32, i32, i32) {
    %c0_i32 = arith.constant 0 : i32
    %c0_i32_0 = arith.constant 0 : i32
    %c0_i32_1 = arith.constant 0 : i32
    return %arg0, %c0_i32, %c0_i32_0 : i32, i32, i32
  }
  func.func @transform_15(%arg0: i32) -> (i32, i32, i32) {
    %c0_i32 = arith.constant 0 : i32
    %c0_i32_0 = arith.constant 0 : i32
    %c0_i32_1 = arith.constant 0 : i32
    return %arg0, %c0_i32, %c0_i32_0 : i32, i32, i32
  }
  func.func @transform_16(%arg0: i32) -> (i32, i32, i32) {
    %c0_i32 = arith.constant 0 : i32
    %c0_i32_0 = arith.constant 0 : i32
    %c0_i32_1 = arith.constant 0 : i32
    return %arg0, %c0_i32, %c0_i32_0 : i32, i32, i32
  }
  func.func @transform_17(%arg0: i32) -> (i32, i32, i32) {
    %c0_i32 = arith.constant 0 : i32
    %c0_i32_0 = arith.constant 0 : i32
    %c0_i32_1 = arith.constant 0 : i32
    return %arg0, %c0_i32, %c0_i32_0 : i32, i32, i32
  }
  func.func @transform_18(%arg0: i32) -> (i32, i32, i32) {
    %c0_i32 = arith.constant 0 : i32
    %c0_i32_0 = arith.constant 0 : i32
    %c0_i32_1 = arith.constant 0 : i32
    return %arg0, %c0_i32, %c0_i32_0 : i32, i32, i32
  }
  func.func @transform_19(%arg0: i32) -> (i32, i32, i32) {
    %c0_i32 = arith.constant 0 : i32
    %c0_i32_0 = arith.constant 0 : i32
    %c0_i32_1 = arith.constant 0 : i32
    return %arg0, %c0_i32, %c0_i32_0 : i32, i32, i32
  }
  func.func @transform_20(%arg0: i32) -> (i32, i32, i32) {
    %c0_i32 = arith.constant 0 : i32
    %c0_i32_0 = arith.constant 0 : i32
    %c0_i32_1 = arith.constant 0 : i32
    return %arg0, %c0_i32, %c0_i32_0 : i32, i32, i32
  }
  func.func @transform_21(%arg0: i32) -> (i32, i32) {
    %c0_i32 = arith.constant 0 : i32
    %c0_i32_0 = arith.constant 0 : i32
    %c0_i32_1 = arith.constant 0 : i32
    return %c0_i32, %c0_i32_0 : i32, i32
  }
}

module attributes {stable_mosaic.version = 11 : i64} {
  func.func @_head_kernel(%arg0: i32, %arg1: memref<10x32xf32, #tpu.memory_space<vmem>>, %arg2: memref<1x32xf32, #tpu.memory_space<vmem>>, %arg3: memref<1x32xf32, #tpu.memory_space<vmem>>, %arg4: memref<32x128xbf16, #tpu.memory_space<vmem>>, %arg5: memref<1x128xf32, #tpu.memory_space<vmem>>, %arg6: memref<2x128xf32, #tpu.memory_space<vmem>>, %arg7: memref<2x32xf32, #tpu.memory_space<vmem>>) attributes {dimension_semantics = [#tpu.dimension_semantics<arbitrary>], iteration_bounds = array<i64: 1>, scalar_prefetch = 0 : i64, scratch_operands = 1 : i64, tpu.core_type = #tpu.core_type<tc>, window_params = [{pipeline_mode = #tpu.pipeline_mode<synchronous>, transform_indices = @transform_0, window_bounds = array<i64: 10, 32>}, {pipeline_mode = #tpu.pipeline_mode<synchronous>, transform_indices = @transform_1, window_bounds = array<i64: 1, 32>}, {pipeline_mode = #tpu.pipeline_mode<synchronous>, transform_indices = @transform_2, window_bounds = array<i64: 1, 32>}, {pipeline_mode = #tpu.pipeline_mode<synchronous>, transform_indices = @transform_3, window_bounds = array<i64: 32, 128>}, {pipeline_mode = #tpu.pipeline_mode<synchronous>, transform_indices = @transform_4, window_bounds = array<i64: 1, 128>}, {pipeline_mode = #tpu.pipeline_mode<synchronous>, transform_indices = @transform_5, window_bounds = array<i64: 2, 128>}]} {
    %c0 = arith.constant 0 : index
    %c0_0 = arith.constant 0 : index
    %0 = vector.load %arg1[%c0, %c0_0] : memref<10x32xf32, #tpu.memory_space<vmem>>, vector<10x32xf32>
    %c0_1 = arith.constant 0 : index
    %c0_2 = arith.constant 0 : index
    %1 = vector.load %arg2[%c0_1, %c0_2] : memref<1x32xf32, #tpu.memory_space<vmem>>, vector<1x32xf32>
    %c0_3 = arith.constant 0 : index
    %c0_4 = arith.constant 0 : index
    %2 = vector.load %arg3[%c0_3, %c0_4] : memref<1x32xf32, #tpu.memory_space<vmem>>, vector<1x32xf32>
    %cst = arith.constant dense<0.000000e+00> : vector<10xf32>
    %3 = vector.multi_reduction <add>, %0, %cst [1] : vector<10x32xf32> to vector<10xf32>
    %4 = vector.shape_cast %3 : vector<10xf32> to vector<10x1xf32>
    %cst_5 = arith.constant 3.200000e+01 : f32
    %5 = vector.broadcast %cst_5 : f32 to vector<10x1xf32>
    %6 = arith.divf %4, %5 : vector<10x1xf32>
    %7 = vector.broadcast %6 : vector<10x1xf32> to vector<10x32xf32>
    %8 = arith.subf %0, %7 : vector<10x32xf32>
    %9 = arith.mulf %8, %8 : vector<10x32xf32>
    %cst_6 = arith.constant dense<0.000000e+00> : vector<10xf32>
    %10 = vector.multi_reduction <add>, %9, %cst_6 [1] : vector<10x32xf32> to vector<10xf32>
    %11 = vector.shape_cast %10 : vector<10xf32> to vector<10x1xf32>
    %cst_7 = arith.constant 3.200000e+01 : f32
    %12 = vector.broadcast %cst_7 : f32 to vector<10x1xf32>
    %13 = arith.divf %11, %12 : vector<10x1xf32>
    %14 = vector.broadcast %6 : vector<10x1xf32> to vector<10x32xf32>
    %15 = arith.subf %0, %14 : vector<10x32xf32>
    %cst_8 = arith.constant 9.99999974E-6 : f32
    %16 = vector.broadcast %cst_8 : f32 to vector<10x1xf32>
    %17 = arith.addf %13, %16 : vector<10x1xf32>
    %18 = math.rsqrt %17 : vector<10x1xf32>
    %19 = vector.broadcast %18 : vector<10x1xf32> to vector<10x32xf32>
    %20 = arith.mulf %15, %19 : vector<10x32xf32>
    %21 = vector.broadcast %1 : vector<1x32xf32> to vector<10x32xf32>
    %22 = arith.mulf %20, %21 : vector<10x32xf32>
    %23 = vector.broadcast %2 : vector<1x32xf32> to vector<10x32xf32>
    %24 = arith.addf %22, %23 : vector<10x32xf32>
    %25 = vector.extract_strided_slice %24 {offsets = [0, 0], sizes = [1, 32], strides = [1, 1]} : vector<10x32xf32> to vector<1x32xf32>
    %c0_9 = arith.constant 0 : index
    %c0_10 = arith.constant 0 : index
    %26 = vector.load %arg7[%c0_9, %c0_10] : memref<2x32xf32, #tpu.memory_space<vmem>>, vector<1x32xf32>
    tpu.vector_store %arg7[%c0_9, %c0_10], %25 {strides = array<i32>} : memref<2x32xf32, #tpu.memory_space<vmem>>, vector<1x32xf32>,
    %27 = vector.extract_strided_slice %24 {offsets = [5, 0], sizes = [1, 32], strides = [1, 1]} : vector<10x32xf32> to vector<1x32xf32>
    %c1 = arith.constant 1 : index
    %c0_11 = arith.constant 0 : index
    %28 = vector.load %arg7[%c1, %c0_11] : memref<2x32xf32, #tpu.memory_space<vmem>>, vector<1x32xf32>
    tpu.vector_store %arg7[%c1, %c0_11], %27 {strides = array<i32>} : memref<2x32xf32, #tpu.memory_space<vmem>>, vector<1x32xf32>,
    %c0_12 = arith.constant 0 : index
    %c0_13 = arith.constant 0 : index
    %29 = vector.load %arg7[%c0_12, %c0_13] : memref<2x32xf32, #tpu.memory_space<vmem>>, vector<2x32xf32>
    %30 = arith.truncf %29 : vector<2x32xf32> to vector<2x32xbf16>
    %c0_14 = arith.constant 0 : index
    %c0_15 = arith.constant 0 : index
    %31 = vector.load %arg4[%c0_14, %c0_15] : memref<32x128xbf16, #tpu.memory_space<vmem>>, vector<32x128xbf16>
    %cst_16 = arith.constant dense<0.000000e+00> : vector<2x128xf32>
    %32 = tpu.matmul %30, %31, %cst_16 {dimension_numbers = #tpu.dot_dimension_numbers<[1], [0], [0], [1], [0, 0, 1, 1], [], []>} : vector<2x32xbf16>, vector<32x128xbf16>, vector<2x128xf32> -> vector<2x128xf32>
    %c0_17 = arith.constant 0 : index
    %c0_18 = arith.constant 0 : index
    %33 = vector.load %arg5[%c0_17, %c0_18] : memref<1x128xf32, #tpu.memory_space<vmem>>, vector<1x128xf32>
    %34 = vector.broadcast %33 : vector<1x128xf32> to vector<2x128xf32>
    %35 = arith.addf %32, %34 : vector<2x128xf32>
    %c0_19 = arith.constant 0 : index
    %c0_20 = arith.constant 0 : index
    %36 = vector.load %arg6[%c0_19, %c0_20] : memref<2x128xf32, #tpu.memory_space<vmem>>, vector<2x128xf32>
    tpu.vector_store %arg6[%c0_19, %c0_20], %35 {strides = array<i32>} : memref<2x128xf32, #tpu.memory_space<vmem>>, vector<2x128xf32>,
    return
  }
  func.func @transform_0(%arg0: i32) -> (i32, i32) {
    %c0_i32 = arith.constant 0 : i32
    %c0_i32_0 = arith.constant 0 : i32
    %c0_i32_1 = arith.constant 0 : i32
    return %c0_i32, %c0_i32_0 : i32, i32
  }
  func.func @transform_1(%arg0: i32) -> (i32, i32) {
    %c0_i32 = arith.constant 0 : i32
    %c0_i32_0 = arith.constant 0 : i32
    %c0_i32_1 = arith.constant 0 : i32
    return %c0_i32, %c0_i32_0 : i32, i32
  }
  func.func @transform_2(%arg0: i32) -> (i32, i32) {
    %c0_i32 = arith.constant 0 : i32
    %c0_i32_0 = arith.constant 0 : i32
    %c0_i32_1 = arith.constant 0 : i32
    return %c0_i32, %c0_i32_0 : i32, i32
  }
  func.func @transform_3(%arg0: i32) -> (i32, i32) {
    %c0_i32 = arith.constant 0 : i32
    %c0_i32_0 = arith.constant 0 : i32
    %c0_i32_1 = arith.constant 0 : i32
    return %c0_i32, %c0_i32_0 : i32, i32
  }
  func.func @transform_4(%arg0: i32) -> (i32, i32) {
    %c0_i32 = arith.constant 0 : i32
    %c0_i32_0 = arith.constant 0 : i32
    %c0_i32_1 = arith.constant 0 : i32
    return %c0_i32, %c0_i32_0 : i32, i32
  }
  func.func @transform_5(%arg0: i32) -> (i32, i32) {
    %c0_i32 = arith.constant 0 : i32
    %c0_i32_0 = arith.constant 0 : i32
    %c0_i32_1 = arith.constant 0 : i32
    return %c0_i32, %c0_i32_0 : i32, i32
  }
}

module attributes {stable_mosaic.version = 11 : i64} {
  func.func @_vit_trunk_kernel(%arg0: i32, %arg1: memref<8x192xf32, #tpu.memory_space<vmem>>, %arg2: memref<1x192xf32, #tpu.memory_space<vmem>>, %arg3: memref<1x192xf32, #tpu.memory_space<vmem>>, %arg4: memref<192x32xbf16, #tpu.memory_space<vmem>>, %arg5: memref<1x32xf32, #tpu.memory_space<vmem>>, %arg6: memref<1x32xf32, #tpu.memory_space<vmem>>, %arg7: memref<1x32xf32, #tpu.memory_space<vmem>>, %arg8: memref<1x32xf32, #tpu.memory_space<vmem>>, %arg9: memref<5x32xf32, #tpu.memory_space<vmem>>, %arg10: memref<1x1x32xf32, #tpu.memory_space<vmem>>, %arg11: memref<1x1x32xf32, #tpu.memory_space<vmem>>, %arg12: memref<1x32x96xbf16, #tpu.memory_space<vmem>>, %arg13: memref<1x32x32xbf16, #tpu.memory_space<vmem>>, %arg14: memref<1x1x32xf32, #tpu.memory_space<vmem>>, %arg15: memref<1x1x32xf32, #tpu.memory_space<vmem>>, %arg16: memref<1x1x32xf32, #tpu.memory_space<vmem>>, %arg17: memref<1x32x64xbf16, #tpu.memory_space<vmem>>, %arg18: memref<1x1x64xf32, #tpu.memory_space<vmem>>, %arg19: memref<1x64x32xbf16, #tpu.memory_space<vmem>>, %arg20: memref<1x1x32xf32, #tpu.memory_space<vmem>>, %arg21: memref<10x32xf32, #tpu.memory_space<vmem>>, %arg22: memref<10x32xf32, #tpu.memory_space<vmem>>) attributes {dimension_semantics = [#tpu.dimension_semantics<arbitrary>], iteration_bounds = array<i64: 2>, scalar_prefetch = 0 : i64, scratch_operands = 1 : i64, tpu.core_type = #tpu.core_type<tc>, window_params = [{pipeline_mode = #tpu.pipeline_mode<synchronous>, transform_indices = @transform_0, window_bounds = array<i64: 8, 192>}, {pipeline_mode = #tpu.pipeline_mode<synchronous>, transform_indices = @transform_1, window_bounds = array<i64: 1, 192>}, {pipeline_mode = #tpu.pipeline_mode<synchronous>, transform_indices = @transform_2, window_bounds = array<i64: 1, 192>}, {pipeline_mode = #tpu.pipeline_mode<synchronous>, transform_indices = @transform_3, window_bounds = array<i64: 192, 32>}, {pipeline_mode = #tpu.pipeline_mode<synchronous>, transform_indices = @transform_4, window_bounds = array<i64: 1, 32>}, {pipeline_mode = #tpu.pipeline_mode<synchronous>, transform_indices = @transform_5, window_bounds = array<i64: 1, 32>}, {pipeline_mode = #tpu.pipeline_mode<synchronous>, transform_indices = @transform_6, window_bounds = array<i64: 1, 32>}, {pipeline_mode = #tpu.pipeline_mode<synchronous>, transform_indices = @transform_7, window_bounds = array<i64: 1, 32>}, {pipeline_mode = #tpu.pipeline_mode<synchronous>, transform_indices = @transform_8, window_bounds = array<i64: 5, 32>}, {transform_indices = @transform_9, window_bounds = array<i64: 1, 1, 32>}, {transform_indices = @transform_10, window_bounds = array<i64: 1, 1, 32>}, {transform_indices = @transform_11, window_bounds = array<i64: 1, 32, 96>}, {transform_indices = @transform_12, window_bounds = array<i64: 1, 32, 32>}, {transform_indices = @transform_13, window_bounds = array<i64: 1, 1, 32>}, {transform_indices = @transform_14, window_bounds = array<i64: 1, 1, 32>}, {transform_indices = @transform_15, window_bounds = array<i64: 1, 1, 32>}, {transform_indices = @transform_16, window_bounds = array<i64: 1, 32, 64>}, {transform_indices = @transform_17, window_bounds = array<i64: 1, 1, 64>}, {transform_indices = @transform_18, window_bounds = array<i64: 1, 64, 32>}, {transform_indices = @transform_19, window_bounds = array<i64: 1, 1, 32>}, {pipeline_mode = #tpu.pipeline_mode<synchronous>, transform_indices = @transform_20, window_bounds = array<i64: 10, 32>}]} {
    %c0_i32 = arith.constant 0 : i32
    %0 = arith.cmpi eq, %arg0, %c0_i32 : i32
    %1 = arith.extui %0 : i1 to i32
    %c0_i32_0 = arith.constant 0 : i32
    %2 = arith.cmpi ne, %1, %c0_i32_0 : i32
    scf.if %2 {
      %c0_111 = arith.constant 0 : index
      %c0_112 = arith.constant 0 : index
      %291 = vector.load %arg1[%c0_111, %c0_112] : memref<8x192xf32, #tpu.memory_space<vmem>>, vector<8x192xf32>
      %c0_113 = arith.constant 0 : index
      %c0_114 = arith.constant 0 : index
      %292 = vector.load %arg2[%c0_113, %c0_114] : memref<1x192xf32, #tpu.memory_space<vmem>>, vector<1x192xf32>
      %c0_115 = arith.constant 0 : index
      %c0_116 = arith.constant 0 : index
      %293 = vector.load %arg3[%c0_115, %c0_116] : memref<1x192xf32, #tpu.memory_space<vmem>>, vector<1x192xf32>
      %cst_117 = arith.constant dense<0.000000e+00> : vector<8xf32>
      %294 = vector.multi_reduction <add>, %291, %cst_117 [1] : vector<8x192xf32> to vector<8xf32>
      %295 = vector.shape_cast %294 : vector<8xf32> to vector<8x1xf32>
      %cst_118 = arith.constant 1.920000e+02 : f32
      %296 = vector.broadcast %cst_118 : f32 to vector<8x1xf32>
      %297 = arith.divf %295, %296 : vector<8x1xf32>
      %298 = vector.broadcast %297 : vector<8x1xf32> to vector<8x192xf32>
      %299 = arith.subf %291, %298 : vector<8x192xf32>
      %300 = arith.mulf %299, %299 : vector<8x192xf32>
      %cst_119 = arith.constant dense<0.000000e+00> : vector<8xf32>
      %301 = vector.multi_reduction <add>, %300, %cst_119 [1] : vector<8x192xf32> to vector<8xf32>
      %302 = vector.shape_cast %301 : vector<8xf32> to vector<8x1xf32>
      %cst_120 = arith.constant 1.920000e+02 : f32
      %303 = vector.broadcast %cst_120 : f32 to vector<8x1xf32>
      %304 = arith.divf %302, %303 : vector<8x1xf32>
      %305 = vector.broadcast %297 : vector<8x1xf32> to vector<8x192xf32>
      %306 = arith.subf %291, %305 : vector<8x192xf32>
      %cst_121 = arith.constant 9.99999974E-6 : f32
      %307 = vector.broadcast %cst_121 : f32 to vector<8x1xf32>
      %308 = arith.addf %304, %307 : vector<8x1xf32>
      %309 = math.rsqrt %308 : vector<8x1xf32>
      %310 = vector.broadcast %309 : vector<8x1xf32> to vector<8x192xf32>
      %311 = arith.mulf %306, %310 : vector<8x192xf32>
      %312 = vector.broadcast %292 : vector<1x192xf32> to vector<8x192xf32>
      %313 = arith.mulf %311, %312 : vector<8x192xf32>
      %314 = vector.broadcast %293 : vector<1x192xf32> to vector<8x192xf32>
      %315 = arith.addf %313, %314 : vector<8x192xf32>
      %316 = arith.truncf %315 : vector<8x192xf32> to vector<8x192xbf16>
      %c0_122 = arith.constant 0 : index
      %c0_123 = arith.constant 0 : index
      %317 = vector.load %arg4[%c0_122, %c0_123] : memref<192x32xbf16, #tpu.memory_space<vmem>>, vector<192x32xbf16>
      %cst_124 = arith.constant dense<0.000000e+00> : vector<8x32xf32>
      %318 = tpu.matmul %316, %317, %cst_124 {dimension_numbers = #tpu.dot_dimension_numbers<[1], [0], [0], [1], [0, 0, 1, 1], [], []>} : vector<8x192xbf16>, vector<192x32xbf16>, vector<8x32xf32> -> vector<8x32xf32>
      %c0_125 = arith.constant 0 : index
      %c0_126 = arith.constant 0 : index
      %319 = vector.load %arg5[%c0_125, %c0_126] : memref<1x32xf32, #tpu.memory_space<vmem>>, vector<1x32xf32>
      %320 = vector.broadcast %319 : vector<1x32xf32> to vector<8x32xf32>
      %321 = arith.addf %318, %320 : vector<8x32xf32>
      %c0_127 = arith.constant 0 : index
      %c0_128 = arith.constant 0 : index
      %322 = vector.load %arg6[%c0_127, %c0_128] : memref<1x32xf32, #tpu.memory_space<vmem>>, vector<1x32xf32>
      %c0_129 = arith.constant 0 : index
      %c0_130 = arith.constant 0 : index
      %323 = vector.load %arg7[%c0_129, %c0_130] : memref<1x32xf32, #tpu.memory_space<vmem>>, vector<1x32xf32>
      %cst_131 = arith.constant dense<0.000000e+00> : vector<8xf32>
      %324 = vector.multi_reduction <add>, %321, %cst_131 [1] : vector<8x32xf32> to vector<8xf32>
      %325 = vector.shape_cast %324 : vector<8xf32> to vector<8x1xf32>
      %cst_132 = arith.constant 3.200000e+01 : f32
      %326 = vector.broadcast %cst_132 : f32 to vector<8x1xf32>
      %327 = arith.divf %325, %326 : vector<8x1xf32>
      %328 = vector.broadcast %327 : vector<8x1xf32> to vector<8x32xf32>
      %329 = arith.subf %321, %328 : vector<8x32xf32>
      %330 = arith.mulf %329, %329 : vector<8x32xf32>
      %cst_133 = arith.constant dense<0.000000e+00> : vector<8xf32>
      %331 = vector.multi_reduction <add>, %330, %cst_133 [1] : vector<8x32xf32> to vector<8xf32>
      %332 = vector.shape_cast %331 : vector<8xf32> to vector<8x1xf32>
      %cst_134 = arith.constant 3.200000e+01 : f32
      %333 = vector.broadcast %cst_134 : f32 to vector<8x1xf32>
      %334 = arith.divf %332, %333 : vector<8x1xf32>
      %335 = vector.broadcast %327 : vector<8x1xf32> to vector<8x32xf32>
      %336 = arith.subf %321, %335 : vector<8x32xf32>
      %cst_135 = arith.constant 9.99999974E-6 : f32
      %337 = vector.broadcast %cst_135 : f32 to vector<8x1xf32>
      %338 = arith.addf %334, %337 : vector<8x1xf32>
      %339 = math.rsqrt %338 : vector<8x1xf32>
      %340 = vector.broadcast %339 : vector<8x1xf32> to vector<8x32xf32>
      %341 = arith.mulf %336, %340 : vector<8x32xf32>
      %342 = vector.broadcast %322 : vector<1x32xf32> to vector<8x32xf32>
      %343 = arith.mulf %341, %342 : vector<8x32xf32>
      %344 = vector.broadcast %323 : vector<1x32xf32> to vector<8x32xf32>
      %345 = arith.addf %343, %344 : vector<8x32xf32>
      %c0_136 = arith.constant 0 : index
      %c0_137 = arith.constant 0 : index
      %346 = vector.load %arg8[%c0_136, %c0_137] : memref<1x32xf32, #tpu.memory_space<vmem>>, vector<1x32xf32>
      %c0_138 = arith.constant 0 : index
      %c0_139 = arith.constant 0 : index
      %347 = vector.load %arg9[%c0_138, %c0_139] : memref<5x32xf32, #tpu.memory_space<vmem>>, vector<1x32xf32>
      %348 = arith.addf %346, %347 : vector<1x32xf32>
      %c1 = arith.constant 1 : index
      %c0_140 = arith.constant 0 : index
      %349 = vector.load %arg9[%c1, %c0_140] : memref<5x32xf32, #tpu.memory_space<vmem>>, vector<4x32xf32>
      %c0_141 = arith.constant 0 : index
      %c0_142 = arith.constant 0 : index
      %350 = vector.load %arg21[%c0_141, %c0_142] : memref<10x32xf32, #tpu.memory_space<vmem>>, vector<1x32xf32>
      tpu.vector_store %arg21[%c0_141, %c0_142], %348 {strides = array<i32>} : memref<10x32xf32, #tpu.memory_space<vmem>>, vector<1x32xf32>,
      %351 = vector.extract_strided_slice %345 {offsets = [0, 0], sizes = [4, 32], strides = [1, 1]} : vector<8x32xf32> to vector<4x32xf32>
      %352 = arith.addf %351, %349 : vector<4x32xf32>
      %c1_143 = arith.constant 1 : index
      %c0_144 = arith.constant 0 : index
      %353 = vector.load %arg21[%c1_143, %c0_144] : memref<10x32xf32, #tpu.memory_space<vmem>>, vector<4x32xf32>
      tpu.vector_store %arg21[%c1_143, %c0_144], %352 {strides = array<i32>} : memref<10x32xf32, #tpu.memory_space<vmem>>, vector<4x32xf32>,
      %c5_145 = arith.constant 5 : index
      %c0_146 = arith.constant 0 : index
      %354 = vector.load %arg21[%c5_145, %c0_146] : memref<10x32xf32, #tpu.memory_space<vmem>>, vector<1x32xf32>
      tpu.vector_store %arg21[%c5_145, %c0_146], %348 {strides = array<i32>} : memref<10x32xf32, #tpu.memory_space<vmem>>, vector<1x32xf32>,
      %355 = vector.extract_strided_slice %345 {offsets = [4, 0], sizes = [4, 32], strides = [1, 1]} : vector<8x32xf32> to vector<4x32xf32>
      %356 = arith.addf %355, %349 : vector<4x32xf32>
      %c6 = arith.constant 6 : index
      %c0_147 = arith.constant 0 : index
      %357 = vector.load %arg21[%c6, %c0_147] : memref<10x32xf32, #tpu.memory_space<vmem>>, vector<4x32xf32>
      tpu.vector_store %arg21[%c6, %c0_147], %356 {strides = array<i32>} : memref<10x32xf32, #tpu.memory_space<vmem>>, vector<4x32xf32>,
    } else {
    }
    %c0 = arith.constant 0 : index
    %c0_1 = arith.constant 0 : index
    %3 = vector.load %arg21[%c0, %c0_1] : memref<10x32xf32, #tpu.memory_space<vmem>>, vector<10x32xf32>
    %c0_2 = arith.constant 0 : index
    %c0_3 = arith.constant 0 : index
    %c0_4 = arith.constant 0 : index
    %4 = vector.load %arg10[%c0_2, %c0_3, %c0_4] : memref<1x1x32xf32, #tpu.memory_space<vmem>>, vector<1x1x32xf32>
    %5 = vector.shape_cast %4 : vector<1x1x32xf32> to vector<1x32xf32>
    %c0_5 = arith.constant 0 : index
    %c0_6 = arith.constant 0 : index
    %c0_7 = arith.constant 0 : index
    %6 = vector.load %arg11[%c0_5, %c0_6, %c0_7] : memref<1x1x32xf32, #tpu.memory_space<vmem>>, vector<1x1x32xf32>
    %7 = vector.shape_cast %6 : vector<1x1x32xf32> to vector<1x32xf32>
    %cst = arith.constant dense<0.000000e+00> : vector<10xf32>
    %8 = vector.multi_reduction <add>, %3, %cst [1] : vector<10x32xf32> to vector<10xf32>
    %9 = vector.shape_cast %8 : vector<10xf32> to vector<10x1xf32>
    %cst_8 = arith.constant 3.200000e+01 : f32
    %10 = vector.broadcast %cst_8 : f32 to vector<10x1xf32>
    %11 = arith.divf %9, %10 : vector<10x1xf32>
    %12 = vector.broadcast %11 : vector<10x1xf32> to vector<10x32xf32>
    %13 = arith.subf %3, %12 : vector<10x32xf32>
    %14 = arith.mulf %13, %13 : vector<10x32xf32>
    %cst_9 = arith.constant dense<0.000000e+00> : vector<10xf32>
    %15 = vector.multi_reduction <add>, %14, %cst_9 [1] : vector<10x32xf32> to vector<10xf32>
    %16 = vector.shape_cast %15 : vector<10xf32> to vector<10x1xf32>
    %cst_10 = arith.constant 3.200000e+01 : f32
    %17 = vector.broadcast %cst_10 : f32 to vector<10x1xf32>
    %18 = arith.divf %16, %17 : vector<10x1xf32>
    %19 = vector.broadcast %11 : vector<10x1xf32> to vector<10x32xf32>
    %20 = arith.subf %3, %19 : vector<10x32xf32>
    %cst_11 = arith.constant 9.99999974E-6 : f32
    %21 = vector.broadcast %cst_11 : f32 to vector<10x1xf32>
    %22 = arith.addf %18, %21 : vector<10x1xf32>
    %23 = math.rsqrt %22 : vector<10x1xf32>
    %24 = vector.broadcast %23 : vector<10x1xf32> to vector<10x32xf32>
    %25 = arith.mulf %20, %24 : vector<10x32xf32>
    %26 = vector.broadcast %5 : vector<1x32xf32> to vector<10x32xf32>
    %27 = arith.mulf %25, %26 : vector<10x32xf32>
    %28 = vector.broadcast %7 : vector<1x32xf32> to vector<10x32xf32>
    %29 = arith.addf %27, %28 : vector<10x32xf32>
    %30 = arith.truncf %29 : vector<10x32xf32> to vector<10x32xbf16>
    %c0_12 = arith.constant 0 : index
    %c0_13 = arith.constant 0 : index
    %c0_14 = arith.constant 0 : index
    %31 = vector.load %arg12[%c0_12, %c0_13, %c0_14] : memref<1x32x96xbf16, #tpu.memory_space<vmem>>, vector<1x32x96xbf16>
    %32 = vector.shape_cast %31 : vector<1x32x96xbf16> to vector<32x96xbf16>
    %cst_15 = arith.constant dense<0.000000e+00> : vector<10x96xf32>
    %33 = tpu.matmul %30, %32, %cst_15 {dimension_numbers = #tpu.dot_dimension_numbers<[1], [0], [0], [1], [0, 0, 1, 1], [], []>} : vector<10x32xbf16>, vector<32x96xbf16>, vector<10x96xf32> -> vector<10x96xf32>
    %34 = vector.extract_strided_slice %33 {offsets = [0, 0], sizes = [10, 32], strides = [1, 1]} : vector<10x96xf32> to vector<10x32xf32>
    %35 = vector.extract_strided_slice %33 {offsets = [0, 32], sizes = [10, 32], strides = [1, 1]} : vector<10x96xf32> to vector<10x32xf32>
    %36 = vector.extract_strided_slice %33 {offsets = [0, 64], sizes = [10, 32], strides = [1, 1]} : vector<10x96xf32> to vector<10x32xf32>
    %37 = vector.extract_strided_slice %34 {offsets = [0, 0], sizes = [5, 8], strides = [1, 1]} : vector<10x32xf32> to vector<5x8xf32>
    %38 = arith.truncf %37 : vector<5x8xf32> to vector<5x8xbf16>
    %39 = vector.extract_strided_slice %35 {offsets = [0, 0], sizes = [5, 8], strides = [1, 1]} : vector<10x32xf32> to vector<5x8xf32>
    %40 = arith.truncf %39 : vector<5x8xf32> to vector<5x8xbf16>
    %41 = vector.extract_strided_slice %36 {offsets = [0, 0], sizes = [5, 8], strides = [1, 1]} : vector<10x32xf32> to vector<5x8xf32>
    %42 = arith.truncf %41 : vector<5x8xf32> to vector<5x8xbf16>
    %cst_16 = arith.constant dense<0.000000e+00> : vector<5x5xf32>
    %43 = tpu.matmul %38, %40, %cst_16 {dimension_numbers = #tpu.dot_dimension_numbers<[1], [1], [0], [0], [0, 0, 1, 0], [], []>} : vector<5x8xbf16>, vector<5x8xbf16>, vector<5x5xf32> -> vector<5x5xf32>
    %cst_17 = arith.constant dense<0xFF800000> : vector<5xf32>
    %44 = vector.multi_reduction <maximumf>, %43, %cst_17 [1] : vector<5x5xf32> to vector<5xf32>
    %45 = vector.shape_cast %44 : vector<5xf32> to vector<5x1xf32>
    %46 = vector.broadcast %45 : vector<5x1xf32> to vector<5x5xf32>
    %47 = arith.subf %43, %46 : vector<5x5xf32>
    %48 = math.exp %47 : vector<5x5xf32>
    %cst_18 = arith.constant dense<0.000000e+00> : vector<5xf32>
    %49 = vector.multi_reduction <add>, %48, %cst_18 [1] : vector<5x5xf32> to vector<5xf32>
    %50 = vector.shape_cast %49 : vector<5xf32> to vector<5x1xf32>
    %51 = tpu.reciprocal %50 {approx = true} : vector<5x1xf32> -> vector<5x1xf32>
    %52 = vector.broadcast %51 : vector<5x1xf32> to vector<5x5xf32>
    %53 = arith.mulf %48, %52 : vector<5x5xf32>
    %54 = arith.truncf %53 : vector<5x5xf32> to vector<5x5xbf16>
    %cst_19 = arith.constant dense<0.000000e+00> : vector<5x8xf32>
    %55 = tpu.matmul %54, %42, %cst_19 {dimension_numbers = #tpu.dot_dimension_numbers<[1], [0], [0], [1], [0, 0, 1, 1], [], []>} : vector<5x5xbf16>, vector<5x8xbf16>, vector<5x8xf32> -> vector<5x8xf32>
    %c0_20 = arith.constant 0 : index
    %c0_21 = arith.constant 0 : index
    %56 = vector.load %arg22[%c0_20, %c0_21] : memref<10x32xf32, #tpu.memory_space<vmem>>, vector<5x8xf32>
    tpu.vector_store %arg22[%c0_20, %c0_21], %55 {strides = array<i32>} : memref<10x32xf32, #tpu.memory_space<vmem>>, vector<5x8xf32>,
    %57 = vector.extract_strided_slice %34 {offsets = [0, 8], sizes = [5, 8], strides = [1, 1]} : vector<10x32xf32> to vector<5x8xf32>
    %58 = arith.truncf %57 : vector<5x8xf32> to vector<5x8xbf16>
    %59 = vector.extract_strided_slice %35 {offsets = [0, 8], sizes = [5, 8], strides = [1, 1]} : vector<10x32xf32> to vector<5x8xf32>
    %60 = arith.truncf %59 : vector<5x8xf32> to vector<5x8xbf16>
    %61 = vector.extract_strided_slice %36 {offsets = [0, 8], sizes = [5, 8], strides = [1, 1]} : vector<10x32xf32> to vector<5x8xf32>
    %62 = arith.truncf %61 : vector<5x8xf32> to vector<5x8xbf16>
    %cst_22 = arith.constant dense<0.000000e+00> : vector<5x5xf32>
    %63 = tpu.matmul %58, %60, %cst_22 {dimension_numbers = #tpu.dot_dimension_numbers<[1], [1], [0], [0], [0, 0, 1, 0], [], []>} : vector<5x8xbf16>, vector<5x8xbf16>, vector<5x5xf32> -> vector<5x5xf32>
    %cst_23 = arith.constant dense<0xFF800000> : vector<5xf32>
    %64 = vector.multi_reduction <maximumf>, %63, %cst_23 [1] : vector<5x5xf32> to vector<5xf32>
    %65 = vector.shape_cast %64 : vector<5xf32> to vector<5x1xf32>
    %66 = vector.broadcast %65 : vector<5x1xf32> to vector<5x5xf32>
    %67 = arith.subf %63, %66 : vector<5x5xf32>
    %68 = math.exp %67 : vector<5x5xf32>
    %cst_24 = arith.constant dense<0.000000e+00> : vector<5xf32>
    %69 = vector.multi_reduction <add>, %68, %cst_24 [1] : vector<5x5xf32> to vector<5xf32>
    %70 = vector.shape_cast %69 : vector<5xf32> to vector<5x1xf32>
    %71 = tpu.reciprocal %70 {approx = true} : vector<5x1xf32> -> vector<5x1xf32>
    %72 = vector.broadcast %71 : vector<5x1xf32> to vector<5x5xf32>
    %73 = arith.mulf %68, %72 : vector<5x5xf32>
    %74 = arith.truncf %73 : vector<5x5xf32> to vector<5x5xbf16>
    %cst_25 = arith.constant dense<0.000000e+00> : vector<5x8xf32>
    %75 = tpu.matmul %74, %62, %cst_25 {dimension_numbers = #tpu.dot_dimension_numbers<[1], [0], [0], [1], [0, 0, 1, 1], [], []>} : vector<5x5xbf16>, vector<5x8xbf16>, vector<5x8xf32> -> vector<5x8xf32>
    %c0_26 = arith.constant 0 : index
    %c8 = arith.constant 8 : index
    %76 = vector.load %arg22[%c0_26, %c8] : memref<10x32xf32, #tpu.memory_space<vmem>>, vector<5x8xf32>
    tpu.vector_store %arg22[%c0_26, %c8], %75 {strides = array<i32>} : memref<10x32xf32, #tpu.memory_space<vmem>>, vector<5x8xf32>,
    %77 = vector.extract_strided_slice %34 {offsets = [0, 16], sizes = [5, 8], strides = [1, 1]} : vector<10x32xf32> to vector<5x8xf32>
    %78 = arith.truncf %77 : vector<5x8xf32> to vector<5x8xbf16>
    %79 = vector.extract_strided_slice %35 {offsets = [0, 16], sizes = [5, 8], strides = [1, 1]} : vector<10x32xf32> to vector<5x8xf32>
    %80 = arith.truncf %79 : vector<5x8xf32> to vector<5x8xbf16>
    %81 = vector.extract_strided_slice %36 {offsets = [0, 16], sizes = [5, 8], strides = [1, 1]} : vector<10x32xf32> to vector<5x8xf32>
    %82 = arith.truncf %81 : vector<5x8xf32> to vector<5x8xbf16>
    %cst_27 = arith.constant dense<0.000000e+00> : vector<5x5xf32>
    %83 = tpu.matmul %78, %80, %cst_27 {dimension_numbers = #tpu.dot_dimension_numbers<[1], [1], [0], [0], [0, 0, 1, 0], [], []>} : vector<5x8xbf16>, vector<5x8xbf16>, vector<5x5xf32> -> vector<5x5xf32>
    %cst_28 = arith.constant dense<0xFF800000> : vector<5xf32>
    %84 = vector.multi_reduction <maximumf>, %83, %cst_28 [1] : vector<5x5xf32> to vector<5xf32>
    %85 = vector.shape_cast %84 : vector<5xf32> to vector<5x1xf32>
    %86 = vector.broadcast %85 : vector<5x1xf32> to vector<5x5xf32>
    %87 = arith.subf %83, %86 : vector<5x5xf32>
    %88 = math.exp %87 : vector<5x5xf32>
    %cst_29 = arith.constant dense<0.000000e+00> : vector<5xf32>
    %89 = vector.multi_reduction <add>, %88, %cst_29 [1] : vector<5x5xf32> to vector<5xf32>
    %90 = vector.shape_cast %89 : vector<5xf32> to vector<5x1xf32>
    %91 = tpu.reciprocal %90 {approx = true} : vector<5x1xf32> -> vector<5x1xf32>
    %92 = vector.broadcast %91 : vector<5x1xf32> to vector<5x5xf32>
    %93 = arith.mulf %88, %92 : vector<5x5xf32>
    %94 = arith.truncf %93 : vector<5x5xf32> to vector<5x5xbf16>
    %cst_30 = arith.constant dense<0.000000e+00> : vector<5x8xf32>
    %95 = tpu.matmul %94, %82, %cst_30 {dimension_numbers = #tpu.dot_dimension_numbers<[1], [0], [0], [1], [0, 0, 1, 1], [], []>} : vector<5x5xbf16>, vector<5x8xbf16>, vector<5x8xf32> -> vector<5x8xf32>
    %c0_31 = arith.constant 0 : index
    %c16 = arith.constant 16 : index
    %96 = vector.load %arg22[%c0_31, %c16] : memref<10x32xf32, #tpu.memory_space<vmem>>, vector<5x8xf32>
    tpu.vector_store %arg22[%c0_31, %c16], %95 {strides = array<i32>} : memref<10x32xf32, #tpu.memory_space<vmem>>, vector<5x8xf32>,
    %97 = vector.extract_strided_slice %34 {offsets = [0, 24], sizes = [5, 8], strides = [1, 1]} : vector<10x32xf32> to vector<5x8xf32>
    %98 = arith.truncf %97 : vector<5x8xf32> to vector<5x8xbf16>
    %99 = vector.extract_strided_slice %35 {offsets = [0, 24], sizes = [5, 8], strides = [1, 1]} : vector<10x32xf32> to vector<5x8xf32>
    %100 = arith.truncf %99 : vector<5x8xf32> to vector<5x8xbf16>
    %101 = vector.extract_strided_slice %36 {offsets = [0, 24], sizes = [5, 8], strides = [1, 1]} : vector<10x32xf32> to vector<5x8xf32>
    %102 = arith.truncf %101 : vector<5x8xf32> to vector<5x8xbf16>
    %cst_32 = arith.constant dense<0.000000e+00> : vector<5x5xf32>
    %103 = tpu.matmul %98, %100, %cst_32 {dimension_numbers = #tpu.dot_dimension_numbers<[1], [1], [0], [0], [0, 0, 1, 0], [], []>} : vector<5x8xbf16>, vector<5x8xbf16>, vector<5x5xf32> -> vector<5x5xf32>
    %cst_33 = arith.constant dense<0xFF800000> : vector<5xf32>
    %104 = vector.multi_reduction <maximumf>, %103, %cst_33 [1] : vector<5x5xf32> to vector<5xf32>
    %105 = vector.shape_cast %104 : vector<5xf32> to vector<5x1xf32>
    %106 = vector.broadcast %105 : vector<5x1xf32> to vector<5x5xf32>
    %107 = arith.subf %103, %106 : vector<5x5xf32>
    %108 = math.exp %107 : vector<5x5xf32>
    %cst_34 = arith.constant dense<0.000000e+00> : vector<5xf32>
    %109 = vector.multi_reduction <add>, %108, %cst_34 [1] : vector<5x5xf32> to vector<5xf32>
    %110 = vector.shape_cast %109 : vector<5xf32> to vector<5x1xf32>
    %111 = tpu.reciprocal %110 {approx = true} : vector<5x1xf32> -> vector<5x1xf32>
    %112 = vector.broadcast %111 : vector<5x1xf32> to vector<5x5xf32>
    %113 = arith.mulf %108, %112 : vector<5x5xf32>
    %114 = arith.truncf %113 : vector<5x5xf32> to vector<5x5xbf16>
    %cst_35 = arith.constant dense<0.000000e+00> : vector<5x8xf32>
    %115 = tpu.matmul %114, %102, %cst_35 {dimension_numbers = #tpu.dot_dimension_numbers<[1], [0], [0], [1], [0, 0, 1, 1], [], []>} : vector<5x5xbf16>, vector<5x8xbf16>, vector<5x8xf32> -> vector<5x8xf32>
    %c0_36 = arith.constant 0 : index
    %c24 = arith.constant 24 : index
    %116 = vector.load %arg22[%c0_36, %c24] : memref<10x32xf32, #tpu.memory_space<vmem>>, vector<5x8xf32>
    tpu.vector_store %arg22[%c0_36, %c24], %115 {strides = array<i32>} : memref<10x32xf32, #tpu.memory_space<vmem>>, vector<5x8xf32>,
    %117 = vector.extract_strided_slice %34 {offsets = [5, 0], sizes = [5, 8], strides = [1, 1]} : vector<10x32xf32> to vector<5x8xf32>
    %118 = arith.truncf %117 : vector<5x8xf32> to vector<5x8xbf16>
    %119 = vector.extract_strided_slice %35 {offsets = [5, 0], sizes = [5, 8], strides = [1, 1]} : vector<10x32xf32> to vector<5x8xf32>
    %120 = arith.truncf %119 : vector<5x8xf32> to vector<5x8xbf16>
    %121 = vector.extract_strided_slice %36 {offsets = [5, 0], sizes = [5, 8], strides = [1, 1]} : vector<10x32xf32> to vector<5x8xf32>
    %122 = arith.truncf %121 : vector<5x8xf32> to vector<5x8xbf16>
    %cst_37 = arith.constant dense<0.000000e+00> : vector<5x5xf32>
    %123 = tpu.matmul %118, %120, %cst_37 {dimension_numbers = #tpu.dot_dimension_numbers<[1], [1], [0], [0], [0, 0, 1, 0], [], []>} : vector<5x8xbf16>, vector<5x8xbf16>, vector<5x5xf32> -> vector<5x5xf32>
    %cst_38 = arith.constant dense<0xFF800000> : vector<5xf32>
    %124 = vector.multi_reduction <maximumf>, %123, %cst_38 [1] : vector<5x5xf32> to vector<5xf32>
    %125 = vector.shape_cast %124 : vector<5xf32> to vector<5x1xf32>
    %126 = vector.broadcast %125 : vector<5x1xf32> to vector<5x5xf32>
    %127 = arith.subf %123, %126 : vector<5x5xf32>
    %128 = math.exp %127 : vector<5x5xf32>
    %cst_39 = arith.constant dense<0.000000e+00> : vector<5xf32>
    %129 = vector.multi_reduction <add>, %128, %cst_39 [1] : vector<5x5xf32> to vector<5xf32>
    %130 = vector.shape_cast %129 : vector<5xf32> to vector<5x1xf32>
    %131 = tpu.reciprocal %130 {approx = true} : vector<5x1xf32> -> vector<5x1xf32>
    %132 = vector.broadcast %131 : vector<5x1xf32> to vector<5x5xf32>
    %133 = arith.mulf %128, %132 : vector<5x5xf32>
    %134 = arith.truncf %133 : vector<5x5xf32> to vector<5x5xbf16>
    %cst_40 = arith.constant dense<0.000000e+00> : vector<5x8xf32>
    %135 = tpu.matmul %134, %122, %cst_40 {dimension_numbers = #tpu.dot_dimension_numbers<[1], [0], [0], [1], [0, 0, 1, 1], [], []>} : vector<5x5xbf16>, vector<5x8xbf16>, vector<5x8xf32> -> vector<5x8xf32>
    %c5 = arith.constant 5 : index
    %c0_41 = arith.constant 0 : index
    %136 = vector.load %arg22[%c5, %c0_41] : memref<10x32xf32, #tpu.memory_space<vmem>>, vector<5x8xf32>
    tpu.vector_store %arg22[%c5, %c0_41], %135 {strides = array<i32>} : memref<10x32xf32, #tpu.memory_space<vmem>>, vector<5x8xf32>,
    %137 = vector.extract_strided_slice %34 {offsets = [5, 8], sizes = [5, 8], strides = [1, 1]} : vector<10x32xf32> to vector<5x8xf32>
    %138 = arith.truncf %137 : vector<5x8xf32> to vector<5x8xbf16>
    %139 = vector.extract_strided_slice %35 {offsets = [5, 8], sizes = [5, 8], strides = [1, 1]} : vector<10x32xf32> to vector<5x8xf32>
    %140 = arith.truncf %139 : vector<5x8xf32> to vector<5x8xbf16>
    %141 = vector.extract_strided_slice %36 {offsets = [5, 8], sizes = [5, 8], strides = [1, 1]} : vector<10x32xf32> to vector<5x8xf32>
    %142 = arith.truncf %141 : vector<5x8xf32> to vector<5x8xbf16>
    %cst_42 = arith.constant dense<0.000000e+00> : vector<5x5xf32>
    %143 = tpu.matmul %138, %140, %cst_42 {dimension_numbers = #tpu.dot_dimension_numbers<[1], [1], [0], [0], [0, 0, 1, 0], [], []>} : vector<5x8xbf16>, vector<5x8xbf16>, vector<5x5xf32> -> vector<5x5xf32>
    %cst_43 = arith.constant dense<0xFF800000> : vector<5xf32>
    %144 = vector.multi_reduction <maximumf>, %143, %cst_43 [1] : vector<5x5xf32> to vector<5xf32>
    %145 = vector.shape_cast %144 : vector<5xf32> to vector<5x1xf32>
    %146 = vector.broadcast %145 : vector<5x1xf32> to vector<5x5xf32>
    %147 = arith.subf %143, %146 : vector<5x5xf32>
    %148 = math.exp %147 : vector<5x5xf32>
    %cst_44 = arith.constant dense<0.000000e+00> : vector<5xf32>
    %149 = vector.multi_reduction <add>, %148, %cst_44 [1] : vector<5x5xf32> to vector<5xf32>
    %150 = vector.shape_cast %149 : vector<5xf32> to vector<5x1xf32>
    %151 = tpu.reciprocal %150 {approx = true} : vector<5x1xf32> -> vector<5x1xf32>
    %152 = vector.broadcast %151 : vector<5x1xf32> to vector<5x5xf32>
    %153 = arith.mulf %148, %152 : vector<5x5xf32>
    %154 = arith.truncf %153 : vector<5x5xf32> to vector<5x5xbf16>
    %cst_45 = arith.constant dense<0.000000e+00> : vector<5x8xf32>
    %155 = tpu.matmul %154, %142, %cst_45 {dimension_numbers = #tpu.dot_dimension_numbers<[1], [0], [0], [1], [0, 0, 1, 1], [], []>} : vector<5x5xbf16>, vector<5x8xbf16>, vector<5x8xf32> -> vector<5x8xf32>
    %c5_46 = arith.constant 5 : index
    %c8_47 = arith.constant 8 : index
    %156 = vector.load %arg22[%c5_46, %c8_47] : memref<10x32xf32, #tpu.memory_space<vmem>>, vector<5x8xf32>
    tpu.vector_store %arg22[%c5_46, %c8_47], %155 {strides = array<i32>} : memref<10x32xf32, #tpu.memory_space<vmem>>, vector<5x8xf32>,
    %157 = vector.extract_strided_slice %34 {offsets = [5, 16], sizes = [5, 8], strides = [1, 1]} : vector<10x32xf32> to vector<5x8xf32>
    %158 = arith.truncf %157 : vector<5x8xf32> to vector<5x8xbf16>
    %159 = vector.extract_strided_slice %35 {offsets = [5, 16], sizes = [5, 8], strides = [1, 1]} : vector<10x32xf32> to vector<5x8xf32>
    %160 = arith.truncf %159 : vector<5x8xf32> to vector<5x8xbf16>
    %161 = vector.extract_strided_slice %36 {offsets = [5, 16], sizes = [5, 8], strides = [1, 1]} : vector<10x32xf32> to vector<5x8xf32>
    %162 = arith.truncf %161 : vector<5x8xf32> to vector<5x8xbf16>
    %cst_48 = arith.constant dense<0.000000e+00> : vector<5x5xf32>
    %163 = tpu.matmul %158, %160, %cst_48 {dimension_numbers = #tpu.dot_dimension_numbers<[1], [1], [0], [0], [0, 0, 1, 0], [], []>} : vector<5x8xbf16>, vector<5x8xbf16>, vector<5x5xf32> -> vector<5x5xf32>
    %cst_49 = arith.constant dense<0xFF800000> : vector<5xf32>
    %164 = vector.multi_reduction <maximumf>, %163, %cst_49 [1] : vector<5x5xf32> to vector<5xf32>
    %165 = vector.shape_cast %164 : vector<5xf32> to vector<5x1xf32>
    %166 = vector.broadcast %165 : vector<5x1xf32> to vector<5x5xf32>
    %167 = arith.subf %163, %166 : vector<5x5xf32>
    %168 = math.exp %167 : vector<5x5xf32>
    %cst_50 = arith.constant dense<0.000000e+00> : vector<5xf32>
    %169 = vector.multi_reduction <add>, %168, %cst_50 [1] : vector<5x5xf32> to vector<5xf32>
    %170 = vector.shape_cast %169 : vector<5xf32> to vector<5x1xf32>
    %171 = tpu.reciprocal %170 {approx = true} : vector<5x1xf32> -> vector<5x1xf32>
    %172 = vector.broadcast %171 : vector<5x1xf32> to vector<5x5xf32>
    %173 = arith.mulf %168, %172 : vector<5x5xf32>
    %174 = arith.truncf %173 : vector<5x5xf32> to vector<5x5xbf16>
    %cst_51 = arith.constant dense<0.000000e+00> : vector<5x8xf32>
    %175 = tpu.matmul %174, %162, %cst_51 {dimension_numbers = #tpu.dot_dimension_numbers<[1], [0], [0], [1], [0, 0, 1, 1], [], []>} : vector<5x5xbf16>, vector<5x8xbf16>, vector<5x8xf32> -> vector<5x8xf32>
    %c5_52 = arith.constant 5 : index
    %c16_53 = arith.constant 16 : index
    %176 = vector.load %arg22[%c5_52, %c16_53] : memref<10x32xf32, #tpu.memory_space<vmem>>, vector<5x8xf32>
    tpu.vector_store %arg22[%c5_52, %c16_53], %175 {strides = array<i32>} : memref<10x32xf32, #tpu.memory_space<vmem>>, vector<5x8xf32>,
    %177 = vector.extract_strided_slice %34 {offsets = [5, 24], sizes = [5, 8], strides = [1, 1]} : vector<10x32xf32> to vector<5x8xf32>
    %178 = arith.truncf %177 : vector<5x8xf32> to vector<5x8xbf16>
    %179 = vector.extract_strided_slice %35 {offsets = [5, 24], sizes = [5, 8], strides = [1, 1]} : vector<10x32xf32> to vector<5x8xf32>
    %180 = arith.truncf %179 : vector<5x8xf32> to vector<5x8xbf16>
    %181 = vector.extract_strided_slice %36 {offsets = [5, 24], sizes = [5, 8], strides = [1, 1]} : vector<10x32xf32> to vector<5x8xf32>
    %182 = arith.truncf %181 : vector<5x8xf32> to vector<5x8xbf16>
    %cst_54 = arith.constant dense<0.000000e+00> : vector<5x5xf32>
    %183 = tpu.matmul %178, %180, %cst_54 {dimension_numbers = #tpu.dot_dimension_numbers<[1], [1], [0], [0], [0, 0, 1, 0], [], []>} : vector<5x8xbf16>, vector<5x8xbf16>, vector<5x5xf32> -> vector<5x5xf32>
    %cst_55 = arith.constant dense<0xFF800000> : vector<5xf32>
    %184 = vector.multi_reduction <maximumf>, %183, %cst_55 [1] : vector<5x5xf32> to vector<5xf32>
    %185 = vector.shape_cast %184 : vector<5xf32> to vector<5x1xf32>
    %186 = vector.broadcast %185 : vector<5x1xf32> to vector<5x5xf32>
    %187 = arith.subf %183, %186 : vector<5x5xf32>
    %188 = math.exp %187 : vector<5x5xf32>
    %cst_56 = arith.constant dense<0.000000e+00> : vector<5xf32>
    %189 = vector.multi_reduction <add>, %188, %cst_56 [1] : vector<5x5xf32> to vector<5xf32>
    %190 = vector.shape_cast %189 : vector<5xf32> to vector<5x1xf32>
    %191 = tpu.reciprocal %190 {approx = true} : vector<5x1xf32> -> vector<5x1xf32>
    %192 = vector.broadcast %191 : vector<5x1xf32> to vector<5x5xf32>
    %193 = arith.mulf %188, %192 : vector<5x5xf32>
    %194 = arith.truncf %193 : vector<5x5xf32> to vector<5x5xbf16>
    %cst_57 = arith.constant dense<0.000000e+00> : vector<5x8xf32>
    %195 = tpu.matmul %194, %182, %cst_57 {dimension_numbers = #tpu.dot_dimension_numbers<[1], [0], [0], [1], [0, 0, 1, 1], [], []>} : vector<5x5xbf16>, vector<5x8xbf16>, vector<5x8xf32> -> vector<5x8xf32>
    %c5_58 = arith.constant 5 : index
    %c24_59 = arith.constant 24 : index
    %196 = vector.load %arg22[%c5_58, %c24_59] : memref<10x32xf32, #tpu.memory_space<vmem>>, vector<5x8xf32>
    tpu.vector_store %arg22[%c5_58, %c24_59], %195 {strides = array<i32>} : memref<10x32xf32, #tpu.memory_space<vmem>>, vector<5x8xf32>,
    %c0_60 = arith.constant 0 : index
    %c0_61 = arith.constant 0 : index
    %197 = vector.load %arg22[%c0_60, %c0_61] : memref<10x32xf32, #tpu.memory_space<vmem>>, vector<10x32xf32>
    %198 = arith.truncf %197 : vector<10x32xf32> to vector<10x32xbf16>
    %c0_62 = arith.constant 0 : index
    %c0_63 = arith.constant 0 : index
    %c0_64 = arith.constant 0 : index
    %199 = vector.load %arg13[%c0_62, %c0_63, %c0_64] : memref<1x32x32xbf16, #tpu.memory_space<vmem>>, vector<1x32x32xbf16>
    %200 = vector.shape_cast %199 : vector<1x32x32xbf16> to vector<32x32xbf16>
    %cst_65 = arith.constant dense<0.000000e+00> : vector<10x32xf32>
    %201 = tpu.matmul %198, %200, %cst_65 {dimension_numbers = #tpu.dot_dimension_numbers<[1], [0], [0], [1], [0, 0, 1, 1], [], []>} : vector<10x32xbf16>, vector<32x32xbf16>, vector<10x32xf32> -> vector<10x32xf32>
    %c0_66 = arith.constant 0 : index
    %c0_67 = arith.constant 0 : index
    %c0_68 = arith.constant 0 : index
    %202 = vector.load %arg14[%c0_66, %c0_67, %c0_68] : memref<1x1x32xf32, #tpu.memory_space<vmem>>, vector<1x1x32xf32>
    %203 = vector.shape_cast %202 : vector<1x1x32xf32> to vector<1x32xf32>
    %204 = vector.broadcast %203 : vector<1x32xf32> to vector<10x32xf32>
    %205 = arith.addf %201, %204 : vector<10x32xf32>
    %206 = arith.addf %3, %205 : vector<10x32xf32>
    %c0_69 = arith.constant 0 : index
    %c0_70 = arith.constant 0 : index
    %c0_71 = arith.constant 0 : index
    %207 = vector.load %arg15[%c0_69, %c0_70, %c0_71] : memref<1x1x32xf32, #tpu.memory_space<vmem>>, vector<1x1x32xf32>
    %208 = vector.shape_cast %207 : vector<1x1x32xf32> to vector<1x32xf32>
    %c0_72 = arith.constant 0 : index
    %c0_73 = arith.constant 0 : index
    %c0_74 = arith.constant 0 : index
    %209 = vector.load %arg16[%c0_72, %c0_73, %c0_74] : memref<1x1x32xf32, #tpu.memory_space<vmem>>, vector<1x1x32xf32>
    %210 = vector.shape_cast %209 : vector<1x1x32xf32> to vector<1x32xf32>
    %cst_75 = arith.constant dense<0.000000e+00> : vector<10xf32>
    %211 = vector.multi_reduction <add>, %206, %cst_75 [1] : vector<10x32xf32> to vector<10xf32>
    %212 = vector.shape_cast %211 : vector<10xf32> to vector<10x1xf32>
    %cst_76 = arith.constant 3.200000e+01 : f32
    %213 = vector.broadcast %cst_76 : f32 to vector<10x1xf32>
    %214 = arith.divf %212, %213 : vector<10x1xf32>
    %215 = vector.broadcast %214 : vector<10x1xf32> to vector<10x32xf32>
    %216 = arith.subf %206, %215 : vector<10x32xf32>
    %217 = arith.mulf %216, %216 : vector<10x32xf32>
    %cst_77 = arith.constant dense<0.000000e+00> : vector<10xf32>
    %218 = vector.multi_reduction <add>, %217, %cst_77 [1] : vector<10x32xf32> to vector<10xf32>
    %219 = vector.shape_cast %218 : vector<10xf32> to vector<10x1xf32>
    %cst_78 = arith.constant 3.200000e+01 : f32
    %220 = vector.broadcast %cst_78 : f32 to vector<10x1xf32>
    %221 = arith.divf %219, %220 : vector<10x1xf32>
    %222 = vector.broadcast %214 : vector<10x1xf32> to vector<10x32xf32>
    %223 = arith.subf %206, %222 : vector<10x32xf32>
    %cst_79 = arith.constant 9.99999974E-6 : f32
    %224 = vector.broadcast %cst_79 : f32 to vector<10x1xf32>
    %225 = arith.addf %221, %224 : vector<10x1xf32>
    %226 = math.rsqrt %225 : vector<10x1xf32>
    %227 = vector.broadcast %226 : vector<10x1xf32> to vector<10x32xf32>
    %228 = arith.mulf %223, %227 : vector<10x32xf32>
    %229 = vector.broadcast %208 : vector<1x32xf32> to vector<10x32xf32>
    %230 = arith.mulf %228, %229 : vector<10x32xf32>
    %231 = vector.broadcast %210 : vector<1x32xf32> to vector<10x32xf32>
    %232 = arith.addf %230, %231 : vector<10x32xf32>
    %233 = arith.truncf %232 : vector<10x32xf32> to vector<10x32xbf16>
    %c0_80 = arith.constant 0 : index
    %c0_81 = arith.constant 0 : index
    %c0_82 = arith.constant 0 : index
    %234 = vector.load %arg17[%c0_80, %c0_81, %c0_82] : memref<1x32x64xbf16, #tpu.memory_space<vmem>>, vector<1x32x64xbf16>
    %235 = vector.shape_cast %234 : vector<1x32x64xbf16> to vector<32x64xbf16>
    %cst_83 = arith.constant dense<0.000000e+00> : vector<10x64xf32>
    %236 = tpu.matmul %233, %235, %cst_83 {dimension_numbers = #tpu.dot_dimension_numbers<[1], [0], [0], [1], [0, 0, 1, 1], [], []>} : vector<10x32xbf16>, vector<32x64xbf16>, vector<10x64xf32> -> vector<10x64xf32>
    %c0_84 = arith.constant 0 : index
    %c0_85 = arith.constant 0 : index
    %c0_86 = arith.constant 0 : index
    %237 = vector.load %arg18[%c0_84, %c0_85, %c0_86] : memref<1x1x64xf32, #tpu.memory_space<vmem>>, vector<1x1x64xf32>
    %238 = vector.shape_cast %237 : vector<1x1x64xf32> to vector<1x64xf32>
    %239 = vector.broadcast %238 : vector<1x64xf32> to vector<10x64xf32>
    %240 = arith.addf %236, %239 : vector<10x64xf32>
    %cst_87 = arith.constant 5.000000e-01 : f32
    %241 = vector.broadcast %cst_87 : f32 to vector<10x64xf32>
    %242 = arith.mulf %241, %240 : vector<10x64xf32>
    %cst_88 = arith.constant 0.707106769 : f32
    %243 = vector.broadcast %cst_88 : f32 to vector<10x64xf32>
    %244 = arith.mulf %240, %243 : vector<10x64xf32>
    %cst_89 = arith.constant 0.000000e+00 : f32
    %245 = vector.broadcast %cst_89 : f32 to vector<10x64xf32>
    %246 = arith.cmpf oge, %244, %245 : vector<10x64xf32>
    %cst_90 = arith.constant 1.000000e+00 : f32
    %cst_91 = arith.constant -1.000000e+00 : f32
    %247 = vector.broadcast %cst_90 : f32 to vector<10x64xf32>
    %248 = vector.broadcast %cst_91 : f32 to vector<10x64xf32>
    %249 = arith.select %246, %247, %248 : vector<10x64xi1>, vector<10x64xf32>
    %250 = math.absf %244 : vector<10x64xf32>
    %cst_92 = arith.constant 0.327591091 : f32
    %251 = vector.broadcast %cst_92 : f32 to vector<10x64xf32>
    %252 = arith.mulf %251, %250 : vector<10x64xf32>
    %cst_93 = arith.constant 1.000000e+00 : f32
    %253 = vector.broadcast %cst_93 : f32 to vector<10x64xf32>
    %254 = arith.addf %253, %252 : vector<10x64xf32>
    %255 = tpu.reciprocal %254 {approx = true} : vector<10x64xf32> -> vector<10x64xf32>
    %cst_94 = arith.constant 1.06140542 : f32
    %256 = vector.broadcast %cst_94 : f32 to vector<10x64xf32>
    %257 = arith.mulf %255, %256 : vector<10x64xf32>
    %cst_95 = arith.constant -1.45315206 : f32
    %258 = vector.broadcast %cst_95 : f32 to vector<10x64xf32>
    %259 = arith.addf %258, %257 : vector<10x64xf32>
    %260 = arith.mulf %255, %259 : vector<10x64xf32>
    %cst_96 = arith.constant 1.42141378 : f32
    %261 = vector.broadcast %cst_96 : f32 to vector<10x64xf32>
    %262 = arith.addf %261, %260 : vector<10x64xf32>
    %263 = arith.mulf %255, %262 : vector<10x64xf32>
    %cst_97 = arith.constant -0.284496725 : f32
    %264 = vector.broadcast %cst_97 : f32 to vector<10x64xf32>
    %265 = arith.addf %264, %263 : vector<10x64xf32>
    %266 = arith.mulf %255, %265 : vector<10x64xf32>
    %cst_98 = arith.constant 0.254829586 : f32
    %267 = vector.broadcast %cst_98 : f32 to vector<10x64xf32>
    %268 = arith.addf %267, %266 : vector<10x64xf32>
    %269 = arith.mulf %255, %268 : vector<10x64xf32>
    %cst_99 = arith.constant 0.000000e+00 : f32
    %270 = vector.broadcast %cst_99 : f32 to vector<10x64xf32>
    %271 = arith.subf %270, %250 : vector<10x64xf32>
    %272 = arith.mulf %271, %250 : vector<10x64xf32>
    %273 = math.exp %272 : vector<10x64xf32>
    %274 = arith.mulf %269, %273 : vector<10x64xf32>
    %cst_100 = arith.constant 1.000000e+00 : f32
    %275 = vector.broadcast %cst_100 : f32 to vector<10x64xf32>
    %276 = arith.subf %275, %274 : vector<10x64xf32>
    %277 = arith.mulf %249, %276 : vector<10x64xf32>
    %cst_101 = arith.constant 1.000000e+00 : f32
    %278 = vector.broadcast %cst_101 : f32 to vector<10x64xf32>
    %279 = arith.addf %278, %277 : vector<10x64xf32>
    %280 = arith.mulf %242, %279 : vector<10x64xf32>
    %281 = arith.truncf %280 : vector<10x64xf32> to vector<10x64xbf16>
    %c0_102 = arith.constant 0 : index
    %c0_103 = arith.constant 0 : index
    %c0_104 = arith.constant 0 : index
    %282 = vector.load %arg19[%c0_102, %c0_103, %c0_104] : memref<1x64x32xbf16, #tpu.memory_space<vmem>>, vector<1x64x32xbf16>
    %283 = vector.shape_cast %282 : vector<1x64x32xbf16> to vector<64x32xbf16>
    %cst_105 = arith.constant dense<0.000000e+00> : vector<10x32xf32>
    %284 = tpu.matmul %281, %283, %cst_105 {dimension_numbers = #tpu.dot_dimension_numbers<[1], [0], [0], [1], [0, 0, 1, 1], [], []>} : vector<10x64xbf16>, vector<64x32xbf16>, vector<10x32xf32> -> vector<10x32xf32>
    %c0_106 = arith.constant 0 : index
    %c0_107 = arith.constant 0 : index
    %c0_108 = arith.constant 0 : index
    %285 = vector.load %arg20[%c0_106, %c0_107, %c0_108] : memref<1x1x32xf32, #tpu.memory_space<vmem>>, vector<1x1x32xf32>
    %286 = vector.shape_cast %285 : vector<1x1x32xf32> to vector<1x32xf32>
    %287 = vector.broadcast %286 : vector<1x32xf32> to vector<10x32xf32>
    %288 = arith.addf %284, %287 : vector<10x32xf32>
    %289 = arith.addf %206, %288 : vector<10x32xf32>
    %c0_109 = arith.constant 0 : index
    %c0_110 = arith.constant 0 : index
    %290 = vector.load %arg21[%c0_109, %c0_110] : memref<10x32xf32, #tpu.memory_space<vmem>>, vector<10x32xf32>
    tpu.vector_store %arg21[%c0_109, %c0_110], %289 {strides = array<i32>} : memref<10x32xf32, #tpu.memory_space<vmem>>, vector<10x32xf32>,
    return
  }
  func.func @transform_0(%arg0: i32) -> (i32, i32) {
    %c0_i32 = arith.constant 0 : i32
    %c0_i32_0 = arith.constant 0 : i32
    %c0_i32_1 = arith.constant 0 : i32
    return %c0_i32, %c0_i32_0 : i32, i32
  }
  func.func @transform_1(%arg0: i32) -> (i32, i32) {
    %c0_i32 = arith.constant 0 : i32
    %c0_i32_0 = arith.constant 0 : i32
    %c0_i32_1 = arith.constant 0 : i32
    return %c0_i32, %c0_i32_0 : i32, i32
  }
  func.func @transform_2(%arg0: i32) -> (i32, i32) {
    %c0_i32 = arith.constant 0 : i32
    %c0_i32_0 = arith.constant 0 : i32
    %c0_i32_1 = arith.constant 0 : i32
    return %c0_i32, %c0_i32_0 : i32, i32
  }
  func.func @transform_3(%arg0: i32) -> (i32, i32) {
    %c0_i32 = arith.constant 0 : i32
    %c0_i32_0 = arith.constant 0 : i32
    %c0_i32_1 = arith.constant 0 : i32
    return %c0_i32, %c0_i32_0 : i32, i32
  }
  func.func @transform_4(%arg0: i32) -> (i32, i32) {
    %c0_i32 = arith.constant 0 : i32
    %c0_i32_0 = arith.constant 0 : i32
    %c0_i32_1 = arith.constant 0 : i32
    return %c0_i32, %c0_i32_0 : i32, i32
  }
  func.func @transform_5(%arg0: i32) -> (i32, i32) {
    %c0_i32 = arith.constant 0 : i32
    %c0_i32_0 = arith.constant 0 : i32
    %c0_i32_1 = arith.constant 0 : i32
    return %c0_i32, %c0_i32_0 : i32, i32
  }
  func.func @transform_6(%arg0: i32) -> (i32, i32) {
    %c0_i32 = arith.constant 0 : i32
    %c0_i32_0 = arith.constant 0 : i32
    %c0_i32_1 = arith.constant 0 : i32
    return %c0_i32, %c0_i32_0 : i32, i32
  }
  func.func @transform_7(%arg0: i32) -> (i32, i32) {
    %c0_i32 = arith.constant 0 : i32
    %c0_i32_0 = arith.constant 0 : i32
    %c0_i32_1 = arith.constant 0 : i32
    return %c0_i32, %c0_i32_0 : i32, i32
  }
  func.func @transform_8(%arg0: i32) -> (i32, i32) {
    %c0_i32 = arith.constant 0 : i32
    %c0_i32_0 = arith.constant 0 : i32
    %c0_i32_1 = arith.constant 0 : i32
    return %c0_i32, %c0_i32_0 : i32, i32
  }
  func.func @transform_9(%arg0: i32) -> (i32, i32, i32) {
    %c0_i32 = arith.constant 0 : i32
    %c0_i32_0 = arith.constant 0 : i32
    %c0_i32_1 = arith.constant 0 : i32
    return %arg0, %c0_i32, %c0_i32_0 : i32, i32, i32
  }
  func.func @transform_10(%arg0: i32) -> (i32, i32, i32) {
    %c0_i32 = arith.constant 0 : i32
    %c0_i32_0 = arith.constant 0 : i32
    %c0_i32_1 = arith.constant 0 : i32
    return %arg0, %c0_i32, %c0_i32_0 : i32, i32, i32
  }
  func.func @transform_11(%arg0: i32) -> (i32, i32, i32) {
    %c0_i32 = arith.constant 0 : i32
    %c0_i32_0 = arith.constant 0 : i32
    %c0_i32_1 = arith.constant 0 : i32
    return %arg0, %c0_i32, %c0_i32_0 : i32, i32, i32
  }
  func.func @transform_12(%arg0: i32) -> (i32, i32, i32) {
    %c0_i32 = arith.constant 0 : i32
    %c0_i32_0 = arith.constant 0 : i32
    %c0_i32_1 = arith.constant 0 : i32
    return %arg0, %c0_i32, %c0_i32_0 : i32, i32, i32
  }
  func.func @transform_13(%arg0: i32) -> (i32, i32, i32) {
    %c0_i32 = arith.constant 0 : i32
    %c0_i32_0 = arith.constant 0 : i32
    %c0_i32_1 = arith.constant 0 : i32
    return %arg0, %c0_i32, %c0_i32_0 : i32, i32, i32
  }
  func.func @transform_14(%arg0: i32) -> (i32, i32, i32) {
    %c0_i32 = arith.constant 0 : i32
    %c0_i32_0 = arith.constant 0 : i32
    %c0_i32_1 = arith.constant 0 : i32
    return %arg0, %c0_i32, %c0_i32_0 : i32, i32, i32
  }
  func.func @transform_15(%arg0: i32) -> (i32, i32, i32) {
    %c0_i32 = arith.constant 0 : i32
    %c0_i32_0 = arith.constant 0 : i32
    %c0_i32_1 = arith.constant 0 : i32
    return %arg0, %c0_i32, %c0_i32_0 : i32, i32, i32
  }
  func.func @transform_16(%arg0: i32) -> (i32, i32, i32) {
    %c0_i32 = arith.constant 0 : i32
    %c0_i32_0 = arith.constant 0 : i32
    %c0_i32_1 = arith.constant 0 : i32
    return %arg0, %c0_i32, %c0_i32_0 : i32, i32, i32
  }
  func.func @transform_17(%arg0: i32) -> (i32, i32, i32) {
    %c0_i32 = arith.constant 0 : i32
    %c0_i32_0 = arith.constant 0 : i32
    %c0_i32_1 = arith.constant 0 : i32
    return %arg0, %c0_i32, %c0_i32_0 : i32, i32, i32
  }
  func.func @transform_18(%arg0: i32) -> (i32, i32, i32) {
    %c0_i32 = arith.constant 0 : i32
    %c0_i32_0 = arith.constant 0 : i32
    %c0_i32_1 = arith.constant 0 : i32
    return %arg0, %c0_i32, %c0_i32_0 : i32, i32, i32
  }
  func.func @transform_19(%arg0: i32) -> (i32, i32, i32) {
    %c0_i32 = arith.constant 0 : i32
    %c0_i32_0 = arith.constant 0 : i32
    %c0_i32_1 = arith.constant 0 : i32
    return %arg0, %c0_i32, %c0_i32_0 : i32, i32, i32
  }
  func.func @transform_20(%arg0: i32) -> (i32, i32) {
    %c0_i32 = arith.constant 0 : i32
    %c0_i32_0 = arith.constant 0 : i32
    %c0_i32_1 = arith.constant 0 : i32
    return %c0_i32, %c0_i32_0 : i32, i32
  }
}

module attributes {stable_mosaic.version = 11 : i64} {
  func.func @_distill_loss_kernel(%arg0: memref<2x1xi32, #tpu.memory_space<vmem>>, %arg1: memref<2x128xf32, #tpu.memory_space<vmem>>, %arg2: memref<2x128xf32, #tpu.memory_space<vmem>>, %arg3: memref<2x128xf32, #tpu.memory_space<vmem>>, %arg4: memref<1x1xf32, #tpu.memory_space<vmem>>) attributes {dimension_semantics = [], scalar_prefetch = 0 : i64, scratch_operands = 0 : i64, tpu.core_type = #tpu.core_type<tc>} {
    %c0 = arith.constant 0 : index
    %c0_0 = arith.constant 0 : index
    %0 = vector.load %arg1[%c0, %c0_0] : memref<2x128xf32, #tpu.memory_space<vmem>>, vector<2x128xf32>
    %c0_1 = arith.constant 0 : index
    %c0_2 = arith.constant 0 : index
    %1 = vector.load %arg2[%c0_1, %c0_2] : memref<2x128xf32, #tpu.memory_space<vmem>>, vector<2x128xf32>
    %c0_3 = arith.constant 0 : index
    %c0_4 = arith.constant 0 : index
    %2 = vector.load %arg3[%c0_3, %c0_4] : memref<2x128xf32, #tpu.memory_space<vmem>>, vector<2x128xf32>
    %3 = tpu.iota {dimensions = array<i32: 1>} : vector<2x128xi32>
    %c10_i32 = arith.constant 10 : i32
    %4 = vector.broadcast %c10_i32 : i32 to vector<2x128xi32>
    %5 = arith.cmpi slt, %3, %4 : vector<2x128xi32>
    %cst = arith.constant -1.000000e+30 : f32
    %6 = vector.broadcast %cst : f32 to vector<2x128xf32>
    %7 = arith.select %5, %0, %6 : vector<2x128xi1>, vector<2x128xf32>
    %cst_5 = arith.constant 1.000000e+00 : f32
    %8 = vector.broadcast %cst_5 : f32 to vector<2x128xf32>
    %9 = arith.mulf %1, %8 : vector<2x128xf32>
    %cst_6 = arith.constant -1.000000e+30 : f32
    %10 = vector.broadcast %cst_6 : f32 to vector<2x128xf32>
    %11 = arith.select %5, %9, %10 : vector<2x128xi1>, vector<2x128xf32>
    %cst_7 = arith.constant 1.000000e+00 : f32
    %12 = vector.broadcast %cst_7 : f32 to vector<2x128xf32>
    %13 = arith.mulf %2, %12 : vector<2x128xf32>
    %cst_8 = arith.constant -1.000000e+30 : f32
    %14 = vector.broadcast %cst_8 : f32 to vector<2x128xf32>
    %15 = arith.select %5, %13, %14 : vector<2x128xi1>, vector<2x128xf32>
    %cst_9 = arith.constant dense<0xFF800000> : vector<2xf32>
    %16 = vector.multi_reduction <maximumf>, %7, %cst_9 [1] : vector<2x128xf32> to vector<2xf32>
    %17 = vector.shape_cast %16 : vector<2xf32> to vector<2x1xf32>
    %18 = vector.broadcast %17 : vector<2x1xf32> to vector<2x128xf32>
    %19 = arith.subf %7, %18 : vector<2x128xf32>
    %20 = math.exp %19 : vector<2x128xf32>
    %cst_10 = arith.constant dense<0.000000e+00> : vector<2xf32>
    %21 = vector.multi_reduction <add>, %20, %cst_10 [1] : vector<2x128xf32> to vector<2xf32>
    %22 = vector.shape_cast %21 : vector<2xf32> to vector<2x1xf32>
    %23 = math.log %22 : vector<2x1xf32>
    %24 = vector.broadcast %17 : vector<2x1xf32> to vector<2x128xf32>
    %25 = arith.subf %7, %24 : vector<2x128xf32>
    %26 = vector.broadcast %23 : vector<2x1xf32> to vector<2x128xf32>
    %27 = arith.subf %25, %26 : vector<2x128xf32>
    %c0_11 = arith.constant 0 : index
    %c0_12 = arith.constant 0 : index
    %28 = vector.load %arg0[%c0_11, %c0_12] : memref<2x1xi32, #tpu.memory_space<vmem>>, vector<2x1xi32>
    %29 = vector.broadcast %28 : vector<2x1xi32> to vector<2x128xi32>
    %30 = arith.cmpi eq, %3, %29 : vector<2x128xi32>
    %31 = arith.extui %30 : vector<2x128xi1> to vector<2x128xi32>
    %32 = arith.sitofp %31 : vector<2x128xi32> to vector<2x128xf32>
    %33 = arith.mulf %32, %27 : vector<2x128xf32>
    %34 = vector.shape_cast %33 : vector<2x128xf32> to vector<1x2x128xf32>
    %cst_13 = arith.constant dense<0.000000e+00> : vector<1xf32>
    %35 = vector.multi_reduction <add>, %34, %cst_13 [1, 2] : vector<1x2x128xf32> to vector<1xf32>
    %36 = vector.shape_cast %35 : vector<1xf32> to vector<1x1x1xf32>
    %37 = vector.extract %36[0, 0, 0] : f32 from vector<1x1x1xf32>
    %cst_14 = arith.constant 0.000000e+00 : f32
    %38 = arith.subf %cst_14, %37 : f32
    %cst_15 = arith.constant 2.000000e+00 : f32
    %39 = arith.divf %38, %cst_15 : f32
    %cst_16 = arith.constant dense<0xFF800000> : vector<2xf32>
    %40 = vector.multi_reduction <maximumf>, %11, %cst_16 [1] : vector<2x128xf32> to vector<2xf32>
    %41 = vector.shape_cast %40 : vector<2xf32> to vector<2x1xf32>
    %42 = vector.broadcast %41 : vector<2x1xf32> to vector<2x128xf32>
    %43 = arith.subf %11, %42 : vector<2x128xf32>
    %44 = math.exp %43 : vector<2x128xf32>
    %cst_17 = arith.constant dense<0.000000e+00> : vector<2xf32>
    %45 = vector.multi_reduction <add>, %44, %cst_17 [1] : vector<2x128xf32> to vector<2xf32>
    %46 = vector.shape_cast %45 : vector<2xf32> to vector<2x1xf32>
    %47 = math.log %46 : vector<2x1xf32>
    %48 = vector.broadcast %41 : vector<2x1xf32> to vector<2x128xf32>
    %49 = arith.subf %11, %48 : vector<2x128xf32>
    %50 = vector.broadcast %47 : vector<2x1xf32> to vector<2x128xf32>
    %51 = arith.subf %49, %50 : vector<2x128xf32>
    %cst_18 = arith.constant dense<0xFF800000> : vector<2xf32>
    %52 = vector.multi_reduction <maximumf>, %15, %cst_18 [1] : vector<2x128xf32> to vector<2xf32>
    %53 = vector.shape_cast %52 : vector<2xf32> to vector<2x1xf32>
    %54 = vector.broadcast %53 : vector<2x1xf32> to vector<2x128xf32>
    %55 = arith.subf %15, %54 : vector<2x128xf32>
    %56 = math.exp %55 : vector<2x128xf32>
    %cst_19 = arith.constant dense<0.000000e+00> : vector<2xf32>
    %57 = vector.multi_reduction <add>, %56, %cst_19 [1] : vector<2x128xf32> to vector<2xf32>
    %58 = vector.shape_cast %57 : vector<2xf32> to vector<2x1xf32>
    %59 = vector.broadcast %58 : vector<2x1xf32> to vector<2x128xf32>
    %60 = arith.divf %56, %59 : vector<2x128xf32>
    %61 = vector.broadcast %53 : vector<2x1xf32> to vector<2x128xf32>
    %62 = arith.subf %15, %61 : vector<2x128xf32>
    %63 = math.log %58 : vector<2x1xf32>
    %64 = vector.broadcast %63 : vector<2x1xf32> to vector<2x128xf32>
    %65 = arith.subf %62, %64 : vector<2x128xf32>
    %66 = arith.subf %65, %51 : vector<2x128xf32>
    %67 = arith.mulf %60, %66 : vector<2x128xf32>
    %cst_20 = arith.constant 0.000000e+00 : f32
    %68 = vector.broadcast %cst_20 : f32 to vector<2x128xf32>
    %69 = arith.select %5, %67, %68 : vector<2x128xi1>, vector<2x128xf32>
    %70 = vector.shape_cast %69 : vector<2x128xf32> to vector<1x2x128xf32>
    %cst_21 = arith.constant dense<0.000000e+00> : vector<1xf32>
    %71 = vector.multi_reduction <add>, %70, %cst_21 [1, 2] : vector<1x2x128xf32> to vector<1xf32>
    %72 = vector.shape_cast %71 : vector<1xf32> to vector<1x1x1xf32>
    %73 = vector.extract %72[0, 0, 0] : f32 from vector<1x1x1xf32>
    %cst_22 = arith.constant 2.000000e+00 : f32
    %74 = arith.divf %73, %cst_22 : f32
    %cst_23 = arith.constant 1.000000e+00 : f32
    %75 = arith.mulf %74, %cst_23 : f32
    %cst_24 = arith.constant 5.000000e-01 : f32
    %76 = arith.mulf %39, %cst_24 : f32
    %cst_25 = arith.constant 5.000000e-01 : f32
    %77 = arith.mulf %75, %cst_25 : f32
    %78 = arith.addf %76, %77 : f32
    %79 = vector.broadcast %78 : f32 to vector<1x1xf32>
    %c0_26 = arith.constant 0 : index
    %c0_27 = arith.constant 0 : index
    %80 = vector.load %arg4[%c0_26, %c0_27] : memref<1x1xf32, #tpu.memory_space<vmem>>, vector<1x1xf32>
    tpu.vector_store %arg4[%c0_26, %c0_27], %79 {strides = array<i32>} : memref<1x1xf32, #tpu.memory_space<vmem>>, vector<1x1xf32>,
    return
  }
}

</mosaic_0001>

<llo_original>
// kernel: distill_wrapper_forward.8
$region0: #{distill_wrapper_forward.8}
  #allocation0 [shape = 'u32[]', space=smem, size = 0x4, offset = 0x4, fixed_abs, tag = 'smem constant byte address 0x4 - core index']
  #allocation1 [shape = 'u32[144,128]{1,0:T(1,128)}', space=vmem, size = 0x12000, scoped, tag = 'internal scratch']
  #allocation2 [shape = 'f32[2,32]{1,0:T(2,128)}', space=vmem, size = 0x400, scoped, tag = 'scratch operand']
  #allocation3 [shape = 'f32[2,32]{1,0:T(2,128)}', space=vmem, size = 0x400, scoped, tag = 'scratch operand']
  %s0 = inlined_call_operand.hbm [shape: f32[12,32], index: 0, kind: input, shape index: {}]
  %s1 = inlined_call_operand.hbm [shape: f32[1,32], index: 1, kind: input, shape index: {}]
  %s2 = inlined_call_operand.hbm [shape: f32[1,32], index: 2, kind: input, shape index: {}]
  %s3 = inlined_call_operand.hbm [shape: bf16[32,128], index: 3, kind: input, shape index: {}]
  %s4 = inlined_call_operand.hbm [shape: f32[1,128], index: 4, kind: input, shape index: {}]
  %s5 = inlined_call_operand.hbm [shape: bf16[32,128], index: 5, kind: input, shape index: {}]
  %s6 = inlined_call_operand.hbm [shape: f32[1,128], index: 6, kind: input, shape index: {}]
  %s7 = inlined_call_operand.hbm [shape: f32[2,128], index: 7, kind: output, shape index: {0}]
  %s8 = inlined_call_operand.hbm [shape: f32[2,128], index: 8, kind: output, shape index: {1}]
  %9 = xla_tuple %s7, %s8
  %s10 = sld [smem:[#allocation0]]
  $region74: #{distill_wrapper_forward.8} parent=0
    _
  %s12 = ssub.s32 1, %s10
  %s13 = scalar_select 0, %s12, %s10
  $region1: #{distill_wrapper_forward.8} parent=0
    #allocation4 [shape = 'u8[8192]{0}', space=vmem, size = 0x2000, scoped, tag = 'input window, operand 0, single buffered']
    #allocation5 [shape = 's32[1]{0}', space=sflag, size = 0x4, scoped, tag = 'scoped memory for distill_wrapper_forward.8']
    #allocation6 [shape = 's32[1]{0}', space=sflag, size = 0x4, scoped, tag = 'scoped memory for distill_wrapper_forward.8']
    #allocation7 [shape = 'u8[512]{0}', space=vmem, size = 0x400, scoped, tag = 'input window, operand 1, single buffered']
    #allocation8 [shape = 's32[1]{0}', space=sflag, size = 0x4, scoped, tag = 'scoped memory for distill_wrapper_forward.8']
    #allocation9 [shape = 'u8[512]{0}', space=vmem, size = 0x400, scoped, tag = 'input window, operand 2, single buffered']
    #allocation10 [shape = 'u8[8192]{0}', space=vmem, size = 0x2000, scoped, tag = 'input window, operand 3, single buffered']
    #allocation11 [shape = 's32[1]{0}', space=sflag, size = 0x4, scoped, tag = 'scoped memory for distill_wrapper_forward.8']
    #allocation12 [shape = 'u8[512]{0}', space=vmem, size = 0x400, scoped, tag = 'input window, operand 4, single buffered']
    #allocation13 [shape = 'u8[8192]{0}', space=vmem, size = 0x2000, scoped, tag = 'input window, operand 5, single buffered']
    #allocation14 [shape = 's32[1]{0}', space=sflag, size = 0x4, scoped, tag = 'scoped memory for distill_wrapper_forward.8']
    #allocation15 [shape = 'u8[512]{0}', space=vmem, size = 0x400, scoped, tag = 'input window, operand 6, single buffered']
    #allocation16 [shape = 'u8[1024]{0}', space=vmem, size = 0x400, scoped, tag = 'output window, operand 0, single buffered']
    #allocation17 [shape = 'u8[1024]{0}', space=vmem, size = 0x400, scoped, tag = 'output window, operand 1, single buffered']
    #allocation18 [shape = 's32[1]{0}', space=sflag, size = 0x4, scoped, tag = 'scoped memory for distill_wrapper_forward.8']
    %14 = vsyncpa [#allocation5], 0
    %15 = vsyncpa [#allocation8], 0
    %16 = vsyncpa [#allocation11], 0
    %17 = vsyncpa [#allocation14], 0
    %18 = vsyncpa [#allocation6], 0
    %19 = vsyncpa [#allocation18], 0
    // Predicated region
    $region2: #{distill_wrapper_forward.8} parent=1 // pred_check
      _
    $region3: #{distill_wrapper_forward.8} parent=1 // pred_check_branch
      %21 = sbr.rel (0) target = $region5
    $region4: #{distill_wrapper_forward.8} parent=1 // pred_region
      %s23 = ssub.s32 256, 256
      %24 = vsyncadd [#allocation5], %s23
      %s25 = sshll.u32 [#allocation4], 4
      %s26 = int_to_ptr.vmem [resolvable:$true] %s25
      %31 = dma.hbm_to_vmem [thread:$0]  %s0, 256, %s26, [#allocation5], 128, 128, 8
    $region5: #{distill_wrapper_forward.8} parent=1 // pred_fallthru
      _
    // Predicated region
    $region6: #{distill_wrapper_forward.8} parent=1 // pred_check
      _
    $region7: #{distill_wrapper_forward.8} parent=1 // pred_check_branch
      %33 = sbr.rel (0) target = $region9
    $region8: #{distill_wrapper_forward.8} parent=1 // pred_region
      %s35 = ssub.s32 16, 16
      %36 = vsyncadd [#allocation8], %s35
      %s38 = sshll.u32 [#allocation7], 4
      %s39 = int_to_ptr.vmem [resolvable:$true] %s38
      %41 = dma.hbm_to_vmem [thread:$0]  %s1, 16, %s39, [#allocation8]
    $region9: #{distill_wrapper_forward.8} parent=1 // pred_fallthru
      _
    // Predicated region
    $region10: #{distill_wrapper_forward.8} parent=1 // pred_check
      _
    $region11: #{distill_wrapper_forward.8} parent=1 // pred_check_branch
      %43 = sbr.rel (0) target = $region13
    $region12: #{distill_wrapper_forward.8} parent=1 // pred_region
      %s45 = ssub.s32 16, 16
      %46 = vsyncadd [#allocation8], %s45
      %s48 = sshll.u32 [#allocation9], 4
      %s49 = int_to_ptr.vmem [resolvable:$true] %s48
      %51 = dma.hbm_to_vmem [thread:$0]  %s2, 16, %s49, [#allocation8]
    $region13: #{distill_wrapper_forward.8} parent=1 // pred_fallthru
      _
    // Predicated region
    $region14: #{distill_wrapper_forward.8} parent=1 // pred_check
      _
    $region15: #{distill_wrapper_forward.8} parent=1 // pred_check_branch
      %53 = sbr.rel (0) target = $region17
    $region16: #{distill_wrapper_forward.8} parent=1 // pred_region
      %s55 = ssub.s32 256, 256
      %56 = vsyncadd [#allocation11], %s55
      %s57 = sshll.u32 [#allocation10], 4
      %s58 = int_to_ptr.vmem [resolvable:$true] %s57
      %63 = dma.hbm_to_vmem [thread:$0]  %s3, 256, %s58, [#allocation11], 64, 64, 4
    $region17: #{distill_wrapper_forward.8} parent=1 // pred_fallthru
      _
    // Predicated region
    $region18: #{distill_wrapper_forward.8} parent=1 // pred_check
      _
    $region19: #{distill_wrapper_forward.8} parent=1 // pred_check_branch
      %65 = sbr.rel (0) target = $region21
    $region20: #{distill_wrapper_forward.8} parent=1 // pred_region
      %s67 = ssub.s32 16, 16
      %68 = vsyncadd [#allocation11], %s67
      %s70 = sshll.u32 [#allocation12], 4
      %s71 = int_to_ptr.vmem [resolvable:$true] %s70
      %73 = dma.hbm_to_vmem [thread:$0]  %s4, 16, %s71, [#allocation11]
    $region21: #{distill_wrapper_forward.8} parent=1 // pred_fallthru
      _
    // Predicated region
    $region22: #{distill_wrapper_forward.8} parent=1 // pred_check
      _
    $region23: #{distill_wrapper_forward.8} parent=1 // pred_check_branch
      %75 = sbr.rel (0) target = $region25
    $region24: #{distill_wrapper_forward.8} parent=1 // pred_region
      %s77 = ssub.s32 256, 256
      %78 = vsyncadd [#allocation14], %s77
      %s79 = sshll.u32 [#allocation13], 4
      %s80 = int_to_ptr.vmem [resolvable:$true] %s79
      %85 = dma.hbm_to_vmem [thread:$0]  %s5, 256, %s80, [#allocation14], 64, 64, 4
    $region25: #{distill_wrapper_forward.8} parent=1 // pred_fallthru
      _
    // Predicated region
    $region26: #{distill_wrapper_forward.8} parent=1 // pred_check
      _
    $region27: #{distill_wrapper_forward.8} parent=1 // pred_check_branch
      %87 = sbr.rel (0) target = $region29
    $region28: #{distill_wrapper_forward.8} parent=1 // pred_region
      %s89 = ssub.s32 16, 16
      %90 = vsyncadd [#allocation14], %s89
      %s92 = sshll.u32 [#allocation15], 4
      %s93 = int_to_ptr.vmem [resolvable:$true] %s92
      %95 = dma.hbm_to_vmem [thread:$0]  %s6, 16, %s93, [#allocation14]
    $region29: #{distill_wrapper_forward.8} parent=1 // pred_fallthru
      _
    // Predicated region
    $region30: #{distill_wrapper_forward.8} parent=1 // pred_check
      _
    $region31: #{distill_wrapper_forward.8} parent=1 // pred_check_branch
      %97 = sbr.rel (0) target = $region33
    $region32: #{distill_wrapper_forward.8} parent=1 // pred_region
      %98 = dma.done [#allocation5], 256
    $region33: #{distill_wrapper_forward.8} parent=1 // pred_fallthru
      _
    // Predicated region
    $region34: #{distill_wrapper_forward.8} parent=1 // pred_check
      _
    $region35: #{distill_wrapper_forward.8} parent=1 // pred_check_branch
      %100 = sbr.rel (0) target = $region37
    $region36: #{distill_wrapper_forward.8} parent=1 // pred_region
      %101 = dma.done [#allocation8], 16
    $region37: #{distill_wrapper_forward.8} parent=1 // pred_fallthru
      _
    // Predicated region
    $region38: #{distill_wrapper_forward.8} parent=1 // pred_check
      _
    $region39: #{distill_wrapper_forward.8} parent=1 // pred_check_branch
      %103 = sbr.rel (0) target = $region41
    $region40: #{distill_wrapper_forward.8} parent=1 // pred_region
      %104 = dma.done [#allocation8], 16
    $region41: #{distill_wrapper_forward.8} parent=1 // pred_fallthru
      _
    // Predicated region
    $region42: #{distill_wrapper_forward.8} parent=1 // pred_check
      _
    $region43: #{distill_wrapper_forward.8} parent=1 // pred_check_branch
      %106 = sbr.rel (0) target = $region45
    $region44: #{distill_wrapper_forward.8} parent=1 // pred_region
      %107 = dma.done [#allocation11], 256
    $region45: #{distill_wrapper_forward.8} parent=1 // pred_fallthru
      _
    // Predicated region
    $region46: #{distill_wrapper_forward.8} parent=1 // pred_check
      _
    $region47: #{distill_wrapper_forward.8} parent=1 // pred_check_branch
      %109 = sbr.rel (0) target = $region49
    $region48: #{distill_wrapper_forward.8} parent=1 // pred_region
      %110 = dma.done [#allocation11], 16
    $region49: #{distill_wrapper_forward.8} parent=1 // pred_fallthru
      _
    // Predicated region
    $region50: #{distill_wrapper_forward.8} parent=1 // pred_check
      _
    $region51: #{distill_wrapper_forward.8} parent=1 // pred_check_branch
      %112 = sbr.rel (0) target = $region53
    $region52: #{distill_wrapper_forward.8} parent=1 // pred_region
      %113 = dma.done [#allocation14], 256
    $region53: #{distill_wrapper_forward.8} parent=1 // pred_fallthru
      _
    // Predicated region
    $region54: #{distill_wrapper_forward.8} parent=1 // pred_check
      _
    $region55: #{distill_wrapper_forward.8} parent=1 // pred_check_branch
      %115 = sbr.rel (0) target = $region57
    $region56: #{distill_wrapper_forward.8} parent=1 // pred_region
      %116 = dma.done [#allocation14], 16
    $region57: #{distill_wrapper_forward.8} parent=1 // pred_fallthru
      _
    %v118 = vld [vmem:[#allocation4] sm:$0xff]
    %v119 = vld [vmem:[#allocation4 + $0x8] sm:$0xf]
    %v120 = vld [vmem:[#allocation7] sm:$0x1]
    %v121 = vld [vmem:[#allocation9] sm:$0x1]
    %vm122 = vcmask 261120
    %v123 = vsel %vm122, %v118, 0.0
    %124 = vadd.xlane.f32.xlu0 %v123
    %v125 = vpop.xlane.xlu0 %124
    %vm126 = vcmask 257024
    %v127 = vsel %vm126, %v119, 0.0
    %128 = vadd.xlane.f32.xlu0 %v127
    %v129 = vpop.xlane.xlu0 %128
    %v130 = vrcp.pop 32.0
    %v131 = vmul.f32 %v125, %v130
    %v132 = vmul.f32 %v129, %v130
    %v133 = vsub.f32 %v118, %v131
    %v134 = vsub.f32 %v119, %v132
    %v135 = vmul.f32 %v133, %v133
    %v136 = vmul.f32 %v134, %v134
    %v137 = vsel %vm122, %v135, 0.0
    %138 = vadd.xlane.f32.xlu0 %v137
    %v139 = vpop.xlane.xlu0 %138
    %v140 = vsel %vm126, %v136, 0.0
    %141 = vadd.xlane.f32.xlu0 %v140
    %v142 = vpop.xlane.xlu0 %141
    %v143 = vmul.f32 %v139, %v130
    %v144 = vmul.f32 %v142, %v130
    %v145 = vadd.f32 %v143, 1e-05
    %v146 = vadd.f32 %v144, 1e-05
    %v147 = vrsqrt.pop %v145
    %v148 = vrsqrt.pop %v146
    %v149 = vmul.f32 %v133, %v147
    %v150 = vmul.f32 %v134, %v148
    %v152 = vlaneseq
    %v153 = vshrl.u32 %v152, 7
    %v154 = vsub.s32 0, %v153
    %v155 = vrot.slane %v120, %v154
    %v157 = vmul.f32 %v149, %v155
    %v158 = vmul.f32 %v150, %v155
    %v160 = vlaneseq
    %v161 = vshrl.u32 %v160, 7
    %v162 = vsub.s32 0, %v161
    %v163 = vrot.slane %v121, %v162
    %v165 = vadd.f32 %v157, %v163
    %v166 = vadd.f32 %v158, %v163
    %vm167 = vcmask 253952
    %168 = vst.msk [vmem:[#allocation2] sm:$0x1] %vm167, %v165
    %vm169 = vcmask 259077
    %170 = vst.msk [vmem:[#allocation3 - $0x5] sm:$0x20] %vm169, %v165
    %vm171 = vcmask 260102
    %172 = vst.msk [vmem:[#allocation2 - $0x5] sm:$0x40] %vm171, %v165
    %vm173 = vcmask 257027
    %174 = vst.msk [vmem:[#allocation3 - $0x2] sm:$0x8] %vm173, %v166
    %v175 = vld [vmem:[#allocation2] sm:$0x3]
    %v176 = vpack.c.bf16 %v175, %v175
    %v177 = vld [vmem:[#allocation10] sm:$0xf]
    %v178 = vld [vmem:[#allocation10 + $0x4] sm:$0xf]
    %v179 = vld [vmem:[#allocation10 + $0x8] sm:$0xf]
    %v180 = vld [vmem:[#allocation10 + $0xc] sm:$0xf]
    %v181 = vld [vmem:[#allocation12] sm:$0x1]
    %v183 = vlaneseq
    %v184 = vshrl.u32 %v183, 7
    %v185 = vsub.s32 0, %v184
    %v186 = vrot.slane %v181, %v185
    %v192 = vunpack.c.l.b16 %v177
    %v193 = vunpack.c.l.b16 %v178
    %v194 = vunpack.c.l.b16 %v179
    %v195 = vunpack.c.l.b16 %v180
    %v196 = vpack.c.b16 %v193, %v192
    %v197 = vpack.c.b16 %v195, %v194
    %v201 = vsel %vm122, %v176, 0
    %203 = vmatprep.subr.bf16.mxu0 0
    %204 = vmatpush1.bf16.msra.mxu0 %v196
    %205 = vmatprep.subr.bf16.mxu0 0
    %206 = vmatpush1.bf16.msra.mxu0 %v197
    %207 = vmatprep.subr.bf16.mxu0 0
    %208 = vmatpush1.bf16.msra.mxu0 0
    %209 = vmatprep.subr.bf16.mxu0 0
    %210 = vmatpush1.bf16.msra.mxu0 0
    %211 = vmatprep.subr.bf16.mxu0 0
    %212 = vmatpush1.bf16.msra.mxu0 0
    %213 = vmatprep.subr.bf16.mxu0 0
    %214 = vmatpush1.bf16.msra.mxu0 0
    %215 = vmatprep.subr.bf16.mxu0 0
    %216 = vmatpush1.bf16.msra.mxu0 0
    %217 = vmatprep.subr.bf16.mxu0 0
    %218 = vmatpush1.bf16.msra.mxu0 0
    %219 = vmatprep.subr.bf16.mxu0 0
    %220 = vmatpush1.bf16.msra.mxu0 0
    %221 = vmatprep.subr.bf16.mxu0 0
    %222 = vmatpush1.bf16.msra.mxu0 0
    %223 = vmatprep.subr.bf16.mxu0 0
    %224 = vmatpush1.bf16.msra.mxu0 0
    %225 = vmatprep.subr.bf16.mxu0 0
    %226 = vmatpush1.bf16.msra.mxu0 0
    %227 = vmatprep.subr.bf16.mxu0 0
    %228 = vmatpush1.bf16.msra.mxu0 0
    %229 = vmatprep.subr.bf16.mxu0 0
    %230 = vmatpush1.bf16.msra.mxu0 0
    %231 = vmatprep.subr.bf16.mxu0 0
    %232 = vmatpush1.bf16.msra.mxu0 0
    %233 = vmatprep.subr.bf16.mxu0 0
    %234 = vmatpush1.bf16.msra.mxu0 0
    %235 = vmatprep.mubr.bf16.mxu0 0
    %236 = vmatmul.mubr.bf16.gmra.mrb[0].mxu0 %v201
    %v237 = vpop.f32.mrb[0].mxu0
    %v238 = vadd.f32 %v186, %v237
    %v239 = vpop.f32.mrb[0].mxu0
    %v240 = vpop.f32.mrb[0].mxu0
    %v241 = vpop.f32.mrb[0].mxu0
    %242 = vdwg.mxu0
    %243 = vst [vmem:[#allocation16] sm:$0x3] %v238
    %v244 = vld [vmem:[#allocation3] sm:$0x3]
    %v245 = vpack.c.bf16 %v244, %v244
    %v246 = vld [vmem:[#allocation13] sm:$0xf]
    %v247 = vld [vmem:[#allocation13 + $0x4] sm:$0xf]
    %v248 = vld [vmem:[#allocation13 + $0x8] sm:$0xf]
    %v249 = vld [vmem:[#allocation13 + $0xc] sm:$0xf]
    %v250 = vld [vmem:[#allocation15] sm:$0x1]
    %v252 = vlaneseq
    %v253 = vshrl.u32 %v252, 7
    %v254 = vsub.s32 0, %v253
    %v255 = vrot.slane %v250, %v254
    %v261 = vunpack.c.l.b16 %v246
    %v262 = vunpack.c.l.b16 %v247
    %v263 = vunpack.c.l.b16 %v248
    %v264 = vunpack.c.l.b16 %v249
    %v265 = vpack.c.b16 %v262, %v261
    %v266 = vpack.c.b16 %v264, %v263
    %v270 = vsel %vm122, %v245, 0
    %272 = vmatprep.subr.bf16.mxu0 0
    %273 = vmatpush1.bf16.msra.mxu0 %v265
    %274 = vmatprep.subr.bf16.mxu0 0
    %275 = vmatpush1.bf16.msra.mxu0 %v266
    %276 = vmatprep.subr.bf16.mxu0 0
    %277 = vmatpush1.bf16.msra.mxu0 0
    %278 = vmatprep.subr.bf16.mxu0 0
    %279 = vmatpush1.bf16.msra.mxu0 0
    %280 = vmatprep.subr.bf16.mxu0 0
    %281 = vmatpush1.bf16.msra.mxu0 0
    %282 = vmatprep.subr.bf16.mxu0 0
    %283 = vmatpush1.bf16.msra.mxu0 0
    %284 = vmatprep.subr.bf16.mxu0 0
    %285 = vmatpush1.bf16.msra.mxu0 0
    %286 = vmatprep.subr.bf16.mxu0 0
    %287 = vmatpush1.bf16.msra.mxu0 0
    %288 = vmatprep.subr.bf16.mxu0 0
    %289 = vmatpush1.bf16.msra.mxu0 0
    %290 = vmatprep.subr.bf16.mxu0 0
    %291 = vmatpush1.bf16.msra.mxu0 0
    %292 = vmatprep.subr.bf16.mxu0 0
    %293 = vmatpush1.bf16.msra.mxu0 0
    %294 = vmatprep.subr.bf16.mxu0 0
    %295 = vmatpush1.bf16.msra.mxu0 0
    %296 = vmatprep.subr.bf16.mxu0 0
    %297 = vmatpush1.bf16.msra.mxu0 0
    %298 = vmatprep.subr.bf16.mxu0 0
    %299 = vmatpush1.bf16.msra.mxu0 0
    %300 = vmatprep.subr.bf16.mxu0 0
    %301 = vmatpush1.bf16.msra.mxu0 0
    %302 = vmatprep.subr.bf16.mxu0 0
    %303 = vmatpush1.bf16.msra.mxu0 0
    %304 = vmatprep.mubr.bf16.mxu0 0
    %305 = vmatmul.mubr.bf16.gmra.mrb[0].mxu0 %v270
    %v306 = vpop.f32.mrb[0].mxu0
    %v307 = vadd.f32 %v255, %v306
    %v308 = vpop.f32.mrb[0].mxu0
    %v309 = vpop.f32.mrb[0].mxu0
    %v310 = vpop.f32.mrb[0].mxu0
    %311 = vdwg.mxu0
    %312 = vst [vmem:[#allocation17] sm:$0x3] %v307
    // Predicated region
    $region58: #{distill_wrapper_forward.8} parent=1 // pred_check
      _
    $region59: #{distill_wrapper_forward.8} parent=1 // pred_check_branch
      %314 = sbr.rel (0) target = $region61
    $region60: #{distill_wrapper_forward.8} parent=1 // pred_region
      %s316 = ssub.s32 32, 32
      %317 = vsyncadd [#allocation6], %s316
      %s319 = sshll.u32 [#allocation16], 4
      %s320 = int_to_ptr.vmem [resolvable:$true] %s319
      %322 = dma.vmem_to_hbm [thread:$0]  %s320, 32, %s7, [#allocation6]
    $region61: #{distill_wrapper_forward.8} parent=1 // pred_fallthru
      _
    // Predicated region
    $region62: #{distill_wrapper_forward.8} parent=1 // pred_check
      _
    $region63: #{distill_wrapper_forward.8} parent=1 // pred_check_branch
      %324 = sbr.rel (0) target = $region65
    $region64: #{distill_wrapper_forward.8} parent=1 // pred_region
      %s326 = ssub.s32 32, 32
      %327 = vsyncadd [#allocation18], %s326
      %s329 = sshll.u32 [#allocation17], 4
      %s330 = int_to_ptr.vmem [resolvable:$true] %s329
      %332 = dma.vmem_to_hbm [thread:$0]  %s330, 32, %s8, [#allocation18]
    $region65: #{distill_wrapper_forward.8} parent=1 // pred_fallthru
      _
    // Predicated region
    $region66: #{distill_wrapper_forward.8} parent=1 // pred_check
      _
    $region67: #{distill_wrapper_forward.8} parent=1 // pred_check_branch
      %334 = sbr.rel (0) target = $region69
    $region68: #{distill_wrapper_forward.8} parent=1 // pred_region
      %335 = dma.done [#allocation6], 32
    $region69: #{distill_wrapper_forward.8} parent=1 // pred_fallthru
      _
    // Predicated region
    $region70: #{distill_wrapper_forward.8} parent=1 // pred_check
      _
    $region71: #{distill_wrapper_forward.8} parent=1 // pred_check_branch
      %337 = sbr.rel (0) target = $region73
    $region72: #{distill_wrapper_forward.8} parent=1 // pred_region
      %338 = dma.done [#allocation18], 32
    $region73: #{distill_wrapper_forward.8} parent=1 // pred_fallthru
      _
    %339 = vsyncpa [#allocation5], 1
    %340 = vsyncpa [#allocation8], 1
    %341 = vsyncpa [#allocation11], 1
    %342 = vsyncpa [#allocation14], 1
    %343 = vsyncpa [#allocation6], 1
    %344 = vsyncpa [#allocation18], 1

// kernel: distill_wrapper_forward.6
$region0: #{distill_wrapper_forward.6}
  #allocation0 [shape = 'u32[]', space=smem, size = 0x4, offset = 0x4, fixed_abs, tag = 'smem constant byte address 0x4 - core index']
  #allocation1 [shape = 'u32[144,128]{1,0:T(1,128)}', space=vmem, size = 0x12000, scoped, tag = 'internal scratch']
  #allocation2 [shape = 'f32[2,32]{1,0:T(2,128)}', space=vmem, size = 0x400, scoped, tag = 'scratch operand']
  %s0 = inlined_call_operand.hbm [shape: f32[10,32], index: 0, kind: input, shape index: {}]
  %s1 = inlined_call_operand.hbm [shape: f32[1,32], index: 1, kind: input, shape index: {}]
  %s2 = inlined_call_operand.hbm [shape: f32[1,32], index: 2, kind: input, shape index: {}]
  %s3 = inlined_call_operand.hbm [shape: bf16[32,128], index: 3, kind: input, shape index: {}]
  %s4 = inlined_call_operand.hbm [shape: f32[1,128], index: 4, kind: input, shape index: {}]
  %s5 = inlined_call_operand.vmem [shape: f32[2,128], index: 5, kind: output, shape index: {}]
  %s6 = sld [smem:[#allocation0]]
  $region50: #{distill_wrapper_forward.6} parent=0
    _
  %s8 = ssub.s32 1, %s6
  %s9 = scalar_select 0, %s8, %s6
  $region1: #{distill_wrapper_forward.6} parent=0
    #allocation3 [shape = 'u8[8192]{0}', space=vmem, size = 0x2000, scoped, tag = 'input window, operand 0, single buffered']
    #allocation4 [shape = 's32[1]{0}', space=sflag, size = 0x4, scoped, tag = 'scoped memory for distill_wrapper_forward.6']
    #allocation5 [shape = 'u8[512]{0}', space=vmem, size = 0x400, scoped, tag = 'input window, operand 1, single buffered']
    #allocation6 [shape = 's32[1]{0}', space=sflag, size = 0x4, scoped, tag = 'scoped memory for distill_wrapper_forward.6']
    #allocation7 [shape = 'u8[512]{0}', space=vmem, size = 0x400, scoped, tag = 'input window, operand 2, single buffered']
    #allocation8 [shape = 'u8[8192]{0}', space=vmem, size = 0x2000, scoped, tag = 'input window, operand 3, single buffered']
    #allocation9 [shape = 's32[1]{0}', space=sflag, size = 0x4, scoped, tag = 'scoped memory for distill_wrapper_forward.6']
    #allocation10 [shape = 'u8[512]{0}', space=vmem, size = 0x400, scoped, tag = 'input window, operand 4, single buffered']
    %10 = vsyncpa [#allocation4], 0
    %11 = vsyncpa [#allocation6], 0
    %12 = vsyncpa [#allocation9], 0
    // Predicated region
    $region2: #{distill_wrapper_forward.6} parent=1 // pred_check
      _
    $region3: #{distill_wrapper_forward.6} parent=1 // pred_check_branch
      %14 = sbr.rel (0) target = $region5
    $region4: #{distill_wrapper_forward.6} parent=1 // pred_region
      %s16 = ssub.s32 256, 256
      %17 = vsyncadd [#allocation4], %s16
      %s18 = sshll.u32 [#allocation3], 4
      %s19 = int_to_ptr.vmem [resolvable:$true] %s18
      %24 = dma.hbm_to_vmem [thread:$0]  %s0, 256, %s19, [#allocation4], 128, 128, 8
    $region5: #{distill_wrapper_forward.6} parent=1 // pred_fallthru
      _
    // Predicated region
    $region6: #{distill_wrapper_forward.6} parent=1 // pred_check
      _
    $region7: #{distill_wrapper_forward.6} parent=1 // pred_check_branch
      %26 = sbr.rel (0) target = $region9
    $region8: #{distill_wrapper_forward.6} parent=1 // pred_region
      %s28 = ssub.s32 16, 16
      %29 = vsyncadd [#allocation6], %s28
      %s31 = sshll.u32 [#allocation5], 4
      %s32 = int_to_ptr.vmem [resolvable:$true] %s31
      %34 = dma.hbm_to_vmem [thread:$0]  %s1, 16, %s32, [#allocation6]
    $region9: #{distill_wrapper_forward.6} parent=1 // pred_fallthru
      _
    // Predicated region
    $region10: #{distill_wrapper_forward.6} parent=1 // pred_check
      _
    $region11: #{distill_wrapper_forward.6} parent=1 // pred_check_branch
      %36 = sbr.rel (0) target = $region13
    $region12: #{distill_wrapper_forward.6} parent=1 // pred_region
      %s38 = ssub.s32 16, 16
      %39 = vsyncadd [#allocation6], %s38
      %s41 = sshll.u32 [#allocation7], 4
      %s42 = int_to_ptr.vmem [resolvable:$true] %s41
      %44 = dma.hbm_to_vmem [thread:$0]  %s2, 16, %s42, [#allocation6]
    $region13: #{distill_wrapper_forward.6} parent=1 // pred_fallthru
      _
    // Predicated region
    $region14: #{distill_wrapper_forward.6} parent=1 // pred_check
      _
    $region15: #{distill_wrapper_forward.6} parent=1 // pred_check_branch
      %46 = sbr.rel (0) target = $region17
    $region16: #{distill_wrapper_forward.6} parent=1 // pred_region
      %s48 = ssub.s32 256, 256
      %49 = vsyncadd [#allocation9], %s48
      %s50 = sshll.u32 [#allocation8], 4
      %s51 = int_to_ptr.vmem [resolvable:$true] %s50
      %56 = dma.hbm_to_vmem [thread:$0]  %s3, 256, %s51, [#allocation9], 64, 64, 4
    $region17: #{distill_wrapper_forward.6} parent=1 // pred_fallthru
      _
    // Predicated region
    $region18: #{distill_wrapper_forward.6} parent=1 // pred_check
      _
    $region19: #{distill_wrapper_forward.6} parent=1 // pred_check_branch
      %58 = sbr.rel (0) target = $region21
    $region20: #{distill_wrapper_forward.6} parent=1 // pred_region
      %s60 = ssub.s32 16, 16
      %61 = vsyncadd [#allocation9], %s60
      %s63 = sshll.u32 [#allocation10], 4
      %s64 = int_to_ptr.vmem [resolvable:$true] %s63
      %66 = dma.hbm_to_vmem [thread:$0]  %s4, 16, %s64, [#allocation9]
    $region21: #{distill_wrapper_forward.6} parent=1 // pred_fallthru
      _
    // Predicated region
    $region22: #{distill_wrapper_forward.6} parent=1 // pred_check
      _
    $region23: #{distill_wrapper_forward.6} parent=1 // pred_check_branch
      %68 = sbr.rel (0) target = $region25
    $region24: #{distill_wrapper_forward.6} parent=1 // pred_region
      %69 = dma.done [#allocation4], 256
    $region25: #{distill_wrapper_forward.6} parent=1 // pred_fallthru
      _
    // Predicated region
    $region26: #{distill_wrapper_forward.6} parent=1 // pred_check
      _
    $region27: #{distill_wrapper_forward.6} parent=1 // pred_check_branch
      %71 = sbr.rel (0) target = $region29
    $region28: #{distill_wrapper_forward.6} parent=1 // pred_region
      %72 = dma.done [#allocation6], 16
    $region29: #{distill_wrapper_forward.6} parent=1 // pred_fallthru
      _
    // Predicated region
    $region30: #{distill_wrapper_forward.6} parent=1 // pred_check
      _
    $region31: #{distill_wrapper_forward.6} parent=1 // pred_check_branch
      %74 = sbr.rel (0) target = $region33
    $region32: #{distill_wrapper_forward.6} parent=1 // pred_region
      %75 = dma.done [#allocation6], 16
    $region33: #{distill_wrapper_forward.6} parent=1 // pred_fallthru
      _
    // Predicated region
    $region34: #{distill_wrapper_forward.6} parent=1 // pred_check
      _
    $region35: #{distill_wrapper_forward.6} parent=1 // pred_check_branch
      %77 = sbr.rel (0) target = $region37
    $region36: #{distill_wrapper_forward.6} parent=1 // pred_region
      %78 = dma.done [#allocation9], 256
    $region37: #{distill_wrapper_forward.6} parent=1 // pred_fallthru
      _
    // Predicated region
    $region38: #{distill_wrapper_forward.6} parent=1 // pred_check
      _
    $region39: #{distill_wrapper_forward.6} parent=1 // pred_check_branch
      %80 = sbr.rel (0) target = $region41
    $region40: #{distill_wrapper_forward.6} parent=1 // pred_region
      %81 = dma.done [#allocation9], 16
    $region41: #{distill_wrapper_forward.6} parent=1 // pred_fallthru
      _
    %v83 = vld [vmem:[#allocation3] sm:$0xff]
    %v84 = vld [vmem:[#allocation5] sm:$0x1]
    %v85 = vld [vmem:[#allocation7] sm:$0x1]
    %vm86 = vcmask 261120
    %v87 = vsel %vm86, %v83, 0.0
    %88 = vadd.xlane.f32.xlu0 %v87
    %v89 = vpop.xlane.xlu0 %88
    %v90 = vrcp.pop 32.0
    %v91 = vmul.f32 %v89, %v90
    %v92 = vsub.f32 %v83, %v91
    %v93 = vmul.f32 %v92, %v92
    %v94 = vsel %vm86, %v93, 0.0
    %95 = vadd.xlane.f32.xlu0 %v94
    %v96 = vpop.xlane.xlu0 %95
    %v97 = vmul.f32 %v96, %v90
    %v98 = vadd.f32 %v97, 1e-05
    %v99 = vrsqrt.pop %v98
    %v100 = vmul.f32 %v92, %v99
    %v102 = vlaneseq
    %v103 = vshrl.u32 %v102, 7
    %v104 = vsub.s32 0, %v103
    %v105 = vrot.slane %v84, %v104
    %v107 = vmul.f32 %v100, %v105
    %v109 = vlaneseq
    %v110 = vshrl.u32 %v109, 7
    %v111 = vsub.s32 0, %v110
    %v112 = vrot.slane %v85, %v111
    %v114 = vadd.f32 %v107, %v112
    %vm115 = vcmask 253952
    %116 = vst.msk [vmem:[#allocation2] sm:$0x1] %vm115, %v114
    %vm117 = vcmask 259077
    %118 = vst.msk [vmem:[#allocation2 - $0x4] sm:$0x20] %vm117, %v114
    %v119 = vld [vmem:[#allocation2] sm:$0x3]
    %v120 = vpack.c.bf16 %v119, %v119
    %v121 = vld [vmem:[#allocation8] sm:$0xf]
    %v122 = vld [vmem:[#allocation8 + $0x4] sm:$0xf]
    %v123 = vld [vmem:[#allocation8 + $0x8] sm:$0xf]
    %v124 = vld [vmem:[#allocation8 + $0xc] sm:$0xf]
    %v125 = vld [vmem:[#allocation10] sm:$0x1]
    %v127 = vlaneseq
    %v128 = vshrl.u32 %v127, 7
    %v129 = vsub.s32 0, %v128
    %v130 = vrot.slane %v125, %v129
    %v136 = vunpack.c.l.b16 %v121
    %v137 = vunpack.c.l.b16 %v122
    %v138 = vunpack.c.l.b16 %v123
    %v139 = vunpack.c.l.b16 %v124
    %v140 = vpack.c.b16 %v137, %v136
    %v141 = vpack.c.b16 %v139, %v138
    %v145 = vsel %vm86, %v120, 0
    %147 = vmatprep.subr.bf16.mxu0 0
    %148 = vmatpush1.bf16.msra.mxu0 %v140
    %149 = vmatprep.subr.bf16.mxu0 0
    %150 = vmatpush1.bf16.msra.mxu0 %v141
    %151 = vmatprep.subr.bf16.mxu0 0
    %152 = vmatpush1.bf16.msra.mxu0 0
    %153 = vmatprep.subr.bf16.mxu0 0
    %154 = vmatpush1.bf16.msra.mxu0 0
    %155 = vmatprep.subr.bf16.mxu0 0
    %156 = vmatpush1.bf16.msra.mxu0 0
    %157 = vmatprep.subr.bf16.mxu0 0
    %158 = vmatpush1.bf16.msra.mxu0 0
    %159 = vmatprep.subr.bf16.mxu0 0
    %160 = vmatpush1.bf16.msra.mxu0 0
    %161 = vmatprep.subr.bf16.mxu0 0
    %162 = vmatpush1.bf16.msra.mxu0 0
    %163 = vmatprep.subr.bf16.mxu0 0
    %164 = vmatpush1.bf16.msra.mxu0 0
    %165 = vmatprep.subr.bf16.mxu0 0
    %166 = vmatpush1.bf16.msra.mxu0 0
    %167 = vmatprep.subr.bf16.mxu0 0
    %168 = vmatpush1.bf16.msra.mxu0 0
    %169 = vmatprep.subr.bf16.mxu0 0
    %170 = vmatpush1.bf16.msra.mxu0 0
    %171 = vmatprep.subr.bf16.mxu0 0
    %172 = vmatpush1.bf16.msra.mxu0 0
    %173 = vmatprep.subr.bf16.mxu0 0
    %174 = vmatpush1.bf16.msra.mxu0 0
    %175 = vmatprep.subr.bf16.mxu0 0
    %176 = vmatpush1.bf16.msra.mxu0 0
    %177 = vmatprep.subr.bf16.mxu0 0
    %178 = vmatpush1.bf16.msra.mxu0 0
    %179 = vmatprep.mubr.bf16.mxu0 0
    %180 = vmatmul.mubr.bf16.gmra.mrb[0].mxu0 %v145
    %v181 = vpop.f32.mrb[0].mxu0
    %v182 = vadd.f32 %v130, %v181
    %v183 = vpop.f32.mrb[0].mxu0
    %v184 = vpop.f32.mrb[0].mxu0
    %v185 = vpop.f32.mrb[0].mxu0
    %186 = vdwg.mxu0
    %187 = vst [vmem:[%s5] sm:$0x3] %v182
    // Predicated region
    $region42: #{distill_wrapper_forward.6} parent=1 // pred_check
      _
    $region43: #{distill_wrapper_forward.6} parent=1 // pred_check_branch
      %189 = sbr.rel (0) target = $region45
    $region44: #{distill_wrapper_forward.6} parent=1 // pred_region
      _
    $region45: #{distill_wrapper_forward.6} parent=1 // pred_fallthru
      _
    // Predicated region
    $region46: #{distill_wrapper_forward.6} parent=1 // pred_check
      _
    $region47: #{distill_wrapper_forward.6} parent=1 // pred_check_branch
      %191 = sbr.rel (0) target = $region49
    $region48: #{distill_wrapper_forward.6} parent=1 // pred_region
      _
    $region49: #{distill_wrapper_forward.6} parent=1 // pred_fallthru
      _
    %192 = vsyncpa [#allocation4], 1
    %193 = vsyncpa [#allocation6], 1
    %194 = vsyncpa [#allocation9], 1

// kernel: distill_wrapper_forward.7
$region0: #{distill_wrapper_forward.7}
  #allocation0 [shape = 'u32[]', space=smem, size = 0x4, offset = 0x4, fixed_abs, tag = 'smem constant byte address 0x4 - core index']
  #allocation1 [shape = 'u32[144,128]{1,0:T(1,128)}', space=vmem, size = 0x12000, scoped, tag = 'internal scratch']
  #allocation2 [shape = 'f32[12,32]{1,0:T(8,128)}', space=vmem, size = 0x2000, scoped, tag = 'scratch operand']
  %s0 = inlined_call_operand.hbm [shape: f32[8,192], index: 0, kind: input, shape index: {}]
  %s1 = inlined_call_operand.hbm [shape: f32[1,192], index: 1, kind: input, shape index: {}]
  %s2 = inlined_call_operand.hbm [shape: f32[1,192], index: 2, kind: input, shape index: {}]
  %s3 = inlined_call_operand.hbm [shape: bf16[192,32], index: 3, kind: input, shape index: {}]
  %s4 = inlined_call_operand.hbm [shape: f32[1,32], index: 4, kind: input, shape index: {}]
  %s5 = inlined_call_operand.hbm [shape: f32[1,32], index: 5, kind: input, shape index: {}]
  %s6 = inlined_call_operand.hbm [shape: f32[1,32], index: 6, kind: input, shape index: {}]
  %s7 = inlined_call_operand.hbm [shape: f32[1,32], index: 7, kind: input, shape index: {}]
  %s8 = inlined_call_operand.hbm [shape: f32[5,32], index: 8, kind: input, shape index: {}]
  %s9 = inlined_call_operand.hbm [shape: f32[1,32], index: 9, kind: input, shape index: {}]
  %s10 = inlined_call_operand.hbm [shape: f32[2,1,32], index: 10, kind: input, shape index: {}]
  %s11 = inlined_call_operand.hbm [shape: f32[2,1,32], index: 11, kind: input, shape index: {}]
  %s12 = inlined_call_operand.hbm [shape: bf16[2,32,96], index: 12, kind: input, shape index: {}]
  %s13 = inlined_call_operand.hbm [shape: bf16[2,32,32], index: 13, kind: input, shape index: {}]
  %s14 = inlined_call_operand.hbm [shape: f32[2,1,32], index: 14, kind: input, shape index: {}]
  %s15 = inlined_call_operand.hbm [shape: f32[2,1,32], index: 15, kind: input, shape index: {}]
  %s16 = inlined_call_operand.hbm [shape: f32[2,1,32], index: 16, kind: input, shape index: {}]
  %s17 = inlined_call_operand.hbm [shape: bf16[2,32,64], index: 17, kind: input, shape index: {}]
  %s18 = inlined_call_operand.hbm [shape: f32[2,1,64], index: 18, kind: input, shape index: {}]
  %s19 = inlined_call_operand.hbm [shape: bf16[2,64,32], index: 19, kind: input, shape index: {}]
  %s20 = inlined_call_operand.hbm [shape: f32[2,1,32], index: 20, kind: input, shape index: {}]
  %s21 = inlined_call_operand.hbm [shape: f32[12,32], index: 21, kind: output, shape index: {}]
  %s22 = sld [smem:[#allocation0]]
  $region205: #{distill_wrapper_forward.7} parent=0
    _
  %s24 = ssub.s32 1, %s22
  %s25 = scalar_select 0, %s24, %s22
  $region1: #{distill_wrapper_forward.7} parent=0
    #allocation3 [shape = 'u8[8192]{0}', space=vmem, size = 0x2000, scoped, tag = 'input window, operand 0, single buffered']
    #allocation4 [shape = 's32[2]{0}', space=sflag, size = 0x8, scoped, tag = 'scoped memory for distill_wrapper_forward.7']
    #allocation5 [shape = 's32[2]{0}', space=sflag, size = 0x8, scoped, tag = 'scoped memory for distill_wrapper_forward.7']
    #allocation6 [shape = 'u8[1024]{0}', space=vmem, size = 0x400, scoped, tag = 'input window, operand 1, single buffered']
    #allocation7 [shape = 's32[1]{0}', space=sflag, size = 0x4, scoped, tag = 'scoped memory for distill_wrapper_forward.7']
    #allocation8 [shape = 'u8[1024]{0}', space=vmem, size = 0x400, scoped, tag = 'input window, operand 2, single buffered']
    #allocation9 [shape = 'u8[49152]{0}', space=vmem, size = 0xc000, scoped, tag = 'input window, operand 3, single buffered']
    #allocation10 [shape = 's32[1]{0}', space=sflag, size = 0x4, scoped, tag = 'scoped memory for distill_wrapper_forward.7']
    #allocation11 [shape = 'u8[512]{0}', space=vmem, size = 0x400, scoped, tag = 'input window, operand 4, single buffered']
    #allocation12 [shape = 'u8[512]{0}', space=vmem, size = 0x400, scoped, tag = 'input window, operand 5, single buffered']
    #allocation13 [shape = 's32[1]{0}', space=sflag, size = 0x4, scoped, tag = 'scoped memory for distill_wrapper_forward.7']
    #allocation14 [shape = 'u8[512]{0}', space=vmem, size = 0x400, scoped, tag = 'input window, operand 6, single buffered']
    #allocation15 [shape = 'u8[512]{0}', space=vmem, size = 0x400, scoped, tag = 'input window, operand 7, single buffered']
    #allocation16 [shape = 's32[1]{0}', space=sflag, size = 0x4, scoped, tag = 'scoped memory for distill_wrapper_forward.7']
    #allocation17 [shape = 'u8[4096]{0}', space=vmem, size = 0x1000, scoped, tag = 'input window, operand 8, single buffered']
    #allocation18 [shape = 'u8[512]{0}', space=vmem, size = 0x400, scoped, tag = 'input window, operand 9, single buffered']
    #allocation19 [shape = 's32[1]{0}', space=sflag, size = 0x4, scoped, tag = 'scoped memory for distill_wrapper_forward.7']
    #allocation20 [shape = 'u8[1024]{0}', space=vmem, size = 0x400, scoped, tag = 'input window, operand 10']
    #allocation21 [shape = 'u8[1024]{0}', space=vmem, size = 0x400, scoped, tag = 'input window, operand 11']
    #allocation22 [shape = 'u8[16384]{0}', space=vmem, size = 0x4000, scoped, tag = 'input window, operand 12']
    #allocation23 [shape = 'u8[16384]{0}', space=vmem, size = 0x4000, scoped, tag = 'input window, operand 13']
    #allocation24 [shape = 'u8[1024]{0}', space=vmem, size = 0x400, scoped, tag = 'input window, operand 14']
    #allocation25 [shape = 'u8[1024]{0}', space=vmem, size = 0x400, scoped, tag = 'input window, operand 15']
    #allocation26 [shape = 'u8[1024]{0}', space=vmem, size = 0x400, scoped, tag = 'input window, operand 16']
    #allocation27 [shape = 'u8[16384]{0}', space=vmem, size = 0x4000, scoped, tag = 'input window, operand 17']
    #allocation28 [shape = 'u8[1024]{0}', space=vmem, size = 0x400, scoped, tag = 'input window, operand 18']
    #allocation29 [shape = 'u8[32768]{0}', space=vmem, size = 0x8000, scoped, tag = 'input window, operand 19']
    #allocation30 [shape = 'u8[1024]{0}', space=vmem, size = 0x400, scoped, tag = 'input window, operand 20']
    #allocation31 [shape = 'u8[8192]{0}', space=vmem, size = 0x2000, scoped, tag = 'output window, operand 0, single buffered']
    %26 = vsyncpa [#allocation4], 0
    %27 = vsyncpa [#allocation7], 0
    %28 = vsyncpa [#allocation10], 0
    %29 = vsyncpa [#allocation13], 0
    %30 = vsyncpa [#allocation16], 0
    %31 = vsyncpa [#allocation19], 0
    %32 = vsyncpa [#allocation5], 0
    loop: start=0, step=1, limit=4
    $region2: #{distill_wrapper_forward.7} parent=1 // loop_pre_header
      _
    $region3: #{distill_wrapper_forward.7} parent=1 // loop_header
      %s34 = sphi 0, %s38
      %p35 = scmp.ge.s32.totalorder %s34, 4
      %s42 = sphi 0, %s42
      %s44 = sphi 0, %s42
      %s45 = sphi 0, %s44
      %s59 = sphi 0, %s45
      %s63 = sphi 0, %s63
      %s65 = sphi 0, %s63
      %s66 = sphi 0, %s65
      %s80 = sphi 0, %s66
      %s84 = sphi 0, %s84
      %s86 = sphi 0, %s84
      %s87 = sphi 0, %s86
      %s101 = sphi 0, %s87
      %s105 = sphi 0, %s105
      %s107 = sphi 0, %s105
      %s108 = sphi 0, %s107
      %s122 = sphi 0, %s108
      %s126 = sphi 0, %s126
      %s128 = sphi 0, %s126
      %s129 = sphi 0, %s128
      %s143 = sphi 0, %s129
      %s147 = sphi 0, %s147
      %s149 = sphi 0, %s147
      %s150 = sphi 0, %s149
      %s164 = sphi 0, %s150
      %s168 = sphi 0, %s168
      %s170 = sphi 0, %s168
      %s171 = sphi 0, %s170
      %s185 = sphi 0, %s171
      %s189 = sphi 0, %s189
      %s191 = sphi 0, %s189
      %s192 = sphi 0, %s191
      %s206 = sphi 0, %s192
      %s210 = sphi 0, %s210
      %s212 = sphi 0, %s210
      %s213 = sphi 0, %s212
      %s227 = sphi 0, %s213
      %s231 = sphi 0, %s231
      %s233 = sphi 0, %s231
      %s234 = sphi 0, %s233
      %s248 = sphi 0, %s234
      %s254 = sphi 0, %s256
      %s257 = sphi 0, %s254
      %s258 = sphi 0, %s257
      %s274 = sphi 0, %s258
      %s280 = sphi 0, %s282
      %s283 = sphi 0, %s280
      %s284 = sphi 0, %s283
      %s300 = sphi 0, %s284
      %s306 = sphi 0, %s308
      %s309 = sphi 0, %s306
      %s310 = sphi 0, %s309
      %s326 = sphi 0, %s310
      %s332 = sphi 0, %s334
      %s335 = sphi 0, %s332
      %s336 = sphi 0, %s335
      %s352 = sphi 0, %s336
      %s358 = sphi 0, %s360
      %s361 = sphi 0, %s358
      %s362 = sphi 0, %s361
      %s378 = sphi 0, %s362
      %s384 = sphi 0, %s386
      %s387 = sphi 0, %s384
      %s388 = sphi 0, %s387
      %s404 = sphi 0, %s388
      %s410 = sphi 0, %s412
      %s413 = sphi 0, %s410
      %s414 = sphi 0, %s413
      %s430 = sphi 0, %s414
      %s436 = sphi 0, %s438
      %s439 = sphi 0, %s436
      %s440 = sphi 0, %s439
      %s456 = sphi 0, %s440
      %s462 = sphi 0, %s464
      %s465 = sphi 0, %s462
      %s466 = sphi 0, %s465
      %s482 = sphi 0, %s466
      %s488 = sphi 0, %s490
      %s491 = sphi 0, %s488
      %s492 = sphi 0, %s491
      %s508 = sphi 0, %s492
      %s514 = sphi 0, %s516
      %s517 = sphi 0, %s514
      %s518 = sphi 0, %s517
      %s534 = sphi 0, %s518
      %s538 = sphi 0, %s538
      %s540 = sphi 0, %s538
      %s541 = sphi 0, %s540
      %s555 = sphi 0, %s541
    $region4: #{distill_wrapper_forward.7} parent=1 // loop_header_branch
      %37 = sbr.rel (%p35) target = $region8
    $region5: #{distill_wrapper_forward.7} parent=1 // loop_body
      %s39 = ssub.s32 %s34, 1
      %s40 = ssub.s32 %s34, 2
      %s41 = sadd.s32 %s34, 1
      %s43 = sadd.s32 %s42, 1
      %p46 = scmp.eq.s32.totalorder %s34, 1
      %p47 = scmp.ne.s32.totalorder %s42, %s44
      %p48 = scmp.eq.s32.totalorder %s34, 0
      %p49 = por %p47, %p48
      %p50 = scmp.ne.s32.totalorder %s42, %s44
      %p51 = scmp.eq.s32.totalorder %s39, 1
      %p52 = por %p50, %p51
      %p53 = scmp.ne.s32.totalorder %s44, %s45
      %p54 = scmp.eq.s32.totalorder %s39, 0
      %p55 = por %p53, %p54
      %p56 = scmp.ne.s32.totalorder %s44, %s45
      %p57 = scmp.eq.s32.totalorder %s40, 1
      %p58 = por %p56, %p57
      %p60 = scmp.ne.s32.totalorder %s45, %s59
      %p61 = scmp.eq.s32.totalorder %s40, 0
      %p62 = por %p60, %p61
      %s64 = sadd.s32 %s63, 1
      %p67 = scmp.eq.s32.totalorder %s34, 1
      %p68 = scmp.ne.s32.totalorder %s63, %s65
      %p69 = scmp.eq.s32.totalorder %s34, 0
      %p70 = por %p68, %p69
      %p71 = scmp.ne.s32.totalorder %s63, %s65
      %p72 = scmp.eq.s32.totalorder %s39, 1
      %p73 = por %p71, %p72
      %p74 = scmp.ne.s32.totalorder %s65, %s66
      %p75 = scmp.eq.s32.totalorder %s39, 0
      %p76 = por %p74, %p75
      %p77 = scmp.ne.s32.totalorder %s65, %s66
      %p78 = scmp.eq.s32.totalorder %s40, 1
      %p79 = por %p77, %p78
      %p81 = scmp.ne.s32.totalorder %s66, %s80
      %p82 = scmp.eq.s32.totalorder %s40, 0
      %p83 = por %p81, %p82
      %s85 = sadd.s32 %s84, 1
      %p88 = scmp.eq.s32.totalorder %s34, 1
      %p89 = scmp.ne.s32.totalorder %s84, %s86
      %p90 = scmp.eq.s32.totalorder %s34, 0
      %p91 = por %p89, %p90
      %p92 = scmp.ne.s32.totalorder %s84, %s86
      %p93 = scmp.eq.s32.totalorder %s39, 1
      %p94 = por %p92, %p93
      %p95 = scmp.ne.s32.totalorder %s86, %s87
      %p96 = scmp.eq.s32.totalorder %s39, 0
      %p97 = por %p95, %p96
      %p98 = scmp.ne.s32.totalorder %s86, %s87
      %p99 = scmp.eq.s32.totalorder %s40, 1
      %p100 = por %p98, %p99
      %p102 = scmp.ne.s32.totalorder %s87, %s101
      %p103 = scmp.eq.s32.totalorder %s40, 0
      %p104 = por %p102, %p103
      %s106 = sadd.s32 %s105, 1
      %p109 = scmp.eq.s32.totalorder %s34, 1
      %p110 = scmp.ne.s32.totalorder %s105, %s107
      %p111 = scmp.eq.s32.totalorder %s34, 0
      %p112 = por %p110, %p111
      %p113 = scmp.ne.s32.totalorder %s105, %s107
      %p114 = scmp.eq.s32.totalorder %s39, 1
      %p115 = por %p113, %p114
      %p116 = scmp.ne.s32.totalorder %s107, %s108
      %p117 = scmp.eq.s32.totalorder %s39, 0
      %p118 = por %p116, %p117
      %p119 = scmp.ne.s32.totalorder %s107, %s108
      %p120 = scmp.eq.s32.totalorder %s40, 1
      %p121 = por %p119, %p120
      %p123 = scmp.ne.s32.totalorder %s108, %s122
      %p124 = scmp.eq.s32.totalorder %s40, 0
      %p125 = por %p123, %p124
      %s127 = sadd.s32 %s126, 1
      %p130 = scmp.eq.s32.totalorder %s34, 1
      %p131 = scmp.ne.s32.totalorder %s126, %s128
      %p132 = scmp.eq.s32.totalorder %s34, 0
      %p133 = por %p131, %p132
      %p134 = scmp.ne.s32.totalorder %s126, %s128
      %p135 = scmp.eq.s32.totalorder %s39, 1
      %p136 = por %p134, %p135
      %p137 = scmp.ne.s32.totalorder %s128, %s129
      %p138 = scmp.eq.s32.totalorder %s39, 0
      %p139 = por %p137, %p138
      %p140 = scmp.ne.s32.totalorder %s128, %s129
      %p141 = scmp.eq.s32.totalorder %s40, 1
      %p142 = por %p140, %p141
      %p144 = scmp.ne.s32.totalorder %s129, %s143
      %p145 = scmp.eq.s32.totalorder %s40, 0
      %p146 = por %p144, %p145
      %s148 = sadd.s32 %s147, 1
      %p151 = scmp.eq.s32.totalorder %s34, 1
      %p152 = scmp.ne.s32.totalorder %s147, %s149
      %p153 = scmp.eq.s32.totalorder %s34, 0
      %p154 = por %p152, %p153
      %p155 = scmp.ne.s32.totalorder %s147, %s149
      %p156 = scmp.eq.s32.totalorder %s39, 1
      %p157 = por %p155, %p156
      %p158 = scmp.ne.s32.totalorder %s149, %s150
      %p159 = scmp.eq.s32.totalorder %s39, 0
      %p160 = por %p158, %p159
      %p161 = scmp.ne.s32.totalorder %s149, %s150
      %p162 = scmp.eq.s32.totalorder %s40, 1
      %p163 = por %p161, %p162
      %p165 = scmp.ne.s32.totalorder %s150, %s164
      %p166 = scmp.eq.s32.totalorder %s40, 0
      %p167 = por %p165, %p166
      %s169 = sadd.s32 %s168, 1
      %p172 = scmp.eq.s32.totalorder %s34, 1
      %p173 = scmp.ne.s32.totalorder %s168, %s170
      %p174 = scmp.eq.s32.totalorder %s34, 0
      %p175 = por %p173, %p174
      %p176 = scmp.ne.s32.totalorder %s168, %s170
      %p177 = scmp.eq.s32.totalorder %s39, 1
      %p178 = por %p176, %p177
      %p179 = scmp.ne.s32.totalorder %s170, %s171
      %p180 = scmp.eq.s32.totalorder %s39, 0
      %p181 = por %p179, %p180
      %p182 = scmp.ne.s32.totalorder %s170, %s171
      %p183 = scmp.eq.s32.totalorder %s40, 1
      %p184 = por %p182, %p183
      %p186 = scmp.ne.s32.totalorder %s171, %s185
      %p187 = scmp.eq.s32.totalorder %s40, 0
      %p188 = por %p186, %p187
      %s190 = sadd.s32 %s189, 1
      %p193 = scmp.eq.s32.totalorder %s34, 1
      %p194 = scmp.ne.s32.totalorder %s189, %s191
      %p195 = scmp.eq.s32.totalorder %s34, 0
      %p196 = por %p194, %p195
      %p197 = scmp.ne.s32.totalorder %s189, %s191
      %p198 = scmp.eq.s32.totalorder %s39, 1
      %p199 = por %p197, %p198
      %p200 = scmp.ne.s32.totalorder %s191, %s192
      %p201 = scmp.eq.s32.totalorder %s39, 0
      %p202 = por %p200, %p201
      %p203 = scmp.ne.s32.totalorder %s191, %s192
      %p204 = scmp.eq.s32.totalorder %s40, 1
      %p205 = por %p203, %p204
      %p207 = scmp.ne.s32.totalorder %s192, %s206
      %p208 = scmp.eq.s32.totalorder %s40, 0
      %p209 = por %p207, %p208
      %s211 = sadd.s32 %s210, 1
      %p214 = scmp.eq.s32.totalorder %s34, 1
      %p215 = scmp.ne.s32.totalorder %s210, %s212
      %p216 = scmp.eq.s32.totalorder %s34, 0
      %p217 = por %p215, %p216
      %p218 = scmp.ne.s32.totalorder %s210, %s212
      %p219 = scmp.eq.s32.totalorder %s39, 1
      %p220 = por %p218, %p219
      %p221 = scmp.ne.s32.totalorder %s212, %s213
      %p222 = scmp.eq.s32.totalorder %s39, 0
      %p223 = por %p221, %p222
      %p224 = scmp.ne.s32.totalorder %s212, %s213
      %p225 = scmp.eq.s32.totalorder %s40, 1
      %p226 = por %p224, %p225
      %p228 = scmp.ne.s32.totalorder %s213, %s227
      %p229 = scmp.eq.s32.totalorder %s40, 0
      %p230 = por %p228, %p229
      %s232 = sadd.s32 %s231, 1
      %p235 = scmp.eq.s32.totalorder %s34, 1
      %p236 = scmp.ne.s32.totalorder %s231, %s233
      %p237 = scmp.eq.s32.totalorder %s34, 0
      %p238 = por %p236, %p237
      %p239 = scmp.ne.s32.totalorder %s231, %s233
      %p240 = scmp.eq.s32.totalorder %s39, 1
      %p241 = por %p239, %p240
      %p242 = scmp.ne.s32.totalorder %s233, %s234
      %p243 = scmp.eq.s32.totalorder %s39, 0
      %p244 = por %p242, %p243
      %p245 = scmp.ne.s32.totalorder %s233, %s234
      %p246 = scmp.eq.s32.totalorder %s40, 1
      %p247 = por %p245, %p246
      %p249 = scmp.ne.s32.totalorder %s234, %s248
      %p250 = scmp.eq.s32.totalorder %s40, 0
      %p251 = por %p249, %p250
      %s252 = ssub.s32 %s34, %s41
      %p253 = scmp.eq.s32.totalorder %s252, 0
      %s255 = sadd.s32 %s254, 1
      %s256 = scalar_select %p253, %s254, %s255
      %p259 = pneg %p253
      %p260 = scmp.eq.s32.totalorder %s34, 1
      %p261 = por %p259, %p260
      %p262 = scmp.ne.s32.totalorder %s254, %s257
      %p263 = scmp.eq.s32.totalorder %s34, 0
      %p264 = por %p262, %p263
      %p265 = scmp.ne.s32.totalorder %s254, %s257
      %p266 = scmp.eq.s32.totalorder %s39, 1
      %p267 = por %p265, %p266
      %p268 = scmp.ne.s32.totalorder %s257, %s258
      %p269 = scmp.eq.s32.totalorder %s39, 0
      %p270 = por %p268, %p269
      %p271 = scmp.ne.s32.totalorder %s257, %s258
      %p272 = scmp.eq.s32.totalorder %s40, 1
      %p273 = por %p271, %p272
      %p275 = scmp.ne.s32.totalorder %s258, %s274
      %p276 = scmp.eq.s32.totalorder %s40, 0
      %p277 = por %p275, %p276
      %s278 = ssub.s32 %s34, %s41
      %p279 = scmp.eq.s32.totalorder %s278, 0
      %s281 = sadd.s32 %s280, 1
      %s282 = scalar_select %p279, %s280, %s281
      %p285 = pneg %p279
      %p286 = scmp.eq.s32.totalorder %s34, 1
      %p287 = por %p285, %p286
      %p288 = scmp.ne.s32.totalorder %s280, %s283
      %p289 = scmp.eq.s32.totalorder %s34, 0
      %p290 = por %p288, %p289
      %p291 = scmp.ne.s32.totalorder %s280, %s283
      %p292 = scmp.eq.s32.totalorder %s39, 1
      %p293 = por %p291, %p292
      %p294 = scmp.ne.s32.totalorder %s283, %s284
      %p295 = scmp.eq.s32.totalorder %s39, 0
      %p296 = por %p294, %p295
      %p297 = scmp.ne.s32.totalorder %s283, %s284
      %p298 = scmp.eq.s32.totalorder %s40, 1
      %p299 = por %p297, %p298
      %p301 = scmp.ne.s32.totalorder %s284, %s300
      %p302 = scmp.eq.s32.totalorder %s40, 0
      %p303 = por %p301, %p302
      %s304 = ssub.s32 %s34, %s41
      %p305 = scmp.eq.s32.totalorder %s304, 0
      %s307 = sadd.s32 %s306, 1
      %s308 = scalar_select %p305, %s306, %s307
      %p311 = pneg %p305
      %p312 = scmp.eq.s32.totalorder %s34, 1
      %p313 = por %p311, %p312
      %p314 = scmp.ne.s32.totalorder %s306, %s309
      %p315 = scmp.eq.s32.totalorder %s34, 0
      %p316 = por %p314, %p315
      %p317 = scmp.ne.s32.totalorder %s306, %s309
      %p318 = scmp.eq.s32.totalorder %s39, 1
      %p319 = por %p317, %p318
      %p320 = scmp.ne.s32.totalorder %s309, %s310
      %p321 = scmp.eq.s32.totalorder %s39, 0
      %p322 = por %p320, %p321
      %p323 = scmp.ne.s32.totalorder %s309, %s310
      %p324 = scmp.eq.s32.totalorder %s40, 1
      %p325 = por %p323, %p324
      %p327 = scmp.ne.s32.totalorder %s310, %s326
      %p328 = scmp.eq.s32.totalorder %s40, 0
      %p329 = por %p327, %p328
      %s330 = ssub.s32 %s34, %s41
      %p331 = scmp.eq.s32.totalorder %s330, 0
      %s333 = sadd.s32 %s332, 1
      %s334 = scalar_select %p331, %s332, %s333
      %p337 = pneg %p331
      %p338 = scmp.eq.s32.totalorder %s34, 1
      %p339 = por %p337, %p338
      %p340 = scmp.ne.s32.totalorder %s332, %s335
      %p341 = scmp.eq.s32.totalorder %s34, 0
      %p342 = por %p340, %p341
      %p343 = scmp.ne.s32.totalorder %s332, %s335
      %p344 = scmp.eq.s32.totalorder %s39, 1
      %p345 = por %p343, %p344
      %p346 = scmp.ne.s32.totalorder %s335, %s336
      %p347 = scmp.eq.s32.totalorder %s39, 0
      %p348 = por %p346, %p347
      %p349 = scmp.ne.s32.totalorder %s335, %s336
      %p350 = scmp.eq.s32.totalorder %s40, 1
      %p351 = por %p349, %p350
      %p353 = scmp.ne.s32.totalorder %s336, %s352
      %p354 = scmp.eq.s32.totalorder %s40, 0
      %p355 = por %p353, %p354
      %s356 = ssub.s32 %s34, %s41
      %p357 = scmp.eq.s32.totalorder %s356, 0
      %s359 = sadd.s32 %s358, 1
      %s360 = scalar_select %p357, %s358, %s359
      %p363 = pneg %p357
      %p364 = scmp.eq.s32.totalorder %s34, 1
      %p365 = por %p363, %p364
      %p366 = scmp.ne.s32.totalorder %s358, %s361
      %p367 = scmp.eq.s32.totalorder %s34, 0
      %p368 = por %p366, %p367
      %p369 = scmp.ne.s32.totalorder %s358, %s361
      %p370 = scmp.eq.s32.totalorder %s39, 1
      %p371 = por %p369, %p370
      %p372 = scmp.ne.s32.totalorder %s361, %s362
      %p373 = scmp.eq.s32.totalorder %s39, 0
      %p374 = por %p372, %p373
      %p375 = scmp.ne.s32.totalorder %s361, %s362
      %p376 = scmp.eq.s32.totalorder %s40, 1
      %p377 = por %p375, %p376
      %p379 = scmp.ne.s32.totalorder %s362, %s378
      %p380 = scmp.eq.s32.totalorder %s40, 0
      %p381 = por %p379, %p380
      %s382 = ssub.s32 %s34, %s41
      %p383 = scmp.eq.s32.totalorder %s382, 0
      %s385 = sadd.s32 %s384, 1
      %s386 = scalar_select %p383, %s384, %s385
      %p389 = pneg %p383
      %p390 = scmp.eq.s32.totalorder %s34, 1
      %p391 = por %p389, %p390
      %p392 = scmp.ne.s32.totalorder %s384, %s387
      %p393 = scmp.eq.s32.totalorder %s34, 0
      %p394 = por %p392, %p393
      %p395 = scmp.ne.s32.totalorder %s384, %s387
      %p396 = scmp.eq.s32.totalorder %s39, 1
      %p397 = por %p395, %p396
      %p398 = scmp.ne.s32.totalorder %s387, %s388
      %p399 = scmp.eq.s32.totalorder %s39, 0
      %p400 = por %p398, %p399
      %p401 = scmp.ne.s32.totalorder %s387, %s388
      %p402 = scmp.eq.s32.totalorder %s40, 1
      %p403 = por %p401, %p402
      %p405 = scmp.ne.s32.totalorder %s388, %s404
      %p406 = scmp.eq.s32.totalorder %s40, 0
      %p407 = por %p405, %p406
      %s408 = ssub.s32 %s34, %s41
      %p409 = scmp.eq.s32.totalorder %s408, 0
      %s411 = sadd.s32 %s410, 1
      %s412 = scalar_select %p409, %s410, %s411
      %p415 = pneg %p409
      %p416 = scmp.eq.s32.totalorder %s34, 1
      %p417 = por %p415, %p416
      %p418 = scmp.ne.s32.totalorder %s410, %s413
      %p419 = scmp.eq.s32.totalorder %s34, 0
      %p420 = por %p418, %p419
      %p421 = scmp.ne.s32.totalorder %s410, %s413
      %p422 = scmp.eq.s32.totalorder %s39, 1
      %p423 = por %p421, %p422
      %p424 = scmp.ne.s32.totalorder %s413, %s414
      %p425 = scmp.eq.s32.totalorder %s39, 0
      %p426 = por %p424, %p425
      %p427 = scmp.ne.s32.totalorder %s413, %s414
      %p428 = scmp.eq.s32.totalorder %s40, 1
      %p429 = por %p427, %p428
      %p431 = scmp.ne.s32.totalorder %s414, %s430
      %p432 = scmp.eq.s32.totalorder %s40, 0
      %p433 = por %p431, %p432
      %s434 = ssub.s32 %s34, %s41
      %p435 = scmp.eq.s32.totalorder %s434, 0
      %s437 = sadd.s32 %s436, 1
      %s438 = scalar_select %p435, %s436, %s437
      %p441 = pneg %p435
      %p442 = scmp.eq.s32.totalorder %s34, 1
      %p443 = por %p441, %p442
      %p444 = scmp.ne.s32.totalorder %s436, %s439
      %p445 = scmp.eq.s32.totalorder %s34, 0
      %p446 = por %p444, %p445
      %p447 = scmp.ne.s32.totalorder %s436, %s439
      %p448 = scmp.eq.s32.totalorder %s39, 1
      %p449 = por %p447, %p448
      %p450 = scmp.ne.s32.totalorder %s439, %s440
      %p451 = scmp.eq.s32.totalorder %s39, 0
      %p452 = por %p450, %p451
      %p453 = scmp.ne.s32.totalorder %s439, %s440
      %p454 = scmp.eq.s32.totalorder %s40, 1
      %p455 = por %p453, %p454
      %p457 = scmp.ne.s32.totalorder %s440, %s456
      %p458 = scmp.eq.s32.totalorder %s40, 0
      %p459 = por %p457, %p458
      %s460 = ssub.s32 %s34, %s41
      %p461 = scmp.eq.s32.totalorder %s460, 0
      %s463 = sadd.s32 %s462, 1
      %s464 = scalar_select %p461, %s462, %s463
      %p467 = pneg %p461
      %p468 = scmp.eq.s32.totalorder %s34, 1
      %p469 = por %p467, %p468
      %p470 = scmp.ne.s32.totalorder %s462, %s465
      %p471 = scmp.eq.s32.totalorder %s34, 0
      %p472 = por %p470, %p471
      %p473 = scmp.ne.s32.totalorder %s462, %s465
      %p474 = scmp.eq.s32.totalorder %s39, 1
      %p475 = por %p473, %p474
      %p476 = scmp.ne.s32.totalorder %s465, %s466
      %p477 = scmp.eq.s32.totalorder %s39, 0
      %p478 = por %p476, %p477
      %p479 = scmp.ne.s32.totalorder %s465, %s466
      %p480 = scmp.eq.s32.totalorder %s40, 1
      %p481 = por %p479, %p480
      %p483 = scmp.ne.s32.totalorder %s466, %s482
      %p484 = scmp.eq.s32.totalorder %s40, 0
      %p485 = por %p483, %p484
      %s486 = ssub.s32 %s34, %s41
      %p487 = scmp.eq.s32.totalorder %s486, 0
      %s489 = sadd.s32 %s488, 1
      %s490 = scalar_select %p487, %s488, %s489
      %p493 = pneg %p487
      %p494 = scmp.eq.s32.totalorder %s34, 1
      %p495 = por %p493, %p494
      %p496 = scmp.ne.s32.totalorder %s488, %s491
      %p497 = scmp.eq.s32.totalorder %s34, 0
      %p498 = por %p496, %p497
      %p499 = scmp.ne.s32.totalorder %s488, %s491
      %p500 = scmp.eq.s32.totalorder %s39, 1
      %p501 = por %p499, %p500
      %p502 = scmp.ne.s32.totalorder %s491, %s492
      %p503 = scmp.eq.s32.totalorder %s39, 0
      %p504 = por %p502, %p503
      %p505 = scmp.ne.s32.totalorder %s491, %s492
      %p506 = scmp.eq.s32.totalorder %s40, 1
      %p507 = por %p505, %p506
      %p509 = scmp.ne.s32.totalorder %s492, %s508
      %p510 = scmp.eq.s32.totalorder %s40, 0
      %p511 = por %p509, %p510
      %s512 = ssub.s32 %s34, %s41
      %p513 = scmp.eq.s32.totalorder %s512, 0
      %s515 = sadd.s32 %s514, 1
      %s516 = scalar_select %p513, %s514, %s515
      %p519 = pneg %p513
      %p520 = scmp.eq.s32.totalorder %s34, 1
      %p521 = por %p519, %p520
      %p522 = scmp.ne.s32.totalorder %s514, %s517
      %p523 = scmp.eq.s32.totalorder %s34, 0
      %p524 = por %p522, %p523
      %p525 = scmp.ne.s32.totalorder %s514, %s517
      %p526 = scmp.eq.s32.totalorder %s39, 1
      %p527 = por %p525, %p526
      %p528 = scmp.ne.s32.totalorder %s517, %s518
      %p529 = scmp.eq.s32.totalorder %s39, 0
      %p530 = por %p528, %p529
      %p531 = scmp.ne.s32.totalorder %s517, %s518
      %p532 = scmp.eq.s32.totalorder %s40, 1
      %p533 = por %p531, %p532
      %p535 = scmp.ne.s32.totalorder %s518, %s534
      %p536 = scmp.eq.s32.totalorder %s40, 0
      %p537 = por %p535, %p536
      %s539 = sadd.s32 %s538, 1
      %p542 = scmp.eq.s32.totalorder %s34, 1
      %p543 = scmp.ne.s32.totalorder %s538, %s540
      %p544 = scmp.eq.s32.totalorder %s34, 0
      %p545 = por %p543, %p544
      %p546 = scmp.ne.s32.totalorder %s538, %s540
      %p547 = scmp.eq.s32.totalorder %s39, 1
      %p548 = por %p546, %p547
      %p549 = scmp.ne.s32.totalorder %s540, %s541
      %p550 = scmp.eq.s32.totalorder %s39, 0
      %p551 = por %p549, %p550
      %p552 = scmp.ne.s32.totalorder %s540, %s541
      %p553 = scmp.eq.s32.totalorder %s40, 1
      %p554 = por %p552, %p553
      %p556 = scmp.ne.s32.totalorder %s541, %s555
      %p557 = scmp.eq.s32.totalorder %s40, 0
      %p558 = por %p556, %p557
      %p559 = scmp.le.s32.totalorder 1, %s34
      %p560 = scmp.lt.s32.totalorder %s34, 3
      %p561 = pnand %p559, %p560
      %p562 = pneg %p561
      // Predicated region
      $region9: #{distill_wrapper_forward.7} parent=5 // pred_check
        _
      $region10: #{distill_wrapper_forward.7} parent=5 // pred_check_branch
        %564 = sbr.rel (%p561) target = $region12
      $region11: #{distill_wrapper_forward.7} parent=5 // pred_region
        %s565 = ssub.s32 %s34, 1
        // Predicated region
        $region13: #{distill_wrapper_forward.7} parent=11 // pred_check
          %p566 = pneg %p55
        $region14: #{distill_wrapper_forward.7} parent=11 // pred_check_branch
          %568 = sbr.rel (%p566) target = $region16
        $region15: #{distill_wrapper_forward.7} parent=11 // pred_region
          %s570 = ssub.s32 256, 256
          %571 = vsyncadd [#allocation4], %s570
          %s573 = sshll.u32 [#allocation3], 4
          %s574 = int_to_ptr.vmem [resolvable:$true] %s573
          %576 = dma.hbm_to_vmem [thread:$0]  %s0, 256, %s574, [#allocation4]
        $region16: #{distill_wrapper_forward.7} parent=11 // pred_fallthru
          _
        // Predicated region
        $region17: #{distill_wrapper_forward.7} parent=11 // pred_check
          %p577 = pneg %p76
        $region18: #{distill_wrapper_forward.7} parent=11 // pred_check_branch
          %579 = sbr.rel (%p577) target = $region20
        $region19: #{distill_wrapper_forward.7} parent=11 // pred_region
          %s581 = ssub.s32 32, 32
          %582 = vsyncadd [#allocation7], %s581
          %s584 = sshll.u32 [#allocation6], 4
          %s585 = int_to_ptr.vmem [resolvable:$true] %s584
          %587 = dma.hbm_to_vmem [thread:$0]  %s1, 32, %s585, [#allocation7]
        $region20: #{distill_wrapper_forward.7} parent=11 // pred_fallthru
          _
        // Predicated region
        $region21: #{distill_wrapper_forward.7} parent=11 // pred_check
          %p588 = pneg %p97
        $region22: #{distill_wrapper_forward.7} parent=11 // pred_check_branch
          %590 = sbr.rel (%p588) target = $region24
        $region23: #{distill_wrapper_forward.7} parent=11 // pred_region
          %s592 = ssub.s32 32, 32
          %593 = vsyncadd [#allocation7], %s592
          %s595 = sshll.u32 [#allocation8], 4
          %s596 = int_to_ptr.vmem [resolvable:$true] %s595
          %598 = dma.hbm_to_vmem [thread:$0]  %s2, 32, %s596, [#allocation7]
        $region24: #{distill_wrapper_forward.7} parent=11 // pred_fallthru
          _
        // Predicated region
        $region25: #{distill_wrapper_forward.7} parent=11 // pred_check
          %p599 = pneg %p118
        $region26: #{distill_wrapper_forward.7} parent=11 // pred_check_branch
          %601 = sbr.rel (%p599) target = $region28
        $region27: #{distill_wrapper_forward.7} parent=11 // pred_region
          %s603 = ssub.s32 1536, 1536
          %604 = vsyncadd [#allocation10], %s603
          %s605 = sshll.u32 [#allocation9], 4
          %s606 = int_to_ptr.vmem [resolvable:$true] %s605
          %611 = dma.hbm_to_vmem [thread:$0]  %s3, 1536, %s606, [#allocation10], 64, 64, 4
        $region28: #{distill_wrapper_forward.7} parent=11 // pred_fallthru
          _
        // Predicated region
        $region29: #{distill_wrapper_forward.7} parent=11 // pred_check
          %p612 = pneg %p139
        $region30: #{distill_wrapper_forward.7} parent=11 // pred_check_branch
          %614 = sbr.rel (%p612) target = $region32
        $region31: #{distill_wrapper_forward.7} parent=11 // pred_region
          %s616 = ssub.s32 16, 16
          %617 = vsyncadd [#allocation10], %s616
          %s619 = sshll.u32 [#allocation11], 4
          %s620 = int_to_ptr.vmem [resolvable:$true] %s619
          %622 = dma.hbm_to_vmem [thread:$0]  %s4, 16, %s620, [#allocation10]
        $region32: #{distill_wrapper_forward.7} parent=11 // pred_fallthru
          _
        // Predicated region
        $region33: #{distill_wrapper_forward.7} parent=11 // pred_check
          %p623 = pneg %p160
        $region34: #{distill_wrapper_forward.7} parent=11 // pred_check_branch
          %625 = sbr.rel (%p623) target = $region36
        $region35: #{distill_wrapper_forward.7} parent=11 // pred_region
          %s627 = ssub.s32 16, 16
          %628 = vsyncadd [#allocation13], %s627
          %s630 = sshll.u32 [#allocation12], 4
          %s631 = int_to_ptr.vmem [resolvable:$true] %s630
          %633 = dma.hbm_to_vmem [thread:$0]  %s5, 16, %s631, [#allocation13]
        $region36: #{distill_wrapper_forward.7} parent=11 // pred_fallthru
          _
        // Predicated region
        $region37: #{distill_wrapper_forward.7} parent=11 // pred_check
          %p634 = pneg %p181
        $region38: #{distill_wrapper_forward.7} parent=11 // pred_check_branch
          %636 = sbr.rel (%p634) target = $region40
        $region39: #{distill_wrapper_forward.7} parent=11 // pred_region
          %s638 = ssub.s32 16, 16
          %639 = vsyncadd [#allocation13], %s638
          %s641 = sshll.u32 [#allocation14], 4
          %s642 = int_to_ptr.vmem [resolvable:$true] %s641
          %644 = dma.hbm_to_vmem [thread:$0]  %s6, 16, %s642, [#allocation13]
        $region40: #{distill_wrapper_forward.7} parent=11 // pred_fallthru
          _
        // Predicated region
        $region41: #{distill_wrapper_forward.7} parent=11 // pred_check
          %p645 = pneg %p202
        $region42: #{distill_wrapper_forward.7} parent=11 // pred_check_branch
          %647 = sbr.rel (%p645) target = $region44
        $region43: #{distill_wrapper_forward.7} parent=11 // pred_region
          %s649 = ssub.s32 16, 16
          %650 = vsyncadd [#allocation16], %s649
          %s652 = sshll.u32 [#allocation15], 4
          %s653 = int_to_ptr.vmem [resolvable:$true] %s652
          %655 = dma.hbm_to_vmem [thread:$0]  %s7, 16, %s653, [#allocation16]
        $region44: #{distill_wrapper_forward.7} parent=11 // pred_fallthru
          _
        // Predicated region
        $region45: #{distill_wrapper_forward.7} parent=11 // pred_check
          %p656 = pneg %p223
        $region46: #{distill_wrapper_forward.7} parent=11 // pred_check_branch
          %658 = sbr.rel (%p656) target = $region48
        $region47: #{distill_wrapper_forward.7} parent=11 // pred_region
          %s660 = ssub.s32 128, 128
          %661 = vsyncadd [#allocation16], %s660
          %s663 = sshll.u32 [#allocation17], 4
          %s664 = int_to_ptr.vmem [resolvable:$true] %s663
          %666 = dma.hbm_to_vmem [thread:$0]  %s8, 128, %s664, [#allocation16]
        $region48: #{distill_wrapper_forward.7} parent=11 // pred_fallthru
          _
        // Predicated region
        $region49: #{distill_wrapper_forward.7} parent=11 // pred_check
          %p667 = pneg %p244
        $region50: #{distill_wrapper_forward.7} parent=11 // pred_check_branch
          %669 = sbr.rel (%p667) target = $region52
        $region51: #{distill_wrapper_forward.7} parent=11 // pred_region
          %s671 = ssub.s32 16, 16
          %672 = vsyncadd [#allocation19], %s671
          %s674 = sshll.u32 [#allocation18], 4
          %s675 = int_to_ptr.vmem [resolvable:$true] %s674
          %677 = dma.hbm_to_vmem [thread:$0]  %s9, 16, %s675, [#allocation19]
        $region52: #{distill_wrapper_forward.7} parent=11 // pred_fallthru
          _
      $region12: #{distill_wrapper_forward.7} parent=5 // pred_fallthru
        _
      %p678 = scmp.lt.s32.totalorder %s34, 2
      // Predicated region
      $region53: #{distill_wrapper_forward.7} parent=5 // pred_check
        %p679 = pneg %p678
      $region54: #{distill_wrapper_forward.7} parent=5 // pred_check_branch
        %681 = sbr.rel (%p679) target = $region56
      $region55: #{distill_wrapper_forward.7} parent=5 // pred_region
        // Predicated region
        $region57: #{distill_wrapper_forward.7} parent=55 // pred_check
          %p682 = pneg %p264
        $region58: #{distill_wrapper_forward.7} parent=55 // pred_check_branch
          %684 = sbr.rel (%p682) target = $region60
        $region59: #{distill_wrapper_forward.7} parent=55 // pred_region
          %s685 = sand.u32 %s34, 1
          %s686 = scalar_lea.sflag [#allocation4], %s685
          %s687 = sand.u32 %s254, 1
          %s688 = scalar_lea.vmem [#allocation20], %s687
          %s690 = ssub.s32 16, 16
          %691 = vsyncadd %s686, %s690
          %s692 = smul.addr %s34, 16
          %s693 = scalar_lea.hbm %s10, %s692
          %s695 = sshll.u32 %s688, 4
          %s696 = int_to_ptr.vmem [resolvable:$true] %s695
          %698 = dma.hbm_to_vmem [thread:$0]  %s693, 16, %s696, %s686
        $region60: #{distill_wrapper_forward.7} parent=55 // pred_fallthru
          _
        // Predicated region
        $region61: #{distill_wrapper_forward.7} parent=55 // pred_check
          %p699 = pneg %p290
        $region62: #{distill_wrapper_forward.7} parent=55 // pred_check_branch
          %701 = sbr.rel (%p699) target = $region64
        $region63: #{distill_wrapper_forward.7} parent=55 // pred_region
          %s702 = sand.u32 %s34, 1
          %s703 = scalar_lea.sflag [#allocation4], %s702
          %s704 = sand.u32 %s280, 1
          %s705 = scalar_lea.vmem [#allocation21], %s704
          %s707 = ssub.s32 16, 16
          %708 = vsyncadd %s703, %s707
          %s709 = smul.addr %s34, 16
          %s710 = scalar_lea.hbm %s11, %s709
          %s712 = sshll.u32 %s705, 4
          %s713 = int_to_ptr.vmem [resolvable:$true] %s712
          %715 = dma.hbm_to_vmem [thread:$0]  %s710, 16, %s713, %s703
        $region64: #{distill_wrapper_forward.7} parent=55 // pred_fallthru
          _
        // Predicated region
        $region65: #{distill_wrapper_forward.7} parent=55 // pred_check
          %p716 = pneg %p316
        $region66: #{distill_wrapper_forward.7} parent=55 // pred_check_branch
          %718 = sbr.rel (%p716) target = $region68
        $region67: #{distill_wrapper_forward.7} parent=55 // pred_region
          %s719 = sand.u32 %s34, 1
          %s720 = scalar_lea.sflag [#allocation4], %s719
          %s721 = sand.u32 %s306, 1
          %s722 = smul.addr %s721, 16
          %s723 = scalar_lea.vmem [#allocation22], %s722
          %s725 = ssub.s32 256, 256
          %726 = vsyncadd %s720, %s725
          %s727 = smul.addr %s34, 4
          %s728 = smul.addr %s727, 64
          %s729 = scalar_lea.hbm %s12, %s728
          %s730 = sshll.u32 %s723, 4
          %s731 = int_to_ptr.vmem [resolvable:$true] %s730
          %736 = dma.hbm_to_vmem [thread:$0]  %s729, 256, %s731, %s720, 64, 64, 4
        $region68: #{distill_wrapper_forward.7} parent=55 // pred_fallthru
          _
        // Predicated region
        $region69: #{distill_wrapper_forward.7} parent=55 // pred_check
          %p737 = pneg %p342
        $region70: #{distill_wrapper_forward.7} parent=55 // pred_check_branch
          %739 = sbr.rel (%p737) target = $region72
        $region71: #{distill_wrapper_forward.7} parent=55 // pred_region
          %s740 = sand.u32 %s34, 1
          %s741 = scalar_lea.sflag [#allocation4], %s740
          %s742 = sand.u32 %s332, 1
          %s743 = smul.addr %s742, 16
          %s744 = scalar_lea.vmem [#allocation23], %s743
          %s746 = ssub.s32 256, 256
          %747 = vsyncadd %s741, %s746
          %s748 = smul.addr %s34, 4
          %s749 = smul.addr %s748, 64
          %s750 = scalar_lea.hbm %s13, %s749
          %s751 = sshll.u32 %s744, 4
          %s752 = int_to_ptr.vmem [resolvable:$true] %s751
          %757 = dma.hbm_to_vmem [thread:$0]  %s750, 256, %s752, %s741, 64, 64, 4
        $region72: #{distill_wrapper_forward.7} parent=55 // pred_fallthru
          _
        // Predicated region
        $region73: #{distill_wrapper_forward.7} parent=55 // pred_check
          %p758 = pneg %p368
        $region74: #{distill_wrapper_forward.7} parent=55 // pred_check_branch
          %760 = sbr.rel (%p758) target = $region76
        $region75: #{distill_wrapper_forward.7} parent=55 // pred_region
          %s761 = sand.u32 %s34, 1
          %s762 = scalar_lea.sflag [#allocation4], %s761
          %s763 = sand.u32 %s358, 1
          %s764 = scalar_lea.vmem [#allocation24], %s763
          %s766 = ssub.s32 16, 16
          %767 = vsyncadd %s762, %s766
          %s768 = smul.addr %s34, 16
          %s769 = scalar_lea.hbm %s14, %s768
          %s771 = sshll.u32 %s764, 4
          %s772 = int_to_ptr.vmem [resolvable:$true] %s771
          %774 = dma.hbm_to_vmem [thread:$0]  %s769, 16, %s772, %s762
        $region76: #{distill_wrapper_forward.7} parent=55 // pred_fallthru
          _
        // Predicated region
        $region77: #{distill_wrapper_forward.7} parent=55 // pred_check
          %p775 = pneg %p394
        $region78: #{distill_wrapper_forward.7} parent=55 // pred_check_branch
          %777 = sbr.rel (%p775) target = $region80
        $region79: #{distill_wrapper_forward.7} parent=55 // pred_region
          %s778 = sand.u32 %s34, 1
          %s779 = scalar_lea.sflag [#allocation4], %s778
          %s780 = sand.u32 %s384, 1
          %s781 = scalar_lea.vmem [#allocation25], %s780
          %s783 = ssub.s32 16, 16
          %784 = vsyncadd %s779, %s783
          %s785 = smul.addr %s34, 16
          %s786 = scalar_lea.hbm %s15, %s785
          %s788 = sshll.u32 %s781, 4
          %s789 = int_to_ptr.vmem [resolvable:$true] %s788
          %791 = dma.hbm_to_vmem [thread:$0]  %s786, 16, %s789, %s779
        $region80: #{distill_wrapper_forward.7} parent=55 // pred_fallthru
          _
        // Predicated region
        $region81: #{distill_wrapper_forward.7} parent=55 // pred_check
          %p792 = pneg %p420
        $region82: #{distill_wrapper_forward.7} parent=55 // pred_check_branch
          %794 = sbr.rel (%p792) target = $region84
        $region83: #{distill_wrapper_forward.7} parent=55 // pred_region
          %s795 = sand.u32 %s34, 1
          %s796 = scalar_lea.sflag [#allocation4], %s795
          %s797 = sand.u32 %s410, 1
          %s798 = scalar_lea.vmem [#allocation26], %s797
          %s800 = ssub.s32 16, 16
          %801 = vsyncadd %s796, %s800
          %s802 = smul.addr %s34, 16
          %s803 = scalar_lea.hbm %s16, %s802
          %s805 = sshll.u32 %s798, 4
          %s806 = int_to_ptr.vmem [resolvable:$true] %s805
          %808 = dma.hbm_to_vmem [thread:$0]  %s803, 16, %s806, %s796
        $region84: #{distill_wrapper_forward.7} parent=55 // pred_fallthru
          _
        // Predicated region
        $region85: #{distill_wrapper_forward.7} parent=55 // pred_check
          %p809 = pneg %p446
        $region86: #{distill_wrapper_forward.7} parent=55 // pred_check_branch
          %811 = sbr.rel (%p809) target = $region88
        $region87: #{distill_wrapper_forward.7} parent=55 // pred_region
          %s812 = sand.u32 %s34, 1
          %s813 = scalar_lea.sflag [#allocation4], %s812
          %s814 = sand.u32 %s436, 1
          %s815 = smul.addr %s814, 16
          %s816 = scalar_lea.vmem [#allocation27], %s815
          %s818 = ssub.s32 256, 256
          %819 = vsyncadd %s813, %s818
          %s820 = smul.addr %s34, 4
          %s821 = smul.addr %s820, 64
          %s822 = scalar_lea.hbm %s17, %s821
          %s823 = sshll.u32 %s816, 4
          %s824 = int_to_ptr.vmem [resolvable:$true] %s823
          %829 = dma.hbm_to_vmem [thread:$0]  %s822, 256, %s824, %s813, 64, 64, 4
        $region88: #{distill_wrapper_forward.7} parent=55 // pred_fallthru
          _
        // Predicated region
        $region89: #{distill_wrapper_forward.7} parent=55 // pred_check
          %p830 = pneg %p472
        $region90: #{distill_wrapper_forward.7} parent=55 // pred_check_branch
          %832 = sbr.rel (%p830) target = $region92
        $region91: #{distill_wrapper_forward.7} parent=55 // pred_region
          %s833 = sand.u32 %s34, 1
          %s834 = scalar_lea.sflag [#allocation4], %s833
          %s835 = sand.u32 %s462, 1
          %s836 = scalar_lea.vmem [#allocation28], %s835
          %s838 = ssub.s32 16, 16
          %839 = vsyncadd %s834, %s838
          %s840 = smul.addr %s34, 16
          %s841 = scalar_lea.hbm %s18, %s840
          %s843 = sshll.u32 %s836, 4
          %s844 = int_to_ptr.vmem [resolvable:$true] %s843
          %846 = dma.hbm_to_vmem [thread:$0]  %s841, 16, %s844, %s834
        $region92: #{distill_wrapper_forward.7} parent=55 // pred_fallthru
          _
        // Predicated region
        $region93: #{distill_wrapper_forward.7} parent=55 // pred_check
          %p847 = pneg %p498
        $region94: #{distill_wrapper_forward.7} parent=55 // pred_check_branch
          %849 = sbr.rel (%p847) target = $region96
        $region95: #{distill_wrapper_forward.7} parent=55 // pred_region
          %s850 = sand.u32 %s34, 1
          %s851 = scalar_lea.sflag [#allocation4], %s850
          %s852 = sand.u32 %s488, 1
          %s853 = smul.addr %s852, 32
          %s854 = scalar_lea.vmem [#allocation29], %s853
          %s856 = ssub.s32 512, 512
          %857 = vsyncadd %s851, %s856
          %s858 = smul.addr %s34, 8
          %s859 = smul.addr %s858, 64
          %s860 = scalar_lea.hbm %s19, %s859
          %s861 = sshll.u32 %s854, 4
          %s862 = int_to_ptr.vmem [resolvable:$true] %s861
          %867 = dma.hbm_to_vmem [thread:$0]  %s860, 512, %s862, %s851, 64, 64, 4
        $region96: #{distill_wrapper_forward.7} parent=55 // pred_fallthru
          _
        // Predicated region
        $region97: #{distill_wrapper_forward.7} parent=55 // pred_check
          %p868 = pneg %p524
        $region98: #{distill_wrapper_forward.7} parent=55 // pred_check_branch
          %870 = sbr.rel (%p868) target = $region100
        $region99: #{distill_wrapper_forward.7} parent=55 // pred_region
          %s871 = sand.u32 %s34, 1
          %s872 = scalar_lea.sflag [#allocation4], %s871
          %s873 = sand.u32 %s514, 1
          %s874 = scalar_lea.vmem [#allocation30], %s873
          %s876 = ssub.s32 16, 16
          %877 = vsyncadd %s872, %s876
          %s878 = smul.addr %s34, 16
          %s879 = scalar_lea.hbm %s20, %s878
          %s881 = sshll.u32 %s874, 4
          %s882 = int_to_ptr.vmem [resolvable:$true] %s881
          %884 = dma.hbm_to_vmem [thread:$0]  %s879, 16, %s882, %s872
        $region100: #{distill_wrapper_forward.7} parent=55 // pred_fallthru
          _
      $region56: #{distill_wrapper_forward.7} parent=5 // pred_fallthru
        _
      %p885 = scmp.le.s32.totalorder 1, %s34
      %p886 = scmp.lt.s32.totalorder %s34, 3
      %p887 = pnand %p885, %p886
      %p888 = pneg %p887
      // Predicated region
      $region101: #{distill_wrapper_forward.7} parent=5 // pred_check
        _
      $region102: #{distill_wrapper_forward.7} parent=5 // pred_check_branch
        %890 = sbr.rel (%p887) target = $region104
      $region103: #{distill_wrapper_forward.7} parent=5 // pred_region
        %s891 = ssub.s32 %s34, 1
        // Predicated region
        $region105: #{distill_wrapper_forward.7} parent=103 // pred_check
          %p892 = pneg %p55
        $region106: #{distill_wrapper_forward.7} parent=103 // pred_check_branch
          %894 = sbr.rel (%p892) target = $region108
        $region107: #{distill_wrapper_forward.7} parent=103 // pred_region
          %895 = dma.done [#allocation4], 256
        $region108: #{distill_wrapper_forward.7} parent=103 // pred_fallthru
          _
        // Predicated region
        $region109: #{distill_wrapper_forward.7} parent=103 // pred_check
          %p896 = pneg %p76
        $region110: #{distill_wrapper_forward.7} parent=103 // pred_check_branch
          %898 = sbr.rel (%p896) target = $region112
        $region111: #{distill_wrapper_forward.7} parent=103 // pred_region
          %899 = dma.done [#allocation7], 32
        $region112: #{distill_wrapper_forward.7} parent=103 // pred_fallthru
          _
        // Predicated region
        $region113: #{distill_wrapper_forward.7} parent=103 // pred_check
          %p900 = pneg %p97
        $region114: #{distill_wrapper_forward.7} parent=103 // pred_check_branch
          %902 = sbr.rel (%p900) target = $region116
        $region115: #{distill_wrapper_forward.7} parent=103 // pred_region
          %903 = dma.done [#allocation7], 32
        $region116: #{distill_wrapper_forward.7} parent=103 // pred_fallthru
          _
        // Predicated region
        $region117: #{distill_wrapper_forward.7} parent=103 // pred_check
          %p904 = pneg %p118
        $region118: #{distill_wrapper_forward.7} parent=103 // pred_check_branch
          %906 = sbr.rel (%p904) target = $region120
        $region119: #{distill_wrapper_forward.7} parent=103 // pred_region
          %907 = dma.done [#allocation10], 1536
        $region120: #{distill_wrapper_forward.7} parent=103 // pred_fallthru
          _
        // Predicated region
        $region121: #{distill_wrapper_forward.7} parent=103 // pred_check
          %p908 = pneg %p139
        $region122: #{distill_wrapper_forward.7} parent=103 // pred_check_branch
          %910 = sbr.rel (%p908) target = $region124
        $region123: #{distill_wrapper_forward.7} parent=103 // pred_region
          %911 = dma.done [#allocation10], 16
        $region124: #{distill_wrapper_forward.7} parent=103 // pred_fallthru
          _
        // Predicated region
        $region125: #{distill_wrapper_forward.7} parent=103 // pred_check
          %p912 = pneg %p160
        $region126: #{distill_wrapper_forward.7} parent=103 // pred_check_branch
          %914 = sbr.rel (%p912) target = $region128
        $region127: #{distill_wrapper_forward.7} parent=103 // pred_region
          %915 = dma.done [#allocation13], 16
        $region128: #{distill_wrapper_forward.7} parent=103 // pred_fallthru
          _
        // Predicated region
        $region129: #{distill_wrapper_forward.7} parent=103 // pred_check
          %p916 = pneg %p181
        $region130: #{distill_wrapper_forward.7} parent=103 // pred_check_branch
          %918 = sbr.rel (%p916) target = $region132
        $region131: #{distill_wrapper_forward.7} parent=103 // pred_region
          %919 = dma.done [#allocation13], 16
        $region132: #{distill_wrapper_forward.7} parent=103 // pred_fallthru
          _
        // Predicated region
        $region133: #{distill_wrapper_forward.7} parent=103 // pred_check
          %p920 = pneg %p202
        $region134: #{distill_wrapper_forward.7} parent=103 // pred_check_branch
          %922 = sbr.rel (%p920) target = $region136
        $region135: #{distill_wrapper_forward.7} parent=103 // pred_region
          %923 = dma.done [#allocation16], 16
        $region136: #{distill_wrapper_forward.7} parent=103 // pred_fallthru
          _
        // Predicated region
        $region137: #{distill_wrapper_forward.7} parent=103 // pred_check
          %p924 = pneg %p223
        $region138: #{distill_wrapper_forward.7} parent=103 // pred_check_branch
          %926 = sbr.rel (%p924) target = $region140
        $region139: #{distill_wrapper_forward.7} parent=103 // pred_region
          %927 = dma.done [#allocation16], 128
        $region140: #{distill_wrapper_forward.7} parent=103 // pred_fallthru
          _
        // Predicated region
        $region141: #{distill_wrapper_forward.7} parent=103 // pred_check
          %p928 = pneg %p244
        $region142: #{distill_wrapper_forward.7} parent=103 // pred_check_branch
          %930 = sbr.rel (%p928) target = $region144
        $region143: #{distill_wrapper_forward.7} parent=103 // pred_region
          %931 = dma.done [#allocation19], 16
        $region144: #{distill_wrapper_forward.7} parent=103 // pred_fallthru
          _
        %s932 = sand.u32 %s39, 1
        %s933 = scalar_lea.sflag [#allocation4], %s932
        %s934 = sand.u32 %s257, 1
        %s935 = scalar_lea.vmem [#allocation20], %s934
        // Predicated region
        $region145: #{distill_wrapper_forward.7} parent=103 // pred_check
          %p936 = pneg %p270
        $region146: #{distill_wrapper_forward.7} parent=103 // pred_check_branch
          %938 = sbr.rel (%p936) target = $region148
        $region147: #{distill_wrapper_forward.7} parent=103 // pred_region
          %939 = dma.done %s933, 16
        $region148: #{distill_wrapper_forward.7} parent=103 // pred_fallthru
          _
        %s940 = sand.u32 %s39, 1
        %s941 = scalar_lea.sflag [#allocation4], %s940
        %s942 = sand.u32 %s283, 1
        %s943 = scalar_lea.vmem [#allocation21], %s942
        // Predicated region
        $region149: #{distill_wrapper_forward.7} parent=103 // pred_check
          %p944 = pneg %p296
        $region150: #{distill_wrapper_forward.7} parent=103 // pred_check_branch
          %946 = sbr.rel (%p944) target = $region152
        $region151: #{distill_wrapper_forward.7} parent=103 // pred_region
          %947 = dma.done %s941, 16
        $region152: #{distill_wrapper_forward.7} parent=103 // pred_fallthru
          _
        %s948 = sand.u32 %s39, 1
        %s949 = scalar_lea.sflag [#allocation4], %s948
        %s950 = sand.u32 %s309, 1
        %s951 = smul.addr %s950, 16
        %s952 = scalar_lea.vmem [#allocation22], %s951
        // Predicated region
        $region153: #{distill_wrapper_forward.7} parent=103 // pred_check
          %p953 = pneg %p322
        $region154: #{distill_wrapper_forward.7} parent=103 // pred_check_branch
          %955 = sbr.rel (%p953) target = $region156
        $region155: #{distill_wrapper_forward.7} parent=103 // pred_region
          %956 = dma.done %s949, 256
        $region156: #{distill_wrapper_forward.7} parent=103 // pred_fallthru
          _
        %s957 = sand.u32 %s39, 1
        %s958 = scalar_lea.sflag [#allocation4], %s957
        %s959 = sand.u32 %s335, 1
        %s960 = smul.addr %s959, 16
        %s961 = scalar_lea.vmem [#allocation23], %s960
        // Predicated region
        $region157: #{distill_wrapper_forward.7} parent=103 // pred_check
          %p962 = pneg %p348
        $region158: #{distill_wrapper_forward.7} parent=103 // pred_check_branch
          %964 = sbr.rel (%p962) target = $region160
        $region159: #{distill_wrapper_forward.7} parent=103 // pred_region
          %965 = dma.done %s958, 256
        $region160: #{distill_wrapper_forward.7} parent=103 // pred_fallthru
          _
        %s966 = sand.u32 %s39, 1
        %s967 = scalar_lea.sflag [#allocation4], %s966
        %s968 = sand.u32 %s361, 1
        %s969 = scalar_lea.vmem [#allocation24], %s968
        // Predicated region
        $region161: #{distill_wrapper_forward.7} parent=103 // pred_check
          %p970 = pneg %p374
        $region162: #{distill_wrapper_forward.7} parent=103 // pred_check_branch
          %972 = sbr.rel (%p970) target = $region164
        $region163: #{distill_wrapper_forward.7} parent=103 // pred_region
          %973 = dma.done %s967, 16
        $region164: #{distill_wrapper_forward.7} parent=103 // pred_fallthru
          _
        %s974 = sand.u32 %s39, 1
        %s975 = scalar_lea.sflag [#allocation4], %s974
        %s976 = sand.u32 %s387, 1
        %s977 = scalar_lea.vmem [#allocation25], %s976
        // Predicated region
        $region165: #{distill_wrapper_forward.7} parent=103 // pred_check
          %p978 = pneg %p400
        $region166: #{distill_wrapper_forward.7} parent=103 // pred_check_branch
          %980 = sbr.rel (%p978) target = $region168
        $region167: #{distill_wrapper_forward.7} parent=103 // pred_region
          %981 = dma.done %s975, 16
        $region168: #{distill_wrapper_forward.7} parent=103 // pred_fallthru
          _
        %s982 = sand.u32 %s39, 1
        %s983 = scalar_lea.sflag [#allocation4], %s982
        %s984 = sand.u32 %s413, 1
        %s985 = scalar_lea.vmem [#allocation26], %s984
        // Predicated region
        $region169: #{distill_wrapper_forward.7} parent=103 // pred_check
          %p986 = pneg %p426
        $region170: #{distill_wrapper_forward.7} parent=103 // pred_check_branch
          %988 = sbr.rel (%p986) target = $region172
        $region171: #{distill_wrapper_forward.7} parent=103 // pred_region
          %989 = dma.done %s983, 16
        $region172: #{distill_wrapper_forward.7} parent=103 // pred_fallthru
          _
        %s990 = sand.u32 %s39, 1
        %s991 = scalar_lea.sflag [#allocation4], %s990
        %s992 = sand.u32 %s439, 1
        %s993 = smul.addr %s992, 16
        %s994 = scalar_lea.vmem [#allocation27], %s993
        // Predicated region
        $region173: #{distill_wrapper_forward.7} parent=103 // pred_check
          %p995 = pneg %p452
        $region174: #{distill_wrapper_forward.7} parent=103 // pred_check_branch
          %997 = sbr.rel (%p995) target = $region176
        $region175: #{distill_wrapper_forward.7} parent=103 // pred_region
          %998 = dma.done %s991, 256
        $region176: #{distill_wrapper_forward.7} parent=103 // pred_fallthru
          _
        %s999 = sand.u32 %s39, 1
        %s1000 = scalar_lea.sflag [#allocation4], %s999
        %s1001 = sand.u32 %s465, 1
        %s1002 = scalar_lea.vmem [#allocation28], %s1001
        // Predicated region
        $region177: #{distill_wrapper_forward.7} parent=103 // pred_check
          %p1003 = pneg %p478
        $region178: #{distill_wrapper_forward.7} parent=103 // pred_check_branch
          %1005 = sbr.rel (%p1003) target = $region180
        $region179: #{distill_wrapper_forward.7} parent=103 // pred_region
          %1006 = dma.done %s1000, 16
        $region180: #{distill_wrapper_forward.7} parent=103 // pred_fallthru
          _
        %s1007 = sand.u32 %s39, 1
        %s1008 = scalar_lea.sflag [#allocation4], %s1007
        %s1009 = sand.u32 %s491, 1
        %s1010 = smul.addr %s1009, 32
        %s1011 = scalar_lea.vmem [#allocation29], %s1010
        // Predicated region
        $region181: #{distill_wrapper_forward.7} parent=103 // pred_check
          %p1012 = pneg %p504
        $region182: #{distill_wrapper_forward.7} parent=103 // pred_check_branch
          %1014 = sbr.rel (%p1012) target = $region184
        $region183: #{distill_wrapper_forward.7} parent=103 // pred_region
          %1015 = dma.done %s1008, 512
        $region184: #{distill_wrapper_forward.7} parent=103 // pred_fallthru
          _
        %s1016 = sand.u32 %s39, 1
        %s1017 = scalar_lea.sflag [#allocation4], %s1016
        %s1018 = sand.u32 %s517, 1
        %s1019 = scalar_lea.vmem [#allocation30], %s1018
        // Predicated region
        $region185: #{distill_wrapper_forward.7} parent=103 // pred_check
          %p1020 = pneg %p530
        $region186: #{distill_wrapper_forward.7} parent=103 // pred_check_branch
          %1022 = sbr.rel (%p1020) target = $region188
        $region187: #{distill_wrapper_forward.7} parent=103 // pred_region
          %1023 = dma.done %s1017, 16
        $region188: #{distill_wrapper_forward.7} parent=103 // pred_fallthru
          _
        %p1024 = pneg %p55
        %p1025 = pneg %p52
        %p1026 = pneg %p76
        %p1027 = pneg %p73
        %p1028 = pneg %p97
        %p1029 = pneg %p94
        %p1030 = pneg %p118
        %p1031 = pneg %p115
        %p1032 = pneg %p139
        %p1033 = pneg %p136
        %p1034 = pneg %p160
        %p1035 = pneg %p157
        %p1036 = pneg %p181
        %p1037 = pneg %p178
        %p1038 = pneg %p202
        %p1039 = pneg %p199
        %p1040 = pneg %p223
        %p1041 = pneg %p220
        %p1042 = pneg %p244
        %p1043 = pneg %p241
        %s1044 = sand.u32 %s39, 1
        %s1045 = scalar_lea.sflag [#allocation4], %s1044
        %s1046 = sand.u32 %s257, 1
        %s1047 = scalar_lea.vmem [#allocation20], %s1046
        %p1048 = pneg %p270
        %p1049 = pneg %p267
        %s1050 = sand.u32 %s39, 1
        %s1051 = scalar_lea.sflag [#allocation4], %s1050
        %s1052 = sand.u32 %s283, 1
        %s1053 = scalar_lea.vmem [#allocation21], %s1052
        %p1054 = pneg %p296
        %p1055 = pneg %p293
        %s1056 = sand.u32 %s39, 1
        %s1057 = scalar_lea.sflag [#allocation4], %s1056
        %s1058 = sand.u32 %s309, 1
        %s1059 = smul.addr %s1058, 16
        %s1060 = scalar_lea.vmem [#allocation22], %s1059
        %p1061 = pneg %p322
        %p1062 = pneg %p319
        %s1063 = sand.u32 %s39, 1
        %s1064 = scalar_lea.sflag [#allocation4], %s1063
        %s1065 = sand.u32 %s335, 1
        %s1066 = smul.addr %s1065, 16
        %s1067 = scalar_lea.vmem [#allocation23], %s1066
        %p1068 = pneg %p348
        %p1069 = pneg %p345
        %s1070 = sand.u32 %s39, 1
        %s1071 = scalar_lea.sflag [#allocation4], %s1070
        %s1072 = sand.u32 %s361, 1
        %s1073 = scalar_lea.vmem [#allocation24], %s1072
        %p1074 = pneg %p374
        %p1075 = pneg %p371
        %s1076 = sand.u32 %s39, 1
        %s1077 = scalar_lea.sflag [#allocation4], %s1076
        %s1078 = sand.u32 %s387, 1
        %s1079 = scalar_lea.vmem [#allocation25], %s1078
        %p1080 = pneg %p400
        %p1081 = pneg %p397
        %s1082 = sand.u32 %s39, 1
        %s1083 = scalar_lea.sflag [#allocation4], %s1082
        %s1084 = sand.u32 %s413, 1
        %s1085 = scalar_lea.vmem [#allocation26], %s1084
        %p1086 = pneg %p426
        %p1087 = pneg %p423
        %s1088 = sand.u32 %s39, 1
        %s1089 = scalar_lea.sflag [#allocation4], %s1088
        %s1090 = sand.u32 %s439, 1
        %s1091 = smul.addr %s1090, 16
        %s1092 = scalar_lea.vmem [#allocation27], %s1091
        %p1093 = pneg %p452
        %p1094 = pneg %p449
        %s1095 = sand.u32 %s39, 1
        %s1096 = scalar_lea.sflag [#allocation4], %s1095
        %s1097 = sand.u32 %s465, 1
        %s1098 = scalar_lea.vmem [#allocation28], %s1097
        %p1099 = pneg %p478
        %p1100 = pneg %p475
        %s1101 = sand.u32 %s39, 1
        %s1102 = scalar_lea.sflag [#allocation4], %s1101
        %s1103 = sand.u32 %s491, 1
        %s1104 = smul.addr %s1103, 32
        %s1105 = scalar_lea.vmem [#allocation29], %s1104
        %p1106 = pneg %p504
        %p1107 = pneg %p501
        %s1108 = sand.u32 %s39, 1
        %s1109 = scalar_lea.sflag [#allocation4], %s1108
        %s1110 = sand.u32 %s517, 1
        %s1111 = scalar_lea.vmem [#allocation30], %s1110
        %p1112 = pneg %p530
        %p1113 = pneg %p527
        %p1114 = pneg %p551
        %p1115 = pneg %p548
        %p1117 = scmp.eq.s32.totalorder %s39, 0
        // Predicated region
        $region189: #{distill_wrapper_forward.7} parent=103 // pred_check
          %p1118 = pneg %p1117
        $region190: #{distill_wrapper_forward.7} parent=103 // pred_check_branch
          %1120 = sbr.rel (%p1118) target = $region192
        $region191: #{distill_wrapper_forward.7} parent=103 // pred_region
          %v1121 = vld [vmem:[#allocation3] sm:$0xff]
          %v1122 = vld [vmem:[#allocation3 + $0x8] sm:$0xff]
          %v1123 = vld [vmem:[#allocation6] sm:$0x3]
          %v1124 = vld [vmem:[#allocation8] sm:$0x3]
          %vm1125 = vcmask 523264
          %v1126 = vsel %vm1125, %v1122, 0.0
          %v1127 = vadd.f32 %v1121, %v1126
          %1128 = vadd.xlane.f32.xlu0 %v1127
          %v1129 = vpop.xlane.xlu0 %1128
          %v1130 = vrcp.pop 192.0
          %v1131 = vmul.f32 %v1129, %v1130
          %v1132 = vsub.f32 %v1121, %v1131
          %v1133 = vsub.f32 %v1122, %v1131
          %v1134 = vmul.f32 %v1132, %v1132
          %v1135 = vmul.f32 %v1133, %v1133
          %v1136 = vsel %vm1125, %v1135, 0.0
          %v1137 = vadd.f32 %v1134, %v1136
          %1138 = vadd.xlane.f32.xlu0 %v1137
          %v1139 = vpop.xlane.xlu0 %1138
          %v1140 = vmul.f32 %v1139, %v1130
          %v1141 = vadd.f32 %v1140, 1e-05
          %v1142 = vrsqrt.pop %v1141
          %v1143 = vmul.f32 %v1132, %v1142
          %v1144 = vmul.f32 %v1133, %v1142
          %v1146 = vlaneseq
          %v1147 = vshrl.u32 %v1146, 7
          %v1148 = vsub.s32 0, %v1147
          %v1149 = vrot.slane %v1123, %v1148
          %v1150 = vlaneseq
          %v1151 = vshrl.u32 %v1150, 7
          %v1152 = vsub.s32 1, %v1151
          %v1153 = vrot.slane %v1123, %v1152
          %v1156 = vmul.f32 %v1143, %v1149
          %v1157 = vmul.f32 %v1144, %v1153
          %v1159 = vlaneseq
          %v1160 = vshrl.u32 %v1159, 7
          %v1161 = vsub.s32 0, %v1160
          %v1162 = vrot.slane %v1124, %v1161
          %v1163 = vlaneseq
          %v1164 = vshrl.u32 %v1163, 7
          %v1165 = vsub.s32 1, %v1164
          %v1166 = vrot.slane %v1124, %v1165
          %v1169 = vadd.f32 %v1156, %v1162
          %v1170 = vadd.f32 %v1157, %v1166
          %v1171 = vpack.c.bf16 %v1169, %v1169
          %v1172 = vpack.c.bf16 %v1170, %v1170
          %v1173 = vld [vmem:[#allocation9] sm:$0xf]
          %v1174 = vld [vmem:[#allocation9 + $0x4] sm:$0xf]
          %v1175 = vld [vmem:[#allocation9 + $0x8] sm:$0xf]
          %v1176 = vld [vmem:[#allocation9 + $0xc] sm:$0xf]
          %v1177 = vld [vmem:[#allocation9 + $0x10] sm:$0xf]
          %v1178 = vld [vmem:[#allocation9 + $0x14] sm:$0xf]
          %v1179 = vld [vmem:[#allocation9 + $0x18] sm:$0xf]
          %v1180 = vld [vmem:[#allocation9 + $0x1c] sm:$0xf]
          %v1181 = vld [vmem:[#allocation9 + $0x20] sm:$0xf]
          %v1182 = vld [vmem:[#allocation9 + $0x24] sm:$0xf]
          %v1183 = vld [vmem:[#allocation9 + $0x28] sm:$0xf]
          %v1184 = vld [vmem:[#allocation9 + $0x2c] sm:$0xf]
          %v1185 = vld [vmem:[#allocation9 + $0x30] sm:$0xf]
          %v1186 = vld [vmem:[#allocation9 + $0x34] sm:$0xf]
          %v1187 = vld [vmem:[#allocation9 + $0x38] sm:$0xf]
          %v1188 = vld [vmem:[#allocation9 + $0x3c] sm:$0xf]
          %v1189 = vld [vmem:[#allocation9 + $0x40] sm:$0xf]
          %v1190 = vld [vmem:[#allocation9 + $0x44] sm:$0xf]
          %v1191 = vld [vmem:[#allocation9 + $0x48] sm:$0xf]
          %v1192 = vld [vmem:[#allocation9 + $0x4c] sm:$0xf]
          %v1193 = vld [vmem:[#allocation9 + $0x50] sm:$0xf]
          %v1194 = vld [vmem:[#allocation9 + $0x54] sm:$0xf]
          %v1195 = vld [vmem:[#allocation9 + $0x58] sm:$0xf]
          %v1196 = vld [vmem:[#allocation9 + $0x5c] sm:$0xf]
          %v1197 = vld [vmem:[#allocation11] sm:$0x1]
          %v1199 = vlaneseq
          %v1200 = vshrl.u32 %v1199, 7
          %v1201 = vsub.s32 0, %v1200
          %v1202 = vrot.slane %v1197, %v1201
          %v1228 = vunpack.c.l.b16 %v1173
          %v1229 = vunpack.c.l.b16 %v1174
          %v1230 = vunpack.c.l.b16 %v1175
          %v1231 = vunpack.c.l.b16 %v1176
          %v1232 = vunpack.c.l.b16 %v1177
          %v1233 = vunpack.c.l.b16 %v1178
          %v1234 = vunpack.c.l.b16 %v1179
          %v1235 = vunpack.c.l.b16 %v1180
          %v1236 = vunpack.c.l.b16 %v1181
          %v1237 = vunpack.c.l.b16 %v1182
          %v1238 = vunpack.c.l.b16 %v1183
          %v1239 = vunpack.c.l.b16 %v1184
          %v1240 = vunpack.c.l.b16 %v1185
          %v1241 = vunpack.c.l.b16 %v1186
          %v1242 = vunpack.c.l.b16 %v1187
          %v1243 = vunpack.c.l.b16 %v1188
          %v1244 = vunpack.c.l.b16 %v1189
          %v1245 = vunpack.c.l.b16 %v1190
          %v1246 = vunpack.c.l.b16 %v1191
          %v1247 = vunpack.c.l.b16 %v1192
          %v1248 = vunpack.c.l.b16 %v1193
          %v1249 = vunpack.c.l.b16 %v1194
          %v1250 = vunpack.c.l.b16 %v1195
          %v1251 = vunpack.c.l.b16 %v1196
          %v1252 = vpack.c.b16 %v1229, %v1228
          %v1253 = vpack.c.b16 %v1231, %v1230
          %v1254 = vpack.c.b16 %v1233, %v1232
          %v1255 = vpack.c.b16 %v1235, %v1234
          %v1256 = vpack.c.b16 %v1237, %v1236
          %v1257 = vpack.c.b16 %v1239, %v1238
          %v1258 = vpack.c.b16 %v1241, %v1240
          %v1259 = vpack.c.b16 %v1243, %v1242
          %v1260 = vpack.c.b16 %v1245, %v1244
          %v1261 = vpack.c.b16 %v1247, %v1246
          %v1262 = vpack.c.b16 %v1249, %v1248
          %v1263 = vpack.c.b16 %v1251, %v1250
          %v1277 = vsel %vm1125, %v1172, 0
          %1279 = vmatprep.subr.bf16.mxu0 0
          %1280 = vmatpush1.bf16.msra.mxu0 %v1252
          %1281 = vmatprep.subr.bf16.mxu0 0
          %1282 = vmatpush1.bf16.msra.mxu0 %v1253
          %1283 = vmatprep.subr.bf16.mxu0 0
          %1284 = vmatpush1.bf16.msra.mxu0 %v1254
          %1285 = vmatprep.subr.bf16.mxu0 0
          %1286 = vmatpush1.bf16.msra.mxu0 %v1255
          %1287 = vmatprep.subr.bf16.mxu0 0
          %1288 = vmatpush1.bf16.msra.mxu0 %v1256
          %1289 = vmatprep.subr.bf16.mxu0 0
          %1290 = vmatpush1.bf16.msra.mxu0 %v1257
          %1291 = vmatprep.subr.bf16.mxu0 0
          %1292 = vmatpush1.bf16.msra.mxu0 %v1258
          %1293 = vmatprep.subr.bf16.mxu0 0
          %1294 = vmatpush1.bf16.msra.mxu0 %v1259
          %1295 = vmatprep.subr.bf16.mxu0 0
          %1296 = vmatpush1.bf16.msra.mxu0 %v1260
          %1297 = vmatprep.subr.bf16.mxu0 0
          %1298 = vmatpush1.bf16.msra.mxu0 %v1261
          %1299 = vmatprep.subr.bf16.mxu0 0
          %1300 = vmatpush1.bf16.msra.mxu0 %v1262
          %1301 = vmatprep.subr.bf16.mxu0 0
          %1302 = vmatpush1.bf16.msra.mxu0 %v1263
          %1303 = vmatprep.subr.bf16.mxu0 0
          %1304 = vmatpush1.bf16.msra.mxu0 0
          %1305 = vmatprep.subr.bf16.mxu0 0
          %1306 = vmatpush1.bf16.msra.mxu0 0
          %1307 = vmatprep.subr.bf16.mxu0 0
          %1308 = vmatpush1.bf16.msra.mxu0 0
          %1309 = vmatprep.subr.bf16.mxu0 0
          %1310 = vmatpush1.bf16.msra.mxu0 0
          %1311 = vmatprep.mubr.bf16.mxu0 %v1277
          %1312 = vmatmul.mubr.bf16.gmra.mrb[0].mxu0 %v1171
          %v1313 = vpop.f32.mrb[0].mxu0
          %v1314 = vadd.f32 %v1202, %v1313
          %v1315 = vpop.f32.mrb[0].mxu0
          %v1316 = vpop.f32.mrb[0].mxu0
          %v1317 = vpop.f32.mrb[0].mxu0
          %1318 = vdwg.mxu0
          %v1319 = vld [vmem:[#allocation12] sm:$0x1]
          %v1320 = vld [vmem:[#allocation14] sm:$0x1]
          %vm1321 = vcmask 261120
          %v1322 = vsel %vm1321, %v1314, 0.0
          %1323 = vadd.xlane.f32.xlu0 %v1322
          %v1324 = vpop.xlane.xlu0 %1323
          %v1325 = vrcp.pop 32.0
          %v1326 = vmul.f32 %v1324, %v1325
          %v1327 = vsub.f32 %v1314, %v1326
          %v1328 = vmul.f32 %v1327, %v1327
          %v1329 = vsel %vm1321, %v1328, 0.0
          %1330 = vadd.xlane.f32.xlu0 %v1329
          %v1331 = vpop.xlane.xlu0 %1330
          %v1332 = vmul.f32 %v1331, %v1325
          %v1333 = vadd.f32 %v1332, 1e-05
          %v1334 = vrsqrt.pop %v1333
          %v1335 = vmul.f32 %v1327, %v1334
          %v1337 = vlaneseq
          %v1338 = vshrl.u32 %v1337, 7
          %v1339 = vsub.s32 0, %v1338
          %v1340 = vrot.slane %v1319, %v1339
          %v1342 = vmul.f32 %v1335, %v1340
          %v1344 = vlaneseq
          %v1345 = vshrl.u32 %v1344, 7
          %v1346 = vsub.s32 0, %v1345
          %v1347 = vrot.slane %v1320, %v1346
          %v1349 = vadd.f32 %v1342, %v1347
          %v1350 = vld [vmem:[#allocation15] sm:$0x1]
          %v1351 = vld [vmem:[#allocation17] sm:$0x1]
          %v1352 = vadd.f32 %v1350, %v1351
          %v1353 = vld [vmem:[#allocation17 + $0x1] sm:$0xf]
          %vm1354 = vcmask 253952
          %1355 = vst.msk [vmem:[#allocation31] sm:$0x1] %vm1354, %v1352
          %v1356 = vadd.f32 %v1349, %v1353
          %vm1357 = vcmask 257024
          %1358 = vst.msk [vmem:[#allocation31 + $0x1] sm:$0xf] %vm1357, %v1356
          %v1359 = vld [vmem:[#allocation18] sm:$0x1]
          %1360 = vst.msk [vmem:[#allocation31 + $0x5] sm:$0x1] %vm1354, %v1359
          %1361 = vst.msk [vmem:[#allocation31 + $0x6] sm:$0x1] %vm1354, %v1352
          %v1363 = vrot.slane %v1353, 4
          %v1365 = vadd.f32 %v1349, %v1363
          %vm1366 = vcmask 261124
          %1367 = vst.msk [vmem:[#allocation31 + $0x3] sm:$0xf0] %vm1366, %v1365
          %v1368 = vld [vmem:[#allocation18] sm:$0x1]
          %1369 = vst.msk [vmem:[#allocation31 + $0xb] sm:$0x1] %vm1354, %v1368
        $region192: #{distill_wrapper_forward.7} parent=103 // pred_fallthru
          _
        %v1370 = vld [vmem:[#allocation31] sm:$0xff]
        %v1371 = vld [vmem:[#allocation31 + $0x8] sm:$0xf]
        %v1372 = vld [vmem:[%s935] sm:$0x1]
        %v1373 = vld [vmem:[%s943] sm:$0x1]
        %vm1374 = vcmask 261120
        %v1375 = vsel %vm1374, %v1370, 0.0
        %1376 = vadd.xlane.f32.xlu0 %v1375
        %v1377 = vpop.xlane.xlu0 %1376
        %vm1378 = vcmask 257024
        %v1379 = vsel %vm1378, %v1371, 0.0
        %1380 = vadd.xlane.f32.xlu0 %v1379
        %v1381 = vpop.xlane.xlu0 %1380
        %v1382 = vrcp.pop 32.0
        %v1383 = vmul.f32 %v1377, %v1382
        %v1384 = vmul.f32 %v1381, %v1382
        %v1385 = vsub.f32 %v1370, %v1383
        %v1386 = vsub.f32 %v1371, %v1384
        %v1387 = vmul.f32 %v1385, %v1385
        %v1388 = vmul.f32 %v1386, %v1386
        %v1389 = vsel %vm1374, %v1387, 0.0
        %1390 = vadd.xlane.f32.xlu0 %v1389
        %v1391 = vpop.xlane.xlu0 %1390
        %v1392 = vsel %vm1378, %v1388, 0.0
        %1393 = vadd.xlane.f32.xlu0 %v1392
        %v1394 = vpop.xlane.xlu0 %1393
        %v1395 = vmul.f32 %v1391, %v1382
        %v1396 = vmul.f32 %v1394, %v1382
        %v1397 = vadd.f32 %v1395, 1e-05
        %v1398 = vadd.f32 %v1396, 1e-05
        %v1399 = vrsqrt.pop %v1397
        %v1400 = vrsqrt.pop %v1398
        %v1401 = vmul.f32 %v1385, %v1399
        %v1402 = vmul.f32 %v1386, %v1400
        %v1404 = vlaneseq
        %v1405 = vshrl.u32 %v1404, 7
        %v1406 = vsub.s32 0, %v1405
        %v1407 = vrot.slane %v1372, %v1406
        %v1409 = vmul.f32 %v1401, %v1407
        %v1410 = vmul.f32 %v1402, %v1407
        %v1412 = vlaneseq
        %v1413 = vshrl.u32 %v1412, 7
        %v1414 = vsub.s32 0, %v1413
        %v1415 = vrot.slane %v1373, %v1414
        %v1417 = vadd.f32 %v1409, %v1415
        %v1418 = vadd.f32 %v1410, %v1415
        %v1419 = vpack.c.bf16 %v1418, %v1417
        %v1420 = vld [vmem:[%s952] sm:$0xf]
        %v1421 = vld [vmem:[%s952 + $0x4] sm:$0xf]
        %v1422 = vld [vmem:[%s952 + $0x8] sm:$0xf]
        %v1423 = vld [vmem:[%s952 + $0xc] sm:$0xf]
        %v1428 = vunpack.c.l.b16 %v1420
        %v1429 = vunpack.c.l.b16 %v1421
        %v1430 = vunpack.c.l.b16 %v1422
        %v1431 = vunpack.c.l.b16 %v1423
        %v1432 = vpack.c.b16 %v1429, %v1428
        %v1433 = vpack.c.b16 %v1431, %v1430
        %v1437 = vsel %vm1374, %v1419, 0
        %1439 = vmatprep.subr.bf16.mxu0 0
        %1440 = vmatpush1.bf16.msra.mxu0 %v1432
        %1441 = vmatprep.subr.bf16.mxu0 0
        %1442 = vmatpush1.bf16.msra.mxu0 %v1433
        %1443 = vmatprep.subr.bf16.mxu0 0
        %1444 = vmatpush1.bf16.msra.mxu0 0
        %1445 = vmatprep.subr.bf16.mxu0 0
        %1446 = vmatpush1.bf16.msra.mxu0 0
        %1447 = vmatprep.subr.bf16.mxu0 0
        %1448 = vmatpush1.bf16.msra.mxu0 0
        %1449 = vmatprep.subr.bf16.mxu0 0
        %1450 = vmatpush1.bf16.msra.mxu0 0
        %1451 = vmatprep.subr.bf16.mxu0 0
        %1452 = vmatpush1.bf16.msra.mxu0 0
        %1453 = vmatprep.subr.bf16.mxu0 0
        %1454 = vmatpush1.bf16.msra.mxu0 0
        %1455 = vmatprep.subr.bf16.mxu0 0
        %1456 = vmatpush1.bf16.msra.mxu0 0
        %1457 = vmatprep.subr.bf16.mxu0 0
        %1458 = vmatpush1.bf16.msra.mxu0 0
        %1459 = vmatprep.subr.bf16.mxu0 0
        %1460 = vmatpush1.bf16.msra.mxu0 0
        %1461 = vmatprep.subr.bf16.mxu0 0
        %1462 = vmatpush1.bf16.msra.mxu0 0
        %1463 = vmatprep.subr.bf16.mxu0 0
        %1464 = vmatpush1.bf16.msra.mxu0 0
        %1465 = vmatprep.subr.bf16.mxu0 0
        %1466 = vmatpush1.bf16.msra.mxu0 0
        %1467 = vmatprep.subr.bf16.mxu0 0
        %1468 = vmatpush1.bf16.msra.mxu0 0
        %1469 = vmatprep.subr.bf16.mxu0 0
        %1470 = vmatpush1.bf16.msra.mxu0 0
        %1471 = vmatprep.mubr.bf16.mxu0 0
        %1472 = vmatmul.mubr.bf16.gmra.mrb[0].mxu0 %v1437
        %v1473 = vpop.f32.mrb[0].mxu0
        %v1474 = vadd.f32 0.0, %v1473
        %v1475 = vpop.f32.mrb[0].mxu0
        %v1476 = vpop.f32.mrb[0].mxu0
        %v1477 = vadd.f32 0.0, %v1476
        %v1478 = vpop.f32.mrb[0].mxu0
        %1479 = vdwg.mxu0
        %v1480 = vpack.c.bf16 %v1474, %v1474
        %1482 = vrot.lane.b32.xlu0 %v1480, 96
        %v1483 = vpop.permute.xlu0 %1482
        %vm1484 = vcmask 64512
        %v1486 = vsel %vm1484, %v1480, 0
        %v1489 = vsel %vm1484, %v1483, 0
        %1491 = vmatprep.subr.bf16.mxu0 0
        %1492 = vmatpush1.bf16.xpose.msra.mxu0 %v1489
        %1493 = vmatprep.subr.bf16.mxu0 0
        %1494 = vmatpush1.bf16.xpose.msra.mxu0 0
        %1495 = vmatprep.subr.bf16.mxu0 0
        %1496 = vmatpush1.bf16.xpose.msra.mxu0 0
        %1497 = vmatprep.subr.bf16.mxu0 0
        %1498 = vmatpush1.bf16.xpose.msra.mxu0 0
        %1499 = vmatprep.subr.bf16.mxu0 0
        %1500 = vmatpush1.bf16.xpose.msra.mxu0 0
        %1501 = vmatprep.subr.bf16.mxu0 0
        %1502 = vmatpush1.bf16.xpose.msra.mxu0 0
        %1503 = vmatprep.subr.bf16.mxu0 0
        %1504 = vmatpush1.bf16.xpose.msra.mxu0 0
        %1505 = vmatprep.subr.bf16.mxu0 0
        %1506 = vmatpush1.bf16.xpose.msra.mxu0 0
        %1507 = vmatprep.subr.bf16.mxu0 0
        %1508 = vmatpush1.bf16.xpose.msra.mxu0 0
        %1509 = vmatprep.subr.bf16.mxu0 0
        %1510 = vmatpush1.bf16.xpose.msra.mxu0 0
        %1511 = vmatprep.subr.bf16.mxu0 0
        %1512 = vmatpush1.bf16.xpose.msra.mxu0 0
        %1513 = vmatprep.subr.bf16.mxu0 0
        %1514 = vmatpush1.bf16.xpose.msra.mxu0 0
        %1515 = vmatprep.subr.bf16.mxu0 0
        %1516 = vmatpush1.bf16.xpose.msra.mxu0 0
        %1517 = vmatprep.subr.bf16.mxu0 0
        %1518 = vmatpush1.bf16.xpose.msra.mxu0 0
        %1519 = vmatprep.subr.bf16.mxu0 0
        %1520 = vmatpush1.bf16.xpose.msra.mxu0 0
        %1521 = vmatprep.subr.bf16.mxu0 0
        %1522 = vmatpush1.bf16.xpose.msra.mxu0 0
        %1523 = vmatprep.mubr.bf16.mxu0 0
        %1524 = vmatmul.mubr.bf16.gmra.mrb[0].mxu0 %v1486
        %v1525 = vpop.f32.mrb[0].mxu0
        %v1526 = vadd.f32 0.0, %v1525
        %v1527 = vpop.f32.mrb[0].mxu0
        %v1528 = vpop.f32.mrb[0].mxu0
        %v1529 = vpop.f32.mrb[0].mxu0
        %1530 = vdwg.mxu0
        %vm1531 = vcmask 46080
        %v1532 = vsel %vm1531, %v1526, -inf
        %1533 = vmax.xlane.f32.xlu0 %v1532
        %v1534 = vpop.xlane.xlu0 %1533
        %v1535 = vsub.f32 %v1526, %v1534
        %v1536 = vmul.f32 %v1535, 1.442695
        %v1537 = vpow.pop %v1536
        %v1538 = vsel %vm1531, %v1537, 0.0
        %1539 = vadd.xlane.f32.xlu0 %v1538
        %v1540 = vpop.xlane.xlu0 %1539
        %v1541 = vrcp.pop %v1540
        %v1542 = vmul.f32 %v1537, %v1541
        %v1543 = vpack.c.bf16 %v1542, %v1542
        %1544 = vrot.lane.b32.xlu0 %v1480, 64
        %v1545 = vpop.permute.xlu0 %1544
        %vm1546 = vcmask 48128
        %v1548 = vsel %vm1546, %v1543, 0
        %vm1550 = vcmask 1042432
        %v1552 = vsel %vm1550, %v1545, 0
        %1554 = vmatprep.subr.bf16.mxu0 0
        %1555 = vmatpush1.bf16.msra.mxu0 %v1552
        %1556 = vmatprep.subr.bf16.mxu0 0
        %1557 = vmatpush1.bf16.msra.mxu0 0
        %1558 = vmatprep.subr.bf16.mxu0 0
        %1559 = vmatpush1.bf16.msra.mxu0 0
        %1560 = vmatprep.subr.bf16.mxu0 0
        %1561 = vmatpush1.bf16.msra.mxu0 0
        %1562 = vmatprep.subr.bf16.mxu0 0
        %1563 = vmatpush1.bf16.msra.mxu0 0
        %1564 = vmatprep.subr.bf16.mxu0 0
        %1565 = vmatpush1.bf16.msra.mxu0 0
        %1566 = vmatprep.subr.bf16.mxu0 0
        %1567 = vmatpush1.bf16.msra.mxu0 0
        %1568 = vmatprep.subr.bf16.mxu0 0
        %1569 = vmatpush1.bf16.msra.mxu0 0
        %1570 = vmatprep.subr.bf16.mxu0 0
        %1571 = vmatpush1.bf16.msra.mxu0 0
        %1572 = vmatprep.subr.bf16.mxu0 0
        %1573 = vmatpush1.bf16.msra.mxu0 0
        %1574 = vmatprep.subr.bf16.mxu0 0
        %1575 = vmatpush1.bf16.msra.mxu0 0
        %1576 = vmatprep.subr.bf16.mxu0 0
        %1577 = vmatpush1.bf16.msra.mxu0 0
        %1578 = vmatprep.subr.bf16.mxu0 0
        %1579 = vmatpush1.bf16.msra.mxu0 0
        %1580 = vmatprep.subr.bf16.mxu0 0
        %1581 = vmatpush1.bf16.msra.mxu0 0
        %1582 = vmatprep.subr.bf16.mxu0 0
        %1583 = vmatpush1.bf16.msra.mxu0 0
        %1584 = vmatprep.subr.bf16.mxu0 0
        %1585 = vmatpush1.bf16.msra.mxu0 0
        %1586 = vmatprep.mubr.bf16.mxu0 0
        %1587 = vmatmul.mubr.bf16.gmra.mrb[0].mxu0 %v1548
        %v1588 = vpop.f32.mrb[0].mxu0
        %v1589 = vadd.f32 0.0, %v1588
        %v1590 = vpop.f32.mrb[0].mxu0
        %v1591 = vpop.f32.mrb[0].mxu0
        %v1592 = vpop.f32.mrb[0].mxu0
        %1593 = vdwg.mxu0
        %vm1594 = vcmask 62464
        %1595 = vst.msk [vmem:[#allocation2] sm:$0x3f] %vm1594, %v1589
        %1596 = vrot.lane.b32.xlu0 %v1480, 120
        %v1597 = vpop.permute.xlu0 %1596
        %1598 = vrot.lane.b32.xlu0 %v1480, 88
        %v1599 = vpop.permute.xlu0 %1598
        %v1601 = vsel %vm1484, %v1597, 0
        %v1604 = vsel %vm1484, %v1599, 0
        %1606 = vmatprep.subr.bf16.mxu0 0
        %1607 = vmatpush1.bf16.xpose.msra.mxu0 %v1604
        %1608 = vmatprep.subr.bf16.mxu0 0
        %1609 = vmatpush1.bf16.xpose.msra.mxu0 0
        %1610 = vmatprep.subr.bf16.mxu0 0
        %1611 = vmatpush1.bf16.xpose.msra.mxu0 0
        %1612 = vmatprep.subr.bf16.mxu0 0
        %1613 = vmatpush1.bf16.xpose.msra.mxu0 0
        %1614 = vmatprep.subr.bf16.mxu0 0
        %1615 = vmatpush1.bf16.xpose.msra.mxu0 0
        %1616 = vmatprep.subr.bf16.mxu0 0
        %1617 = vmatpush1.bf16.xpose.msra.mxu0 0
        %1618 = vmatprep.subr.bf16.mxu0 0
        %1619 = vmatpush1.bf16.xpose.msra.mxu0 0
        %1620 = vmatprep.subr.bf16.mxu0 0
        %1621 = vmatpush1.bf16.xpose.msra.mxu0 0
        %1622 = vmatprep.subr.bf16.mxu0 0
        %1623 = vmatpush1.bf16.xpose.msra.mxu0 0
        %1624 = vmatprep.subr.bf16.mxu0 0
        %1625 = vmatpush1.bf16.xpose.msra.mxu0 0
        %1626 = vmatprep.subr.bf16.mxu0 0
        %1627 = vmatpush1.bf16.xpose.msra.mxu0 0
        %1628 = vmatprep.subr.bf16.mxu0 0
        %1629 = vmatpush1.bf16.xpose.msra.mxu0 0
        %1630 = vmatprep.subr.bf16.mxu0 0
        %1631 = vmatpush1.bf16.xpose.msra.mxu0 0
        %1632 = vmatprep.subr.bf16.mxu0 0
        %1633 = vmatpush1.bf16.xpose.msra.mxu0 0
        %1634 = vmatprep.subr.bf16.mxu0 0
        %1635 = vmatpush1.bf16.xpose.msra.mxu0 0
        %1636 = vmatprep.subr.bf16.mxu0 0
        %1637 = vmatpush1.bf16.xpose.msra.mxu0 0
        %1638 = vmatprep.mubr.bf16.mxu0 0
        %1639 = vmatmul.mubr.bf16.gmra.mrb[0].mxu0 %v1601
        %v1640 = vpop.f32.mrb[0].mxu0
        %v1641 = vadd.f32 0.0, %v1640
        %v1642 = vpop.f32.mrb[0].mxu0
        %v1643 = vpop.f32.mrb[0].mxu0
        %v1644 = vpop.f32.mrb[0].mxu0
        %1645 = vdwg.mxu0
        %v1646 = vsel %vm1531, %v1641, -inf
        %1647 = vmax.xlane.f32.xlu0 %v1646
        %v1648 = vpop.xlane.xlu0 %1647
        %v1649 = vsub.f32 %v1641, %v1648
        %v1650 = vmul.f32 %v1649, 1.442695
        %v1651 = vpow.pop %v1650
        %v1652 = vsel %vm1531, %v1651, 0.0
        %1653 = vadd.xlane.f32.xlu0 %v1652
        %v1654 = vpop.xlane.xlu0 %1653
        %v1655 = vrcp.pop %v1654
        %v1656 = vmul.f32 %v1651, %v1655
        %v1657 = vpack.c.bf16 %v1656, %v1656
        %1658 = vrot.lane.b32.xlu0 %v1480, 56
        %v1659 = vpop.permute.xlu0 %1658
        %v1661 = vsel %vm1546, %v1657, 0
        %v1664 = vsel %vm1550, %v1659, 0
        %1666 = vmatprep.subr.bf16.mxu0 0
        %1667 = vmatpush1.bf16.msra.mxu0 %v1664
        %1668 = vmatprep.subr.bf16.mxu0 0
        %1669 = vmatpush1.bf16.msra.mxu0 0
        %1670 = vmatprep.subr.bf16.mxu0 0
        %1671 = vmatpush1.bf16.msra.mxu0 0
        %1672 = vmatprep.subr.bf16.mxu0 0
        %1673 = vmatpush1.bf16.msra.mxu0 0
        %1674 = vmatprep.subr.bf16.mxu0 0
        %1675 = vmatpush1.bf16.msra.mxu0 0
        %1676 = vmatprep.subr.bf16.mxu0 0
        %1677 = vmatpush1.bf16.msra.mxu0 0
        %1678 = vmatprep.subr.bf16.mxu0 0
        %1679 = vmatpush1.bf16.msra.mxu0 0
        %1680 = vmatprep.subr.bf16.mxu0 0
        %1681 = vmatpush1.bf16.msra.mxu0 0
        %1682 = vmatprep.subr.bf16.mxu0 0
        %1683 = vmatpush1.bf16.msra.mxu0 0
        %1684 = vmatprep.subr.bf16.mxu0 0
        %1685 = vmatpush1.bf16.msra.mxu0 0
        %1686 = vmatprep.subr.bf16.mxu0 0
        %1687 = vmatpush1.bf16.msra.mxu0 0
        %1688 = vmatprep.subr.bf16.mxu0 0
        %1689 = vmatpush1.bf16.msra.mxu0 0
        %1690 = vmatprep.subr.bf16.mxu0 0
        %1691 = vmatpush1.bf16.msra.mxu0 0
        %1692 = vmatprep.subr.bf16.mxu0 0
        %1693 = vmatpush1.bf16.msra.mxu0 0
        %1694 = vmatprep.subr.bf16.mxu0 0
        %1695 = vmatpush1.bf16.msra.mxu0 0
        %1696 = vmatprep.subr.bf16.mxu0 0
        %1697 = vmatpush1.bf16.msra.mxu0 0
        %1698 = vmatprep.mubr.bf16.mxu0 0
        %1699 = vmatmul.mubr.bf16.gmra.mrb[0].mxu0 %v1661
        %v1700 = vpop.f32.mrb[0].mxu0
        %v1701 = vadd.f32 0.0, %v1700
        %v1702 = vpop.f32.mrb[0].mxu0
        %v1703 = vpop.f32.mrb[0].mxu0
        %v1704 = vpop.f32.mrb[0].mxu0
        %1705 = vdwg.mxu0
        %1707 = vrot.lane.b32.xlu0 %v1701, 8
        %v1708 = vpop.permute.xlu0 %1707
        %vm1710 = vcmask 128064
        %1711 = vst.msk [vmem:[#allocation2] sm:$0x3f] %vm1710, %v1708
        %1712 = vrot.lane.b32.xlu0 %v1480, 112
        %v1713 = vpop.permute.xlu0 %1712
        %1714 = vrot.lane.b32.xlu0 %v1480, 80
        %v1715 = vpop.permute.xlu0 %1714
        %v1717 = vsel %vm1484, %v1713, 0
        %v1720 = vsel %vm1484, %v1715, 0
        %1722 = vmatprep.subr.bf16.mxu0 0
        %1723 = vmatpush1.bf16.xpose.msra.mxu0 %v1720
        %1724 = vmatprep.subr.bf16.mxu0 0
        %1725 = vmatpush1.bf16.xpose.msra.mxu0 0
        %1726 = vmatprep.subr.bf16.mxu0 0
        %1727 = vmatpush1.bf16.xpose.msra.mxu0 0
        %1728 = vmatprep.subr.bf16.mxu0 0
        %1729 = vmatpush1.bf16.xpose.msra.mxu0 0
        %1730 = vmatprep.subr.bf16.mxu0 0
        %1731 = vmatpush1.bf16.xpose.msra.mxu0 0
        %1732 = vmatprep.subr.bf16.mxu0 0
        %1733 = vmatpush1.bf16.xpose.msra.mxu0 0
        %1734 = vmatprep.subr.bf16.mxu0 0
        %1735 = vmatpush1.bf16.xpose.msra.mxu0 0
        %1736 = vmatprep.subr.bf16.mxu0 0
        %1737 = vmatpush1.bf16.xpose.msra.mxu0 0
        %1738 = vmatprep.subr.bf16.mxu0 0
        %1739 = vmatpush1.bf16.xpose.msra.mxu0 0
        %1740 = vmatprep.subr.bf16.mxu0 0
        %1741 = vmatpush1.bf16.xpose.msra.mxu0 0
        %1742 = vmatprep.subr.bf16.mxu0 0
        %1743 = vmatpush1.bf16.xpose.msra.mxu0 0
        %1744 = vmatprep.subr.bf16.mxu0 0
        %1745 = vmatpush1.bf16.xpose.msra.mxu0 0
        %1746 = vmatprep.subr.bf16.mxu0 0
        %1747 = vmatpush1.bf16.xpose.msra.mxu0 0
        %1748 = vmatprep.subr.bf16.mxu0 0
        %1749 = vmatpush1.bf16.xpose.msra.mxu0 0
        %1750 = vmatprep.subr.bf16.mxu0 0
        %1751 = vmatpush1.bf16.xpose.msra.mxu0 0
        %1752 = vmatprep.subr.bf16.mxu0 0
        %1753 = vmatpush1.bf16.xpose.msra.mxu0 0
        %1754 = vmatprep.mubr.bf16.mxu0 0
        %1755 = vmatmul.mubr.bf16.gmra.mrb[0].mxu0 %v1717
        %v1756 = vpop.f32.mrb[0].mxu0
        %v1757 = vadd.f32 0.0, %v1756
        %v1758 = vpop.f32.mrb[0].mxu0
        %v1759 = vpop.f32.mrb[0].mxu0
        %v1760 = vpop.f32.mrb[0].mxu0
        %1761 = vdwg.mxu0
        %v1762 = vsel %vm1531, %v1757, -inf
        %1763 = vmax.xlane.f32.xlu0 %v1762
        %v1764 = vpop.xlane.xlu0 %1763
        %v1765 = vsub.f32 %v1757, %v1764
        %v1766 = vmul.f32 %v1765, 1.442695
        %v1767 = vpow.pop %v1766
        %v1768 = vsel %vm1531, %v1767, 0.0
        %1769 = vadd.xlane.f32.xlu0 %v1768
        %v1770 = vpop.xlane.xlu0 %1769
        %v1771 = vrcp.pop %v1770
        %v1772 = vmul.f32 %v1767, %v1771
        %v1773 = vpack.c.bf16 %v1772, %v1772
        %1774 = vrot.lane.b32.xlu0 %v1480, 48
        %v1775 = vpop.permute.xlu0 %1774
        %v1777 = vsel %vm1546, %v1773, 0
        %v1780 = vsel %vm1550, %v1775, 0
        %1782 = vmatprep.subr.bf16.mxu0 0
        %1783 = vmatpush1.bf16.msra.mxu0 %v1780
        %1784 = vmatprep.subr.bf16.mxu0 0
        %1785 = vmatpush1.bf16.msra.mxu0 0
        %1786 = vmatprep.subr.bf16.mxu0 0
        %1787 = vmatpush1.bf16.msra.mxu0 0
        %1788 = vmatprep.subr.bf16.mxu0 0
        %1789 = vmatpush1.bf16.msra.mxu0 0
        %1790 = vmatprep.subr.bf16.mxu0 0
        %1791 = vmatpush1.bf16.msra.mxu0 0
        %1792 = vmatprep.subr.bf16.mxu0 0
        %1793 = vmatpush1.bf16.msra.mxu0 0
        %1794 = vmatprep.subr.bf16.mxu0 0
        %1795 = vmatpush1.bf16.msra.mxu0 0
        %1796 = vmatprep.subr.bf16.mxu0 0
        %1797 = vmatpush1.bf16.msra.mxu0 0
        %1798 = vmatprep.subr.bf16.mxu0 0
        %1799 = vmatpush1.bf16.msra.mxu0 0
        %1800 = vmatprep.subr.bf16.mxu0 0
        %1801 = vmatpush1.bf16.msra.mxu0 0
        %1802 = vmatprep.subr.bf16.mxu0 0
        %1803 = vmatpush1.bf16.msra.mxu0 0
        %1804 = vmatprep.subr.bf16.mxu0 0
        %1805 = vmatpush1.bf16.msra.mxu0 0
        %1806 = vmatprep.subr.bf16.mxu0 0
        %1807 = vmatpush1.bf16.msra.mxu0 0
        %1808 = vmatprep.subr.bf16.mxu0 0
        %1809 = vmatpush1.bf16.msra.mxu0 0
        %1810 = vmatprep.subr.bf16.mxu0 0
        %1811 = vmatpush1.bf16.msra.mxu0 0
        %1812 = vmatprep.subr.bf16.mxu0 0
        %1813 = vmatpush1.bf16.msra.mxu0 0
        %1814 = vmatprep.mubr.bf16.mxu0 0
        %1815 = vmatmul.mubr.bf16.gmra.mrb[0].mxu0 %v1777
        %v1816 = vpop.f32.mrb[0].mxu0
        %v1817 = vadd.f32 0.0, %v1816
        %v1818 = vpop.f32.mrb[0].mxu0
        %v1819 = vpop.f32.mrb[0].mxu0
        %v1820 = vpop.f32.mrb[0].mxu0
        %1821 = vdwg.mxu0
        %1823 = vrot.lane.b32.xlu0 %v1817, 16
        %v1824 = vpop.permute.xlu0 %1823
        %vm1826 = vcmask 193664
        %1827 = vst.msk [vmem:[#allocation2] sm:$0x3f] %vm1826, %v1824
        %1828 = vrot.lane.b32.xlu0 %v1480, 104
        %v1829 = vpop.permute.xlu0 %1828
        %1830 = vrot.lane.b32.xlu0 %v1480, 72
        %v1831 = vpop.permute.xlu0 %1830
        %v1833 = vsel %vm1484, %v1829, 0
        %v1836 = vsel %vm1484, %v1831, 0
        %1838 = vmatprep.subr.bf16.mxu0 0
        %1839 = vmatpush1.bf16.xpose.msra.mxu0 %v1836
        %1840 = vmatprep.subr.bf16.mxu0 0
        %1841 = vmatpush1.bf16.xpose.msra.mxu0 0
        %1842 = vmatprep.subr.bf16.mxu0 0
        %1843 = vmatpush1.bf16.xpose.msra.mxu0 0
        %1844 = vmatprep.subr.bf16.mxu0 0
        %1845 = vmatpush1.bf16.xpose.msra.mxu0 0
        %1846 = vmatprep.subr.bf16.mxu0 0
        %1847 = vmatpush1.bf16.xpose.msra.mxu0 0
        %1848 = vmatprep.subr.bf16.mxu0 0
        %1849 = vmatpush1.bf16.xpose.msra.mxu0 0
        %1850 = vmatprep.subr.bf16.mxu0 0
        %1851 = vmatpush1.bf16.xpose.msra.mxu0 0
        %1852 = vmatprep.subr.bf16.mxu0 0
        %1853 = vmatpush1.bf16.xpose.msra.mxu0 0
        %1854 = vmatprep.subr.bf16.mxu0 0
        %1855 = vmatpush1.bf16.xpose.msra.mxu0 0
        %1856 = vmatprep.subr.bf16.mxu0 0
        %1857 = vmatpush1.bf16.xpose.msra.mxu0 0
        %1858 = vmatprep.subr.bf16.mxu0 0
        %1859 = vmatpush1.bf16.xpose.msra.mxu0 0
        %1860 = vmatprep.subr.bf16.mxu0 0
        %1861 = vmatpush1.bf16.xpose.msra.mxu0 0
        %1862 = vmatprep.subr.bf16.mxu0 0
        %1863 = vmatpush1.bf16.xpose.msra.mxu0 0
        %1864 = vmatprep.subr.bf16.mxu0 0
        %1865 = vmatpush1.bf16.xpose.msra.mxu0 0
        %1866 = vmatprep.subr.bf16.mxu0 0
        %1867 = vmatpush1.bf16.xpose.msra.mxu0 0
        %1868 = vmatprep.subr.bf16.mxu0 0
        %1869 = vmatpush1.bf16.xpose.msra.mxu0 0
        %1870 = vmatprep.mubr.bf16.mxu0 0
        %1871 = vmatmul.mubr.bf16.gmra.mrb[0].mxu0 %v1833
        %v1872 = vpop.f32.mrb[0].mxu0
        %v1873 = vadd.f32 0.0, %v1872
        %v1874 = vpop.f32.mrb[0].mxu0
        %v1875 = vpop.f32.mrb[0].mxu0
        %v1876 = vpop.f32.mrb[0].mxu0
        %1877 = vdwg.mxu0
        %v1878 = vsel %vm1531, %v1873, -inf
        %1879 = vmax.xlane.f32.xlu0 %v1878
        %v1880 = vpop.xlane.xlu0 %1879
        %v1881 = vsub.f32 %v1873, %v1880
        %v1882 = vmul.f32 %v1881, 1.442695
        %v1883 = vpow.pop %v1882
        %v1884 = vsel %vm1531, %v1883, 0.0
        %1885 = vadd.xlane.f32.xlu0 %v1884
        %v1886 = vpop.xlane.xlu0 %1885
        %v1887 = vrcp.pop %v1886
        %v1888 = vmul.f32 %v1883, %v1887
        %v1889 = vpack.c.bf16 %v1888, %v1888
        %1890 = vrot.lane.b32.xlu0 %v1480, 40
        %v1891 = vpop.permute.xlu0 %1890
        %v1893 = vsel %vm1546, %v1889, 0
        %v1896 = vsel %vm1550, %v1891, 0
        %1898 = vmatprep.subr.bf16.mxu0 0
        %1899 = vmatpush1.bf16.msra.mxu0 %v1896
        %1900 = vmatprep.subr.bf16.mxu0 0
        %1901 = vmatpush1.bf16.msra.mxu0 0
        %1902 = vmatprep.subr.bf16.mxu0 0
        %1903 = vmatpush1.bf16.msra.mxu0 0
        %1904 = vmatprep.subr.bf16.mxu0 0
        %1905 = vmatpush1.bf16.msra.mxu0 0
        %1906 = vmatprep.subr.bf16.mxu0 0
        %1907 = vmatpush1.bf16.msra.mxu0 0
        %1908 = vmatprep.subr.bf16.mxu0 0
        %1909 = vmatpush1.bf16.msra.mxu0 0
        %1910 = vmatprep.subr.bf16.mxu0 0
        %1911 = vmatpush1.bf16.msra.mxu0 0
        %1912 = vmatprep.subr.bf16.mxu0 0
        %1913 = vmatpush1.bf16.msra.mxu0 0
        %1914 = vmatprep.subr.bf16.mxu0 0
        %1915 = vmatpush1.bf16.msra.mxu0 0
        %1916 = vmatprep.subr.bf16.mxu0 0
        %1917 = vmatpush1.bf16.msra.mxu0 0
        %1918 = vmatprep.subr.bf16.mxu0 0
        %1919 = vmatpush1.bf16.msra.mxu0 0
        %1920 = vmatprep.subr.bf16.mxu0 0
        %1921 = vmatpush1.bf16.msra.mxu0 0
        %1922 = vmatprep.subr.bf16.mxu0 0
        %1923 = vmatpush1.bf16.msra.mxu0 0
        %1924 = vmatprep.subr.bf16.mxu0 0
        %1925 = vmatpush1.bf16.msra.mxu0 0
        %1926 = vmatprep.subr.bf16.mxu0 0
        %1927 = vmatpush1.bf16.msra.mxu0 0
        %1928 = vmatprep.subr.bf16.mxu0 0
        %1929 = vmatpush1.bf16.msra.mxu0 0
        %1930 = vmatprep.mubr.bf16.mxu0 0
        %1931 = vmatmul.mubr.bf16.gmra.mrb[0].mxu0 %v1893
        %v1932 = vpop.f32.mrb[0].mxu0
        %v1933 = vadd.f32 0.0, %v1932
        %v1934 = vpop.f32.mrb[0].mxu0
        %v1935 = vpop.f32.mrb[0].mxu0
        %v1936 = vpop.f32.mrb[0].mxu0
        %1937 = vdwg.mxu0
        %1939 = vrot.lane.b32.xlu0 %v1933, 24
        %v1940 = vpop.permute.xlu0 %1939
        %vm1942 = vcmask 259264
        %1943 = vst.msk [vmem:[#allocation2] sm:$0x3f] %vm1942, %v1940
        %v1944 = vpack.c.bf16 %v1477, %v1474
        %v1946 = vrot.slane %v1944, 3
        %1947 = vrot.lane.b32.xlu0 %v1946, 96
        %v1948 = vpop.permute.xlu0 %1947
        %v1950 = vsel %vm1484, %v1946, 0
        %v1953 = vsel %vm1484, %v1948, 0
        %1955 = vmatprep.subr.bf16.mxu0 0
        %1956 = vmatpush1.bf16.xpose.msra.mxu0 %v1953
        %1957 = vmatprep.subr.bf16.mxu0 0
        %1958 = vmatpush1.bf16.xpose.msra.mxu0 0
        %1959 = vmatprep.subr.bf16.mxu0 0
        %1960 = vmatpush1.bf16.xpose.msra.mxu0 0
        %1961 = vmatprep.subr.bf16.mxu0 0
        %1962 = vmatpush1.bf16.xpose.msra.mxu0 0
        %1963 = vmatprep.subr.bf16.mxu0 0
        %1964 = vmatpush1.bf16.xpose.msra.mxu0 0
        %1965 = vmatprep.subr.bf16.mxu0 0
        %1966 = vmatpush1.bf16.xpose.msra.mxu0 0
        %1967 = vmatprep.subr.bf16.mxu0 0
        %1968 = vmatpush1.bf16.xpose.msra.mxu0 0
        %1969 = vmatprep.subr.bf16.mxu0 0
        %1970 = vmatpush1.bf16.xpose.msra.mxu0 0
        %1971 = vmatprep.subr.bf16.mxu0 0
        %1972 = vmatpush1.bf16.xpose.msra.mxu0 0
        %1973 = vmatprep.subr.bf16.mxu0 0
        %1974 = vmatpush1.bf16.xpose.msra.mxu0 0
        %1975 = vmatprep.subr.bf16.mxu0 0
        %1976 = vmatpush1.bf16.xpose.msra.mxu0 0
        %1977 = vmatprep.subr.bf16.mxu0 0
        %1978 = vmatpush1.bf16.xpose.msra.mxu0 0
        %1979 = vmatprep.subr.bf16.mxu0 0
        %1980 = vmatpush1.bf16.xpose.msra.mxu0 0
        %1981 = vmatprep.subr.bf16.mxu0 0
        %1982 = vmatpush1.bf16.xpose.msra.mxu0 0
        %1983 = vmatprep.subr.bf16.mxu0 0
        %1984 = vmatpush1.bf16.xpose.msra.mxu0 0
        %1985 = vmatprep.subr.bf16.mxu0 0
        %1986 = vmatpush1.bf16.xpose.msra.mxu0 0
        %1987 = vmatprep.mubr.bf16.mxu0 0
        %1988 = vmatmul.mubr.bf16.gmra.mrb[0].mxu0 %v1950
        %v1989 = vpop.f32.mrb[0].mxu0
        %v1990 = vadd.f32 0.0, %v1989
        %v1991 = vpop.f32.mrb[0].mxu0
        %v1992 = vpop.f32.mrb[0].mxu0
        %v1993 = vpop.f32.mrb[0].mxu0
        %1994 = vdwg.mxu0
        %v1995 = vsel %vm1531, %v1990, -inf
        %1996 = vmax.xlane.f32.xlu0 %v1995
        %v1997 = vpop.xlane.xlu0 %1996
        %v1998 = vsub.f32 %v1990, %v1997
        %v1999 = vmul.f32 %v1998, 1.442695
        %v2000 = vpow.pop %v1999
        %v2001 = vsel %vm1531, %v2000, 0.0
        %2002 = vadd.xlane.f32.xlu0 %v2001
        %v2003 = vpop.xlane.xlu0 %2002
        %v2004 = vrcp.pop %v2003
        %v2005 = vmul.f32 %v2000, %v2004
        %v2006 = vpack.c.bf16 %v2005, %v2005
        %2007 = vrot.lane.b32.xlu0 %v1946, 64
        %v2008 = vpop.permute.xlu0 %2007
        %v2010 = vsel %vm1546, %v2006, 0
        %v2013 = vsel %vm1550, %v2008, 0
        %2015 = vmatprep.subr.bf16.mxu0 0
        %2016 = vmatpush1.bf16.msra.mxu0 %v2013
        %2017 = vmatprep.subr.bf16.mxu0 0
        %2018 = vmatpush1.bf16.msra.mxu0 0
        %2019 = vmatprep.subr.bf16.mxu0 0
        %2020 = vmatpush1.bf16.msra.mxu0 0
        %2021 = vmatprep.subr.bf16.mxu0 0
        %2022 = vmatpush1.bf16.msra.mxu0 0
        %2023 = vmatprep.subr.bf16.mxu0 0
        %2024 = vmatpush1.bf16.msra.mxu0 0
        %2025 = vmatprep.subr.bf16.mxu0 0
        %2026 = vmatpush1.bf16.msra.mxu0 0
        %2027 = vmatprep.subr.bf16.mxu0 0
        %2028 = vmatpush1.bf16.msra.mxu0 0
        %2029 = vmatprep.subr.bf16.mxu0 0
        %2030 = vmatpush1.bf16.msra.mxu0 0
        %2031 = vmatprep.subr.bf16.mxu0 0
        %2032 = vmatpush1.bf16.msra.mxu0 0
        %2033 = vmatprep.subr.bf16.mxu0 0
        %2034 = vmatpush1.bf16.msra.mxu0 0
        %2035 = vmatprep.subr.bf16.mxu0 0
        %2036 = vmatpush1.bf16.msra.mxu0 0
        %2037 = vmatprep.subr.bf16.mxu0 0
        %2038 = vmatpush1.bf16.msra.mxu0 0
        %2039 = vmatprep.subr.bf16.mxu0 0
        %2040 = vmatpush1.bf16.msra.mxu0 0
        %2041 = vmatprep.subr.bf16.mxu0 0
        %2042 = vmatpush1.bf16.msra.mxu0 0
        %2043 = vmatprep.subr.bf16.mxu0 0
        %2044 = vmatpush1.bf16.msra.mxu0 0
        %2045 = vmatprep.subr.bf16.mxu0 0
        %2046 = vmatpush1.bf16.msra.mxu0 0
        %2047 = vmatprep.mubr.bf16.mxu0 0
        %2048 = vmatmul.mubr.bf16.gmra.mrb[0].mxu0 %v2010
        %v2049 = vpop.f32.mrb[0].mxu0
        %v2050 = vadd.f32 0.0, %v2049
        %v2051 = vpop.f32.mrb[0].mxu0
        %v2052 = vpop.f32.mrb[0].mxu0
        %v2053 = vpop.f32.mrb[0].mxu0
        %2054 = vdwg.mxu0
        %2055 = vst.msk [vmem:[#allocation2 + $0x6] sm:$0x3f] %vm1594, %v2050
        %2056 = vrot.lane.b32.xlu0 %v1946, 120
        %v2057 = vpop.permute.xlu0 %2056
        %2058 = vrot.lane.b32.xlu0 %v1946, 88
        %v2059 = vpop.permute.xlu0 %2058
        %v2061 = vsel %vm1484, %v2057, 0
        %v2064 = vsel %vm1484, %v2059, 0
        %2066 = vmatprep.subr.bf16.mxu0 0
        %2067 = vmatpush1.bf16.xpose.msra.mxu0 %v2064
        %2068 = vmatprep.subr.bf16.mxu0 0
        %2069 = vmatpush1.bf16.xpose.msra.mxu0 0
        %2070 = vmatprep.subr.bf16.mxu0 0
        %2071 = vmatpush1.bf16.xpose.msra.mxu0 0
        %2072 = vmatprep.subr.bf16.mxu0 0
        %2073 = vmatpush1.bf16.xpose.msra.mxu0 0
        %2074 = vmatprep.subr.bf16.mxu0 0
        %2075 = vmatpush1.bf16.xpose.msra.mxu0 0
        %2076 = vmatprep.subr.bf16.mxu0 0
        %2077 = vmatpush1.bf16.xpose.msra.mxu0 0
        %2078 = vmatprep.subr.bf16.mxu0 0
        %2079 = vmatpush1.bf16.xpose.msra.mxu0 0
        %2080 = vmatprep.subr.bf16.mxu0 0
        %2081 = vmatpush1.bf16.xpose.msra.mxu0 0
        %2082 = vmatprep.subr.bf16.mxu0 0
        %2083 = vmatpush1.bf16.xpose.msra.mxu0 0
        %2084 = vmatprep.subr.bf16.mxu0 0
        %2085 = vmatpush1.bf16.xpose.msra.mxu0 0
        %2086 = vmatprep.subr.bf16.mxu0 0
        %2087 = vmatpush1.bf16.xpose.msra.mxu0 0
        %2088 = vmatprep.subr.bf16.mxu0 0
        %2089 = vmatpush1.bf16.xpose.msra.mxu0 0
        %2090 = vmatprep.subr.bf16.mxu0 0
        %2091 = vmatpush1.bf16.xpose.msra.mxu0 0
        %2092 = vmatprep.subr.bf16.mxu0 0
        %2093 = vmatpush1.bf16.xpose.msra.mxu0 0
        %2094 = vmatprep.subr.bf16.mxu0 0
        %2095 = vmatpush1.bf16.xpose.msra.mxu0 0
        %2096 = vmatprep.subr.bf16.mxu0 0
        %2097 = vmatpush1.bf16.xpose.msra.mxu0 0
        %2098 = vmatprep.mubr.bf16.mxu0 0
        %2099 = vmatmul.mubr.bf16.gmra.mrb[0].mxu0 %v2061
        %v2100 = vpop.f32.mrb[0].mxu0
        %v2101 = vadd.f32 0.0, %v2100
        %v2102 = vpop.f32.mrb[0].mxu0
        %v2103 = vpop.f32.mrb[0].mxu0
        %v2104 = vpop.f32.mrb[0].mxu0
        %2105 = vdwg.mxu0
        %v2106 = vsel %vm1531, %v2101, -inf
        %2107 = vmax.xlane.f32.xlu0 %v2106
        %v2108 = vpop.xlane.xlu0 %2107
        %v2109 = vsub.f32 %v2101, %v2108
        %v2110 = vmul.f32 %v2109, 1.442695
        %v2111 = vpow.pop %v2110
        %v2112 = vsel %vm1531, %v2111, 0.0
        %2113 = vadd.xlane.f32.xlu0 %v2112
        %v2114 = vpop.xlane.xlu0 %2113
        %v2115 = vrcp.pop %v2114
        %v2116 = vmul.f32 %v2111, %v2115
        %v2117 = vpack.c.bf16 %v2116, %v2116
        %2118 = vrot.lane.b32.xlu0 %v1946, 56
        %v2119 = vpop.permute.xlu0 %2118
        %v2121 = vsel %vm1546, %v2117, 0
        %v2124 = vsel %vm1550, %v2119, 0
        %2126 = vmatprep.subr.bf16.mxu0 0
        %2127 = vmatpush1.bf16.msra.mxu0 %v2124
        %2128 = vmatprep.subr.bf16.mxu0 0
        %2129 = vmatpush1.bf16.msra.mxu0 0
        %2130 = vmatprep.subr.bf16.mxu0 0
        %2131 = vmatpush1.bf16.msra.mxu0 0
        %2132 = vmatprep.subr.bf16.mxu0 0
        %2133 = vmatpush1.bf16.msra.mxu0 0
        %2134 = vmatprep.subr.bf16.mxu0 0
        %2135 = vmatpush1.bf16.msra.mxu0 0
        %2136 = vmatprep.subr.bf16.mxu0 0
        %2137 = vmatpush1.bf16.msra.mxu0 0
        %2138 = vmatprep.subr.bf16.mxu0 0
        %2139 = vmatpush1.bf16.msra.mxu0 0
        %2140 = vmatprep.subr.bf16.mxu0 0
        %2141 = vmatpush1.bf16.msra.mxu0 0
        %2142 = vmatprep.subr.bf16.mxu0 0
        %2143 = vmatpush1.bf16.msra.mxu0 0
        %2144 = vmatprep.subr.bf16.mxu0 0
        %2145 = vmatpush1.bf16.msra.mxu0 0
        %2146 = vmatprep.subr.bf16.mxu0 0
        %2147 = vmatpush1.bf16.msra.mxu0 0
        %2148 = vmatprep.subr.bf16.mxu0 0
        %2149 = vmatpush1.bf16.msra.mxu0 0
        %2150 = vmatprep.subr.bf16.mxu0 0
        %2151 = vmatpush1.bf16.msra.mxu0 0
        %2152 = vmatprep.subr.bf16.mxu0 0
        %2153 = vmatpush1.bf16.msra.mxu0 0
        %2154 = vmatprep.subr.bf16.mxu0 0
        %2155 = vmatpush1.bf16.msra.mxu0 0
        %2156 = vmatprep.subr.bf16.mxu0 0
        %2157 = vmatpush1.bf16.msra.mxu0 0
        %2158 = vmatprep.mubr.bf16.mxu0 0
        %2159 = vmatmul.mubr.bf16.gmra.mrb[0].mxu0 %v2121
        %v2160 = vpop.f32.mrb[0].mxu0
        %v2161 = vadd.f32 0.0, %v2160
        %v2162 = vpop.f32.mrb[0].mxu0
        %v2163 = vpop.f32.mrb[0].mxu0
        %v2164 = vpop.f32.mrb[0].mxu0
        %2165 = vdwg.mxu0
        %2167 = vrot.lane.b32.xlu0 %v2161, 8
        %v2168 = vpop.permute.xlu0 %2167
        %2170 = vst.msk [vmem:[#allocation2 + $0x6] sm:$0x3f] %vm1710, %v2168
        %2171 = vrot.lane.b32.xlu0 %v1946, 112
        %v2172 = vpop.permute.xlu0 %2171
        %2173 = vrot.lane.b32.xlu0 %v1946, 80
        %v2174 = vpop.permute.xlu0 %2173
        %v2176 = vsel %vm1484, %v2172, 0
        %v2179 = vsel %vm1484, %v2174, 0
        %2181 = vmatprep.subr.bf16.mxu0 0
        %2182 = vmatpush1.bf16.xpose.msra.mxu0 %v2179
        %2183 = vmatprep.subr.bf16.mxu0 0
        %2184 = vmatpush1.bf16.xpose.msra.mxu0 0
        %2185 = vmatprep.subr.bf16.mxu0 0
        %2186 = vmatpush1.bf16.xpose.msra.mxu0 0
        %2187 = vmatprep.subr.bf16.mxu0 0
        %2188 = vmatpush1.bf16.xpose.msra.mxu0 0
        %2189 = vmatprep.subr.bf16.mxu0 0
        %2190 = vmatpush1.bf16.xpose.msra.mxu0 0
        %2191 = vmatprep.subr.bf16.mxu0 0
        %2192 = vmatpush1.bf16.xpose.msra.mxu0 0
        %2193 = vmatprep.subr.bf16.mxu0 0
        %2194 = vmatpush1.bf16.xpose.msra.mxu0 0
        %2195 = vmatprep.subr.bf16.mxu0 0
        %2196 = vmatpush1.bf16.xpose.msra.mxu0 0
        %2197 = vmatprep.subr.bf16.mxu0 0
        %2198 = vmatpush1.bf16.xpose.msra.mxu0 0
        %2199 = vmatprep.subr.bf16.mxu0 0
        %2200 = vmatpush1.bf16.xpose.msra.mxu0 0
        %2201 = vmatprep.subr.bf16.mxu0 0
        %2202 = vmatpush1.bf16.xpose.msra.mxu0 0
        %2203 = vmatprep.subr.bf16.mxu0 0
        %2204 = vmatpush1.bf16.xpose.msra.mxu0 0
        %2205 = vmatprep.subr.bf16.mxu0 0
        %2206 = vmatpush1.bf16.xpose.msra.mxu0 0
        %2207 = vmatprep.subr.bf16.mxu0 0
        %2208 = vmatpush1.bf16.xpose.msra.mxu0 0
        %2209 = vmatprep.subr.bf16.mxu0 0
        %2210 = vmatpush1.bf16.xpose.msra.mxu0 0
        %2211 = vmatprep.subr.bf16.mxu0 0
        %2212 = vmatpush1.bf16.xpose.msra.mxu0 0
        %2213 = vmatprep.mubr.bf16.mxu0 0
        %2214 = vmatmul.mubr.bf16.gmra.mrb[0].mxu0 %v2176
        %v2215 = vpop.f32.mrb[0].mxu0
        %v2216 = vadd.f32 0.0, %v2215
        %v2217 = vpop.f32.mrb[0].mxu0
        %v2218 = vpop.f32.mrb[0].mxu0
        %v2219 = vpop.f32.mrb[0].mxu0
        %2220 = vdwg.mxu0
        %v2221 = vsel %vm1531, %v2216, -inf
        %2222 = vmax.xlane.f32.xlu0 %v2221
        %v2223 = vpop.xlane.xlu0 %2222
        %v2224 = vsub.f32 %v2216, %v2223
        %v2225 = vmul.f32 %v2224, 1.442695
        %v2226 = vpow.pop %v2225
        %v2227 = vsel %vm1531, %v2226, 0.0
        %2228 = vadd.xlane.f32.xlu0 %v2227
        %v2229 = vpop.xlane.xlu0 %2228
        %v2230 = vrcp.pop %v2229
        %v2231 = vmul.f32 %v2226, %v2230
        %v2232 = vpack.c.bf16 %v2231, %v2231
        %2233 = vrot.lane.b32.xlu0 %v1946, 48
        %v2234 = vpop.permute.xlu0 %2233
        %v2236 = vsel %vm1546, %v2232, 0
        %v2239 = vsel %vm1550, %v2234, 0
        %2241 = vmatprep.subr.bf16.mxu0 0
        %2242 = vmatpush1.bf16.msra.mxu0 %v2239
        %2243 = vmatprep.subr.bf16.mxu0 0
        %2244 = vmatpush1.bf16.msra.mxu0 0
        %2245 = vmatprep.subr.bf16.mxu0 0
        %2246 = vmatpush1.bf16.msra.mxu0 0
        %2247 = vmatprep.subr.bf16.mxu0 0
        %2248 = vmatpush1.bf16.msra.mxu0 0
        %2249 = vmatprep.subr.bf16.mxu0 0
        %2250 = vmatpush1.bf16.msra.mxu0 0
        %2251 = vmatprep.subr.bf16.mxu0 0
        %2252 = vmatpush1.bf16.msra.mxu0 0
        %2253 = vmatprep.subr.bf16.mxu0 0
        %2254 = vmatpush1.bf16.msra.mxu0 0
        %2255 = vmatprep.subr.bf16.mxu0 0
        %2256 = vmatpush1.bf16.msra.mxu0 0
        %2257 = vmatprep.subr.bf16.mxu0 0
        %2258 = vmatpush1.bf16.msra.mxu0 0
        %2259 = vmatprep.subr.bf16.mxu0 0
        %2260 = vmatpush1.bf16.msra.mxu0 0
        %2261 = vmatprep.subr.bf16.mxu0 0
        %2262 = vmatpush1.bf16.msra.mxu0 0
        %2263 = vmatprep.subr.bf16.mxu0 0
        %2264 = vmatpush1.bf16.msra.mxu0 0
        %2265 = vmatprep.subr.bf16.mxu0 0
        %2266 = vmatpush1.bf16.msra.mxu0 0
        %2267 = vmatprep.subr.bf16.mxu0 0
        %2268 = vmatpush1.bf16.msra.mxu0 0
        %2269 = vmatprep.subr.bf16.mxu0 0
        %2270 = vmatpush1.bf16.msra.mxu0 0
        %2271 = vmatprep.subr.bf16.mxu0 0
        %2272 = vmatpush1.bf16.msra.mxu0 0
        %2273 = vmatprep.mubr.bf16.mxu0 0
        %2274 = vmatmul.mubr.bf16.gmra.mrb[0].mxu0 %v2236
        %v2275 = vpop.f32.mrb[0].mxu0
        %v2276 = vadd.f32 0.0, %v2275
        %v2277 = vpop.f32.mrb[0].mxu0
        %v2278 = vpop.f32.mrb[0].mxu0
        %v2279 = vpop.f32.mrb[0].mxu0
        %2280 = vdwg.mxu0
        %2282 = vrot.lane.b32.xlu0 %v2276, 16
        %v2283 = vpop.permute.xlu0 %2282
        %2285 = vst.msk [vmem:[#allocation2 + $0x6] sm:$0x3f] %vm1826, %v2283
        %2286 = vrot.lane.b32.xlu0 %v1946, 104
        %v2287 = vpop.permute.xlu0 %2286
        %2288 = vrot.lane.b32.xlu0 %v1946, 72
        %v2289 = vpop.permute.xlu0 %2288
        %v2291 = vsel %vm1484, %v2287, 0
        %v2294 = vsel %vm1484, %v2289, 0
        %2296 = vmatprep.subr.bf16.mxu0 0
        %2297 = vmatpush1.bf16.xpose.msra.mxu0 %v2294
        %2298 = vmatprep.subr.bf16.mxu0 0
        %2299 = vmatpush1.bf16.xpose.msra.mxu0 0
        %2300 = vmatprep.subr.bf16.mxu0 0
        %2301 = vmatpush1.bf16.xpose.msra.mxu0 0
        %2302 = vmatprep.subr.bf16.mxu0 0
        %2303 = vmatpush1.bf16.xpose.msra.mxu0 0
        %2304 = vmatprep.subr.bf16.mxu0 0
        %2305 = vmatpush1.bf16.xpose.msra.mxu0 0
        %2306 = vmatprep.subr.bf16.mxu0 0
        %2307 = vmatpush1.bf16.xpose.msra.mxu0 0
        %2308 = vmatprep.subr.bf16.mxu0 0
        %2309 = vmatpush1.bf16.xpose.msra.mxu0 0
        %2310 = vmatprep.subr.bf16.mxu0 0
        %2311 = vmatpush1.bf16.xpose.msra.mxu0 0
        %2312 = vmatprep.subr.bf16.mxu0 0
        %2313 = vmatpush1.bf16.xpose.msra.mxu0 0
        %2314 = vmatprep.subr.bf16.mxu0 0
        %2315 = vmatpush1.bf16.xpose.msra.mxu0 0
        %2316 = vmatprep.subr.bf16.mxu0 0
        %2317 = vmatpush1.bf16.xpose.msra.mxu0 0
        %2318 = vmatprep.subr.bf16.mxu0 0
        %2319 = vmatpush1.bf16.xpose.msra.mxu0 0
        %2320 = vmatprep.subr.bf16.mxu0 0
        %2321 = vmatpush1.bf16.xpose.msra.mxu0 0
        %2322 = vmatprep.subr.bf16.mxu0 0
        %2323 = vmatpush1.bf16.xpose.msra.mxu0 0
        %2324 = vmatprep.subr.bf16.mxu0 0
        %2325 = vmatpush1.bf16.xpose.msra.mxu0 0
        %2326 = vmatprep.subr.bf16.mxu0 0
        %2327 = vmatpush1.bf16.xpose.msra.mxu0 0
        %2328 = vmatprep.mubr.bf16.mxu0 0
        %2329 = vmatmul.mubr.bf16.gmra.mrb[0].mxu0 %v2291
        %v2330 = vpop.f32.mrb[0].mxu0
        %v2331 = vadd.f32 0.0, %v2330
        %v2332 = vpop.f32.mrb[0].mxu0
        %v2333 = vpop.f32.mrb[0].mxu0
        %v2334 = vpop.f32.mrb[0].mxu0
        %2335 = vdwg.mxu0
        %v2336 = vsel %vm1531, %v2331, -inf
        %2337 = vmax.xlane.f32.xlu0 %v2336
        %v2338 = vpop.xlane.xlu0 %2337
        %v2339 = vsub.f32 %v2331, %v2338
        %v2340 = vmul.f32 %v2339, 1.442695
        %v2341 = vpow.pop %v2340
        %v2342 = vsel %vm1531, %v2341, 0.0
        %2343 = vadd.xlane.f32.xlu0 %v2342
        %v2344 = vpop.xlane.xlu0 %2343
        %v2345 = vrcp.pop %v2344
        %v2346 = vmul.f32 %v2341, %v2345
        %v2347 = vpack.c.bf16 %v2346, %v2346
        %2348 = vrot.lane.b32.xlu0 %v1946, 40
        %v2349 = vpop.permute.xlu0 %2348
        %v2351 = vsel %vm1546, %v2347, 0
        %v2354 = vsel %vm1550, %v2349, 0
        %2356 = vmatprep.subr.bf16.mxu0 0
        %2357 = vmatpush1.bf16.msra.mxu0 %v2354
        %2358 = vmatprep.subr.bf16.mxu0 0
        %2359 = vmatpush1.bf16.msra.mxu0 0
        %2360 = vmatprep.subr.bf16.mxu0 0
        %2361 = vmatpush1.bf16.msra.mxu0 0
        %2362 = vmatprep.subr.bf16.mxu0 0
        %2363 = vmatpush1.bf16.msra.mxu0 0
        %2364 = vmatprep.subr.bf16.mxu0 0
        %2365 = vmatpush1.bf16.msra.mxu0 0
        %2366 = vmatprep.subr.bf16.mxu0 0
        %2367 = vmatpush1.bf16.msra.mxu0 0
        %2368 = vmatprep.subr.bf16.mxu0 0
        %2369 = vmatpush1.bf16.msra.mxu0 0
        %2370 = vmatprep.subr.bf16.mxu0 0
        %2371 = vmatpush1.bf16.msra.mxu0 0
        %2372 = vmatprep.subr.bf16.mxu0 0
        %2373 = vmatpush1.bf16.msra.mxu0 0
        %2374 = vmatprep.subr.bf16.mxu0 0
        %2375 = vmatpush1.bf16.msra.mxu0 0
        %2376 = vmatprep.subr.bf16.mxu0 0
        %2377 = vmatpush1.bf16.msra.mxu0 0
        %2378 = vmatprep.subr.bf16.mxu0 0
        %2379 = vmatpush1.bf16.msra.mxu0 0
        %2380 = vmatprep.subr.bf16.mxu0 0
        %2381 = vmatpush1.bf16.msra.mxu0 0
        %2382 = vmatprep.subr.bf16.mxu0 0
        %2383 = vmatpush1.bf16.msra.mxu0 0
        %2384 = vmatprep.subr.bf16.mxu0 0
        %2385 = vmatpush1.bf16.msra.mxu0 0
        %2386 = vmatprep.subr.bf16.mxu0 0
        %2387 = vmatpush1.bf16.msra.mxu0 0
        %2388 = vmatprep.mubr.bf16.mxu0 0
        %2389 = vmatmul.mubr.bf16.gmra.mrb[0].mxu0 %v2351
        %v2390 = vpop.f32.mrb[0].mxu0
        %v2391 = vadd.f32 0.0, %v2390
        %v2392 = vpop.f32.mrb[0].mxu0
        %v2393 = vpop.f32.mrb[0].mxu0
        %v2394 = vpop.f32.mrb[0].mxu0
        %2395 = vdwg.mxu0
        %2397 = vrot.lane.b32.xlu0 %v2391, 24
        %v2398 = vpop.permute.xlu0 %2397
        %2400 = vst.msk [vmem:[#allocation2 + $0x6] sm:$0x3f] %vm1942, %v2398
        %v2401 = vld [vmem:[#allocation2] sm:$0xff]
        %v2402 = vld [vmem:[#allocation2 + $0x8] sm:$0xf]
        %v2403 = vpack.c.bf16 %v2402, %v2401
        %v2404 = vld [vmem:[%s961] sm:$0xf]
        %v2405 = vld [vmem:[%s961 + $0x4] sm:$0xf]
        %v2406 = vld [vmem:[%s961 + $0x8] sm:$0xf]
        %v2407 = vld [vmem:[%s961 + $0xc] sm:$0xf]
        %v2408 = vld [vmem:[%s969] sm:$0x1]
        %v2410 = vlaneseq
        %v2411 = vshrl.u32 %v2410, 7
        %v2412 = vsub.s32 0, %v2411
        %v2413 = vrot.slane %v2408, %v2412
        %v2419 = vunpack.c.l.b16 %v2404
        %v2420 = vunpack.c.l.b16 %v2405
        %v2421 = vunpack.c.l.b16 %v2406
        %v2422 = vunpack.c.l.b16 %v2407
        %v2423 = vpack.c.b16 %v2420, %v2419
        %v2424 = vpack.c.b16 %v2422, %v2421
        %v2428 = vsel %vm1374, %v2403, 0
        %2430 = vmatprep.subr.bf16.mxu0 0
        %2431 = vmatpush1.bf16.msra.mxu0 %v2423
        %2432 = vmatprep.subr.bf16.mxu0 0
        %2433 = vmatpush1.bf16.msra.mxu0 %v2424
        %2434 = vmatprep.subr.bf16.mxu0 0
        %2435 = vmatpush1.bf16.msra.mxu0 0
        %2436 = vmatprep.subr.bf16.mxu0 0
        %2437 = vmatpush1.bf16.msra.mxu0 0
        %2438 = vmatprep.subr.bf16.mxu0 0
        %2439 = vmatpush1.bf16.msra.mxu0 0
        %2440 = vmatprep.subr.bf16.mxu0 0
        %2441 = vmatpush1.bf16.msra.mxu0 0
        %2442 = vmatprep.subr.bf16.mxu0 0
        %2443 = vmatpush1.bf16.msra.mxu0 0
        %2444 = vmatprep.subr.bf16.mxu0 0
        %2445 = vmatpush1.bf16.msra.mxu0 0
        %2446 = vmatprep.subr.bf16.mxu0 0
        %2447 = vmatpush1.bf16.msra.mxu0 0
        %2448 = vmatprep.subr.bf16.mxu0 0
        %2449 = vmatpush1.bf16.msra.mxu0 0
        %2450 = vmatprep.subr.bf16.mxu0 0
        %2451 = vmatpush1.bf16.msra.mxu0 0
        %2452 = vmatprep.subr.bf16.mxu0 0
        %2453 = vmatpush1.bf16.msra.mxu0 0
        %2454 = vmatprep.subr.bf16.mxu0 0
        %2455 = vmatpush1.bf16.msra.mxu0 0
        %2456 = vmatprep.subr.bf16.mxu0 0
        %2457 = vmatpush1.bf16.msra.mxu0 0
        %2458 = vmatprep.subr.bf16.mxu0 0
        %2459 = vmatpush1.bf16.msra.mxu0 0
        %2460 = vmatprep.subr.bf16.mxu0 0
        %2461 = vmatpush1.bf16.msra.mxu0 0
        %2462 = vmatprep.mubr.bf16.mxu0 0
        %2463 = vmatmul.mubr.bf16.gmra.mrb[0].mxu0 %v2428
        %v2464 = vpop.f32.mrb[0].mxu0
        %v2465 = vadd.f32 %v2413, %v2464
        %v2466 = vpop.f32.mrb[0].mxu0
        %v2467 = vpop.f32.mrb[0].mxu0
        %v2468 = vadd.f32 %v2413, %v2467
        %v2469 = vpop.f32.mrb[0].mxu0
        %2470 = vdwg.mxu0
        %v2471 = vadd.f32 %v1370, %v2465
        %v2472 = vadd.f32 %v1371, %v2468
        %v2473 = vld [vmem:[%s977] sm:$0x1]
        %v2474 = vld [vmem:[%s985] sm:$0x1]
        %v2475 = vsel %vm1374, %v2471, 0.0
        %2476 = vadd.xlane.f32.xlu0 %v2475
        %v2477 = vpop.xlane.xlu0 %2476
        %v2478 = vsel %vm1378, %v2472, 0.0
        %2479 = vadd.xlane.f32.xlu0 %v2478
        %v2480 = vpop.xlane.xlu0 %2479
        %v2481 = vmul.f32 %v2477, %v1382
        %v2482 = vmul.f32 %v2480, %v1382
        %v2483 = vsub.f32 %v2471, %v2481
        %v2484 = vsub.f32 %v2472, %v2482
        %v2485 = vmul.f32 %v2483, %v2483
        %v2486 = vmul.f32 %v2484, %v2484
        %v2487 = vsel %vm1374, %v2485, 0.0
        %2488 = vadd.xlane.f32.xlu0 %v2487
        %v2489 = vpop.xlane.xlu0 %2488
        %v2490 = vsel %vm1378, %v2486, 0.0
        %2491 = vadd.xlane.f32.xlu0 %v2490
        %v2492 = vpop.xlane.xlu0 %2491
        %v2493 = vmul.f32 %v2489, %v1382
        %v2494 = vmul.f32 %v2492, %v1382
        %v2495 = vadd.f32 %v2493, 1e-05
        %v2496 = vadd.f32 %v2494, 1e-05
        %v2497 = vrsqrt.pop %v2495
        %v2498 = vrsqrt.pop %v2496
        %v2499 = vmul.f32 %v2483, %v2497
        %v2500 = vmul.f32 %v2484, %v2498
        %v2502 = vlaneseq
        %v2503 = vshrl.u32 %v2502, 7
        %v2504 = vsub.s32 0, %v2503
        %v2505 = vrot.slane %v2473, %v2504
        %v2507 = vmul.f32 %v2499, %v2505
        %v2508 = vmul.f32 %v2500, %v2505
        %v2510 = vlaneseq
        %v2511 = vshrl.u32 %v2510, 7
        %v2512 = vsub.s32 0, %v2511
        %v2513 = vrot.slane %v2474, %v2512
        %v2515 = vadd.f32 %v2507, %v2513
        %v2516 = vadd.f32 %v2508, %v2513
        %v2517 = vpack.c.bf16 %v2516, %v2515
        %v2518 = vld [vmem:[%s994] sm:$0xf]
        %v2519 = vld [vmem:[%s994 + $0x4] sm:$0xf]
        %v2520 = vld [vmem:[%s994 + $0x8] sm:$0xf]
        %v2521 = vld [vmem:[%s994 + $0xc] sm:$0xf]
        %v2522 = vld [vmem:[%s1002] sm:$0x1]
        %v2524 = vlaneseq
        %v2525 = vshrl.u32 %v2524, 7
        %v2526 = vsub.s32 0, %v2525
        %v2527 = vrot.slane %v2522, %v2526
        %v2533 = vunpack.c.l.b16 %v2518
        %v2534 = vunpack.c.l.b16 %v2519
        %v2535 = vunpack.c.l.b16 %v2520
        %v2536 = vunpack.c.l.b16 %v2521
        %v2537 = vpack.c.b16 %v2534, %v2533
        %v2538 = vpack.c.b16 %v2536, %v2535
        %v2542 = vsel %vm1374, %v2517, 0
        %2544 = vmatprep.subr.bf16.mxu0 0
        %2545 = vmatpush1.bf16.msra.mxu0 %v2537
        %2546 = vmatprep.subr.bf16.mxu0 0
        %2547 = vmatpush1.bf16.msra.mxu0 %v2538
        %2548 = vmatprep.subr.bf16.mxu0 0
        %2549 = vmatpush1.bf16.msra.mxu0 0
        %2550 = vmatprep.subr.bf16.mxu0 0
        %2551 = vmatpush1.bf16.msra.mxu0 0
        %2552 = vmatprep.subr.bf16.mxu0 0
        %2553 = vmatpush1.bf16.msra.mxu0 0
        %2554 = vmatprep.subr.bf16.mxu0 0
        %2555 = vmatpush1.bf16.msra.mxu0 0
        %2556 = vmatprep.subr.bf16.mxu0 0
        %2557 = vmatpush1.bf16.msra.mxu0 0
        %2558 = vmatprep.subr.bf16.mxu0 0
        %2559 = vmatpush1.bf16.msra.mxu0 0
        %2560 = vmatprep.subr.bf16.mxu0 0
        %2561 = vmatpush1.bf16.msra.mxu0 0
        %2562 = vmatprep.subr.bf16.mxu0 0
        %2563 = vmatpush1.bf16.msra.mxu0 0
        %2564 = vmatprep.subr.bf16.mxu0 0
        %2565 = vmatpush1.bf16.msra.mxu0 0
        %2566 = vmatprep.subr.bf16.mxu0 0
        %2567 = vmatpush1.bf16.msra.mxu0 0
        %2568 = vmatprep.subr.bf16.mxu0 0
        %2569 = vmatpush1.bf16.msra.mxu0 0
        %2570 = vmatprep.subr.bf16.mxu0 0
        %2571 = vmatpush1.bf16.msra.mxu0 0
        %2572 = vmatprep.subr.bf16.mxu0 0
        %2573 = vmatpush1.bf16.msra.mxu0 0
        %2574 = vmatprep.subr.bf16.mxu0 0
        %2575 = vmatpush1.bf16.msra.mxu0 0
        %2576 = vmatprep.mubr.bf16.mxu0 0
        %2577 = vmatmul.mubr.bf16.gmra.mrb[0].mxu0 %v2542
        %v2578 = vpop.f32.mrb[0].mxu0
        %v2579 = vadd.f32 %v2527, %v2578
        %v2580 = vpop.f32.mrb[0].mxu0
        %v2581 = vpop.f32.mrb[0].mxu0
        %v2582 = vadd.f32 %v2527, %v2581
        %v2583 = vpop.f32.mrb[0].mxu0
        %2584 = vdwg.mxu0
        %v2585 = vmul.f32 %v2579, 0.5
        %v2586 = vmul.f32 %v2582, 0.5
        %v2587 = vmul.f32 %v2579, 0.70710677
        %v2588 = vmul.f32 %v2582, 0.70710677
        %vm2589 = vcmp.ge.f32.partialorder %v2587, 0.0
        %vm2590 = vcmp.ge.f32.partialorder %v2588, 0.0
        %v2591 = vsel %vm2589, 1.0, -1.0
        %v2592 = vsel %vm2590, 1.0, -1.0
        %v2593 = vand.u32 2147483647, %v2587
        %v2594 = vand.u32 2147483647, %v2588
        %v2595 = vmul.f32 %v2593, 0.3275911
        %v2596 = vmul.f32 %v2594, 0.3275911
        %v2597 = vadd.f32 %v2595, 1.0
        %v2598 = vadd.f32 %v2596, 1.0
        %v2599 = vrcp.pop %v2597
        %v2600 = vrcp.pop %v2598
        %v2601 = vmul.f32 %v2599, 1.0614054
        %v2602 = vmul.f32 %v2600, 1.0614054
        %v2603 = vadd.f32 %v2601, -1.4531521
        %v2604 = vadd.f32 %v2602, -1.4531521
        %v2605 = vmul.f32 %v2599, %v2603
        %v2606 = vmul.f32 %v2600, %v2604
        %v2607 = vadd.f32 %v2605, 1.4214138
        %v2608 = vadd.f32 %v2606, 1.4214138
        %v2609 = vmul.f32 %v2599, %v2607
        %v2610 = vmul.f32 %v2600, %v2608
        %v2611 = vadd.f32 %v2609, -0.28449672
        %v2612 = vadd.f32 %v2610, -0.28449672
        %v2613 = vmul.f32 %v2599, %v2611
        %v2614 = vmul.f32 %v2600, %v2612
        %v2615 = vadd.f32 %v2613, 0.2548296
        %v2616 = vadd.f32 %v2614, 0.2548296
        %v2617 = vmul.f32 %v2599, %v2615
        %v2618 = vmul.f32 %v2600, %v2616
        %v2619 = vsub.f32 0.0, %v2593
        %v2620 = vsub.f32 0.0, %v2594
        %v2621 = vmul.f32 %v2619, %v2593
        %v2622 = vmul.f32 %v2620, %v2594
        %v2623 = vmul.f32 %v2621, 1.442695
        %v2624 = vpow.pop %v2623
        %v2625 = vmul.f32 %v2622, 1.442695
        %v2626 = vpow.pop %v2625
        %v2627 = vmul.f32 %v2617, %v2624
        %v2628 = vmul.f32 %v2618, %v2626
        %v2629 = vsub.f32 1.0, %v2627
        %v2630 = vsub.f32 1.0, %v2628
        %v2631 = vmul.f32 %v2591, %v2629
        %v2632 = vmul.f32 %v2592, %v2630
        %v2633 = vadd.f32 %v2631, 1.0
        %v2634 = vadd.f32 %v2632, 1.0
        %v2635 = vmul.f32 %v2585, %v2633
        %v2636 = vmul.f32 %v2586, %v2634
        %v2637 = vpack.c.bf16 %v2636, %v2635
        %v2638 = vld [vmem:[%s1011] sm:$0xf]
        %v2639 = vld [vmem:[%s1011 + $0x4] sm:$0xf]
        %v2640 = vld [vmem:[%s1011 + $0x8] sm:$0xf]
        %v2641 = vld [vmem:[%s1011 + $0xc] sm:$0xf]
        %v2642 = vld [vmem:[%s1011 + $0x10] sm:$0xf]
        %v2643 = vld [vmem:[%s1011 + $0x14] sm:$0xf]
        %v2644 = vld [vmem:[%s1011 + $0x18] sm:$0xf]
        %v2645 = vld [vmem:[%s1011 + $0x1c] sm:$0xf]
        %v2646 = vld [vmem:[%s1019] sm:$0x1]
        %v2648 = vlaneseq
        %v2649 = vshrl.u32 %v2648, 7
        %v2650 = vsub.s32 0, %v2649
        %v2651 = vrot.slane %v2646, %v2650
        %v2661 = vunpack.c.l.b16 %v2638
        %v2662 = vunpack.c.l.b16 %v2639
        %v2663 = vunpack.c.l.b16 %v2640
        %v2664 = vunpack.c.l.b16 %v2641
        %v2665 = vunpack.c.l.b16 %v2642
        %v2666 = vunpack.c.l.b16 %v2643
        %v2667 = vunpack.c.l.b16 %v2644
        %v2668 = vunpack.c.l.b16 %v2645
        %v2669 = vpack.c.b16 %v2662, %v2661
        %v2670 = vpack.c.b16 %v2664, %v2663
        %v2671 = vpack.c.b16 %v2666, %v2665
        %v2672 = vpack.c.b16 %v2668, %v2667
        %vm2677 = vcmask 523264
        %v2679 = vsel %vm2677, %v2637, 0
        %2681 = vmatprep.subr.bf16.mxu0 0
        %2682 = vmatpush1.bf16.msra.mxu0 %v2669
        %2683 = vmatprep.subr.bf16.mxu0 0
        %2684 = vmatpush1.bf16.msra.mxu0 %v2670
        %2685 = vmatprep.subr.bf16.mxu0 0
        %2686 = vmatpush1.bf16.msra.mxu0 %v2671
        %2687 = vmatprep.subr.bf16.mxu0 0
        %2688 = vmatpush1.bf16.msra.mxu0 %v2672
        %2689 = vmatprep.subr.bf16.mxu0 0
        %2690 = vmatpush1.bf16.msra.mxu0 0
        %2691 = vmatprep.subr.bf16.mxu0 0
        %2692 = vmatpush1.bf16.msra.mxu0 0
        %2693 = vmatprep.subr.bf16.mxu0 0
        %2694 = vmatpush1.bf16.msra.mxu0 0
        %2695 = vmatprep.subr.bf16.mxu0 0
        %2696 = vmatpush1.bf16.msra.mxu0 0
        %2697 = vmatprep.subr.bf16.mxu0 0
        %2698 = vmatpush1.bf16.msra.mxu0 0
        %2699 = vmatprep.subr.bf16.mxu0 0
        %2700 = vmatpush1.bf16.msra.mxu0 0
        %2701 = vmatprep.subr.bf16.mxu0 0
        %2702 = vmatpush1.bf16.msra.mxu0 0
        %2703 = vmatprep.subr.bf16.mxu0 0
        %2704 = vmatpush1.bf16.msra.mxu0 0
        %2705 = vmatprep.subr.bf16.mxu0 0
        %2706 = vmatpush1.bf16.msra.mxu0 0
        %2707 = vmatprep.subr.bf16.mxu0 0
        %2708 = vmatpush1.bf16.msra.mxu0 0
        %2709 = vmatprep.subr.bf16.mxu0 0
        %2710 = vmatpush1.bf16.msra.mxu0 0
        %2711 = vmatprep.subr.bf16.mxu0 0
        %2712 = vmatpush1.bf16.msra.mxu0 0
        %2713 = vmatprep.mubr.bf16.mxu0 0
        %2714 = vmatmul.mubr.bf16.gmra.mrb[0].mxu0 %v2679
        %v2715 = vpop.f32.mrb[0].mxu0
        %v2716 = vadd.f32 %v2651, %v2715
        %v2717 = vpop.f32.mrb[0].mxu0
        %v2718 = vpop.f32.mrb[0].mxu0
        %v2719 = vadd.f32 %v2651, %v2718
        %v2720 = vpop.f32.mrb[0].mxu0
        %2721 = vdwg.mxu0
        %v2722 = vadd.f32 %v2471, %v2716
        %v2723 = vadd.f32 %v2472, %v2719
        %2724 = vst.msk [vmem:[#allocation31] sm:$0xff] %vm1374, %v2722
        %2725 = vst.msk [vmem:[#allocation31 + $0x8] sm:$0xf] %vm1378, %v2723
        // Predicated region
        $region193: #{distill_wrapper_forward.7} parent=103 // pred_check
          %p2726 = pneg %p548
        $region194: #{distill_wrapper_forward.7} parent=103 // pred_check_branch
          %2728 = sbr.rel (%p2726) target = $region196
        $region195: #{distill_wrapper_forward.7} parent=103 // pred_region
          %s2730 = ssub.s32 256, 256
          %2731 = vsyncadd [#allocation5], %s2730
          %s2732 = sshll.u32 [#allocation31], 4
          %s2733 = int_to_ptr.vmem [resolvable:$true] %s2732
          %2738 = dma.vmem_to_hbm [thread:$0]  %s2733, 256, %s21, [#allocation5], 128, 128, 8
        $region196: #{distill_wrapper_forward.7} parent=103 // pred_fallthru
          _
        // Predicated region
        $region197: #{distill_wrapper_forward.7} parent=103 // pred_check
          %p2739 = pneg %p548
        $region198: #{distill_wrapper_forward.7} parent=103 // pred_check_branch
          %2741 = sbr.rel (%p2739) target = $region200
        $region199: #{distill_wrapper_forward.7} parent=103 // pred_region
          %2742 = dma.done [#allocation5], 256
        $region200: #{distill_wrapper_forward.7} parent=103 // pred_fallthru
          _
      $region104: #{distill_wrapper_forward.7} parent=5 // pred_fallthru
        _
      %p2743 = scmp.le.s32.totalorder 2, %s34
      // Predicated region
      $region201: #{distill_wrapper_forward.7} parent=5 // pred_check
        %p2744 = pneg %p2743
      $region202: #{distill_wrapper_forward.7} parent=5 // pred_check_branch
        %2746 = sbr.rel (%p2744) target = $region204
      $region203: #{distill_wrapper_forward.7} parent=5 // pred_region
        %s2747 = ssub.s32 %s34, 2
      $region204: #{distill_wrapper_forward.7} parent=5 // pred_fallthru
        _
    $region6: #{distill_wrapper_forward.7} parent=1 // loop_footer
      %s38 = sadd.s32 1, %s34
    $region7: #{distill_wrapper_forward.7} parent=1 // loop_footer_branch
      %33 = sbr.rel target = $region3
    $region8: #{distill_wrapper_forward.7} parent=1 // loop_exit
      _
    %2748 = vsyncpa [#allocation4], 1
    %s2749 = scalar_lea.sflag [#allocation4], 1
    %2750 = vsyncpa %s2749, 1
    %2751 = vsyncpa [#allocation7], 1
    %2752 = vsyncpa [#allocation10], 1
    %2753 = vsyncpa [#allocation13], 1
    %2754 = vsyncpa [#allocation16], 1
    %2755 = vsyncpa [#allocation19], 1
    %2756 = vsyncpa [#allocation5], 1
    %s2757 = scalar_lea.sflag [#allocation5], 1
    %2758 = vsyncpa %s2757, 1

// kernel: distill_wrapper_forward.9
$region0: #{distill_wrapper_forward.9}
  #allocation0 [shape = 'u32[]', space=smem, size = 0x4, offset = 0x4, fixed_abs, tag = 'smem constant byte address 0x4 - core index']
  #allocation1 [shape = 'u32[144,128]{1,0:T(1,128)}', space=vmem, size = 0x12000, scoped, tag = 'internal scratch']
  %s0 = inlined_call_operand.vmem [shape: s32[2,1], index: 0, kind: input, shape index: {}]
  %s1 = inlined_call_operand.vmem [shape: f32[2,128], index: 1, kind: input, shape index: {}]
  %s2 = inlined_call_operand.vmem [shape: f32[2,128], index: 2, kind: input, shape index: {}]
  %s3 = inlined_call_operand.vmem [shape: f32[2,128], index: 3, kind: input, shape index: {}]
  %s4 = inlined_call_operand.hbm [shape: f32[1,1], index: 4, kind: output, shape index: {}]
  %s5 = sld [smem:[#allocation0]]
  $region26: #{distill_wrapper_forward.9} parent=0
    _
  %s7 = ssub.s32 1, %s5
  %s8 = scalar_select 0, %s7, %s5
  $region1: #{distill_wrapper_forward.9} parent=0
    #allocation2 [shape = 'u8[512]{0}', space=vmem, size = 0x400, scoped, tag = 'output window, operand 0, single buffered']
    #allocation3 [shape = 's32[1]{0}', space=sflag, size = 0x4, scoped, tag = 'scoped memory for distill_wrapper_forward.9']
    %9 = vsyncpa [#allocation3], 0
    // Predicated region
    $region2: #{distill_wrapper_forward.9} parent=1 // pred_check
      _
    $region3: #{distill_wrapper_forward.9} parent=1 // pred_check_branch
      %11 = sbr.rel (0) target = $region5
    $region4: #{distill_wrapper_forward.9} parent=1 // pred_region
      _
    $region5: #{distill_wrapper_forward.9} parent=1 // pred_fallthru
      _
    // Predicated region
    $region6: #{distill_wrapper_forward.9} parent=1 // pred_check
      _
    $region7: #{distill_wrapper_forward.9} parent=1 // pred_check_branch
      %13 = sbr.rel (0) target = $region9
    $region8: #{distill_wrapper_forward.9} parent=1 // pred_region
      _
    $region9: #{distill_wrapper_forward.9} parent=1 // pred_fallthru
      _
    // Predicated region
    $region10: #{distill_wrapper_forward.9} parent=1 // pred_check
      _
    $region11: #{distill_wrapper_forward.9} parent=1 // pred_check_branch
      %15 = sbr.rel (0) target = $region13
    $region12: #{distill_wrapper_forward.9} parent=1 // pred_region
      _
    $region13: #{distill_wrapper_forward.9} parent=1 // pred_fallthru
      _
    // Predicated region
    $region14: #{distill_wrapper_forward.9} parent=1 // pred_check
      _
    $region15: #{distill_wrapper_forward.9} parent=1 // pred_check_branch
      %17 = sbr.rel (0) target = $region17
    $region16: #{distill_wrapper_forward.9} parent=1 // pred_region
      _
    $region17: #{distill_wrapper_forward.9} parent=1 // pred_fallthru
      _
    %v18 = vld [vmem:[%s1] sm:$0x3]
    %v19 = vld [vmem:[%s2] sm:$0x3]
    %v20 = vld [vmem:[%s3] sm:$0x3]
    %v21 = vlaneseq
    %v22 = vand.u32 %v21, 127
    %vm23 = vcmp.lt.s32.totalorder %v22, 10
    %v24 = vsel %vm23, %v18, -1e+30
    %v25 = vsel %vm23, %v19, -1e+30
    %v26 = vsel %vm23, %v20, -1e+30
    %vm27 = vcmask 1041408
    %v28 = vsel %vm27, %v24, -inf
    %29 = vmax.xlane.f32.xlu0 %v28
    %v30 = vpop.xlane.xlu0 %29
    %v31 = vsub.f32 %v24, %v30
    %v32 = vmul.f32 %v31, 1.442695
    %v33 = vpow.pop %v32
    %v34 = vsel %vm27, %v33, 0.0
    %35 = vadd.xlane.f32.xlu0 %v34
    %v36 = vpop.xlane.xlu0 %35
    %v37 = vlog2.pop %v36
    %v38 = vmul.f32 %v37, 0.6931472
    %v39 = vsub.f32 %v31, %v38
    %v40 = vld [vmem:[%s0] sm:$0x3]
    %41 = vset.pattern.permute.xlu0 0
    %42 = vperm.xlu0 %41, %v40
    %v43 = vpop.permute.xlu0 %42
    %vm44 = vcmp.eq.s32.totalorder %v22, %v43
    %v45 = vsel %vm44, 1, 0
    %v46 = vcvt.s32.f32 %v45
    %v47 = vmul.f32 %v46, %v39
    %v48 = vsel %vm27, %v47, 0.0
    %49 = vadd.xlane.f32.xlu0 %v48
    %v50 = vpop.xlane.xlu0 %49
    %v51 = vrot.slane %v50, 4
    %v52 = vadd.f32 %v50, %v51
    %v53 = vrot.slane %v52, 2
    %v54 = vadd.f32 %v52, %v53
    %v55 = vrot.slane %v54, 1
    %v56 = vadd.f32 %v54, %v55
    %s57 = vtos %v56
    %s58 = ssub.f32 0.0, %s57
    %v59 = vrcp.pop 2.0
    %s60 = vtos %v59
    %s61 = smul.f32 %s58, %s60
    %v62 = vsel %vm27, %v25, -inf
    %63 = vmax.xlane.f32.xlu0 %v62
    %v64 = vpop.xlane.xlu0 %63
    %v65 = vsub.f32 %v25, %v64
    %v66 = vmul.f32 %v65, 1.442695
    %v67 = vpow.pop %v66
    %v68 = vsel %vm27, %v67, 0.0
    %69 = vadd.xlane.f32.xlu0 %v68
    %v70 = vpop.xlane.xlu0 %69
    %v71 = vlog2.pop %v70
    %v72 = vmul.f32 %v71, 0.6931472
    %v73 = vsub.f32 %v65, %v72
    %v74 = vsel %vm27, %v26, -inf
    %75 = vmax.xlane.f32.xlu0 %v74
    %v76 = vpop.xlane.xlu0 %75
    %v77 = vsub.f32 %v26, %v76
    %v78 = vmul.f32 %v77, 1.442695
    %v79 = vpow.pop %v78
    %v80 = vsel %vm27, %v79, 0.0
    %81 = vadd.xlane.f32.xlu0 %v80
    %v82 = vpop.xlane.xlu0 %81
    %v83 = vrcp.pop %v82
    %v84 = vmul.f32 %v79, %v83
    %v85 = vlog2.pop %v82
    %v86 = vmul.f32 %v85, 0.6931472
    %v87 = vsub.f32 %v77, %v86
    %v88 = vsub.f32 %v87, %v73
    %v89 = vmul.f32 %v84, %v88
    %v90 = vsel %vm23, %v89, 0.0
    %v91 = vsel %vm27, %v90, 0.0
    %92 = vadd.xlane.f32.xlu0 %v91
    %v93 = vpop.xlane.xlu0 %92
    %v94 = vrot.slane %v93, 4
    %v95 = vadd.f32 %v93, %v94
    %v96 = vrot.slane %v95, 2
    %v97 = vadd.f32 %v95, %v96
    %v98 = vrot.slane %v97, 1
    %v99 = vadd.f32 %v97, %v98
    %s100 = vtos %v99
    %v101 = vrcp.pop 2.0
    %s102 = vtos %v101
    %s103 = smul.f32 %s100, %s102
    %s104 = smul.f32 %s61, 0.5
    %s105 = smul.f32 %s103, 0.5
    %s106 = sadd.f32 %s104, %s105
    %v107 = vstv %s106
    %vm108 = vcmask 0
    %109 = vst.msk [vmem:[#allocation2] sm:$0x1] %vm108, %v107
    // Predicated region
    $region18: #{distill_wrapper_forward.9} parent=1 // pred_check
      _
    $region19: #{distill_wrapper_forward.9} parent=1 // pred_check_branch
      %111 = sbr.rel (0) target = $region21
    $region20: #{distill_wrapper_forward.9} parent=1 // pred_region
      %s113 = ssub.s32 16, 16
      %114 = vsyncadd [#allocation3], %s113
      %s116 = sshll.u32 [#allocation2], 4
      %s117 = int_to_ptr.vmem [resolvable:$true] %s116
      %119 = dma.vmem_to_hbm [thread:$0]  %s117, 16, %s4, [#allocation3]
    $region21: #{distill_wrapper_forward.9} parent=1 // pred_fallthru
      _
    // Predicated region
    $region22: #{distill_wrapper_forward.9} parent=1 // pred_check
      _
    $region23: #{distill_wrapper_forward.9} parent=1 // pred_check_branch
      %121 = sbr.rel (0) target = $region25
    $region24: #{distill_wrapper_forward.9} parent=1 // pred_region
      %122 = dma.done [#allocation3], 16
    $region25: #{distill_wrapper_forward.9} parent=1 // pred_fallthru
      _
    %123 = vsyncpa [#allocation3], 1

// kernel: distill_wrapper_forward.5
$region0: #{distill_wrapper_forward.5}
  #allocation0 [shape = 'u32[]', space=smem, size = 0x4, offset = 0x4, fixed_abs, tag = 'smem constant byte address 0x4 - core index']
  #allocation1 [shape = 'u32[144,128]{1,0:T(1,128)}', space=vmem, size = 0x12000, scoped, tag = 'internal scratch']
  #allocation2 [shape = 'f32[10,32]{1,0:T(8,128)}', space=vmem, size = 0x2000, scoped, tag = 'scratch operand']
  %s0 = inlined_call_operand.hbm [shape: f32[8,192], index: 0, kind: input, shape index: {}]
  %s1 = inlined_call_operand.hbm [shape: f32[1,192], index: 1, kind: input, shape index: {}]
  %s2 = inlined_call_operand.hbm [shape: f32[1,192], index: 2, kind: input, shape index: {}]
  %s3 = inlined_call_operand.hbm [shape: bf16[192,32], index: 3, kind: input, shape index: {}]
  %s4 = inlined_call_operand.hbm [shape: f32[1,32], index: 4, kind: input, shape index: {}]
  %s5 = inlined_call_operand.hbm [shape: f32[1,32], index: 5, kind: input, shape index: {}]
  %s6 = inlined_call_operand.hbm [shape: f32[1,32], index: 6, kind: input, shape index: {}]
  %s7 = inlined_call_operand.hbm [shape: f32[1,32], index: 7, kind: input, shape index: {}]
  %s8 = inlined_call_operand.hbm [shape: f32[5,32], index: 8, kind: input, shape index: {}]
  %s9 = inlined_call_operand.hbm [shape: f32[2,1,32], index: 9, kind: input, shape index: {}]
  %s10 = inlined_call_operand.hbm [shape: f32[2,1,32], index: 10, kind: input, shape index: {}]
  %s11 = inlined_call_operand.hbm [shape: bf16[2,32,96], index: 11, kind: input, shape index: {}]
  %s12 = inlined_call_operand.hbm [shape: bf16[2,32,32], index: 12, kind: input, shape index: {}]
  %s13 = inlined_call_operand.hbm [shape: f32[2,1,32], index: 13, kind: input, shape index: {}]
  %s14 = inlined_call_operand.hbm [shape: f32[2,1,32], index: 14, kind: input, shape index: {}]
  %s15 = inlined_call_operand.hbm [shape: f32[2,1,32], index: 15, kind: input, shape index: {}]
  %s16 = inlined_call_operand.hbm [shape: bf16[2,32,64], index: 16, kind: input, shape index: {}]
  %s17 = inlined_call_operand.hbm [shape: f32[2,1,64], index: 17, kind: input, shape index: {}]
  %s18 = inlined_call_operand.hbm [shape: bf16[2,64,32], index: 18, kind: input, shape index: {}]
  %s19 = inlined_call_operand.hbm [shape: f32[2,1,32], index: 19, kind: input, shape index: {}]
  %s20 = inlined_call_operand.hbm [shape: f32[10,32], index: 20, kind: output, shape index: {}]
  %s21 = sld [smem:[#allocation0]]
  $region197: #{distill_wrapper_forward.5} parent=0
    _
  %s23 = ssub.s32 1, %s21
  %s24 = scalar_select 0, %s23, %s21
  $region1: #{distill_wrapper_forward.5} parent=0
    #allocation3 [shape = 'u8[8192]{0}', space=vmem, size = 0x2000, scoped, tag = 'input window, operand 0, single buffered']
    #allocation4 [shape = 's32[2]{0}', space=sflag, size = 0x8, scoped, tag = 'scoped memory for distill_wrapper_forward.5']
    #allocation5 [shape = 's32[2]{0}', space=sflag, size = 0x8, scoped, tag = 'scoped memory for distill_wrapper_forward.5']
    #allocation6 [shape = 'u8[1024]{0}', space=vmem, size = 0x400, scoped, tag = 'input window, operand 1, single buffered']
    #allocation7 [shape = 's32[1]{0}', space=sflag, size = 0x4, scoped, tag = 'scoped memory for distill_wrapper_forward.5']
    #allocation8 [shape = 'u8[1024]{0}', space=vmem, size = 0x400, scoped, tag = 'input window, operand 2, single buffered']
    #allocation9 [shape = 'u8[49152]{0}', space=vmem, size = 0xc000, scoped, tag = 'input window, operand 3, single buffered']
    #allocation10 [shape = 's32[1]{0}', space=sflag, size = 0x4, scoped, tag = 'scoped memory for distill_wrapper_forward.5']
    #allocation11 [shape = 'u8[512]{0}', space=vmem, size = 0x400, scoped, tag = 'input window, operand 4, single buffered']
    #allocation12 [shape = 'u8[512]{0}', space=vmem, size = 0x400, scoped, tag = 'input window, operand 5, single buffered']
    #allocation13 [shape = 's32[1]{0}', space=sflag, size = 0x4, scoped, tag = 'scoped memory for distill_wrapper_forward.5']
    #allocation14 [shape = 'u8[512]{0}', space=vmem, size = 0x400, scoped, tag = 'input window, operand 6, single buffered']
    #allocation15 [shape = 'u8[512]{0}', space=vmem, size = 0x400, scoped, tag = 'input window, operand 7, single buffered']
    #allocation16 [shape = 's32[1]{0}', space=sflag, size = 0x4, scoped, tag = 'scoped memory for distill_wrapper_forward.5']
    #allocation17 [shape = 'u8[4096]{0}', space=vmem, size = 0x1000, scoped, tag = 'input window, operand 8, single buffered']
    #allocation18 [shape = 'u8[1024]{0}', space=vmem, size = 0x400, scoped, tag = 'input window, operand 9']
    #allocation19 [shape = 's32[2]{0}', space=sflag, size = 0x8, scoped, tag = 'scoped memory for distill_wrapper_forward.5']
    #allocation20 [shape = 'u8[1024]{0}', space=vmem, size = 0x400, scoped, tag = 'input window, operand 10']
    #allocation21 [shape = 'u8[16384]{0}', space=vmem, size = 0x4000, scoped, tag = 'input window, operand 11']
    #allocation22 [shape = 's32[2]{0}', space=sflag, size = 0x8, scoped, tag = 'scoped memory for distill_wrapper_forward.5']
    #allocation23 [shape = 'u8[16384]{0}', space=vmem, size = 0x4000, scoped, tag = 'input window, operand 12']
    #allocation24 [shape = 'u8[1024]{0}', space=vmem, size = 0x400, scoped, tag = 'input window, operand 13']
    #allocation25 [shape = 's32[2]{0}', space=sflag, size = 0x8, scoped, tag = 'scoped memory for distill_wrapper_forward.5']
    #allocation26 [shape = 'u8[1024]{0}', space=vmem, size = 0x400, scoped, tag = 'input window, operand 14']
    #allocation27 [shape = 'u8[1024]{0}', space=vmem, size = 0x400, scoped, tag = 'input window, operand 15']
    #allocation28 [shape = 's32[2]{0}', space=sflag, size = 0x8, scoped, tag = 'scoped memory for distill_wrapper_forward.5']
    #allocation29 [shape = 'u8[16384]{0}', space=vmem, size = 0x4000, scoped, tag = 'input window, operand 16']
    #allocation30 [shape = 'u8[1024]{0}', space=vmem, size = 0x400, scoped, tag = 'input window, operand 17']
    #allocation31 [shape = 's32[2]{0}', space=sflag, size = 0x8, scoped, tag = 'scoped memory for distill_wrapper_forward.5']
    #allocation32 [shape = 'u8[32768]{0}', space=vmem, size = 0x8000, scoped, tag = 'input window, operand 18']
    #allocation33 [shape = 'u8[1024]{0}', space=vmem, size = 0x400, scoped, tag = 'input window, operand 19']
    #allocation34 [shape = 's32[2]{0}', space=sflag, size = 0x8, scoped, tag = 'scoped memory for distill_wrapper_forward.5']
    #allocation35 [shape = 'u8[8192]{0}', space=vmem, size = 0x2000, scoped, tag = 'output window, operand 0, single buffered']
    %25 = vsyncpa [#allocation4], 0
    %26 = vsyncpa [#allocation7], 0
    %27 = vsyncpa [#allocation10], 0
    %28 = vsyncpa [#allocation13], 0
    %29 = vsyncpa [#allocation16], 0
    %30 = vsyncpa [#allocation19], 0
    %s31 = scalar_lea.sflag [#allocation19], 1
    %32 = vsyncpa %s31, 0
    %33 = vsyncpa [#allocation22], 0
    %s34 = scalar_lea.sflag [#allocation22], 1
    %35 = vsyncpa %s34, 0
    %36 = vsyncpa [#allocation25], 0
    %s37 = scalar_lea.sflag [#allocation25], 1
    %38 = vsyncpa %s37, 0
    %39 = vsyncpa [#allocation28], 0
    %s40 = scalar_lea.sflag [#allocation28], 1
    %41 = vsyncpa %s40, 0
    %42 = vsyncpa [#allocation31], 0
    %s43 = scalar_lea.sflag [#allocation31], 1
    %44 = vsyncpa %s43, 0
    %45 = vsyncpa [#allocation34], 0
    %s46 = scalar_lea.sflag [#allocation34], 1
    %47 = vsyncpa %s46, 0
    %48 = vsyncpa [#allocation5], 0
    loop: start=0, step=1, limit=4
    $region2: #{distill_wrapper_forward.5} parent=1 // loop_pre_header
      _
    $region3: #{distill_wrapper_forward.5} parent=1 // loop_header
      %s50 = sphi 0, %s54
      %p51 = scmp.ge.s32.totalorder %s50, 4
      %s58 = sphi 0, %s58
      %s60 = sphi 0, %s58
      %s61 = sphi 0, %s60
      %s75 = sphi 0, %s61
      %s79 = sphi 0, %s79
      %s81 = sphi 0, %s79
      %s82 = sphi 0, %s81
      %s96 = sphi 0, %s82
      %s100 = sphi 0, %s100
      %s102 = sphi 0, %s100
      %s103 = sphi 0, %s102
      %s117 = sphi 0, %s103
      %s121 = sphi 0, %s121
      %s123 = sphi 0, %s121
      %s124 = sphi 0, %s123
      %s138 = sphi 0, %s124
      %s142 = sphi 0, %s142
      %s144 = sphi 0, %s142
      %s145 = sphi 0, %s144
      %s159 = sphi 0, %s145
      %s163 = sphi 0, %s163
      %s165 = sphi 0, %s163
      %s166 = sphi 0, %s165
      %s180 = sphi 0, %s166
      %s184 = sphi 0, %s184
      %s186 = sphi 0, %s184
      %s187 = sphi 0, %s186
      %s201 = sphi 0, %s187
      %s205 = sphi 0, %s205
      %s207 = sphi 0, %s205
      %s208 = sphi 0, %s207
      %s222 = sphi 0, %s208
      %s226 = sphi 0, %s226
      %s228 = sphi 0, %s226
      %s229 = sphi 0, %s228
      %s243 = sphi 0, %s229
      %s249 = sphi 0, %s251
      %s252 = sphi 0, %s249
      %s253 = sphi 0, %s252
      %s269 = sphi 0, %s253
      %s275 = sphi 0, %s277
      %s278 = sphi 0, %s275
      %s279 = sphi 0, %s278
      %s295 = sphi 0, %s279
      %s301 = sphi 0, %s303
      %s304 = sphi 0, %s301
      %s305 = sphi 0, %s304
      %s321 = sphi 0, %s305
      %s327 = sphi 0, %s329
      %s330 = sphi 0, %s327
      %s331 = sphi 0, %s330
      %s347 = sphi 0, %s331
      %s353 = sphi 0, %s355
      %s356 = sphi 0, %s353
      %s357 = sphi 0, %s356
      %s373 = sphi 0, %s357
      %s379 = sphi 0, %s381
      %s382 = sphi 0, %s379
      %s383 = sphi 0, %s382
      %s399 = sphi 0, %s383
      %s405 = sphi 0, %s407
      %s408 = sphi 0, %s405
      %s409 = sphi 0, %s408
      %s425 = sphi 0, %s409
      %s431 = sphi 0, %s433
      %s434 = sphi 0, %s431
      %s435 = sphi 0, %s434
      %s451 = sphi 0, %s435
      %s457 = sphi 0, %s459
      %s460 = sphi 0, %s457
      %s461 = sphi 0, %s460
      %s477 = sphi 0, %s461
      %s483 = sphi 0, %s485
      %s486 = sphi 0, %s483
      %s487 = sphi 0, %s486
      %s503 = sphi 0, %s487
      %s509 = sphi 0, %s511
      %s512 = sphi 0, %s509
      %s513 = sphi 0, %s512
      %s529 = sphi 0, %s513
      %s533 = sphi 0, %s533
      %s535 = sphi 0, %s533
      %s536 = sphi 0, %s535
      %s550 = sphi 0, %s536
    $region4: #{distill_wrapper_forward.5} parent=1 // loop_header_branch
      %53 = sbr.rel (%p51) target = $region8
    $region5: #{distill_wrapper_forward.5} parent=1 // loop_body
      %s55 = ssub.s32 %s50, 1
      %s56 = ssub.s32 %s50, 2
      %s57 = sadd.s32 %s50, 1
      %s59 = sadd.s32 %s58, 1
      %p62 = scmp.eq.s32.totalorder %s50, 1
      %p63 = scmp.ne.s32.totalorder %s58, %s60
      %p64 = scmp.eq.s32.totalorder %s50, 0
      %p65 = por %p63, %p64
      %p66 = scmp.ne.s32.totalorder %s58, %s60
      %p67 = scmp.eq.s32.totalorder %s55, 1
      %p68 = por %p66, %p67
      %p69 = scmp.ne.s32.totalorder %s60, %s61
      %p70 = scmp.eq.s32.totalorder %s55, 0
      %p71 = por %p69, %p70
      %p72 = scmp.ne.s32.totalorder %s60, %s61
      %p73 = scmp.eq.s32.totalorder %s56, 1
      %p74 = por %p72, %p73
      %p76 = scmp.ne.s32.totalorder %s61, %s75
      %p77 = scmp.eq.s32.totalorder %s56, 0
      %p78 = por %p76, %p77
      %s80 = sadd.s32 %s79, 1
      %p83 = scmp.eq.s32.totalorder %s50, 1
      %p84 = scmp.ne.s32.totalorder %s79, %s81
      %p85 = scmp.eq.s32.totalorder %s50, 0
      %p86 = por %p84, %p85
      %p87 = scmp.ne.s32.totalorder %s79, %s81
      %p88 = scmp.eq.s32.totalorder %s55, 1
      %p89 = por %p87, %p88
      %p90 = scmp.ne.s32.totalorder %s81, %s82
      %p91 = scmp.eq.s32.totalorder %s55, 0
      %p92 = por %p90, %p91
      %p93 = scmp.ne.s32.totalorder %s81, %s82
      %p94 = scmp.eq.s32.totalorder %s56, 1
      %p95 = por %p93, %p94
      %p97 = scmp.ne.s32.totalorder %s82, %s96
      %p98 = scmp.eq.s32.totalorder %s56, 0
      %p99 = por %p97, %p98
      %s101 = sadd.s32 %s100, 1
      %p104 = scmp.eq.s32.totalorder %s50, 1
      %p105 = scmp.ne.s32.totalorder %s100, %s102
      %p106 = scmp.eq.s32.totalorder %s50, 0
      %p107 = por %p105, %p106
      %p108 = scmp.ne.s32.totalorder %s100, %s102
      %p109 = scmp.eq.s32.totalorder %s55, 1
      %p110 = por %p108, %p109
      %p111 = scmp.ne.s32.totalorder %s102, %s103
      %p112 = scmp.eq.s32.totalorder %s55, 0
      %p113 = por %p111, %p112
      %p114 = scmp.ne.s32.totalorder %s102, %s103
      %p115 = scmp.eq.s32.totalorder %s56, 1
      %p116 = por %p114, %p115
      %p118 = scmp.ne.s32.totalorder %s103, %s117
      %p119 = scmp.eq.s32.totalorder %s56, 0
      %p120 = por %p118, %p119
      %s122 = sadd.s32 %s121, 1
      %p125 = scmp.eq.s32.totalorder %s50, 1
      %p126 = scmp.ne.s32.totalorder %s121, %s123
      %p127 = scmp.eq.s32.totalorder %s50, 0
      %p128 = por %p126, %p127
      %p129 = scmp.ne.s32.totalorder %s121, %s123
      %p130 = scmp.eq.s32.totalorder %s55, 1
      %p131 = por %p129, %p130
      %p132 = scmp.ne.s32.totalorder %s123, %s124
      %p133 = scmp.eq.s32.totalorder %s55, 0
      %p134 = por %p132, %p133
      %p135 = scmp.ne.s32.totalorder %s123, %s124
      %p136 = scmp.eq.s32.totalorder %s56, 1
      %p137 = por %p135, %p136
      %p139 = scmp.ne.s32.totalorder %s124, %s138
      %p140 = scmp.eq.s32.totalorder %s56, 0
      %p141 = por %p139, %p140
      %s143 = sadd.s32 %s142, 1
      %p146 = scmp.eq.s32.totalorder %s50, 1
      %p147 = scmp.ne.s32.totalorder %s142, %s144
      %p148 = scmp.eq.s32.totalorder %s50, 0
      %p149 = por %p147, %p148
      %p150 = scmp.ne.s32.totalorder %s142, %s144
      %p151 = scmp.eq.s32.totalorder %s55, 1
      %p152 = por %p150, %p151
      %p153 = scmp.ne.s32.totalorder %s144, %s145
      %p154 = scmp.eq.s32.totalorder %s55, 0
      %p155 = por %p153, %p154
      %p156 = scmp.ne.s32.totalorder %s144, %s145
      %p157 = scmp.eq.s32.totalorder %s56, 1
      %p158 = por %p156, %p157
      %p160 = scmp.ne.s32.totalorder %s145, %s159
      %p161 = scmp.eq.s32.totalorder %s56, 0
      %p162 = por %p160, %p161
      %s164 = sadd.s32 %s163, 1
      %p167 = scmp.eq.s32.totalorder %s50, 1
      %p168 = scmp.ne.s32.totalorder %s163, %s165
      %p169 = scmp.eq.s32.totalorder %s50, 0
      %p170 = por %p168, %p169
      %p171 = scmp.ne.s32.totalorder %s163, %s165
      %p172 = scmp.eq.s32.totalorder %s55, 1
      %p173 = por %p171, %p172
      %p174 = scmp.ne.s32.totalorder %s165, %s166
      %p175 = scmp.eq.s32.totalorder %s55, 0
      %p176 = por %p174, %p175
      %p177 = scmp.ne.s32.totalorder %s165, %s166
      %p178 = scmp.eq.s32.totalorder %s56, 1
      %p179 = por %p177, %p178
      %p181 = scmp.ne.s32.totalorder %s166, %s180
      %p182 = scmp.eq.s32.totalorder %s56, 0
      %p183 = por %p181, %p182
      %s185 = sadd.s32 %s184, 1
      %p188 = scmp.eq.s32.totalorder %s50, 1
      %p189 = scmp.ne.s32.totalorder %s184, %s186
      %p190 = scmp.eq.s32.totalorder %s50, 0
      %p191 = por %p189, %p190
      %p192 = scmp.ne.s32.totalorder %s184, %s186
      %p193 = scmp.eq.s32.totalorder %s55, 1
      %p194 = por %p192, %p193
      %p195 = scmp.ne.s32.totalorder %s186, %s187
      %p196 = scmp.eq.s32.totalorder %s55, 0
      %p197 = por %p195, %p196
      %p198 = scmp.ne.s32.totalorder %s186, %s187
      %p199 = scmp.eq.s32.totalorder %s56, 1
      %p200 = por %p198, %p199
      %p202 = scmp.ne.s32.totalorder %s187, %s201
      %p203 = scmp.eq.s32.totalorder %s56, 0
      %p204 = por %p202, %p203
      %s206 = sadd.s32 %s205, 1
      %p209 = scmp.eq.s32.totalorder %s50, 1
      %p210 = scmp.ne.s32.totalorder %s205, %s207
      %p211 = scmp.eq.s32.totalorder %s50, 0
      %p212 = por %p210, %p211
      %p213 = scmp.ne.s32.totalorder %s205, %s207
      %p214 = scmp.eq.s32.totalorder %s55, 1
      %p215 = por %p213, %p214
      %p216 = scmp.ne.s32.totalorder %s207, %s208
      %p217 = scmp.eq.s32.totalorder %s55, 0
      %p218 = por %p216, %p217
      %p219 = scmp.ne.s32.totalorder %s207, %s208
      %p220 = scmp.eq.s32.totalorder %s56, 1
      %p221 = por %p219, %p220
      %p223 = scmp.ne.s32.totalorder %s208, %s222
      %p224 = scmp.eq.s32.totalorder %s56, 0
      %p225 = por %p223, %p224
      %s227 = sadd.s32 %s226, 1
      %p230 = scmp.eq.s32.totalorder %s50, 1
      %p231 = scmp.ne.s32.totalorder %s226, %s228
      %p232 = scmp.eq.s32.totalorder %s50, 0
      %p233 = por %p231, %p232
      %p234 = scmp.ne.s32.totalorder %s226, %s228
      %p235 = scmp.eq.s32.totalorder %s55, 1
      %p236 = por %p234, %p235
      %p237 = scmp.ne.s32.totalorder %s228, %s229
      %p238 = scmp.eq.s32.totalorder %s55, 0
      %p239 = por %p237, %p238
      %p240 = scmp.ne.s32.totalorder %s228, %s229
      %p241 = scmp.eq.s32.totalorder %s56, 1
      %p242 = por %p240, %p241
      %p244 = scmp.ne.s32.totalorder %s229, %s243
      %p245 = scmp.eq.s32.totalorder %s56, 0
      %p246 = por %p244, %p245
      %s247 = ssub.s32 %s50, %s57
      %p248 = scmp.eq.s32.totalorder %s247, 0
      %s250 = sadd.s32 %s249, 1
      %s251 = scalar_select %p248, %s249, %s250
      %p254 = pneg %p248
      %p255 = scmp.eq.s32.totalorder %s50, 1
      %p256 = por %p254, %p255
      %p257 = scmp.ne.s32.totalorder %s249, %s252
      %p258 = scmp.eq.s32.totalorder %s50, 0
      %p259 = por %p257, %p258
      %p260 = scmp.ne.s32.totalorder %s249, %s252
      %p261 = scmp.eq.s32.totalorder %s55, 1
      %p262 = por %p260, %p261
      %p263 = scmp.ne.s32.totalorder %s252, %s253
      %p264 = scmp.eq.s32.totalorder %s55, 0
      %p265 = por %p263, %p264
      %p266 = scmp.ne.s32.totalorder %s252, %s253
      %p267 = scmp.eq.s32.totalorder %s56, 1
      %p268 = por %p266, %p267
      %p270 = scmp.ne.s32.totalorder %s253, %s269
      %p271 = scmp.eq.s32.totalorder %s56, 0
      %p272 = por %p270, %p271
      %s273 = ssub.s32 %s50, %s57
      %p274 = scmp.eq.s32.totalorder %s273, 0
      %s276 = sadd.s32 %s275, 1
      %s277 = scalar_select %p274, %s275, %s276
      %p280 = pneg %p274
      %p281 = scmp.eq.s32.totalorder %s50, 1
      %p282 = por %p280, %p281
      %p283 = scmp.ne.s32.totalorder %s275, %s278
      %p284 = scmp.eq.s32.totalorder %s50, 0
      %p285 = por %p283, %p284
      %p286 = scmp.ne.s32.totalorder %s275, %s278
      %p287 = scmp.eq.s32.totalorder %s55, 1
      %p288 = por %p286, %p287
      %p289 = scmp.ne.s32.totalorder %s278, %s279
      %p290 = scmp.eq.s32.totalorder %s55, 0
      %p291 = por %p289, %p290
      %p292 = scmp.ne.s32.totalorder %s278, %s279
      %p293 = scmp.eq.s32.totalorder %s56, 1
      %p294 = por %p292, %p293
      %p296 = scmp.ne.s32.totalorder %s279, %s295
      %p297 = scmp.eq.s32.totalorder %s56, 0
      %p298 = por %p296, %p297
      %s299 = ssub.s32 %s50, %s57
      %p300 = scmp.eq.s32.totalorder %s299, 0
      %s302 = sadd.s32 %s301, 1
      %s303 = scalar_select %p300, %s301, %s302
      %p306 = pneg %p300
      %p307 = scmp.eq.s32.totalorder %s50, 1
      %p308 = por %p306, %p307
      %p309 = scmp.ne.s32.totalorder %s301, %s304
      %p310 = scmp.eq.s32.totalorder %s50, 0
      %p311 = por %p309, %p310
      %p312 = scmp.ne.s32.totalorder %s301, %s304
      %p313 = scmp.eq.s32.totalorder %s55, 1
      %p314 = por %p312, %p313
      %p315 = scmp.ne.s32.totalorder %s304, %s305
      %p316 = scmp.eq.s32.totalorder %s55, 0
      %p317 = por %p315, %p316
      %p318 = scmp.ne.s32.totalorder %s304, %s305
      %p319 = scmp.eq.s32.totalorder %s56, 1
      %p320 = por %p318, %p319
      %p322 = scmp.ne.s32.totalorder %s305, %s321
      %p323 = scmp.eq.s32.totalorder %s56, 0
      %p324 = por %p322, %p323
      %s325 = ssub.s32 %s50, %s57
      %p326 = scmp.eq.s32.totalorder %s325, 0
      %s328 = sadd.s32 %s327, 1
      %s329 = scalar_select %p326, %s327, %s328
      %p332 = pneg %p326
      %p333 = scmp.eq.s32.totalorder %s50, 1
      %p334 = por %p332, %p333
      %p335 = scmp.ne.s32.totalorder %s327, %s330
      %p336 = scmp.eq.s32.totalorder %s50, 0
      %p337 = por %p335, %p336
      %p338 = scmp.ne.s32.totalorder %s327, %s330
      %p339 = scmp.eq.s32.totalorder %s55, 1
      %p340 = por %p338, %p339
      %p341 = scmp.ne.s32.totalorder %s330, %s331
      %p342 = scmp.eq.s32.totalorder %s55, 0
      %p343 = por %p341, %p342
      %p344 = scmp.ne.s32.totalorder %s330, %s331
      %p345 = scmp.eq.s32.totalorder %s56, 1
      %p346 = por %p344, %p345
      %p348 = scmp.ne.s32.totalorder %s331, %s347
      %p349 = scmp.eq.s32.totalorder %s56, 0
      %p350 = por %p348, %p349
      %s351 = ssub.s32 %s50, %s57
      %p352 = scmp.eq.s32.totalorder %s351, 0
      %s354 = sadd.s32 %s353, 1
      %s355 = scalar_select %p352, %s353, %s354
      %p358 = pneg %p352
      %p359 = scmp.eq.s32.totalorder %s50, 1
      %p360 = por %p358, %p359
      %p361 = scmp.ne.s32.totalorder %s353, %s356
      %p362 = scmp.eq.s32.totalorder %s50, 0
      %p363 = por %p361, %p362
      %p364 = scmp.ne.s32.totalorder %s353, %s356
      %p365 = scmp.eq.s32.totalorder %s55, 1
      %p366 = por %p364, %p365
      %p367 = scmp.ne.s32.totalorder %s356, %s357
      %p368 = scmp.eq.s32.totalorder %s55, 0
      %p369 = por %p367, %p368
      %p370 = scmp.ne.s32.totalorder %s356, %s357
      %p371 = scmp.eq.s32.totalorder %s56, 1
      %p372 = por %p370, %p371
      %p374 = scmp.ne.s32.totalorder %s357, %s373
      %p375 = scmp.eq.s32.totalorder %s56, 0
      %p376 = por %p374, %p375
      %s377 = ssub.s32 %s50, %s57
      %p378 = scmp.eq.s32.totalorder %s377, 0
      %s380 = sadd.s32 %s379, 1
      %s381 = scalar_select %p378, %s379, %s380
      %p384 = pneg %p378
      %p385 = scmp.eq.s32.totalorder %s50, 1
      %p386 = por %p384, %p385
      %p387 = scmp.ne.s32.totalorder %s379, %s382
      %p388 = scmp.eq.s32.totalorder %s50, 0
      %p389 = por %p387, %p388
      %p390 = scmp.ne.s32.totalorder %s379, %s382
      %p391 = scmp.eq.s32.totalorder %s55, 1
      %p392 = por %p390, %p391
      %p393 = scmp.ne.s32.totalorder %s382, %s383
      %p394 = scmp.eq.s32.totalorder %s55, 0
      %p395 = por %p393, %p394
      %p396 = scmp.ne.s32.totalorder %s382, %s383
      %p397 = scmp.eq.s32.totalorder %s56, 1
      %p398 = por %p396, %p397
      %p400 = scmp.ne.s32.totalorder %s383, %s399
      %p401 = scmp.eq.s32.totalorder %s56, 0
      %p402 = por %p400, %p401
      %s403 = ssub.s32 %s50, %s57
      %p404 = scmp.eq.s32.totalorder %s403, 0
      %s406 = sadd.s32 %s405, 1
      %s407 = scalar_select %p404, %s405, %s406
      %p410 = pneg %p404
      %p411 = scmp.eq.s32.totalorder %s50, 1
      %p412 = por %p410, %p411
      %p413 = scmp.ne.s32.totalorder %s405, %s408
      %p414 = scmp.eq.s32.totalorder %s50, 0
      %p415 = por %p413, %p414
      %p416 = scmp.ne.s32.totalorder %s405, %s408
      %p417 = scmp.eq.s32.totalorder %s55, 1
      %p418 = por %p416, %p417
      %p419 = scmp.ne.s32.totalorder %s408, %s409
      %p420 = scmp.eq.s32.totalorder %s55, 0
      %p421 = por %p419, %p420
      %p422 = scmp.ne.s32.totalorder %s408, %s409
      %p423 = scmp.eq.s32.totalorder %s56, 1
      %p424 = por %p422, %p423
      %p426 = scmp.ne.s32.totalorder %s409, %s425
      %p427 = scmp.eq.s32.totalorder %s56, 0
      %p428 = por %p426, %p427
      %s429 = ssub.s32 %s50, %s57
      %p430 = scmp.eq.s32.totalorder %s429, 0
      %s432 = sadd.s32 %s431, 1
      %s433 = scalar_select %p430, %s431, %s432
      %p436 = pneg %p430
      %p437 = scmp.eq.s32.totalorder %s50, 1
      %p438 = por %p436, %p437
      %p439 = scmp.ne.s32.totalorder %s431, %s434
      %p440 = scmp.eq.s32.totalorder %s50, 0
      %p441 = por %p439, %p440
      %p442 = scmp.ne.s32.totalorder %s431, %s434
      %p443 = scmp.eq.s32.totalorder %s55, 1
      %p444 = por %p442, %p443
      %p445 = scmp.ne.s32.totalorder %s434, %s435
      %p446 = scmp.eq.s32.totalorder %s55, 0
      %p447 = por %p445, %p446
      %p448 = scmp.ne.s32.totalorder %s434, %s435
      %p449 = scmp.eq.s32.totalorder %s56, 1
      %p450 = por %p448, %p449
      %p452 = scmp.ne.s32.totalorder %s435, %s451
      %p453 = scmp.eq.s32.totalorder %s56, 0
      %p454 = por %p452, %p453
      %s455 = ssub.s32 %s50, %s57
      %p456 = scmp.eq.s32.totalorder %s455, 0
      %s458 = sadd.s32 %s457, 1
      %s459 = scalar_select %p456, %s457, %s458
      %p462 = pneg %p456
      %p463 = scmp.eq.s32.totalorder %s50, 1
      %p464 = por %p462, %p463
      %p465 = scmp.ne.s32.totalorder %s457, %s460
      %p466 = scmp.eq.s32.totalorder %s50, 0
      %p467 = por %p465, %p466
      %p468 = scmp.ne.s32.totalorder %s457, %s460
      %p469 = scmp.eq.s32.totalorder %s55, 1
      %p470 = por %p468, %p469
      %p471 = scmp.ne.s32.totalorder %s460, %s461
      %p472 = scmp.eq.s32.totalorder %s55, 0
      %p473 = por %p471, %p472
      %p474 = scmp.ne.s32.totalorder %s460, %s461
      %p475 = scmp.eq.s32.totalorder %s56, 1
      %p476 = por %p474, %p475
      %p478 = scmp.ne.s32.totalorder %s461, %s477
      %p479 = scmp.eq.s32.totalorder %s56, 0
      %p480 = por %p478, %p479
      %s481 = ssub.s32 %s50, %s57
      %p482 = scmp.eq.s32.totalorder %s481, 0
      %s484 = sadd.s32 %s483, 1
      %s485 = scalar_select %p482, %s483, %s484
      %p488 = pneg %p482
      %p489 = scmp.eq.s32.totalorder %s50, 1
      %p490 = por %p488, %p489
      %p491 = scmp.ne.s32.totalorder %s483, %s486
      %p492 = scmp.eq.s32.totalorder %s50, 0
      %p493 = por %p491, %p492
      %p494 = scmp.ne.s32.totalorder %s483, %s486
      %p495 = scmp.eq.s32.totalorder %s55, 1
      %p496 = por %p494, %p495
      %p497 = scmp.ne.s32.totalorder %s486, %s487
      %p498 = scmp.eq.s32.totalorder %s55, 0
      %p499 = por %p497, %p498
      %p500 = scmp.ne.s32.totalorder %s486, %s487
      %p501 = scmp.eq.s32.totalorder %s56, 1
      %p502 = por %p500, %p501
      %p504 = scmp.ne.s32.totalorder %s487, %s503
      %p505 = scmp.eq.s32.totalorder %s56, 0
      %p506 = por %p504, %p505
      %s507 = ssub.s32 %s50, %s57
      %p508 = scmp.eq.s32.totalorder %s507, 0
      %s510 = sadd.s32 %s509, 1
      %s511 = scalar_select %p508, %s509, %s510
      %p514 = pneg %p508
      %p515 = scmp.eq.s32.totalorder %s50, 1
      %p516 = por %p514, %p515
      %p517 = scmp.ne.s32.totalorder %s509, %s512
      %p518 = scmp.eq.s32.totalorder %s50, 0
      %p519 = por %p517, %p518
      %p520 = scmp.ne.s32.totalorder %s509, %s512
      %p521 = scmp.eq.s32.totalorder %s55, 1
      %p522 = por %p520, %p521
      %p523 = scmp.ne.s32.totalorder %s512, %s513
      %p524 = scmp.eq.s32.totalorder %s55, 0
      %p525 = por %p523, %p524
      %p526 = scmp.ne.s32.totalorder %s512, %s513
      %p527 = scmp.eq.s32.totalorder %s56, 1
      %p528 = por %p526, %p527
      %p530 = scmp.ne.s32.totalorder %s513, %s529
      %p531 = scmp.eq.s32.totalorder %s56, 0
      %p532 = por %p530, %p531
      %s534 = sadd.s32 %s533, 1
      %p537 = scmp.eq.s32.totalorder %s50, 1
      %p538 = scmp.ne.s32.totalorder %s533, %s535
      %p539 = scmp.eq.s32.totalorder %s50, 0
      %p540 = por %p538, %p539
      %p541 = scmp.ne.s32.totalorder %s533, %s535
      %p542 = scmp.eq.s32.totalorder %s55, 1
      %p543 = por %p541, %p542
      %p544 = scmp.ne.s32.totalorder %s535, %s536
      %p545 = scmp.eq.s32.totalorder %s55, 0
      %p546 = por %p544, %p545
      %p547 = scmp.ne.s32.totalorder %s535, %s536
      %p548 = scmp.eq.s32.totalorder %s56, 1
      %p549 = por %p547, %p548
      %p551 = scmp.ne.s32.totalorder %s536, %s550
      %p552 = scmp.eq.s32.totalorder %s56, 0
      %p553 = por %p551, %p552
      %p554 = scmp.le.s32.totalorder 1, %s50
      %p555 = scmp.lt.s32.totalorder %s50, 3
      %p556 = pnand %p554, %p555
      %p557 = pneg %p556
      // Predicated region
      $region9: #{distill_wrapper_forward.5} parent=5 // pred_check
        _
      $region10: #{distill_wrapper_forward.5} parent=5 // pred_check_branch
        %559 = sbr.rel (%p556) target = $region12
      $region11: #{distill_wrapper_forward.5} parent=5 // pred_region
        %s560 = ssub.s32 %s50, 1
        // Predicated region
        $region13: #{distill_wrapper_forward.5} parent=11 // pred_check
          %p561 = pneg %p71
        $region14: #{distill_wrapper_forward.5} parent=11 // pred_check_branch
          %563 = sbr.rel (%p561) target = $region16
        $region15: #{distill_wrapper_forward.5} parent=11 // pred_region
          %s565 = ssub.s32 256, 256
          %566 = vsyncadd [#allocation4], %s565
          %s568 = sshll.u32 [#allocation3], 4
          %s569 = int_to_ptr.vmem [resolvable:$true] %s568
          %571 = dma.hbm_to_vmem [thread:$0]  %s0, 256, %s569, [#allocation4]
        $region16: #{distill_wrapper_forward.5} parent=11 // pred_fallthru
          _
        // Predicated region
        $region17: #{distill_wrapper_forward.5} parent=11 // pred_check
          %p572 = pneg %p92
        $region18: #{distill_wrapper_forward.5} parent=11 // pred_check_branch
          %574 = sbr.rel (%p572) target = $region20
        $region19: #{distill_wrapper_forward.5} parent=11 // pred_region
          %s576 = ssub.s32 32, 32
          %577 = vsyncadd [#allocation7], %s576
          %s579 = sshll.u32 [#allocation6], 4
          %s580 = int_to_ptr.vmem [resolvable:$true] %s579
          %582 = dma.hbm_to_vmem [thread:$0]  %s1, 32, %s580, [#allocation7]
        $region20: #{distill_wrapper_forward.5} parent=11 // pred_fallthru
          _
        // Predicated region
        $region21: #{distill_wrapper_forward.5} parent=11 // pred_check
          %p583 = pneg %p113
        $region22: #{distill_wrapper_forward.5} parent=11 // pred_check_branch
          %585 = sbr.rel (%p583) target = $region24
        $region23: #{distill_wrapper_forward.5} parent=11 // pred_region
          %s587 = ssub.s32 32, 32
          %588 = vsyncadd [#allocation7], %s587
          %s590 = sshll.u32 [#allocation8], 4
          %s591 = int_to_ptr.vmem [resolvable:$true] %s590
          %593 = dma.hbm_to_vmem [thread:$0]  %s2, 32, %s591, [#allocation7]
        $region24: #{distill_wrapper_forward.5} parent=11 // pred_fallthru
          _
        // Predicated region
        $region25: #{distill_wrapper_forward.5} parent=11 // pred_check
          %p594 = pneg %p134
        $region26: #{distill_wrapper_forward.5} parent=11 // pred_check_branch
          %596 = sbr.rel (%p594) target = $region28
        $region27: #{distill_wrapper_forward.5} parent=11 // pred_region
          %s598 = ssub.s32 1536, 1536
          %599 = vsyncadd [#allocation10], %s598
          %s600 = sshll.u32 [#allocation9], 4
          %s601 = int_to_ptr.vmem [resolvable:$true] %s600
          %606 = dma.hbm_to_vmem [thread:$0]  %s3, 1536, %s601, [#allocation10], 64, 64, 4
        $region28: #{distill_wrapper_forward.5} parent=11 // pred_fallthru
          _
        // Predicated region
        $region29: #{distill_wrapper_forward.5} parent=11 // pred_check
          %p607 = pneg %p155
        $region30: #{distill_wrapper_forward.5} parent=11 // pred_check_branch
          %609 = sbr.rel (%p607) target = $region32
        $region31: #{distill_wrapper_forward.5} parent=11 // pred_region
          %s611 = ssub.s32 16, 16
          %612 = vsyncadd [#allocation10], %s611
          %s614 = sshll.u32 [#allocation11], 4
          %s615 = int_to_ptr.vmem [resolvable:$true] %s614
          %617 = dma.hbm_to_vmem [thread:$0]  %s4, 16, %s615, [#allocation10]
        $region32: #{distill_wrapper_forward.5} parent=11 // pred_fallthru
          _
        // Predicated region
        $region33: #{distill_wrapper_forward.5} parent=11 // pred_check
          %p618 = pneg %p176
        $region34: #{distill_wrapper_forward.5} parent=11 // pred_check_branch
          %620 = sbr.rel (%p618) target = $region36
        $region35: #{distill_wrapper_forward.5} parent=11 // pred_region
          %s622 = ssub.s32 16, 16
          %623 = vsyncadd [#allocation13], %s622
          %s625 = sshll.u32 [#allocation12], 4
          %s626 = int_to_ptr.vmem [resolvable:$true] %s625
          %628 = dma.hbm_to_vmem [thread:$0]  %s5, 16, %s626, [#allocation13]
        $region36: #{distill_wrapper_forward.5} parent=11 // pred_fallthru
          _
        // Predicated region
        $region37: #{distill_wrapper_forward.5} parent=11 // pred_check
          %p629 = pneg %p197
        $region38: #{distill_wrapper_forward.5} parent=11 // pred_check_branch
          %631 = sbr.rel (%p629) target = $region40
        $region39: #{distill_wrapper_forward.5} parent=11 // pred_region
          %s633 = ssub.s32 16, 16
          %634 = vsyncadd [#allocation13], %s633
          %s636 = sshll.u32 [#allocation14], 4
          %s637 = int_to_ptr.vmem [resolvable:$true] %s636
          %639 = dma.hbm_to_vmem [thread:$0]  %s6, 16, %s637, [#allocation13]
        $region40: #{distill_wrapper_forward.5} parent=11 // pred_fallthru
          _
        // Predicated region
        $region41: #{distill_wrapper_forward.5} parent=11 // pred_check
          %p640 = pneg %p218
        $region42: #{distill_wrapper_forward.5} parent=11 // pred_check_branch
          %642 = sbr.rel (%p640) target = $region44
        $region43: #{distill_wrapper_forward.5} parent=11 // pred_region
          %s644 = ssub.s32 16, 16
          %645 = vsyncadd [#allocation16], %s644
          %s647 = sshll.u32 [#allocation15], 4
          %s648 = int_to_ptr.vmem [resolvable:$true] %s647
          %650 = dma.hbm_to_vmem [thread:$0]  %s7, 16, %s648, [#allocation16]
        $region44: #{distill_wrapper_forward.5} parent=11 // pred_fallthru
          _
        // Predicated region
        $region45: #{distill_wrapper_forward.5} parent=11 // pred_check
          %p651 = pneg %p239
        $region46: #{distill_wrapper_forward.5} parent=11 // pred_check_branch
          %653 = sbr.rel (%p651) target = $region48
        $region47: #{distill_wrapper_forward.5} parent=11 // pred_region
          %s655 = ssub.s32 128, 128
          %656 = vsyncadd [#allocation16], %s655
          %s658 = sshll.u32 [#allocation17], 4
          %s659 = int_to_ptr.vmem [resolvable:$true] %s658
          %661 = dma.hbm_to_vmem [thread:$0]  %s8, 128, %s659, [#allocation16]
        $region48: #{distill_wrapper_forward.5} parent=11 // pred_fallthru
          _
      $region12: #{distill_wrapper_forward.5} parent=5 // pred_fallthru
        _
      %p662 = scmp.lt.s32.totalorder %s50, 2
      // Predicated region
      $region49: #{distill_wrapper_forward.5} parent=5 // pred_check
        %p663 = pneg %p662
      $region50: #{distill_wrapper_forward.5} parent=5 // pred_check_branch
        %665 = sbr.rel (%p663) target = $region52
      $region51: #{distill_wrapper_forward.5} parent=5 // pred_region
        // Predicated region
        $region53: #{distill_wrapper_forward.5} parent=51 // pred_check
          %p666 = pneg %p259
        $region54: #{distill_wrapper_forward.5} parent=51 // pred_check_branch
          %668 = sbr.rel (%p666) target = $region56
        $region55: #{distill_wrapper_forward.5} parent=51 // pred_region
          %s669 = sand.u32 %s50, 1
          %s670 = scalar_lea.sflag [#allocation19], %s669
          %s671 = sand.u32 %s249, 1
          %s672 = scalar_lea.vmem [#allocation18], %s671
          %s674 = ssub.s32 16, 16
          %675 = vsyncadd %s670, %s674
          %s676 = smul.addr %s50, 16
          %s677 = scalar_lea.hbm %s9, %s676
          %s679 = sshll.u32 %s672, 4
          %s680 = int_to_ptr.vmem [resolvable:$true] %s679
          %682 = dma.hbm_to_vmem [thread:$0]  %s677, 16, %s680, %s670
        $region56: #{distill_wrapper_forward.5} parent=51 // pred_fallthru
          _
        // Predicated region
        $region57: #{distill_wrapper_forward.5} parent=51 // pred_check
          %p683 = pneg %p285
        $region58: #{distill_wrapper_forward.5} parent=51 // pred_check_branch
          %685 = sbr.rel (%p683) target = $region60
        $region59: #{distill_wrapper_forward.5} parent=51 // pred_region
          %s686 = sand.u32 %s50, 1
          %s687 = scalar_lea.sflag [#allocation19], %s686
          %s688 = sand.u32 %s275, 1
          %s689 = scalar_lea.vmem [#allocation20], %s688
          %s691 = ssub.s32 16, 16
          %692 = vsyncadd %s687, %s691
          %s693 = smul.addr %s50, 16
          %s694 = scalar_lea.hbm %s10, %s693
          %s696 = sshll.u32 %s689, 4
          %s697 = int_to_ptr.vmem [resolvable:$true] %s696
          %699 = dma.hbm_to_vmem [thread:$0]  %s694, 16, %s697, %s687
        $region60: #{distill_wrapper_forward.5} parent=51 // pred_fallthru
          _
        // Predicated region
        $region61: #{distill_wrapper_forward.5} parent=51 // pred_check
          %p700 = pneg %p311
        $region62: #{distill_wrapper_forward.5} parent=51 // pred_check_branch
          %702 = sbr.rel (%p700) target = $region64
        $region63: #{distill_wrapper_forward.5} parent=51 // pred_region
          %s703 = sand.u32 %s50, 1
          %s704 = scalar_lea.sflag [#allocation22], %s703
          %s705 = sand.u32 %s301, 1
          %s706 = smul.addr %s705, 16
          %s707 = scalar_lea.vmem [#allocation21], %s706
          %s709 = ssub.s32 256, 256
          %710 = vsyncadd %s704, %s709
          %s711 = smul.addr %s50, 4
          %s712 = smul.addr %s711, 64
          %s713 = scalar_lea.hbm %s11, %s712
          %s714 = sshll.u32 %s707, 4
          %s715 = int_to_ptr.vmem [resolvable:$true] %s714
          %720 = dma.hbm_to_vmem [thread:$0]  %s713, 256, %s715, %s704, 64, 64, 4
        $region64: #{distill_wrapper_forward.5} parent=51 // pred_fallthru
          _
        // Predicated region
        $region65: #{distill_wrapper_forward.5} parent=51 // pred_check
          %p721 = pneg %p337
        $region66: #{distill_wrapper_forward.5} parent=51 // pred_check_branch
          %723 = sbr.rel (%p721) target = $region68
        $region67: #{distill_wrapper_forward.5} parent=51 // pred_region
          %s724 = sand.u32 %s50, 1
          %s725 = scalar_lea.sflag [#allocation22], %s724
          %s726 = sand.u32 %s327, 1
          %s727 = smul.addr %s726, 16
          %s728 = scalar_lea.vmem [#allocation23], %s727
          %s730 = ssub.s32 256, 256
          %731 = vsyncadd %s725, %s730
          %s732 = smul.addr %s50, 4
          %s733 = smul.addr %s732, 64
          %s734 = scalar_lea.hbm %s12, %s733
          %s735 = sshll.u32 %s728, 4
          %s736 = int_to_ptr.vmem [resolvable:$true] %s735
          %741 = dma.hbm_to_vmem [thread:$0]  %s734, 256, %s736, %s725, 64, 64, 4
        $region68: #{distill_wrapper_forward.5} parent=51 // pred_fallthru
          _
        // Predicated region
        $region69: #{distill_wrapper_forward.5} parent=51 // pred_check
          %p742 = pneg %p363
        $region70: #{distill_wrapper_forward.5} parent=51 // pred_check_branch
          %744 = sbr.rel (%p742) target = $region72
        $region71: #{distill_wrapper_forward.5} parent=51 // pred_region
          %s745 = sand.u32 %s50, 1
          %s746 = scalar_lea.sflag [#allocation25], %s745
          %s747 = sand.u32 %s353, 1
          %s748 = scalar_lea.vmem [#allocation24], %s747
          %s750 = ssub.s32 16, 16
          %751 = vsyncadd %s746, %s750
          %s752 = smul.addr %s50, 16
          %s753 = scalar_lea.hbm %s13, %s752
          %s755 = sshll.u32 %s748, 4
          %s756 = int_to_ptr.vmem [resolvable:$true] %s755
          %758 = dma.hbm_to_vmem [thread:$0]  %s753, 16, %s756, %s746
        $region72: #{distill_wrapper_forward.5} parent=51 // pred_fallthru
          _
        // Predicated region
        $region73: #{distill_wrapper_forward.5} parent=51 // pred_check
          %p759 = pneg %p389
        $region74: #{distill_wrapper_forward.5} parent=51 // pred_check_branch
          %761 = sbr.rel (%p759) target = $region76
        $region75: #{distill_wrapper_forward.5} parent=51 // pred_region
          %s762 = sand.u32 %s50, 1
          %s763 = scalar_lea.sflag [#allocation25], %s762
          %s764 = sand.u32 %s379, 1
          %s765 = scalar_lea.vmem [#allocation26], %s764
          %s767 = ssub.s32 16, 16
          %768 = vsyncadd %s763, %s767
          %s769 = smul.addr %s50, 16
          %s770 = scalar_lea.hbm %s14, %s769
          %s772 = sshll.u32 %s765, 4
          %s773 = int_to_ptr.vmem [resolvable:$true] %s772
          %775 = dma.hbm_to_vmem [thread:$0]  %s770, 16, %s773, %s763
        $region76: #{distill_wrapper_forward.5} parent=51 // pred_fallthru
          _
        // Predicated region
        $region77: #{distill_wrapper_forward.5} parent=51 // pred_check
          %p776 = pneg %p415
        $region78: #{distill_wrapper_forward.5} parent=51 // pred_check_branch
          %778 = sbr.rel (%p776) target = $region80
        $region79: #{distill_wrapper_forward.5} parent=51 // pred_region
          %s779 = sand.u32 %s50, 1
          %s780 = scalar_lea.sflag [#allocation28], %s779
          %s781 = sand.u32 %s405, 1
          %s782 = scalar_lea.vmem [#allocation27], %s781
          %s784 = ssub.s32 16, 16
          %785 = vsyncadd %s780, %s784
          %s786 = smul.addr %s50, 16
          %s787 = scalar_lea.hbm %s15, %s786
          %s789 = sshll.u32 %s782, 4
          %s790 = int_to_ptr.vmem [resolvable:$true] %s789
          %792 = dma.hbm_to_vmem [thread:$0]  %s787, 16, %s790, %s780
        $region80: #{distill_wrapper_forward.5} parent=51 // pred_fallthru
          _
        // Predicated region
        $region81: #{distill_wrapper_forward.5} parent=51 // pred_check
          %p793 = pneg %p441
        $region82: #{distill_wrapper_forward.5} parent=51 // pred_check_branch
          %795 = sbr.rel (%p793) target = $region84
        $region83: #{distill_wrapper_forward.5} parent=51 // pred_region
          %s796 = sand.u32 %s50, 1
          %s797 = scalar_lea.sflag [#allocation28], %s796
          %s798 = sand.u32 %s431, 1
          %s799 = smul.addr %s798, 16
          %s800 = scalar_lea.vmem [#allocation29], %s799
          %s802 = ssub.s32 256, 256
          %803 = vsyncadd %s797, %s802
          %s804 = smul.addr %s50, 4
          %s805 = smul.addr %s804, 64
          %s806 = scalar_lea.hbm %s16, %s805
          %s807 = sshll.u32 %s800, 4
          %s808 = int_to_ptr.vmem [resolvable:$true] %s807
          %813 = dma.hbm_to_vmem [thread:$0]  %s806, 256, %s808, %s797, 64, 64, 4
        $region84: #{distill_wrapper_forward.5} parent=51 // pred_fallthru
          _
        // Predicated region
        $region85: #{distill_wrapper_forward.5} parent=51 // pred_check
          %p814 = pneg %p467
        $region86: #{distill_wrapper_forward.5} parent=51 // pred_check_branch
          %816 = sbr.rel (%p814) target = $region88
        $region87: #{distill_wrapper_forward.5} parent=51 // pred_region
          %s817 = sand.u32 %s50, 1
          %s818 = scalar_lea.sflag [#allocation31], %s817
          %s819 = sand.u32 %s457, 1
          %s820 = scalar_lea.vmem [#allocation30], %s819
          %s822 = ssub.s32 16, 16
          %823 = vsyncadd %s818, %s822
          %s824 = smul.addr %s50, 16
          %s825 = scalar_lea.hbm %s17, %s824
          %s827 = sshll.u32 %s820, 4
          %s828 = int_to_ptr.vmem [resolvable:$true] %s827
          %830 = dma.hbm_to_vmem [thread:$0]  %s825, 16, %s828, %s818
        $region88: #{distill_wrapper_forward.5} parent=51 // pred_fallthru
          _
        // Predicated region
        $region89: #{distill_wrapper_forward.5} parent=51 // pred_check
          %p831 = pneg %p493
        $region90: #{distill_wrapper_forward.5} parent=51 // pred_check_branch
          %833 = sbr.rel (%p831) target = $region92
        $region91: #{distill_wrapper_forward.5} parent=51 // pred_region
          %s834 = sand.u32 %s50, 1
          %s835 = scalar_lea.sflag [#allocation31], %s834
          %s836 = sand.u32 %s483, 1
          %s837 = smul.addr %s836, 32
          %s838 = scalar_lea.vmem [#allocation32], %s837
          %s840 = ssub.s32 512, 512
          %841 = vsyncadd %s835, %s840
          %s842 = smul.addr %s50, 8
          %s843 = smul.addr %s842, 64
          %s844 = scalar_lea.hbm %s18, %s843
          %s845 = sshll.u32 %s838, 4
          %s846 = int_to_ptr.vmem [resolvable:$true] %s845
          %851 = dma.hbm_to_vmem [thread:$0]  %s844, 512, %s846, %s835, 64, 64, 4
        $region92: #{distill_wrapper_forward.5} parent=51 // pred_fallthru
          _
        // Predicated region
        $region93: #{distill_wrapper_forward.5} parent=51 // pred_check
          %p852 = pneg %p519
        $region94: #{distill_wrapper_forward.5} parent=51 // pred_check_branch
          %854 = sbr.rel (%p852) target = $region96
        $region95: #{distill_wrapper_forward.5} parent=51 // pred_region
          %s855 = sand.u32 %s509, 1
          %s856 = scalar_lea.sflag [#allocation34], %s855
          %s857 = sand.u32 %s509, 1
          %s858 = scalar_lea.vmem [#allocation33], %s857
          %s860 = ssub.s32 16, 16
          %861 = vsyncadd %s856, %s860
          %s862 = smul.addr %s50, 16
          %s863 = scalar_lea.hbm %s19, %s862
          %s865 = sshll.u32 %s858, 4
          %s866 = int_to_ptr.vmem [resolvable:$true] %s865
          %868 = dma.hbm_to_vmem [thread:$0]  %s863, 16, %s866, %s856
        $region96: #{distill_wrapper_forward.5} parent=51 // pred_fallthru
          _
      $region52: #{distill_wrapper_forward.5} parent=5 // pred_fallthru
        _
      %p869 = scmp.le.s32.totalorder 1, %s50
      %p870 = scmp.lt.s32.totalorder %s50, 3
      %p871 = pnand %p869, %p870
      %p872 = pneg %p871
      // Predicated region
      $region97: #{distill_wrapper_forward.5} parent=5 // pred_check
        _
      $region98: #{distill_wrapper_forward.5} parent=5 // pred_check_branch
        %874 = sbr.rel (%p871) target = $region100
      $region99: #{distill_wrapper_forward.5} parent=5 // pred_region
        %s875 = ssub.s32 %s50, 1
        // Predicated region
        $region101: #{distill_wrapper_forward.5} parent=99 // pred_check
          %p876 = pneg %p71
        $region102: #{distill_wrapper_forward.5} parent=99 // pred_check_branch
          %878 = sbr.rel (%p876) target = $region104
        $region103: #{distill_wrapper_forward.5} parent=99 // pred_region
          %879 = dma.done [#allocation4], 256
        $region104: #{distill_wrapper_forward.5} parent=99 // pred_fallthru
          _
        // Predicated region
        $region105: #{distill_wrapper_forward.5} parent=99 // pred_check
          %p880 = pneg %p92
        $region106: #{distill_wrapper_forward.5} parent=99 // pred_check_branch
          %882 = sbr.rel (%p880) target = $region108
        $region107: #{distill_wrapper_forward.5} parent=99 // pred_region
          %883 = dma.done [#allocation7], 32
        $region108: #{distill_wrapper_forward.5} parent=99 // pred_fallthru
          _
        // Predicated region
        $region109: #{distill_wrapper_forward.5} parent=99 // pred_check
          %p884 = pneg %p113
        $region110: #{distill_wrapper_forward.5} parent=99 // pred_check_branch
          %886 = sbr.rel (%p884) target = $region112
        $region111: #{distill_wrapper_forward.5} parent=99 // pred_region
          %887 = dma.done [#allocation7], 32
        $region112: #{distill_wrapper_forward.5} parent=99 // pred_fallthru
          _
        // Predicated region
        $region113: #{distill_wrapper_forward.5} parent=99 // pred_check
          %p888 = pneg %p134
        $region114: #{distill_wrapper_forward.5} parent=99 // pred_check_branch
          %890 = sbr.rel (%p888) target = $region116
        $region115: #{distill_wrapper_forward.5} parent=99 // pred_region
          %891 = dma.done [#allocation10], 1536
        $region116: #{distill_wrapper_forward.5} parent=99 // pred_fallthru
          _
        // Predicated region
        $region117: #{distill_wrapper_forward.5} parent=99 // pred_check
          %p892 = pneg %p155
        $region118: #{distill_wrapper_forward.5} parent=99 // pred_check_branch
          %894 = sbr.rel (%p892) target = $region120
        $region119: #{distill_wrapper_forward.5} parent=99 // pred_region
          %895 = dma.done [#allocation10], 16
        $region120: #{distill_wrapper_forward.5} parent=99 // pred_fallthru
          _
        // Predicated region
        $region121: #{distill_wrapper_forward.5} parent=99 // pred_check
          %p896 = pneg %p176
        $region122: #{distill_wrapper_forward.5} parent=99 // pred_check_branch
          %898 = sbr.rel (%p896) target = $region124
        $region123: #{distill_wrapper_forward.5} parent=99 // pred_region
          %899 = dma.done [#allocation13], 16
        $region124: #{distill_wrapper_forward.5} parent=99 // pred_fallthru
          _
        // Predicated region
        $region125: #{distill_wrapper_forward.5} parent=99 // pred_check
          %p900 = pneg %p197
        $region126: #{distill_wrapper_forward.5} parent=99 // pred_check_branch
          %902 = sbr.rel (%p900) target = $region128
        $region127: #{distill_wrapper_forward.5} parent=99 // pred_region
          %903 = dma.done [#allocation13], 16
        $region128: #{distill_wrapper_forward.5} parent=99 // pred_fallthru
          _
        // Predicated region
        $region129: #{distill_wrapper_forward.5} parent=99 // pred_check
          %p904 = pneg %p218
        $region130: #{distill_wrapper_forward.5} parent=99 // pred_check_branch
          %906 = sbr.rel (%p904) target = $region132
        $region131: #{distill_wrapper_forward.5} parent=99 // pred_region
          %907 = dma.done [#allocation16], 16
        $region132: #{distill_wrapper_forward.5} parent=99 // pred_fallthru
          _
        // Predicated region
        $region133: #{distill_wrapper_forward.5} parent=99 // pred_check
          %p908 = pneg %p239
        $region134: #{distill_wrapper_forward.5} parent=99 // pred_check_branch
          %910 = sbr.rel (%p908) target = $region136
        $region135: #{distill_wrapper_forward.5} parent=99 // pred_region
          %911 = dma.done [#allocation16], 128
        $region136: #{distill_wrapper_forward.5} parent=99 // pred_fallthru
          _
        %s912 = sand.u32 %s55, 1
        %s913 = scalar_lea.sflag [#allocation19], %s912
        %s914 = sand.u32 %s252, 1
        %s915 = scalar_lea.vmem [#allocation18], %s914
        // Predicated region
        $region137: #{distill_wrapper_forward.5} parent=99 // pred_check
          %p916 = pneg %p265
        $region138: #{distill_wrapper_forward.5} parent=99 // pred_check_branch
          %918 = sbr.rel (%p916) target = $region140
        $region139: #{distill_wrapper_forward.5} parent=99 // pred_region
          %919 = dma.done %s913, 16
        $region140: #{distill_wrapper_forward.5} parent=99 // pred_fallthru
          _
        %s920 = sand.u32 %s55, 1
        %s921 = scalar_lea.sflag [#allocation19], %s920
        %s922 = sand.u32 %s278, 1
        %s923 = scalar_lea.vmem [#allocation20], %s922
        // Predicated region
        $region141: #{distill_wrapper_forward.5} parent=99 // pred_check
          %p924 = pneg %p291
        $region142: #{distill_wrapper_forward.5} parent=99 // pred_check_branch
          %926 = sbr.rel (%p924) target = $region144
        $region143: #{distill_wrapper_forward.5} parent=99 // pred_region
          %927 = dma.done %s921, 16
        $region144: #{distill_wrapper_forward.5} parent=99 // pred_fallthru
          _
        %s928 = sand.u32 %s55, 1
        %s929 = scalar_lea.sflag [#allocation22], %s928
        %s930 = sand.u32 %s304, 1
        %s931 = smul.addr %s930, 16
        %s932 = scalar_lea.vmem [#allocation21], %s931
        // Predicated region
        $region145: #{distill_wrapper_forward.5} parent=99 // pred_check
          %p933 = pneg %p317
        $region146: #{distill_wrapper_forward.5} parent=99 // pred_check_branch
          %935 = sbr.rel (%p933) target = $region148
        $region147: #{distill_wrapper_forward.5} parent=99 // pred_region
          %936 = dma.done %s929, 256
        $region148: #{distill_wrapper_forward.5} parent=99 // pred_fallthru
          _
        %s937 = sand.u32 %s55, 1
        %s938 = scalar_lea.sflag [#allocation22], %s937
        %s939 = sand.u32 %s330, 1
        %s940 = smul.addr %s939, 16
        %s941 = scalar_lea.vmem [#allocation23], %s940
        // Predicated region
        $region149: #{distill_wrapper_forward.5} parent=99 // pred_check
          %p942 = pneg %p343
        $region150: #{distill_wrapper_forward.5} parent=99 // pred_check_branch
          %944 = sbr.rel (%p942) target = $region152
        $region151: #{distill_wrapper_forward.5} parent=99 // pred_region
          %945 = dma.done %s938, 256
        $region152: #{distill_wrapper_forward.5} parent=99 // pred_fallthru
          _
        %s946 = sand.u32 %s55, 1
        %s947 = scalar_lea.sflag [#allocation25], %s946
        %s948 = sand.u32 %s356, 1
        %s949 = scalar_lea.vmem [#allocation24], %s948
        // Predicated region
        $region153: #{distill_wrapper_forward.5} parent=99 // pred_check
          %p950 = pneg %p369
        $region154: #{distill_wrapper_forward.5} parent=99 // pred_check_branch
          %952 = sbr.rel (%p950) target = $region156
        $region155: #{distill_wrapper_forward.5} parent=99 // pred_region
          %953 = dma.done %s947, 16
        $region156: #{distill_wrapper_forward.5} parent=99 // pred_fallthru
          _
        %s954 = sand.u32 %s55, 1
        %s955 = scalar_lea.sflag [#allocation25], %s954
        %s956 = sand.u32 %s382, 1
        %s957 = scalar_lea.vmem [#allocation26], %s956
        // Predicated region
        $region157: #{distill_wrapper_forward.5} parent=99 // pred_check
          %p958 = pneg %p395
        $region158: #{distill_wrapper_forward.5} parent=99 // pred_check_branch
          %960 = sbr.rel (%p958) target = $region160
        $region159: #{distill_wrapper_forward.5} parent=99 // pred_region
          %961 = dma.done %s955, 16
        $region160: #{distill_wrapper_forward.5} parent=99 // pred_fallthru
          _
        %s962 = sand.u32 %s55, 1
        %s963 = scalar_lea.sflag [#allocation28], %s962
        %s964 = sand.u32 %s408, 1
        %s965 = scalar_lea.vmem [#allocation27], %s964
        // Predicated region
        $region161: #{distill_wrapper_forward.5} parent=99 // pred_check
          %p966 = pneg %p421
        $region162: #{distill_wrapper_forward.5} parent=99 // pred_check_branch
          %968 = sbr.rel (%p966) target = $region164
        $region163: #{distill_wrapper_forward.5} parent=99 // pred_region
          %969 = dma.done %s963, 16
        $region164: #{distill_wrapper_forward.5} parent=99 // pred_fallthru
          _
        %s970 = sand.u32 %s55, 1
        %s971 = scalar_lea.sflag [#allocation28], %s970
        %s972 = sand.u32 %s434, 1
        %s973 = smul.addr %s972, 16
        %s974 = scalar_lea.vmem [#allocation29], %s973
        // Predicated region
        $region165: #{distill_wrapper_forward.5} parent=99 // pred_check
          %p975 = pneg %p447
        $region166: #{distill_wrapper_forward.5} parent=99 // pred_check_branch
          %977 = sbr.rel (%p975) target = $region168
        $region167: #{distill_wrapper_forward.5} parent=99 // pred_region
          %978 = dma.done %s971, 256
        $region168: #{distill_wrapper_forward.5} parent=99 // pred_fallthru
          _
        %s979 = sand.u32 %s55, 1
        %s980 = scalar_lea.sflag [#allocation31], %s979
        %s981 = sand.u32 %s460, 1
        %s982 = scalar_lea.vmem [#allocation30], %s981
        // Predicated region
        $region169: #{distill_wrapper_forward.5} parent=99 // pred_check
          %p983 = pneg %p473
        $region170: #{distill_wrapper_forward.5} parent=99 // pred_check_branch
          %985 = sbr.rel (%p983) target = $region172
        $region171: #{distill_wrapper_forward.5} parent=99 // pred_region
          %986 = dma.done %s980, 16
        $region172: #{distill_wrapper_forward.5} parent=99 // pred_fallthru
          _
        %s987 = sand.u32 %s55, 1
        %s988 = scalar_lea.sflag [#allocation31], %s987
        %s989 = sand.u32 %s486, 1
        %s990 = smul.addr %s989, 32
        %s991 = scalar_lea.vmem [#allocation32], %s990
        // Predicated region
        $region173: #{distill_wrapper_forward.5} parent=99 // pred_check
          %p992 = pneg %p499
        $region174: #{distill_wrapper_forward.5} parent=99 // pred_check_branch
          %994 = sbr.rel (%p992) target = $region176
        $region175: #{distill_wrapper_forward.5} parent=99 // pred_region
          %995 = dma.done %s988, 512
        $region176: #{distill_wrapper_forward.5} parent=99 // pred_fallthru
          _
        %s996 = sand.u32 %s512, 1
        %s997 = scalar_lea.sflag [#allocation34], %s996
        %s998 = sand.u32 %s512, 1
        %s999 = scalar_lea.vmem [#allocation33], %s998
        // Predicated region
        $region177: #{distill_wrapper_forward.5} parent=99 // pred_check
          %p1000 = pneg %p525
        $region178: #{distill_wrapper_forward.5} parent=99 // pred_check_branch
          %1002 = sbr.rel (%p1000) target = $region180
        $region179: #{distill_wrapper_forward.5} parent=99 // pred_region
          %1003 = dma.done %s997, 16
        $region180: #{distill_wrapper_forward.5} parent=99 // pred_fallthru
          _
        %p1004 = pneg %p71
        %p1005 = pneg %p68
        %p1006 = pneg %p92
        %p1007 = pneg %p89
        %p1008 = pneg %p113
        %p1009 = pneg %p110
        %p1010 = pneg %p134
        %p1011 = pneg %p131
        %p1012 = pneg %p155
        %p1013 = pneg %p152
        %p1014 = pneg %p176
        %p1015 = pneg %p173
        %p1016 = pneg %p197
        %p1017 = pneg %p194
        %p1018 = pneg %p218
        %p1019 = pneg %p215
        %p1020 = pneg %p239
        %p1021 = pneg %p236
        %s1022 = sand.u32 %s55, 1
        %s1023 = scalar_lea.sflag [#allocation19], %s1022
        %s1024 = sand.u32 %s252, 1
        %s1025 = scalar_lea.vmem [#allocation18], %s1024
        %p1026 = pneg %p265
        %p1027 = pneg %p262
        %s1028 = sand.u32 %s55, 1
        %s1029 = scalar_lea.sflag [#allocation19], %s1028
        %s1030 = sand.u32 %s278, 1
        %s1031 = scalar_lea.vmem [#allocation20], %s1030
        %p1032 = pneg %p291
        %p1033 = pneg %p288
        %s1034 = sand.u32 %s55, 1
        %s1035 = scalar_lea.sflag [#allocation22], %s1034
        %s1036 = sand.u32 %s304, 1
        %s1037 = smul.addr %s1036, 16
        %s1038 = scalar_lea.vmem [#allocation21], %s1037
        %p1039 = pneg %p317
        %p1040 = pneg %p314
        %s1041 = sand.u32 %s55, 1
        %s1042 = scalar_lea.sflag [#allocation22], %s1041
        %s1043 = sand.u32 %s330, 1
        %s1044 = smul.addr %s1043, 16
        %s1045 = scalar_lea.vmem [#allocation23], %s1044
        %p1046 = pneg %p343
        %p1047 = pneg %p340
        %s1048 = sand.u32 %s55, 1
        %s1049 = scalar_lea.sflag [#allocation25], %s1048
        %s1050 = sand.u32 %s356, 1
        %s1051 = scalar_lea.vmem [#allocation24], %s1050
        %p1052 = pneg %p369
        %p1053 = pneg %p366
        %s1054 = sand.u32 %s55, 1
        %s1055 = scalar_lea.sflag [#allocation25], %s1054
        %s1056 = sand.u32 %s382, 1
        %s1057 = scalar_lea.vmem [#allocation26], %s1056
        %p1058 = pneg %p395
        %p1059 = pneg %p392
        %s1060 = sand.u32 %s55, 1
        %s1061 = scalar_lea.sflag [#allocation28], %s1060
        %s1062 = sand.u32 %s408, 1
        %s1063 = scalar_lea.vmem [#allocation27], %s1062
        %p1064 = pneg %p421
        %p1065 = pneg %p418
        %s1066 = sand.u32 %s55, 1
        %s1067 = scalar_lea.sflag [#allocation28], %s1066
        %s1068 = sand.u32 %s434, 1
        %s1069 = smul.addr %s1068, 16
        %s1070 = scalar_lea.vmem [#allocation29], %s1069
        %p1071 = pneg %p447
        %p1072 = pneg %p444
        %s1073 = sand.u32 %s55, 1
        %s1074 = scalar_lea.sflag [#allocation31], %s1073
        %s1075 = sand.u32 %s460, 1
        %s1076 = scalar_lea.vmem [#allocation30], %s1075
        %p1077 = pneg %p473
        %p1078 = pneg %p470
        %s1079 = sand.u32 %s55, 1
        %s1080 = scalar_lea.sflag [#allocation31], %s1079
        %s1081 = sand.u32 %s486, 1
        %s1082 = smul.addr %s1081, 32
        %s1083 = scalar_lea.vmem [#allocation32], %s1082
        %p1084 = pneg %p499
        %p1085 = pneg %p496
        %s1086 = sand.u32 %s512, 1
        %s1087 = scalar_lea.sflag [#allocation34], %s1086
        %s1088 = sand.u32 %s512, 1
        %s1089 = scalar_lea.vmem [#allocation33], %s1088
        %p1090 = pneg %p525
        %p1091 = pneg %p522
        %p1092 = pneg %p546
        %p1093 = pneg %p543
        %p1095 = scmp.eq.s32.totalorder %s55, 0
        // Predicated region
        $region181: #{distill_wrapper_forward.5} parent=99 // pred_check
          %p1096 = pneg %p1095
        $region182: #{distill_wrapper_forward.5} parent=99 // pred_check_branch
          %1098 = sbr.rel (%p1096) target = $region184
        $region183: #{distill_wrapper_forward.5} parent=99 // pred_region
          %v1099 = vld [vmem:[#allocation3] sm:$0xff]
          %v1100 = vld [vmem:[#allocation3 + $0x8] sm:$0xff]
          %v1101 = vld [vmem:[#allocation6] sm:$0x3]
          %v1102 = vld [vmem:[#allocation8] sm:$0x3]
          %vm1103 = vcmask 523264
          %v1104 = vsel %vm1103, %v1100, 0.0
          %v1105 = vadd.f32 %v1099, %v1104
          %1106 = vadd.xlane.f32.xlu0 %v1105
          %v1107 = vpop.xlane.xlu0 %1106
          %v1108 = vrcp.pop 192.0
          %v1109 = vmul.f32 %v1107, %v1108
          %v1110 = vsub.f32 %v1099, %v1109
          %v1111 = vsub.f32 %v1100, %v1109
          %v1112 = vmul.f32 %v1110, %v1110
          %v1113 = vmul.f32 %v1111, %v1111
          %v1114 = vsel %vm1103, %v1113, 0.0
          %v1115 = vadd.f32 %v1112, %v1114
          %1116 = vadd.xlane.f32.xlu0 %v1115
          %v1117 = vpop.xlane.xlu0 %1116
          %v1118 = vmul.f32 %v1117, %v1108
          %v1119 = vadd.f32 %v1118, 1e-05
          %v1120 = vrsqrt.pop %v1119
          %v1121 = vmul.f32 %v1110, %v1120
          %v1122 = vmul.f32 %v1111, %v1120
          %v1124 = vlaneseq
          %v1125 = vshrl.u32 %v1124, 7
          %v1126 = vsub.s32 0, %v1125
          %v1127 = vrot.slane %v1101, %v1126
          %v1128 = vlaneseq
          %v1129 = vshrl.u32 %v1128, 7
          %v1130 = vsub.s32 1, %v1129
          %v1131 = vrot.slane %v1101, %v1130
          %v1134 = vmul.f32 %v1121, %v1127
          %v1135 = vmul.f32 %v1122, %v1131
          %v1137 = vlaneseq
          %v1138 = vshrl.u32 %v1137, 7
          %v1139 = vsub.s32 0, %v1138
          %v1140 = vrot.slane %v1102, %v1139
          %v1141 = vlaneseq
          %v1142 = vshrl.u32 %v1141, 7
          %v1143 = vsub.s32 1, %v1142
          %v1144 = vrot.slane %v1102, %v1143
          %v1147 = vadd.f32 %v1134, %v1140
          %v1148 = vadd.f32 %v1135, %v1144
          %v1149 = vpack.c.bf16 %v1147, %v1147
          %v1150 = vpack.c.bf16 %v1148, %v1148
          %v1151 = vld [vmem:[#allocation9] sm:$0xf]
          %v1152 = vld [vmem:[#allocation9 + $0x4] sm:$0xf]
          %v1153 = vld [vmem:[#allocation9 + $0x8] sm:$0xf]
          %v1154 = vld [vmem:[#allocation9 + $0xc] sm:$0xf]
          %v1155 = vld [vmem:[#allocation9 + $0x10] sm:$0xf]
          %v1156 = vld [vmem:[#allocation9 + $0x14] sm:$0xf]
          %v1157 = vld [vmem:[#allocation9 + $0x18] sm:$0xf]
          %v1158 = vld [vmem:[#allocation9 + $0x1c] sm:$0xf]
          %v1159 = vld [vmem:[#allocation9 + $0x20] sm:$0xf]
          %v1160 = vld [vmem:[#allocation9 + $0x24] sm:$0xf]
          %v1161 = vld [vmem:[#allocation9 + $0x28] sm:$0xf]
          %v1162 = vld [vmem:[#allocation9 + $0x2c] sm:$0xf]
          %v1163 = vld [vmem:[#allocation9 + $0x30] sm:$0xf]
          %v1164 = vld [vmem:[#allocation9 + $0x34] sm:$0xf]
          %v1165 = vld [vmem:[#allocation9 + $0x38] sm:$0xf]
          %v1166 = vld [vmem:[#allocation9 + $0x3c] sm:$0xf]
          %v1167 = vld [vmem:[#allocation9 + $0x40] sm:$0xf]
          %v1168 = vld [vmem:[#allocation9 + $0x44] sm:$0xf]
          %v1169 = vld [vmem:[#allocation9 + $0x48] sm:$0xf]
          %v1170 = vld [vmem:[#allocation9 + $0x4c] sm:$0xf]
          %v1171 = vld [vmem:[#allocation9 + $0x50] sm:$0xf]
          %v1172 = vld [vmem:[#allocation9 + $0x54] sm:$0xf]
          %v1173 = vld [vmem:[#allocation9 + $0x58] sm:$0xf]
          %v1174 = vld [vmem:[#allocation9 + $0x5c] sm:$0xf]
          %v1175 = vld [vmem:[#allocation11] sm:$0x1]
          %v1177 = vlaneseq
          %v1178 = vshrl.u32 %v1177, 7
          %v1179 = vsub.s32 0, %v1178
          %v1180 = vrot.slane %v1175, %v1179
          %v1206 = vunpack.c.l.b16 %v1151
          %v1207 = vunpack.c.l.b16 %v1152
          %v1208 = vunpack.c.l.b16 %v1153
          %v1209 = vunpack.c.l.b16 %v1154
          %v1210 = vunpack.c.l.b16 %v1155
          %v1211 = vunpack.c.l.b16 %v1156
          %v1212 = vunpack.c.l.b16 %v1157
          %v1213 = vunpack.c.l.b16 %v1158
          %v1214 = vunpack.c.l.b16 %v1159
          %v1215 = vunpack.c.l.b16 %v1160
          %v1216 = vunpack.c.l.b16 %v1161
          %v1217 = vunpack.c.l.b16 %v1162
          %v1218 = vunpack.c.l.b16 %v1163
          %v1219 = vunpack.c.l.b16 %v1164
          %v1220 = vunpack.c.l.b16 %v1165
          %v1221 = vunpack.c.l.b16 %v1166
          %v1222 = vunpack.c.l.b16 %v1167
          %v1223 = vunpack.c.l.b16 %v1168
          %v1224 = vunpack.c.l.b16 %v1169
          %v1225 = vunpack.c.l.b16 %v1170
          %v1226 = vunpack.c.l.b16 %v1171
          %v1227 = vunpack.c.l.b16 %v1172
          %v1228 = vunpack.c.l.b16 %v1173
          %v1229 = vunpack.c.l.b16 %v1174
          %v1230 = vpack.c.b16 %v1207, %v1206
          %v1231 = vpack.c.b16 %v1209, %v1208
          %v1232 = vpack.c.b16 %v1211, %v1210
          %v1233 = vpack.c.b16 %v1213, %v1212
          %v1234 = vpack.c.b16 %v1215, %v1214
          %v1235 = vpack.c.b16 %v1217, %v1216
          %v1236 = vpack.c.b16 %v1219, %v1218
          %v1237 = vpack.c.b16 %v1221, %v1220
          %v1238 = vpack.c.b16 %v1223, %v1222
          %v1239 = vpack.c.b16 %v1225, %v1224
          %v1240 = vpack.c.b16 %v1227, %v1226
          %v1241 = vpack.c.b16 %v1229, %v1228
          %v1255 = vsel %vm1103, %v1150, 0
          %1257 = vmatprep.subr.bf16.mxu0 0
          %1258 = vmatpush1.bf16.msra.mxu0 %v1230
          %1259 = vmatprep.subr.bf16.mxu0 0
          %1260 = vmatpush1.bf16.msra.mxu0 %v1231
          %1261 = vmatprep.subr.bf16.mxu0 0
          %1262 = vmatpush1.bf16.msra.mxu0 %v1232
          %1263 = vmatprep.subr.bf16.mxu0 0
          %1264 = vmatpush1.bf16.msra.mxu0 %v1233
          %1265 = vmatprep.subr.bf16.mxu0 0
          %1266 = vmatpush1.bf16.msra.mxu0 %v1234
          %1267 = vmatprep.subr.bf16.mxu0 0
          %1268 = vmatpush1.bf16.msra.mxu0 %v1235
          %1269 = vmatprep.subr.bf16.mxu0 0
          %1270 = vmatpush1.bf16.msra.mxu0 %v1236
          %1271 = vmatprep.subr.bf16.mxu0 0
          %1272 = vmatpush1.bf16.msra.mxu0 %v1237
          %1273 = vmatprep.subr.bf16.mxu0 0
          %1274 = vmatpush1.bf16.msra.mxu0 %v1238
          %1275 = vmatprep.subr.bf16.mxu0 0
          %1276 = vmatpush1.bf16.msra.mxu0 %v1239
          %1277 = vmatprep.subr.bf16.mxu0 0
          %1278 = vmatpush1.bf16.msra.mxu0 %v1240
          %1279 = vmatprep.subr.bf16.mxu0 0
          %1280 = vmatpush1.bf16.msra.mxu0 %v1241
          %1281 = vmatprep.subr.bf16.mxu0 0
          %1282 = vmatpush1.bf16.msra.mxu0 0
          %1283 = vmatprep.subr.bf16.mxu0 0
          %1284 = vmatpush1.bf16.msra.mxu0 0
          %1285 = vmatprep.subr.bf16.mxu0 0
          %1286 = vmatpush1.bf16.msra.mxu0 0
          %1287 = vmatprep.subr.bf16.mxu0 0
          %1288 = vmatpush1.bf16.msra.mxu0 0
          %1289 = vmatprep.mubr.bf16.mxu0 %v1255
          %1290 = vmatmul.mubr.bf16.gmra.mrb[0].mxu0 %v1149
          %v1291 = vpop.f32.mrb[0].mxu0
          %v1292 = vadd.f32 %v1180, %v1291
          %v1293 = vpop.f32.mrb[0].mxu0
          %v1294 = vpop.f32.mrb[0].mxu0
          %v1295 = vpop.f32.mrb[0].mxu0
          %1296 = vdwg.mxu0
          %v1297 = vld [vmem:[#allocation12] sm:$0x1]
          %v1298 = vld [vmem:[#allocation14] sm:$0x1]
          %vm1299 = vcmask 261120
          %v1300 = vsel %vm1299, %v1292, 0.0
          %1301 = vadd.xlane.f32.xlu0 %v1300
          %v1302 = vpop.xlane.xlu0 %1301
          %v1303 = vrcp.pop 32.0
          %v1304 = vmul.f32 %v1302, %v1303
          %v1305 = vsub.f32 %v1292, %v1304
          %v1306 = vmul.f32 %v1305, %v1305
          %v1307 = vsel %vm1299, %v1306, 0.0
          %1308 = vadd.xlane.f32.xlu0 %v1307
          %v1309 = vpop.xlane.xlu0 %1308
          %v1310 = vmul.f32 %v1309, %v1303
          %v1311 = vadd.f32 %v1310, 1e-05
          %v1312 = vrsqrt.pop %v1311
          %v1313 = vmul.f32 %v1305, %v1312
          %v1315 = vlaneseq
          %v1316 = vshrl.u32 %v1315, 7
          %v1317 = vsub.s32 0, %v1316
          %v1318 = vrot.slane %v1297, %v1317
          %v1320 = vmul.f32 %v1313, %v1318
          %v1322 = vlaneseq
          %v1323 = vshrl.u32 %v1322, 7
          %v1324 = vsub.s32 0, %v1323
          %v1325 = vrot.slane %v1298, %v1324
          %v1327 = vadd.f32 %v1320, %v1325
          %v1328 = vld [vmem:[#allocation15] sm:$0x1]
          %v1329 = vld [vmem:[#allocation17] sm:$0x1]
          %v1330 = vadd.f32 %v1328, %v1329
          %v1331 = vld [vmem:[#allocation17 + $0x1] sm:$0xf]
          %vm1332 = vcmask 253952
          %1333 = vst.msk [vmem:[#allocation35] sm:$0x1] %vm1332, %v1330
          %v1334 = vadd.f32 %v1327, %v1331
          %vm1335 = vcmask 257024
          %1336 = vst.msk [vmem:[#allocation35 + $0x1] sm:$0xf] %vm1335, %v1334
          %1337 = vst.msk [vmem:[#allocation35 + $0x5] sm:$0x1] %vm1332, %v1330
          %v1339 = vrot.slane %v1331, 4
          %v1341 = vadd.f32 %v1327, %v1339
          %vm1342 = vcmask 261124
          %1343 = vst.msk [vmem:[#allocation35 + $0x2] sm:$0xf0] %vm1342, %v1341
        $region184: #{distill_wrapper_forward.5} parent=99 // pred_fallthru
          _
        %v1344 = vld [vmem:[#allocation35] sm:$0xff]
        %v1345 = vld [vmem:[#allocation35 + $0x8] sm:$0x3]
        %v1346 = vld [vmem:[%s915] sm:$0x1]
        %v1347 = vld [vmem:[%s923] sm:$0x1]
        %vm1348 = vcmask 261120
        %v1349 = vsel %vm1348, %v1344, 0.0
        %1350 = vadd.xlane.f32.xlu0 %v1349
        %v1351 = vpop.xlane.xlu0 %1350
        %vm1352 = vcmask 254976
        %v1353 = vsel %vm1352, %v1345, 0.0
        %1354 = vadd.xlane.f32.xlu0 %v1353
        %v1355 = vpop.xlane.xlu0 %1354
        %v1356 = vrcp.pop 32.0
        %v1357 = vmul.f32 %v1351, %v1356
        %v1358 = vmul.f32 %v1355, %v1356
        %v1359 = vsub.f32 %v1344, %v1357
        %v1360 = vsub.f32 %v1345, %v1358
        %v1361 = vmul.f32 %v1359, %v1359
        %v1362 = vmul.f32 %v1360, %v1360
        %v1363 = vsel %vm1348, %v1361, 0.0
        %1364 = vadd.xlane.f32.xlu0 %v1363
        %v1365 = vpop.xlane.xlu0 %1364
        %v1366 = vsel %vm1352, %v1362, 0.0
        %1367 = vadd.xlane.f32.xlu0 %v1366
        %v1368 = vpop.xlane.xlu0 %1367
        %v1369 = vmul.f32 %v1365, %v1356
        %v1370 = vmul.f32 %v1368, %v1356
        %v1371 = vadd.f32 %v1369, 1e-05
        %v1372 = vadd.f32 %v1370, 1e-05
        %v1373 = vrsqrt.pop %v1371
        %v1374 = vrsqrt.pop %v1372
        %v1375 = vmul.f32 %v1359, %v1373
        %v1376 = vmul.f32 %v1360, %v1374
        %v1378 = vlaneseq
        %v1379 = vshrl.u32 %v1378, 7
        %v1380 = vsub.s32 0, %v1379
        %v1381 = vrot.slane %v1346, %v1380
        %v1383 = vmul.f32 %v1375, %v1381
        %v1384 = vmul.f32 %v1376, %v1381
        %v1386 = vlaneseq
        %v1387 = vshrl.u32 %v1386, 7
        %v1388 = vsub.s32 0, %v1387
        %v1389 = vrot.slane %v1347, %v1388
        %v1391 = vadd.f32 %v1383, %v1389
        %v1392 = vadd.f32 %v1384, %v1389
        %v1393 = vpack.c.bf16 %v1392, %v1391
        %v1394 = vld [vmem:[%s932] sm:$0xf]
        %v1395 = vld [vmem:[%s932 + $0x4] sm:$0xf]
        %v1396 = vld [vmem:[%s932 + $0x8] sm:$0xf]
        %v1397 = vld [vmem:[%s932 + $0xc] sm:$0xf]
        %v1402 = vunpack.c.l.b16 %v1394
        %v1403 = vunpack.c.l.b16 %v1395
        %v1404 = vunpack.c.l.b16 %v1396
        %v1405 = vunpack.c.l.b16 %v1397
        %v1406 = vpack.c.b16 %v1403, %v1402
        %v1407 = vpack.c.b16 %v1405, %v1404
        %v1411 = vsel %vm1348, %v1393, 0
        %1413 = vmatprep.subr.bf16.mxu0 0
        %1414 = vmatpush1.bf16.msra.mxu0 %v1406
        %1415 = vmatprep.subr.bf16.mxu0 0
        %1416 = vmatpush1.bf16.msra.mxu0 %v1407
        %1417 = vmatprep.subr.bf16.mxu0 0
        %1418 = vmatpush1.bf16.msra.mxu0 0
        %1419 = vmatprep.subr.bf16.mxu0 0
        %1420 = vmatpush1.bf16.msra.mxu0 0
        %1421 = vmatprep.subr.bf16.mxu0 0
        %1422 = vmatpush1.bf16.msra.mxu0 0
        %1423 = vmatprep.subr.bf16.mxu0 0
        %1424 = vmatpush1.bf16.msra.mxu0 0
        %1425 = vmatprep.subr.bf16.mxu0 0
        %1426 = vmatpush1.bf16.msra.mxu0 0
        %1427 = vmatprep.subr.bf16.mxu0 0
        %1428 = vmatpush1.bf16.msra.mxu0 0
        %1429 = vmatprep.subr.bf16.mxu0 0
        %1430 = vmatpush1.bf16.msra.mxu0 0
        %1431 = vmatprep.subr.bf16.mxu0 0
        %1432 = vmatpush1.bf16.msra.mxu0 0
        %1433 = vmatprep.subr.bf16.mxu0 0
        %1434 = vmatpush1.bf16.msra.mxu0 0
        %1435 = vmatprep.subr.bf16.mxu0 0
        %1436 = vmatpush1.bf16.msra.mxu0 0
        %1437 = vmatprep.subr.bf16.mxu0 0
        %1438 = vmatpush1.bf16.msra.mxu0 0
        %1439 = vmatprep.subr.bf16.mxu0 0
        %1440 = vmatpush1.bf16.msra.mxu0 0
        %1441 = vmatprep.subr.bf16.mxu0 0
        %1442 = vmatpush1.bf16.msra.mxu0 0
        %1443 = vmatprep.subr.bf16.mxu0 0
        %1444 = vmatpush1.bf16.msra.mxu0 0
        %1445 = vmatprep.mubr.bf16.mxu0 0
        %1446 = vmatmul.mubr.bf16.gmra.mrb[0].mxu0 %v1411
        %v1447 = vpop.f32.mrb[0].mxu0
        %v1448 = vadd.f32 0.0, %v1447
        %v1449 = vpop.f32.mrb[0].mxu0
        %v1450 = vpop.f32.mrb[0].mxu0
        %v1451 = vadd.f32 0.0, %v1450
        %v1452 = vpop.f32.mrb[0].mxu0
        %1453 = vdwg.mxu0
        %v1454 = vpack.c.bf16 %v1448, %v1448
        %1456 = vrot.lane.b32.xlu0 %v1454, 96
        %v1457 = vpop.permute.xlu0 %1456
        %vm1458 = vcmask 64512
        %v1460 = vsel %vm1458, %v1454, 0
        %v1463 = vsel %vm1458, %v1457, 0
        %1465 = vmatprep.subr.bf16.mxu0 0
        %1466 = vmatpush1.bf16.xpose.msra.mxu0 %v1463
        %1467 = vmatprep.subr.bf16.mxu0 0
        %1468 = vmatpush1.bf16.xpose.msra.mxu0 0
        %1469 = vmatprep.subr.bf16.mxu0 0
        %1470 = vmatpush1.bf16.xpose.msra.mxu0 0
        %1471 = vmatprep.subr.bf16.mxu0 0
        %1472 = vmatpush1.bf16.xpose.msra.mxu0 0
        %1473 = vmatprep.subr.bf16.mxu0 0
        %1474 = vmatpush1.bf16.xpose.msra.mxu0 0
        %1475 = vmatprep.subr.bf16.mxu0 0
        %1476 = vmatpush1.bf16.xpose.msra.mxu0 0
        %1477 = vmatprep.subr.bf16.mxu0 0
        %1478 = vmatpush1.bf16.xpose.msra.mxu0 0
        %1479 = vmatprep.subr.bf16.mxu0 0
        %1480 = vmatpush1.bf16.xpose.msra.mxu0 0
        %1481 = vmatprep.subr.bf16.mxu0 0
        %1482 = vmatpush1.bf16.xpose.msra.mxu0 0
        %1483 = vmatprep.subr.bf16.mxu0 0
        %1484 = vmatpush1.bf16.xpose.msra.mxu0 0
        %1485 = vmatprep.subr.bf16.mxu0 0
        %1486 = vmatpush1.bf16.xpose.msra.mxu0 0
        %1487 = vmatprep.subr.bf16.mxu0 0
        %1488 = vmatpush1.bf16.xpose.msra.mxu0 0
        %1489 = vmatprep.subr.bf16.mxu0 0
        %1490 = vmatpush1.bf16.xpose.msra.mxu0 0
        %1491 = vmatprep.subr.bf16.mxu0 0
        %1492 = vmatpush1.bf16.xpose.msra.mxu0 0
        %1493 = vmatprep.subr.bf16.mxu0 0
        %1494 = vmatpush1.bf16.xpose.msra.mxu0 0
        %1495 = vmatprep.subr.bf16.mxu0 0
        %1496 = vmatpush1.bf16.xpose.msra.mxu0 0
        %1497 = vmatprep.mubr.bf16.mxu0 0
        %1498 = vmatmul.mubr.bf16.gmra.mrb[0].mxu0 %v1460
        %v1499 = vpop.f32.mrb[0].mxu0
        %v1500 = vadd.f32 0.0, %v1499
        %v1501 = vpop.f32.mrb[0].mxu0
        %v1502 = vpop.f32.mrb[0].mxu0
        %v1503 = vpop.f32.mrb[0].mxu0
        %1504 = vdwg.mxu0
        %vm1505 = vcmask 36864
        %v1506 = vsel %vm1505, %v1500, -inf
        %1507 = vmax.xlane.f32.xlu0 %v1506
        %v1508 = vpop.xlane.xlu0 %1507
        %v1509 = vsub.f32 %v1500, %v1508
        %v1510 = vmul.f32 %v1509, 1.442695
        %v1511 = vpow.pop %v1510
        %v1512 = vsel %vm1505, %v1511, 0.0
        %1513 = vadd.xlane.f32.xlu0 %v1512
        %v1514 = vpop.xlane.xlu0 %1513
        %v1515 = vrcp.pop %v1514
        %v1516 = vmul.f32 %v1511, %v1515
        %v1517 = vpack.c.bf16 %v1516, %v1516
        %1518 = vrot.lane.b32.xlu0 %v1454, 64
        %v1519 = vpop.permute.xlu0 %1518
        %vm1520 = vcmask 39936
        %v1522 = vsel %vm1520, %v1517, 0
        %vm1524 = vcmask 1041408
        %vm1525 = vcmask 1042432
        %v1526 = vsel %vm1524, 4294967295, 65535
        %v1527 = vsel %vm1525, %v1526, 0
        %v1529 = vand.u32 %v1519, %v1527
        %1531 = vmatprep.subr.bf16.mxu0 0
        %1532 = vmatpush1.bf16.msra.mxu0 %v1529
        %1533 = vmatprep.subr.bf16.mxu0 0
        %1534 = vmatpush1.bf16.msra.mxu0 0
        %1535 = vmatprep.subr.bf16.mxu0 0
        %1536 = vmatpush1.bf16.msra.mxu0 0
        %1537 = vmatprep.subr.bf16.mxu0 0
        %1538 = vmatpush1.bf16.msra.mxu0 0
        %1539 = vmatprep.subr.bf16.mxu0 0
        %1540 = vmatpush1.bf16.msra.mxu0 0
        %1541 = vmatprep.subr.bf16.mxu0 0
        %1542 = vmatpush1.bf16.msra.mxu0 0
        %1543 = vmatprep.subr.bf16.mxu0 0
        %1544 = vmatpush1.bf16.msra.mxu0 0
        %1545 = vmatprep.subr.bf16.mxu0 0
        %1546 = vmatpush1.bf16.msra.mxu0 0
        %1547 = vmatprep.subr.bf16.mxu0 0
        %1548 = vmatpush1.bf16.msra.mxu0 0
        %1549 = vmatprep.subr.bf16.mxu0 0
        %1550 = vmatpush1.bf16.msra.mxu0 0
        %1551 = vmatprep.subr.bf16.mxu0 0
        %1552 = vmatpush1.bf16.msra.mxu0 0
        %1553 = vmatprep.subr.bf16.mxu0 0
        %1554 = vmatpush1.bf16.msra.mxu0 0
        %1555 = vmatprep.subr.bf16.mxu0 0
        %1556 = vmatpush1.bf16.msra.mxu0 0
        %1557 = vmatprep.subr.bf16.mxu0 0
        %1558 = vmatpush1.bf16.msra.mxu0 0
        %1559 = vmatprep.subr.bf16.mxu0 0
        %1560 = vmatpush1.bf16.msra.mxu0 0
        %1561 = vmatprep.subr.bf16.mxu0 0
        %1562 = vmatpush1.bf16.msra.mxu0 0
        %1563 = vmatprep.mubr.bf16.mxu0 0
        %1564 = vmatmul.mubr.bf16.gmra.mrb[0].mxu0 %v1522
        %v1565 = vpop.f32.mrb[0].mxu0
        %v1566 = vadd.f32 0.0, %v1565
        %v1567 = vpop.f32.mrb[0].mxu0
        %v1568 = vpop.f32.mrb[0].mxu0
        %v1569 = vpop.f32.mrb[0].mxu0
        %1570 = vdwg.mxu0
        %vm1571 = vcmask 61440
        %1572 = vst.msk [vmem:[#allocation2] sm:$0x1f] %vm1571, %v1566
        %1573 = vrot.lane.b32.xlu0 %v1454, 120
        %v1574 = vpop.permute.xlu0 %1573
        %1575 = vrot.lane.b32.xlu0 %v1454, 88
        %v1576 = vpop.permute.xlu0 %1575
        %v1578 = vsel %vm1458, %v1574, 0
        %v1581 = vsel %vm1458, %v1576, 0
        %1583 = vmatprep.subr.bf16.mxu0 0
        %1584 = vmatpush1.bf16.xpose.msra.mxu0 %v1581
        %1585 = vmatprep.subr.bf16.mxu0 0
        %1586 = vmatpush1.bf16.xpose.msra.mxu0 0
        %1587 = vmatprep.subr.bf16.mxu0 0
        %1588 = vmatpush1.bf16.xpose.msra.mxu0 0
        %1589 = vmatprep.subr.bf16.mxu0 0
        %1590 = vmatpush1.bf16.xpose.msra.mxu0 0
        %1591 = vmatprep.subr.bf16.mxu0 0
        %1592 = vmatpush1.bf16.xpose.msra.mxu0 0
        %1593 = vmatprep.subr.bf16.mxu0 0
        %1594 = vmatpush1.bf16.xpose.msra.mxu0 0
        %1595 = vmatprep.subr.bf16.mxu0 0
        %1596 = vmatpush1.bf16.xpose.msra.mxu0 0
        %1597 = vmatprep.subr.bf16.mxu0 0
        %1598 = vmatpush1.bf16.xpose.msra.mxu0 0
        %1599 = vmatprep.subr.bf16.mxu0 0
        %1600 = vmatpush1.bf16.xpose.msra.mxu0 0
        %1601 = vmatprep.subr.bf16.mxu0 0
        %1602 = vmatpush1.bf16.xpose.msra.mxu0 0
        %1603 = vmatprep.subr.bf16.mxu0 0
        %1604 = vmatpush1.bf16.xpose.msra.mxu0 0
        %1605 = vmatprep.subr.bf16.mxu0 0
        %1606 = vmatpush1.bf16.xpose.msra.mxu0 0
        %1607 = vmatprep.subr.bf16.mxu0 0
        %1608 = vmatpush1.bf16.xpose.msra.mxu0 0
        %1609 = vmatprep.subr.bf16.mxu0 0
        %1610 = vmatpush1.bf16.xpose.msra.mxu0 0
        %1611 = vmatprep.subr.bf16.mxu0 0
        %1612 = vmatpush1.bf16.xpose.msra.mxu0 0
        %1613 = vmatprep.subr.bf16.mxu0 0
        %1614 = vmatpush1.bf16.xpose.msra.mxu0 0
        %1615 = vmatprep.mubr.bf16.mxu0 0
        %1616 = vmatmul.mubr.bf16.gmra.mrb[0].mxu0 %v1578
        %v1617 = vpop.f32.mrb[0].mxu0
        %v1618 = vadd.f32 0.0, %v1617
        %v1619 = vpop.f32.mrb[0].mxu0
        %v1620 = vpop.f32.mrb[0].mxu0
        %v1621 = vpop.f32.mrb[0].mxu0
        %1622 = vdwg.mxu0
        %v1623 = vsel %vm1505, %v1618, -inf
        %1624 = vmax.xlane.f32.xlu0 %v1623
        %v1625 = vpop.xlane.xlu0 %1624
        %v1626 = vsub.f32 %v1618, %v1625
        %v1627 = vmul.f32 %v1626, 1.442695
        %v1628 = vpow.pop %v1627
        %v1629 = vsel %vm1505, %v1628, 0.0
        %1630 = vadd.xlane.f32.xlu0 %v1629
        %v1631 = vpop.xlane.xlu0 %1630
        %v1632 = vrcp.pop %v1631
        %v1633 = vmul.f32 %v1628, %v1632
        %v1634 = vpack.c.bf16 %v1633, %v1633
        %1635 = vrot.lane.b32.xlu0 %v1454, 56
        %v1636 = vpop.permute.xlu0 %1635
        %v1638 = vsel %vm1520, %v1634, 0
        %v1641 = vand.u32 %v1636, %v1527
        %1643 = vmatprep.subr.bf16.mxu0 0
        %1644 = vmatpush1.bf16.msra.mxu0 %v1641
        %1645 = vmatprep.subr.bf16.mxu0 0
        %1646 = vmatpush1.bf16.msra.mxu0 0
        %1647 = vmatprep.subr.bf16.mxu0 0
        %1648 = vmatpush1.bf16.msra.mxu0 0
        %1649 = vmatprep.subr.bf16.mxu0 0
        %1650 = vmatpush1.bf16.msra.mxu0 0
        %1651 = vmatprep.subr.bf16.mxu0 0
        %1652 = vmatpush1.bf16.msra.mxu0 0
        %1653 = vmatprep.subr.bf16.mxu0 0
        %1654 = vmatpush1.bf16.msra.mxu0 0
        %1655 = vmatprep.subr.bf16.mxu0 0
        %1656 = vmatpush1.bf16.msra.mxu0 0
        %1657 = vmatprep.subr.bf16.mxu0 0
        %1658 = vmatpush1.bf16.msra.mxu0 0
        %1659 = vmatprep.subr.bf16.mxu0 0
        %1660 = vmatpush1.bf16.msra.mxu0 0
        %1661 = vmatprep.subr.bf16.mxu0 0
        %1662 = vmatpush1.bf16.msra.mxu0 0
        %1663 = vmatprep.subr.bf16.mxu0 0
        %1664 = vmatpush1.bf16.msra.mxu0 0
        %1665 = vmatprep.subr.bf16.mxu0 0
        %1666 = vmatpush1.bf16.msra.mxu0 0
        %1667 = vmatprep.subr.bf16.mxu0 0
        %1668 = vmatpush1.bf16.msra.mxu0 0
        %1669 = vmatprep.subr.bf16.mxu0 0
        %1670 = vmatpush1.bf16.msra.mxu0 0
        %1671 = vmatprep.subr.bf16.mxu0 0
        %1672 = vmatpush1.bf16.msra.mxu0 0
        %1673 = vmatprep.subr.bf16.mxu0 0
        %1674 = vmatpush1.bf16.msra.mxu0 0
        %1675 = vmatprep.mubr.bf16.mxu0 0
        %1676 = vmatmul.mubr.bf16.gmra.mrb[0].mxu0 %v1638
        %v1677 = vpop.f32.mrb[0].mxu0
        %v1678 = vadd.f32 0.0, %v1677
        %v1679 = vpop.f32.mrb[0].mxu0
        %v1680 = vpop.f32.mrb[0].mxu0
        %v1681 = vpop.f32.mrb[0].mxu0
        %1682 = vdwg.mxu0
        %1684 = vrot.lane.b32.xlu0 %v1678, 8
        %v1685 = vpop.permute.xlu0 %1684
        %vm1687 = vcmask 127040
        %1688 = vst.msk [vmem:[#allocation2] sm:$0x1f] %vm1687, %v1685
        %1689 = vrot.lane.b32.xlu0 %v1454, 112
        %v1690 = vpop.permute.xlu0 %1689
        %1691 = vrot.lane.b32.xlu0 %v1454, 80
        %v1692 = vpop.permute.xlu0 %1691
        %v1694 = vsel %vm1458, %v1690, 0
        %v1697 = vsel %vm1458, %v1692, 0
        %1699 = vmatprep.subr.bf16.mxu0 0
        %1700 = vmatpush1.bf16.xpose.msra.mxu0 %v1697
        %1701 = vmatprep.subr.bf16.mxu0 0
        %1702 = vmatpush1.bf16.xpose.msra.mxu0 0
        %1703 = vmatprep.subr.bf16.mxu0 0
        %1704 = vmatpush1.bf16.xpose.msra.mxu0 0
        %1705 = vmatprep.subr.bf16.mxu0 0
        %1706 = vmatpush1.bf16.xpose.msra.mxu0 0
        %1707 = vmatprep.subr.bf16.mxu0 0
        %1708 = vmatpush1.bf16.xpose.msra.mxu0 0
        %1709 = vmatprep.subr.bf16.mxu0 0
        %1710 = vmatpush1.bf16.xpose.msra.mxu0 0
        %1711 = vmatprep.subr.bf16.mxu0 0
        %1712 = vmatpush1.bf16.xpose.msra.mxu0 0
        %1713 = vmatprep.subr.bf16.mxu0 0
        %1714 = vmatpush1.bf16.xpose.msra.mxu0 0
        %1715 = vmatprep.subr.bf16.mxu0 0
        %1716 = vmatpush1.bf16.xpose.msra.mxu0 0
        %1717 = vmatprep.subr.bf16.mxu0 0
        %1718 = vmatpush1.bf16.xpose.msra.mxu0 0
        %1719 = vmatprep.subr.bf16.mxu0 0
        %1720 = vmatpush1.bf16.xpose.msra.mxu0 0
        %1721 = vmatprep.subr.bf16.mxu0 0
        %1722 = vmatpush1.bf16.xpose.msra.mxu0 0
        %1723 = vmatprep.subr.bf16.mxu0 0
        %1724 = vmatpush1.bf16.xpose.msra.mxu0 0
        %1725 = vmatprep.subr.bf16.mxu0 0
        %1726 = vmatpush1.bf16.xpose.msra.mxu0 0
        %1727 = vmatprep.subr.bf16.mxu0 0
        %1728 = vmatpush1.bf16.xpose.msra.mxu0 0
        %1729 = vmatprep.subr.bf16.mxu0 0
        %1730 = vmatpush1.bf16.xpose.msra.mxu0 0
        %1731 = vmatprep.mubr.bf16.mxu0 0
        %1732 = vmatmul.mubr.bf16.gmra.mrb[0].mxu0 %v1694
        %v1733 = vpop.f32.mrb[0].mxu0
        %v1734 = vadd.f32 0.0, %v1733
        %v1735 = vpop.f32.mrb[0].mxu0
        %v1736 = vpop.f32.mrb[0].mxu0
        %v1737 = vpop.f32.mrb[0].mxu0
        %1738 = vdwg.mxu0
        %v1739 = vsel %vm1505, %v1734, -inf
        %1740 = vmax.xlane.f32.xlu0 %v1739
        %v1741 = vpop.xlane.xlu0 %1740
        %v1742 = vsub.f32 %v1734, %v1741
        %v1743 = vmul.f32 %v1742, 1.442695
        %v1744 = vpow.pop %v1743
        %v1745 = vsel %vm1505, %v1744, 0.0
        %1746 = vadd.xlane.f32.xlu0 %v1745
        %v1747 = vpop.xlane.xlu0 %1746
        %v1748 = vrcp.pop %v1747
        %v1749 = vmul.f32 %v1744, %v1748
        %v1750 = vpack.c.bf16 %v1749, %v1749
        %1751 = vrot.lane.b32.xlu0 %v1454, 48
        %v1752 = vpop.permute.xlu0 %1751
        %v1754 = vsel %vm1520, %v1750, 0
        %v1757 = vand.u32 %v1752, %v1527
        %1759 = vmatprep.subr.bf16.mxu0 0
        %1760 = vmatpush1.bf16.msra.mxu0 %v1757
        %1761 = vmatprep.subr.bf16.mxu0 0
        %1762 = vmatpush1.bf16.msra.mxu0 0
        %1763 = vmatprep.subr.bf16.mxu0 0
        %1764 = vmatpush1.bf16.msra.mxu0 0
        %1765 = vmatprep.subr.bf16.mxu0 0
        %1766 = vmatpush1.bf16.msra.mxu0 0
        %1767 = vmatprep.subr.bf16.mxu0 0
        %1768 = vmatpush1.bf16.msra.mxu0 0
        %1769 = vmatprep.subr.bf16.mxu0 0
        %1770 = vmatpush1.bf16.msra.mxu0 0
        %1771 = vmatprep.subr.bf16.mxu0 0
        %1772 = vmatpush1.bf16.msra.mxu0 0
        %1773 = vmatprep.subr.bf16.mxu0 0
        %1774 = vmatpush1.bf16.msra.mxu0 0
        %1775 = vmatprep.subr.bf16.mxu0 0
        %1776 = vmatpush1.bf16.msra.mxu0 0
        %1777 = vmatprep.subr.bf16.mxu0 0
        %1778 = vmatpush1.bf16.msra.mxu0 0
        %1779 = vmatprep.subr.bf16.mxu0 0
        %1780 = vmatpush1.bf16.msra.mxu0 0
        %1781 = vmatprep.subr.bf16.mxu0 0
        %1782 = vmatpush1.bf16.msra.mxu0 0
        %1783 = vmatprep.subr.bf16.mxu0 0
        %1784 = vmatpush1.bf16.msra.mxu0 0
        %1785 = vmatprep.subr.bf16.mxu0 0
        %1786 = vmatpush1.bf16.msra.mxu0 0
        %1787 = vmatprep.subr.bf16.mxu0 0
        %1788 = vmatpush1.bf16.msra.mxu0 0
        %1789 = vmatprep.subr.bf16.mxu0 0
        %1790 = vmatpush1.bf16.msra.mxu0 0
        %1791 = vmatprep.mubr.bf16.mxu0 0
        %1792 = vmatmul.mubr.bf16.gmra.mrb[0].mxu0 %v1754
        %v1793 = vpop.f32.mrb[0].mxu0
        %v1794 = vadd.f32 0.0, %v1793
        %v1795 = vpop.f32.mrb[0].mxu0
        %v1796 = vpop.f32.mrb[0].mxu0
        %v1797 = vpop.f32.mrb[0].mxu0
        %1798 = vdwg.mxu0
        %1800 = vrot.lane.b32.xlu0 %v1794, 16
        %v1801 = vpop.permute.xlu0 %1800
        %vm1803 = vcmask 192640
        %1804 = vst.msk [vmem:[#allocation2] sm:$0x1f] %vm1803, %v1801
        %1805 = vrot.lane.b32.xlu0 %v1454, 104
        %v1806 = vpop.permute.xlu0 %1805
        %1807 = vrot.lane.b32.xlu0 %v1454, 72
        %v1808 = vpop.permute.xlu0 %1807
        %v1810 = vsel %vm1458, %v1806, 0
        %v1813 = vsel %vm1458, %v1808, 0
        %1815 = vmatprep.subr.bf16.mxu0 0
        %1816 = vmatpush1.bf16.xpose.msra.mxu0 %v1813
        %1817 = vmatprep.subr.bf16.mxu0 0
        %1818 = vmatpush1.bf16.xpose.msra.mxu0 0
        %1819 = vmatprep.subr.bf16.mxu0 0
        %1820 = vmatpush1.bf16.xpose.msra.mxu0 0
        %1821 = vmatprep.subr.bf16.mxu0 0
        %1822 = vmatpush1.bf16.xpose.msra.mxu0 0
        %1823 = vmatprep.subr.bf16.mxu0 0
        %1824 = vmatpush1.bf16.xpose.msra.mxu0 0
        %1825 = vmatprep.subr.bf16.mxu0 0
        %1826 = vmatpush1.bf16.xpose.msra.mxu0 0
        %1827 = vmatprep.subr.bf16.mxu0 0
        %1828 = vmatpush1.bf16.xpose.msra.mxu0 0
        %1829 = vmatprep.subr.bf16.mxu0 0
        %1830 = vmatpush1.bf16.xpose.msra.mxu0 0
        %1831 = vmatprep.subr.bf16.mxu0 0
        %1832 = vmatpush1.bf16.xpose.msra.mxu0 0
        %1833 = vmatprep.subr.bf16.mxu0 0
        %1834 = vmatpush1.bf16.xpose.msra.mxu0 0
        %1835 = vmatprep.subr.bf16.mxu0 0
        %1836 = vmatpush1.bf16.xpose.msra.mxu0 0
        %1837 = vmatprep.subr.bf16.mxu0 0
        %1838 = vmatpush1.bf16.xpose.msra.mxu0 0
        %1839 = vmatprep.subr.bf16.mxu0 0
        %1840 = vmatpush1.bf16.xpose.msra.mxu0 0
        %1841 = vmatprep.subr.bf16.mxu0 0
        %1842 = vmatpush1.bf16.xpose.msra.mxu0 0
        %1843 = vmatprep.subr.bf16.mxu0 0
        %1844 = vmatpush1.bf16.xpose.msra.mxu0 0
        %1845 = vmatprep.subr.bf16.mxu0 0
        %1846 = vmatpush1.bf16.xpose.msra.mxu0 0
        %1847 = vmatprep.mubr.bf16.mxu0 0
        %1848 = vmatmul.mubr.bf16.gmra.mrb[0].mxu0 %v1810
        %v1849 = vpop.f32.mrb[0].mxu0
        %v1850 = vadd.f32 0.0, %v1849
        %v1851 = vpop.f32.mrb[0].mxu0
        %v1852 = vpop.f32.mrb[0].mxu0
        %v1853 = vpop.f32.mrb[0].mxu0
        %1854 = vdwg.mxu0
        %v1855 = vsel %vm1505, %v1850, -inf
        %1856 = vmax.xlane.f32.xlu0 %v1855
        %v1857 = vpop.xlane.xlu0 %1856
        %v1858 = vsub.f32 %v1850, %v1857
        %v1859 = vmul.f32 %v1858, 1.442695
        %v1860 = vpow.pop %v1859
        %v1861 = vsel %vm1505, %v1860, 0.0
        %1862 = vadd.xlane.f32.xlu0 %v1861
        %v1863 = vpop.xlane.xlu0 %1862
        %v1864 = vrcp.pop %v1863
        %v1865 = vmul.f32 %v1860, %v1864
        %v1866 = vpack.c.bf16 %v1865, %v1865
        %1867 = vrot.lane.b32.xlu0 %v1454, 40
        %v1868 = vpop.permute.xlu0 %1867
        %v1870 = vsel %vm1520, %v1866, 0
        %v1873 = vand.u32 %v1868, %v1527
        %1875 = vmatprep.subr.bf16.mxu0 0
        %1876 = vmatpush1.bf16.msra.mxu0 %v1873
        %1877 = vmatprep.subr.bf16.mxu0 0
        %1878 = vmatpush1.bf16.msra.mxu0 0
        %1879 = vmatprep.subr.bf16.mxu0 0
        %1880 = vmatpush1.bf16.msra.mxu0 0
        %1881 = vmatprep.subr.bf16.mxu0 0
        %1882 = vmatpush1.bf16.msra.mxu0 0
        %1883 = vmatprep.subr.bf16.mxu0 0
        %1884 = vmatpush1.bf16.msra.mxu0 0
        %1885 = vmatprep.subr.bf16.mxu0 0
        %1886 = vmatpush1.bf16.msra.mxu0 0
        %1887 = vmatprep.subr.bf16.mxu0 0
        %1888 = vmatpush1.bf16.msra.mxu0 0
        %1889 = vmatprep.subr.bf16.mxu0 0
        %1890 = vmatpush1.bf16.msra.mxu0 0
        %1891 = vmatprep.subr.bf16.mxu0 0
        %1892 = vmatpush1.bf16.msra.mxu0 0
        %1893 = vmatprep.subr.bf16.mxu0 0
        %1894 = vmatpush1.bf16.msra.mxu0 0
        %1895 = vmatprep.subr.bf16.mxu0 0
        %1896 = vmatpush1.bf16.msra.mxu0 0
        %1897 = vmatprep.subr.bf16.mxu0 0
        %1898 = vmatpush1.bf16.msra.mxu0 0
        %1899 = vmatprep.subr.bf16.mxu0 0
        %1900 = vmatpush1.bf16.msra.mxu0 0
        %1901 = vmatprep.subr.bf16.mxu0 0
        %1902 = vmatpush1.bf16.msra.mxu0 0
        %1903 = vmatprep.subr.bf16.mxu0 0
        %1904 = vmatpush1.bf16.msra.mxu0 0
        %1905 = vmatprep.subr.bf16.mxu0 0
        %1906 = vmatpush1.bf16.msra.mxu0 0
        %1907 = vmatprep.mubr.bf16.mxu0 0
        %1908 = vmatmul.mubr.bf16.gmra.mrb[0].mxu0 %v1870
        %v1909 = vpop.f32.mrb[0].mxu0
        %v1910 = vadd.f32 0.0, %v1909
        %v1911 = vpop.f32.mrb[0].mxu0
        %v1912 = vpop.f32.mrb[0].mxu0
        %v1913 = vpop.f32.mrb[0].mxu0
        %1914 = vdwg.mxu0
        %1916 = vrot.lane.b32.xlu0 %v1910, 24
        %v1917 = vpop.permute.xlu0 %1916
        %vm1919 = vcmask 258240
        %1920 = vst.msk [vmem:[#allocation2] sm:$0x1f] %vm1919, %v1917
        %v1921 = vpack.c.bf16 %v1451, %v1448
        %v1923 = vshrl.u32 %v1921, 16
        %v1925 = vrot.slane %v1923, 2
        %v1926 = vshll.u32 %v1921, 16
        %v1928 = vrot.slane %v1926, 3
        %v1929 = vor.u32 %v1925, %v1928
        %1930 = vrot.lane.b32.xlu0 %v1929, 96
        %v1931 = vpop.permute.xlu0 %1930
        %v1933 = vsel %vm1458, %v1929, 0
        %v1936 = vsel %vm1458, %v1931, 0
        %1938 = vmatprep.subr.bf16.mxu0 0
        %1939 = vmatpush1.bf16.xpose.msra.mxu0 %v1936
        %1940 = vmatprep.subr.bf16.mxu0 0
        %1941 = vmatpush1.bf16.xpose.msra.mxu0 0
        %1942 = vmatprep.subr.bf16.mxu0 0
        %1943 = vmatpush1.bf16.xpose.msra.mxu0 0
        %1944 = vmatprep.subr.bf16.mxu0 0
        %1945 = vmatpush1.bf16.xpose.msra.mxu0 0
        %1946 = vmatprep.subr.bf16.mxu0 0
        %1947 = vmatpush1.bf16.xpose.msra.mxu0 0
        %1948 = vmatprep.subr.bf16.mxu0 0
        %1949 = vmatpush1.bf16.xpose.msra.mxu0 0
        %1950 = vmatprep.subr.bf16.mxu0 0
        %1951 = vmatpush1.bf16.xpose.msra.mxu0 0
        %1952 = vmatprep.subr.bf16.mxu0 0
        %1953 = vmatpush1.bf16.xpose.msra.mxu0 0
        %1954 = vmatprep.subr.bf16.mxu0 0
        %1955 = vmatpush1.bf16.xpose.msra.mxu0 0
        %1956 = vmatprep.subr.bf16.mxu0 0
        %1957 = vmatpush1.bf16.xpose.msra.mxu0 0
        %1958 = vmatprep.subr.bf16.mxu0 0
        %1959 = vmatpush1.bf16.xpose.msra.mxu0 0
        %1960 = vmatprep.subr.bf16.mxu0 0
        %1961 = vmatpush1.bf16.xpose.msra.mxu0 0
        %1962 = vmatprep.subr.bf16.mxu0 0
        %1963 = vmatpush1.bf16.xpose.msra.mxu0 0
        %1964 = vmatprep.subr.bf16.mxu0 0
        %1965 = vmatpush1.bf16.xpose.msra.mxu0 0
        %1966 = vmatprep.subr.bf16.mxu0 0
        %1967 = vmatpush1.bf16.xpose.msra.mxu0 0
        %1968 = vmatprep.subr.bf16.mxu0 0
        %1969 = vmatpush1.bf16.xpose.msra.mxu0 0
        %1970 = vmatprep.mubr.bf16.mxu0 0
        %1971 = vmatmul.mubr.bf16.gmra.mrb[0].mxu0 %v1933
        %v1972 = vpop.f32.mrb[0].mxu0
        %v1973 = vadd.f32 0.0, %v1972
        %v1974 = vpop.f32.mrb[0].mxu0
        %v1975 = vpop.f32.mrb[0].mxu0
        %v1976 = vpop.f32.mrb[0].mxu0
        %1977 = vdwg.mxu0
        %v1978 = vsel %vm1505, %v1973, -inf
        %1979 = vmax.xlane.f32.xlu0 %v1978
        %v1980 = vpop.xlane.xlu0 %1979
        %v1981 = vsub.f32 %v1973, %v1980
        %v1982 = vmul.f32 %v1981, 1.442695
        %v1983 = vpow.pop %v1982
        %v1984 = vsel %vm1505, %v1983, 0.0
        %1985 = vadd.xlane.f32.xlu0 %v1984
        %v1986 = vpop.xlane.xlu0 %1985
        %v1987 = vrcp.pop %v1986
        %v1988 = vmul.f32 %v1983, %v1987
        %v1989 = vpack.c.bf16 %v1988, %v1988
        %1990 = vrot.lane.b32.xlu0 %v1929, 64
        %v1991 = vpop.permute.xlu0 %1990
        %v1993 = vsel %vm1520, %v1989, 0
        %v1996 = vand.u32 %v1991, %v1527
        %1998 = vmatprep.subr.bf16.mxu0 0
        %1999 = vmatpush1.bf16.msra.mxu0 %v1996
        %2000 = vmatprep.subr.bf16.mxu0 0
        %2001 = vmatpush1.bf16.msra.mxu0 0
        %2002 = vmatprep.subr.bf16.mxu0 0
        %2003 = vmatpush1.bf16.msra.mxu0 0
        %2004 = vmatprep.subr.bf16.mxu0 0
        %2005 = vmatpush1.bf16.msra.mxu0 0
        %2006 = vmatprep.subr.bf16.mxu0 0
        %2007 = vmatpush1.bf16.msra.mxu0 0
        %2008 = vmatprep.subr.bf16.mxu0 0
        %2009 = vmatpush1.bf16.msra.mxu0 0
        %2010 = vmatprep.subr.bf16.mxu0 0
        %2011 = vmatpush1.bf16.msra.mxu0 0
        %2012 = vmatprep.subr.bf16.mxu0 0
        %2013 = vmatpush1.bf16.msra.mxu0 0
        %2014 = vmatprep.subr.bf16.mxu0 0
        %2015 = vmatpush1.bf16.msra.mxu0 0
        %2016 = vmatprep.subr.bf16.mxu0 0
        %2017 = vmatpush1.bf16.msra.mxu0 0
        %2018 = vmatprep.subr.bf16.mxu0 0
        %2019 = vmatpush1.bf16.msra.mxu0 0
        %2020 = vmatprep.subr.bf16.mxu0 0
        %2021 = vmatpush1.bf16.msra.mxu0 0
        %2022 = vmatprep.subr.bf16.mxu0 0
        %2023 = vmatpush1.bf16.msra.mxu0 0
        %2024 = vmatprep.subr.bf16.mxu0 0
        %2025 = vmatpush1.bf16.msra.mxu0 0
        %2026 = vmatprep.subr.bf16.mxu0 0
        %2027 = vmatpush1.bf16.msra.mxu0 0
        %2028 = vmatprep.subr.bf16.mxu0 0
        %2029 = vmatpush1.bf16.msra.mxu0 0
        %2030 = vmatprep.mubr.bf16.mxu0 0
        %2031 = vmatmul.mubr.bf16.gmra.mrb[0].mxu0 %v1993
        %v2032 = vpop.f32.mrb[0].mxu0
        %v2033 = vadd.f32 0.0, %v2032
        %v2034 = vpop.f32.mrb[0].mxu0
        %v2035 = vpop.f32.mrb[0].mxu0
        %v2036 = vpop.f32.mrb[0].mxu0
        %2037 = vdwg.mxu0
        %2038 = vst.msk [vmem:[#allocation2 + $0x5] sm:$0x1f] %vm1571, %v2033
        %2039 = vrot.lane.b32.xlu0 %v1929, 120
        %v2040 = vpop.permute.xlu0 %2039
        %2041 = vrot.lane.b32.xlu0 %v1929, 88
        %v2042 = vpop.permute.xlu0 %2041
        %v2044 = vsel %vm1458, %v2040, 0
        %v2047 = vsel %vm1458, %v2042, 0
        %2049 = vmatprep.subr.bf16.mxu0 0
        %2050 = vmatpush1.bf16.xpose.msra.mxu0 %v2047
        %2051 = vmatprep.subr.bf16.mxu0 0
        %2052 = vmatpush1.bf16.xpose.msra.mxu0 0
        %2053 = vmatprep.subr.bf16.mxu0 0
        %2054 = vmatpush1.bf16.xpose.msra.mxu0 0
        %2055 = vmatprep.subr.bf16.mxu0 0
        %2056 = vmatpush1.bf16.xpose.msra.mxu0 0
        %2057 = vmatprep.subr.bf16.mxu0 0
        %2058 = vmatpush1.bf16.xpose.msra.mxu0 0
        %2059 = vmatprep.subr.bf16.mxu0 0
        %2060 = vmatpush1.bf16.xpose.msra.mxu0 0
        %2061 = vmatprep.subr.bf16.mxu0 0
        %2062 = vmatpush1.bf16.xpose.msra.mxu0 0
        %2063 = vmatprep.subr.bf16.mxu0 0
        %2064 = vmatpush1.bf16.xpose.msra.mxu0 0
        %2065 = vmatprep.subr.bf16.mxu0 0
        %2066 = vmatpush1.bf16.xpose.msra.mxu0 0
        %2067 = vmatprep.subr.bf16.mxu0 0
        %2068 = vmatpush1.bf16.xpose.msra.mxu0 0
        %2069 = vmatprep.subr.bf16.mxu0 0
        %2070 = vmatpush1.bf16.xpose.msra.mxu0 0
        %2071 = vmatprep.subr.bf16.mxu0 0
        %2072 = vmatpush1.bf16.xpose.msra.mxu0 0
        %2073 = vmatprep.subr.bf16.mxu0 0
        %2074 = vmatpush1.bf16.xpose.msra.mxu0 0
        %2075 = vmatprep.subr.bf16.mxu0 0
        %2076 = vmatpush1.bf16.xpose.msra.mxu0 0
        %2077 = vmatprep.subr.bf16.mxu0 0
        %2078 = vmatpush1.bf16.xpose.msra.mxu0 0
        %2079 = vmatprep.subr.bf16.mxu0 0
        %2080 = vmatpush1.bf16.xpose.msra.mxu0 0
        %2081 = vmatprep.mubr.bf16.mxu0 0
        %2082 = vmatmul.mubr.bf16.gmra.mrb[0].mxu0 %v2044
        %v2083 = vpop.f32.mrb[0].mxu0
        %v2084 = vadd.f32 0.0, %v2083
        %v2085 = vpop.f32.mrb[0].mxu0
        %v2086 = vpop.f32.mrb[0].mxu0
        %v2087 = vpop.f32.mrb[0].mxu0
        %2088 = vdwg.mxu0
        %v2089 = vsel %vm1505, %v2084, -inf
        %2090 = vmax.xlane.f32.xlu0 %v2089
        %v2091 = vpop.xlane.xlu0 %2090
        %v2092 = vsub.f32 %v2084, %v2091
        %v2093 = vmul.f32 %v2092, 1.442695
        %v2094 = vpow.pop %v2093
        %v2095 = vsel %vm1505, %v2094, 0.0
        %2096 = vadd.xlane.f32.xlu0 %v2095
        %v2097 = vpop.xlane.xlu0 %2096
        %v2098 = vrcp.pop %v2097
        %v2099 = vmul.f32 %v2094, %v2098
        %v2100 = vpack.c.bf16 %v2099, %v2099
        %2101 = vrot.lane.b32.xlu0 %v1929, 56
        %v2102 = vpop.permute.xlu0 %2101
        %v2104 = vsel %vm1520, %v2100, 0
        %v2107 = vand.u32 %v2102, %v1527
        %2109 = vmatprep.subr.bf16.mxu0 0
        %2110 = vmatpush1.bf16.msra.mxu0 %v2107
        %2111 = vmatprep.subr.bf16.mxu0 0
        %2112 = vmatpush1.bf16.msra.mxu0 0
        %2113 = vmatprep.subr.bf16.mxu0 0
        %2114 = vmatpush1.bf16.msra.mxu0 0
        %2115 = vmatprep.subr.bf16.mxu0 0
        %2116 = vmatpush1.bf16.msra.mxu0 0
        %2117 = vmatprep.subr.bf16.mxu0 0
        %2118 = vmatpush1.bf16.msra.mxu0 0
        %2119 = vmatprep.subr.bf16.mxu0 0
        %2120 = vmatpush1.bf16.msra.mxu0 0
        %2121 = vmatprep.subr.bf16.mxu0 0
        %2122 = vmatpush1.bf16.msra.mxu0 0
        %2123 = vmatprep.subr.bf16.mxu0 0
        %2124 = vmatpush1.bf16.msra.mxu0 0
        %2125 = vmatprep.subr.bf16.mxu0 0
        %2126 = vmatpush1.bf16.msra.mxu0 0
        %2127 = vmatprep.subr.bf16.mxu0 0
        %2128 = vmatpush1.bf16.msra.mxu0 0
        %2129 = vmatprep.subr.bf16.mxu0 0
        %2130 = vmatpush1.bf16.msra.mxu0 0
        %2131 = vmatprep.subr.bf16.mxu0 0
        %2132 = vmatpush1.bf16.msra.mxu0 0
        %2133 = vmatprep.subr.bf16.mxu0 0
        %2134 = vmatpush1.bf16.msra.mxu0 0
        %2135 = vmatprep.subr.bf16.mxu0 0
        %2136 = vmatpush1.bf16.msra.mxu0 0
        %2137 = vmatprep.subr.bf16.mxu0 0
        %2138 = vmatpush1.bf16.msra.mxu0 0
        %2139 = vmatprep.subr.bf16.mxu0 0
        %2140 = vmatpush1.bf16.msra.mxu0 0
        %2141 = vmatprep.mubr.bf16.mxu0 0
        %2142 = vmatmul.mubr.bf16.gmra.mrb[0].mxu0 %v2104
        %v2143 = vpop.f32.mrb[0].mxu0
        %v2144 = vadd.f32 0.0, %v2143
        %v2145 = vpop.f32.mrb[0].mxu0
        %v2146 = vpop.f32.mrb[0].mxu0
        %v2147 = vpop.f32.mrb[0].mxu0
        %2148 = vdwg.mxu0
        %2150 = vrot.lane.b32.xlu0 %v2144, 8
        %v2151 = vpop.permute.xlu0 %2150
        %2153 = vst.msk [vmem:[#allocation2 + $0x5] sm:$0x1f] %vm1687, %v2151
        %2154 = vrot.lane.b32.xlu0 %v1929, 112
        %v2155 = vpop.permute.xlu0 %2154
        %2156 = vrot.lane.b32.xlu0 %v1929, 80
        %v2157 = vpop.permute.xlu0 %2156
        %v2159 = vsel %vm1458, %v2155, 0
        %v2162 = vsel %vm1458, %v2157, 0
        %2164 = vmatprep.subr.bf16.mxu0 0
        %2165 = vmatpush1.bf16.xpose.msra.mxu0 %v2162
        %2166 = vmatprep.subr.bf16.mxu0 0
        %2167 = vmatpush1.bf16.xpose.msra.mxu0 0
        %2168 = vmatprep.subr.bf16.mxu0 0
        %2169 = vmatpush1.bf16.xpose.msra.mxu0 0
        %2170 = vmatprep.subr.bf16.mxu0 0
        %2171 = vmatpush1.bf16.xpose.msra.mxu0 0
        %2172 = vmatprep.subr.bf16.mxu0 0
        %2173 = vmatpush1.bf16.xpose.msra.mxu0 0
        %2174 = vmatprep.subr.bf16.mxu0 0
        %2175 = vmatpush1.bf16.xpose.msra.mxu0 0
        %2176 = vmatprep.subr.bf16.mxu0 0
        %2177 = vmatpush1.bf16.xpose.msra.mxu0 0
        %2178 = vmatprep.subr.bf16.mxu0 0
        %2179 = vmatpush1.bf16.xpose.msra.mxu0 0
        %2180 = vmatprep.subr.bf16.mxu0 0
        %2181 = vmatpush1.bf16.xpose.msra.mxu0 0
        %2182 = vmatprep.subr.bf16.mxu0 0
        %2183 = vmatpush1.bf16.xpose.msra.mxu0 0
        %2184 = vmatprep.subr.bf16.mxu0 0
        %2185 = vmatpush1.bf16.xpose.msra.mxu0 0
        %2186 = vmatprep.subr.bf16.mxu0 0
        %2187 = vmatpush1.bf16.xpose.msra.mxu0 0
        %2188 = vmatprep.subr.bf16.mxu0 0
        %2189 = vmatpush1.bf16.xpose.msra.mxu0 0
        %2190 = vmatprep.subr.bf16.mxu0 0
        %2191 = vmatpush1.bf16.xpose.msra.mxu0 0
        %2192 = vmatprep.subr.bf16.mxu0 0
        %2193 = vmatpush1.bf16.xpose.msra.mxu0 0
        %2194 = vmatprep.subr.bf16.mxu0 0
        %2195 = vmatpush1.bf16.xpose.msra.mxu0 0
        %2196 = vmatprep.mubr.bf16.mxu0 0
        %2197 = vmatmul.mubr.bf16.gmra.mrb[0].mxu0 %v2159
        %v2198 = vpop.f32.mrb[0].mxu0
        %v2199 = vadd.f32 0.0, %v2198
        %v2200 = vpop.f32.mrb[0].mxu0
        %v2201 = vpop.f32.mrb[0].mxu0
        %v2202 = vpop.f32.mrb[0].mxu0
        %2203 = vdwg.mxu0
        %v2204 = vsel %vm1505, %v2199, -inf
        %2205 = vmax.xlane.f32.xlu0 %v2204
        %v2206 = vpop.xlane.xlu0 %2205
        %v2207 = vsub.f32 %v2199, %v2206
        %v2208 = vmul.f32 %v2207, 1.442695
        %v2209 = vpow.pop %v2208
        %v2210 = vsel %vm1505, %v2209, 0.0
        %2211 = vadd.xlane.f32.xlu0 %v2210
        %v2212 = vpop.xlane.xlu0 %2211
        %v2213 = vrcp.pop %v2212
        %v2214 = vmul.f32 %v2209, %v2213
        %v2215 = vpack.c.bf16 %v2214, %v2214
        %2216 = vrot.lane.b32.xlu0 %v1929, 48
        %v2217 = vpop.permute.xlu0 %2216
        %v2219 = vsel %vm1520, %v2215, 0
        %v2222 = vand.u32 %v2217, %v1527
        %2224 = vmatprep.subr.bf16.mxu0 0
        %2225 = vmatpush1.bf16.msra.mxu0 %v2222
        %2226 = vmatprep.subr.bf16.mxu0 0
        %2227 = vmatpush1.bf16.msra.mxu0 0
        %2228 = vmatprep.subr.bf16.mxu0 0
        %2229 = vmatpush1.bf16.msra.mxu0 0
        %2230 = vmatprep.subr.bf16.mxu0 0
        %2231 = vmatpush1.bf16.msra.mxu0 0
        %2232 = vmatprep.subr.bf16.mxu0 0
        %2233 = vmatpush1.bf16.msra.mxu0 0
        %2234 = vmatprep.subr.bf16.mxu0 0
        %2235 = vmatpush1.bf16.msra.mxu0 0
        %2236 = vmatprep.subr.bf16.mxu0 0
        %2237 = vmatpush1.bf16.msra.mxu0 0
        %2238 = vmatprep.subr.bf16.mxu0 0
        %2239 = vmatpush1.bf16.msra.mxu0 0
        %2240 = vmatprep.subr.bf16.mxu0 0
        %2241 = vmatpush1.bf16.msra.mxu0 0
        %2242 = vmatprep.subr.bf16.mxu0 0
        %2243 = vmatpush1.bf16.msra.mxu0 0
        %2244 = vmatprep.subr.bf16.mxu0 0
        %2245 = vmatpush1.bf16.msra.mxu0 0
        %2246 = vmatprep.subr.bf16.mxu0 0
        %2247 = vmatpush1.bf16.msra.mxu0 0
        %2248 = vmatprep.subr.bf16.mxu0 0
        %2249 = vmatpush1.bf16.msra.mxu0 0
        %2250 = vmatprep.subr.bf16.mxu0 0
        %2251 = vmatpush1.bf16.msra.mxu0 0
        %2252 = vmatprep.subr.bf16.mxu0 0
        %2253 = vmatpush1.bf16.msra.mxu0 0
        %2254 = vmatprep.subr.bf16.mxu0 0
        %2255 = vmatpush1.bf16.msra.mxu0 0
        %2256 = vmatprep.mubr.bf16.mxu0 0
        %2257 = vmatmul.mubr.bf16.gmra.mrb[0].mxu0 %v2219
        %v2258 = vpop.f32.mrb[0].mxu0
        %v2259 = vadd.f32 0.0, %v2258
        %v2260 = vpop.f32.mrb[0].mxu0
        %v2261 = vpop.f32.mrb[0].mxu0
        %v2262 = vpop.f32.mrb[0].mxu0
        %2263 = vdwg.mxu0
        %2265 = vrot.lane.b32.xlu0 %v2259, 16
        %v2266 = vpop.permute.xlu0 %2265
        %2268 = vst.msk [vmem:[#allocation2 + $0x5] sm:$0x1f] %vm1803, %v2266
        %2269 = vrot.lane.b32.xlu0 %v1929, 104
        %v2270 = vpop.permute.xlu0 %2269
        %2271 = vrot.lane.b32.xlu0 %v1929, 72
        %v2272 = vpop.permute.xlu0 %2271
        %v2274 = vsel %vm1458, %v2270, 0
        %v2277 = vsel %vm1458, %v2272, 0
        %2279 = vmatprep.subr.bf16.mxu0 0
        %2280 = vmatpush1.bf16.xpose.msra.mxu0 %v2277
        %2281 = vmatprep.subr.bf16.mxu0 0
        %2282 = vmatpush1.bf16.xpose.msra.mxu0 0
        %2283 = vmatprep.subr.bf16.mxu0 0
        %2284 = vmatpush1.bf16.xpose.msra.mxu0 0
        %2285 = vmatprep.subr.bf16.mxu0 0
        %2286 = vmatpush1.bf16.xpose.msra.mxu0 0
        %2287 = vmatprep.subr.bf16.mxu0 0
        %2288 = vmatpush1.bf16.xpose.msra.mxu0 0
        %2289 = vmatprep.subr.bf16.mxu0 0
        %2290 = vmatpush1.bf16.xpose.msra.mxu0 0
        %2291 = vmatprep.subr.bf16.mxu0 0
        %2292 = vmatpush1.bf16.xpose.msra.mxu0 0
        %2293 = vmatprep.subr.bf16.mxu0 0
        %2294 = vmatpush1.bf16.xpose.msra.mxu0 0
        %2295 = vmatprep.subr.bf16.mxu0 0
        %2296 = vmatpush1.bf16.xpose.msra.mxu0 0
        %2297 = vmatprep.subr.bf16.mxu0 0
        %2298 = vmatpush1.bf16.xpose.msra.mxu0 0
        %2299 = vmatprep.subr.bf16.mxu0 0
        %2300 = vmatpush1.bf16.xpose.msra.mxu0 0
        %2301 = vmatprep.subr.bf16.mxu0 0
        %2302 = vmatpush1.bf16.xpose.msra.mxu0 0
        %2303 = vmatprep.subr.bf16.mxu0 0
        %2304 = vmatpush1.bf16.xpose.msra.mxu0 0
        %2305 = vmatprep.subr.bf16.mxu0 0
        %2306 = vmatpush1.bf16.xpose.msra.mxu0 0
        %2307 = vmatprep.subr.bf16.mxu0 0
        %2308 = vmatpush1.bf16.xpose.msra.mxu0 0
        %2309 = vmatprep.subr.bf16.mxu0 0
        %2310 = vmatpush1.bf16.xpose.msra.mxu0 0
        %2311 = vmatprep.mubr.bf16.mxu0 0
        %2312 = vmatmul.mubr.bf16.gmra.mrb[0].mxu0 %v2274
        %v2313 = vpop.f32.mrb[0].mxu0
        %v2314 = vadd.f32 0.0, %v2313
        %v2315 = vpop.f32.mrb[0].mxu0
        %v2316 = vpop.f32.mrb[0].mxu0
        %v2317 = vpop.f32.mrb[0].mxu0
        %2318 = vdwg.mxu0
        %v2319 = vsel %vm1505, %v2314, -inf
        %2320 = vmax.xlane.f32.xlu0 %v2319
        %v2321 = vpop.xlane.xlu0 %2320
        %v2322 = vsub.f32 %v2314, %v2321
        %v2323 = vmul.f32 %v2322, 1.442695
        %v2324 = vpow.pop %v2323
        %v2325 = vsel %vm1505, %v2324, 0.0
        %2326 = vadd.xlane.f32.xlu0 %v2325
        %v2327 = vpop.xlane.xlu0 %2326
        %v2328 = vrcp.pop %v2327
        %v2329 = vmul.f32 %v2324, %v2328
        %v2330 = vpack.c.bf16 %v2329, %v2329
        %2331 = vrot.lane.b32.xlu0 %v1929, 40
        %v2332 = vpop.permute.xlu0 %2331
        %v2334 = vsel %vm1520, %v2330, 0
        %v2337 = vand.u32 %v2332, %v1527
        %2339 = vmatprep.subr.bf16.mxu0 0
        %2340 = vmatpush1.bf16.msra.mxu0 %v2337
        %2341 = vmatprep.subr.bf16.mxu0 0
        %2342 = vmatpush1.bf16.msra.mxu0 0
        %2343 = vmatprep.subr.bf16.mxu0 0
        %2344 = vmatpush1.bf16.msra.mxu0 0
        %2345 = vmatprep.subr.bf16.mxu0 0
        %2346 = vmatpush1.bf16.msra.mxu0 0
        %2347 = vmatprep.subr.bf16.mxu0 0
        %2348 = vmatpush1.bf16.msra.mxu0 0
        %2349 = vmatprep.subr.bf16.mxu0 0
        %2350 = vmatpush1.bf16.msra.mxu0 0
        %2351 = vmatprep.subr.bf16.mxu0 0
        %2352 = vmatpush1.bf16.msra.mxu0 0
        %2353 = vmatprep.subr.bf16.mxu0 0
        %2354 = vmatpush1.bf16.msra.mxu0 0
        %2355 = vmatprep.subr.bf16.mxu0 0
        %2356 = vmatpush1.bf16.msra.mxu0 0
        %2357 = vmatprep.subr.bf16.mxu0 0
        %2358 = vmatpush1.bf16.msra.mxu0 0
        %2359 = vmatprep.subr.bf16.mxu0 0
        %2360 = vmatpush1.bf16.msra.mxu0 0
        %2361 = vmatprep.subr.bf16.mxu0 0
        %2362 = vmatpush1.bf16.msra.mxu0 0
        %2363 = vmatprep.subr.bf16.mxu0 0
        %2364 = vmatpush1.bf16.msra.mxu0 0
        %2365 = vmatprep.subr.bf16.mxu0 0
        %2366 = vmatpush1.bf16.msra.mxu0 0
        %2367 = vmatprep.subr.bf16.mxu0 0
        %2368 = vmatpush1.bf16.msra.mxu0 0
        %2369 = vmatprep.subr.bf16.mxu0 0
        %2370 = vmatpush1.bf16.msra.mxu0 0
        %2371 = vmatprep.mubr.bf16.mxu0 0
        %2372 = vmatmul.mubr.bf16.gmra.mrb[0].mxu0 %v2334
        %v2373 = vpop.f32.mrb[0].mxu0
        %v2374 = vadd.f32 0.0, %v2373
        %v2375 = vpop.f32.mrb[0].mxu0
        %v2376 = vpop.f32.mrb[0].mxu0
        %v2377 = vpop.f32.mrb[0].mxu0
        %2378 = vdwg.mxu0
        %2380 = vrot.lane.b32.xlu0 %v2374, 24
        %v2381 = vpop.permute.xlu0 %2380
        %2383 = vst.msk [vmem:[#allocation2 + $0x5] sm:$0x1f] %vm1919, %v2381
        %v2384 = vld [vmem:[#allocation2] sm:$0xff]
        %v2385 = vld [vmem:[#allocation2 + $0x8] sm:$0x3]
        %v2386 = vpack.c.bf16 %v2385, %v2384
        %v2387 = vld [vmem:[%s941] sm:$0xf]
        %v2388 = vld [vmem:[%s941 + $0x4] sm:$0xf]
        %v2389 = vld [vmem:[%s941 + $0x8] sm:$0xf]
        %v2390 = vld [vmem:[%s941 + $0xc] sm:$0xf]
        %v2391 = vld [vmem:[%s949] sm:$0x1]
        %v2393 = vlaneseq
        %v2394 = vshrl.u32 %v2393, 7
        %v2395 = vsub.s32 0, %v2394
        %v2396 = vrot.slane %v2391, %v2395
        %v2402 = vunpack.c.l.b16 %v2387
        %v2403 = vunpack.c.l.b16 %v2388
        %v2404 = vunpack.c.l.b16 %v2389
        %v2405 = vunpack.c.l.b16 %v2390
        %v2406 = vpack.c.b16 %v2403, %v2402
        %v2407 = vpack.c.b16 %v2405, %v2404
        %v2411 = vsel %vm1348, %v2386, 0
        %2413 = vmatprep.subr.bf16.mxu0 0
        %2414 = vmatpush1.bf16.msra.mxu0 %v2406
        %2415 = vmatprep.subr.bf16.mxu0 0
        %2416 = vmatpush1.bf16.msra.mxu0 %v2407
        %2417 = vmatprep.subr.bf16.mxu0 0
        %2418 = vmatpush1.bf16.msra.mxu0 0
        %2419 = vmatprep.subr.bf16.mxu0 0
        %2420 = vmatpush1.bf16.msra.mxu0 0
        %2421 = vmatprep.subr.bf16.mxu0 0
        %2422 = vmatpush1.bf16.msra.mxu0 0
        %2423 = vmatprep.subr.bf16.mxu0 0
        %2424 = vmatpush1.bf16.msra.mxu0 0
        %2425 = vmatprep.subr.bf16.mxu0 0
        %2426 = vmatpush1.bf16.msra.mxu0 0
        %2427 = vmatprep.subr.bf16.mxu0 0
        %2428 = vmatpush1.bf16.msra.mxu0 0
        %2429 = vmatprep.subr.bf16.mxu0 0
        %2430 = vmatpush1.bf16.msra.mxu0 0
        %2431 = vmatprep.subr.bf16.mxu0 0
        %2432 = vmatpush1.bf16.msra.mxu0 0
        %2433 = vmatprep.subr.bf16.mxu0 0
        %2434 = vmatpush1.bf16.msra.mxu0 0
        %2435 = vmatprep.subr.bf16.mxu0 0
        %2436 = vmatpush1.bf16.msra.mxu0 0
        %2437 = vmatprep.subr.bf16.mxu0 0
        %2438 = vmatpush1.bf16.msra.mxu0 0
        %2439 = vmatprep.subr.bf16.mxu0 0
        %2440 = vmatpush1.bf16.msra.mxu0 0
        %2441 = vmatprep.subr.bf16.mxu0 0
        %2442 = vmatpush1.bf16.msra.mxu0 0
        %2443 = vmatprep.subr.bf16.mxu0 0
        %2444 = vmatpush1.bf16.msra.mxu0 0
        %2445 = vmatprep.mubr.bf16.mxu0 0
        %2446 = vmatmul.mubr.bf16.gmra.mrb[0].mxu0 %v2411
        %v2447 = vpop.f32.mrb[0].mxu0
        %v2448 = vadd.f32 %v2396, %v2447
        %v2449 = vpop.f32.mrb[0].mxu0
        %v2450 = vpop.f32.mrb[0].mxu0
        %v2451 = vadd.f32 %v2396, %v2450
        %v2452 = vpop.f32.mrb[0].mxu0
        %2453 = vdwg.mxu0
        %v2454 = vadd.f32 %v1344, %v2448
        %v2455 = vadd.f32 %v1345, %v2451
        %v2456 = vld [vmem:[%s957] sm:$0x1]
        %v2457 = vld [vmem:[%s965] sm:$0x1]
        %v2458 = vsel %vm1348, %v2454, 0.0
        %2459 = vadd.xlane.f32.xlu0 %v2458
        %v2460 = vpop.xlane.xlu0 %2459
        %v2461 = vsel %vm1352, %v2455, 0.0
        %2462 = vadd.xlane.f32.xlu0 %v2461
        %v2463 = vpop.xlane.xlu0 %2462
        %v2464 = vmul.f32 %v2460, %v1356
        %v2465 = vmul.f32 %v2463, %v1356
        %v2466 = vsub.f32 %v2454, %v2464
        %v2467 = vsub.f32 %v2455, %v2465
        %v2468 = vmul.f32 %v2466, %v2466
        %v2469 = vmul.f32 %v2467, %v2467
        %v2470 = vsel %vm1348, %v2468, 0.0
        %2471 = vadd.xlane.f32.xlu0 %v2470
        %v2472 = vpop.xlane.xlu0 %2471
        %v2473 = vsel %vm1352, %v2469, 0.0
        %2474 = vadd.xlane.f32.xlu0 %v2473
        %v2475 = vpop.xlane.xlu0 %2474
        %v2476 = vmul.f32 %v2472, %v1356
        %v2477 = vmul.f32 %v2475, %v1356
        %v2478 = vadd.f32 %v2476, 1e-05
        %v2479 = vadd.f32 %v2477, 1e-05
        %v2480 = vrsqrt.pop %v2478
        %v2481 = vrsqrt.pop %v2479
        %v2482 = vmul.f32 %v2466, %v2480
        %v2483 = vmul.f32 %v2467, %v2481
        %v2485 = vlaneseq
        %v2486 = vshrl.u32 %v2485, 7
        %v2487 = vsub.s32 0, %v2486
        %v2488 = vrot.slane %v2456, %v2487
        %v2490 = vmul.f32 %v2482, %v2488
        %v2491 = vmul.f32 %v2483, %v2488
        %v2493 = vlaneseq
        %v2494 = vshrl.u32 %v2493, 7
        %v2495 = vsub.s32 0, %v2494
        %v2496 = vrot.slane %v2457, %v2495
        %v2498 = vadd.f32 %v2490, %v2496
        %v2499 = vadd.f32 %v2491, %v2496
        %v2500 = vpack.c.bf16 %v2499, %v2498
        %v2501 = vld [vmem:[%s974] sm:$0xf]
        %v2502 = vld [vmem:[%s974 + $0x4] sm:$0xf]
        %v2503 = vld [vmem:[%s974 + $0x8] sm:$0xf]
        %v2504 = vld [vmem:[%s974 + $0xc] sm:$0xf]
        %v2505 = vld [vmem:[%s982] sm:$0x1]
        %v2507 = vlaneseq
        %v2508 = vshrl.u32 %v2507, 7
        %v2509 = vsub.s32 0, %v2508
        %v2510 = vrot.slane %v2505, %v2509
        %v2516 = vunpack.c.l.b16 %v2501
        %v2517 = vunpack.c.l.b16 %v2502
        %v2518 = vunpack.c.l.b16 %v2503
        %v2519 = vunpack.c.l.b16 %v2504
        %v2520 = vpack.c.b16 %v2517, %v2516
        %v2521 = vpack.c.b16 %v2519, %v2518
        %v2525 = vsel %vm1348, %v2500, 0
        %2527 = vmatprep.subr.bf16.mxu0 0
        %2528 = vmatpush1.bf16.msra.mxu0 %v2520
        %2529 = vmatprep.subr.bf16.mxu0 0
        %2530 = vmatpush1.bf16.msra.mxu0 %v2521
        %2531 = vmatprep.subr.bf16.mxu0 0
        %2532 = vmatpush1.bf16.msra.mxu0 0
        %2533 = vmatprep.subr.bf16.mxu0 0
        %2534 = vmatpush1.bf16.msra.mxu0 0
        %2535 = vmatprep.subr.bf16.mxu0 0
        %2536 = vmatpush1.bf16.msra.mxu0 0
        %2537 = vmatprep.subr.bf16.mxu0 0
        %2538 = vmatpush1.bf16.msra.mxu0 0
        %2539 = vmatprep.subr.bf16.mxu0 0
        %2540 = vmatpush1.bf16.msra.mxu0 0
        %2541 = vmatprep.subr.bf16.mxu0 0
        %2542 = vmatpush1.bf16.msra.mxu0 0
        %2543 = vmatprep.subr.bf16.mxu0 0
        %2544 = vmatpush1.bf16.msra.mxu0 0
        %2545 = vmatprep.subr.bf16.mxu0 0
        %2546 = vmatpush1.bf16.msra.mxu0 0
        %2547 = vmatprep.subr.bf16.mxu0 0
        %2548 = vmatpush1.bf16.msra.mxu0 0
        %2549 = vmatprep.subr.bf16.mxu0 0
        %2550 = vmatpush1.bf16.msra.mxu0 0
        %2551 = vmatprep.subr.bf16.mxu0 0
        %2552 = vmatpush1.bf16.msra.mxu0 0
        %2553 = vmatprep.subr.bf16.mxu0 0
        %2554 = vmatpush1.bf16.msra.mxu0 0
        %2555 = vmatprep.subr.bf16.mxu0 0
        %2556 = vmatpush1.bf16.msra.mxu0 0
        %2557 = vmatprep.subr.bf16.mxu0 0
        %2558 = vmatpush1.bf16.msra.mxu0 0
        %2559 = vmatprep.mubr.bf16.mxu0 0
        %2560 = vmatmul.mubr.bf16.gmra.mrb[0].mxu0 %v2525
        %v2561 = vpop.f32.mrb[0].mxu0
        %v2562 = vadd.f32 %v2510, %v2561
        %v2563 = vpop.f32.mrb[0].mxu0
        %v2564 = vpop.f32.mrb[0].mxu0
        %v2565 = vadd.f32 %v2510, %v2564
        %v2566 = vpop.f32.mrb[0].mxu0
        %2567 = vdwg.mxu0
        %v2568 = vmul.f32 %v2562, 0.5
        %v2569 = vmul.f32 %v2565, 0.5
        %v2570 = vmul.f32 %v2562, 0.70710677
        %v2571 = vmul.f32 %v2565, 0.70710677
        %vm2572 = vcmp.ge.f32.partialorder %v2570, 0.0
        %vm2573 = vcmp.ge.f32.partialorder %v2571, 0.0
        %v2574 = vsel %vm2572, 1.0, -1.0
        %v2575 = vsel %vm2573, 1.0, -1.0
        %v2576 = vand.u32 2147483647, %v2570
        %v2577 = vand.u32 2147483647, %v2571
        %v2578 = vmul.f32 %v2576, 0.3275911
        %v2579 = vmul.f32 %v2577, 0.3275911
        %v2580 = vadd.f32 %v2578, 1.0
        %v2581 = vadd.f32 %v2579, 1.0
        %v2582 = vrcp.pop %v2580
        %v2583 = vrcp.pop %v2581
        %v2584 = vmul.f32 %v2582, 1.0614054
        %v2585 = vmul.f32 %v2583, 1.0614054
        %v2586 = vadd.f32 %v2584, -1.4531521
        %v2587 = vadd.f32 %v2585, -1.4531521
        %v2588 = vmul.f32 %v2582, %v2586
        %v2589 = vmul.f32 %v2583, %v2587
        %v2590 = vadd.f32 %v2588, 1.4214138
        %v2591 = vadd.f32 %v2589, 1.4214138
        %v2592 = vmul.f32 %v2582, %v2590
        %v2593 = vmul.f32 %v2583, %v2591
        %v2594 = vadd.f32 %v2592, -0.28449672
        %v2595 = vadd.f32 %v2593, -0.28449672
        %v2596 = vmul.f32 %v2582, %v2594
        %v2597 = vmul.f32 %v2583, %v2595
        %v2598 = vadd.f32 %v2596, 0.2548296
        %v2599 = vadd.f32 %v2597, 0.2548296
        %v2600 = vmul.f32 %v2582, %v2598
        %v2601 = vmul.f32 %v2583, %v2599
        %v2602 = vsub.f32 0.0, %v2576
        %v2603 = vsub.f32 0.0, %v2577
        %v2604 = vmul.f32 %v2602, %v2576
        %v2605 = vmul.f32 %v2603, %v2577
        %v2606 = vmul.f32 %v2604, 1.442695
        %v2607 = vpow.pop %v2606
        %v2608 = vmul.f32 %v2605, 1.442695
        %v2609 = vpow.pop %v2608
        %v2610 = vmul.f32 %v2600, %v2607
        %v2611 = vmul.f32 %v2601, %v2609
        %v2612 = vsub.f32 1.0, %v2610
        %v2613 = vsub.f32 1.0, %v2611
        %v2614 = vmul.f32 %v2574, %v2612
        %v2615 = vmul.f32 %v2575, %v2613
        %v2616 = vadd.f32 %v2614, 1.0
        %v2617 = vadd.f32 %v2615, 1.0
        %v2618 = vmul.f32 %v2568, %v2616
        %v2619 = vmul.f32 %v2569, %v2617
        %v2620 = vpack.c.bf16 %v2619, %v2618
        %v2621 = vld [vmem:[%s991] sm:$0xf]
        %v2622 = vld [vmem:[%s991 + $0x4] sm:$0xf]
        %v2623 = vld [vmem:[%s991 + $0x8] sm:$0xf]
        %v2624 = vld [vmem:[%s991 + $0xc] sm:$0xf]
        %v2625 = vld [vmem:[%s991 + $0x10] sm:$0xf]
        %v2626 = vld [vmem:[%s991 + $0x14] sm:$0xf]
        %v2627 = vld [vmem:[%s991 + $0x18] sm:$0xf]
        %v2628 = vld [vmem:[%s991 + $0x1c] sm:$0xf]
        %v2629 = vld [vmem:[%s999] sm:$0x1]
        %v2631 = vlaneseq
        %v2632 = vshrl.u32 %v2631, 7
        %v2633 = vsub.s32 0, %v2632
        %v2634 = vrot.slane %v2629, %v2633
        %v2644 = vunpack.c.l.b16 %v2621
        %v2645 = vunpack.c.l.b16 %v2622
        %v2646 = vunpack.c.l.b16 %v2623
        %v2647 = vunpack.c.l.b16 %v2624
        %v2648 = vunpack.c.l.b16 %v2625
        %v2649 = vunpack.c.l.b16 %v2626
        %v2650 = vunpack.c.l.b16 %v2627
        %v2651 = vunpack.c.l.b16 %v2628
        %v2652 = vpack.c.b16 %v2645, %v2644
        %v2653 = vpack.c.b16 %v2647, %v2646
        %v2654 = vpack.c.b16 %v2649, %v2648
        %v2655 = vpack.c.b16 %v2651, %v2650
        %vm2660 = vcmask 523264
        %v2662 = vsel %vm2660, %v2620, 0
        %2664 = vmatprep.subr.bf16.mxu0 0
        %2665 = vmatpush1.bf16.msra.mxu0 %v2652
        %2666 = vmatprep.subr.bf16.mxu0 0
        %2667 = vmatpush1.bf16.msra.mxu0 %v2653
        %2668 = vmatprep.subr.bf16.mxu0 0
        %2669 = vmatpush1.bf16.msra.mxu0 %v2654
        %2670 = vmatprep.subr.bf16.mxu0 0
        %2671 = vmatpush1.bf16.msra.mxu0 %v2655
        %2672 = vmatprep.subr.bf16.mxu0 0
        %2673 = vmatpush1.bf16.msra.mxu0 0
        %2674 = vmatprep.subr.bf16.mxu0 0
        %2675 = vmatpush1.bf16.msra.mxu0 0
        %2676 = vmatprep.subr.bf16.mxu0 0
        %2677 = vmatpush1.bf16.msra.mxu0 0
        %2678 = vmatprep.subr.bf16.mxu0 0
        %2679 = vmatpush1.bf16.msra.mxu0 0
        %2680 = vmatprep.subr.bf16.mxu0 0
        %2681 = vmatpush1.bf16.msra.mxu0 0
        %2682 = vmatprep.subr.bf16.mxu0 0
        %2683 = vmatpush1.bf16.msra.mxu0 0
        %2684 = vmatprep.subr.bf16.mxu0 0
        %2685 = vmatpush1.bf16.msra.mxu0 0
        %2686 = vmatprep.subr.bf16.mxu0 0
        %2687 = vmatpush1.bf16.msra.mxu0 0
        %2688 = vmatprep.subr.bf16.mxu0 0
        %2689 = vmatpush1.bf16.msra.mxu0 0
        %2690 = vmatprep.subr.bf16.mxu0 0
        %2691 = vmatpush1.bf16.msra.mxu0 0
        %2692 = vmatprep.subr.bf16.mxu0 0
        %2693 = vmatpush1.bf16.msra.mxu0 0
        %2694 = vmatprep.subr.bf16.mxu0 0
        %2695 = vmatpush1.bf16.msra.mxu0 0
        %2696 = vmatprep.mubr.bf16.mxu0 0
        %2697 = vmatmul.mubr.bf16.gmra.mrb[0].mxu0 %v2662
        %v2698 = vpop.f32.mrb[0].mxu0
        %v2699 = vadd.f32 %v2634, %v2698
        %v2700 = vpop.f32.mrb[0].mxu0
        %v2701 = vpop.f32.mrb[0].mxu0
        %v2702 = vadd.f32 %v2634, %v2701
        %v2703 = vpop.f32.mrb[0].mxu0
        %2704 = vdwg.mxu0
        %v2705 = vadd.f32 %v2454, %v2699
        %v2706 = vadd.f32 %v2455, %v2702
        %2707 = vst.msk [vmem:[#allocation35] sm:$0xff] %vm1348, %v2705
        %2708 = vst.msk [vmem:[#allocation35 + $0x8] sm:$0x3] %vm1352, %v2706
        // Predicated region
        $region185: #{distill_wrapper_forward.5} parent=99 // pred_check
          %p2709 = pneg %p543
        $region186: #{distill_wrapper_forward.5} parent=99 // pred_check_branch
          %2711 = sbr.rel (%p2709) target = $region188
        $region187: #{distill_wrapper_forward.5} parent=99 // pred_region
          %s2713 = ssub.s32 256, 256
          %2714 = vsyncadd [#allocation5], %s2713
          %s2715 = sshll.u32 [#allocation35], 4
          %s2716 = int_to_ptr.vmem [resolvable:$true] %s2715
          %2721 = dma.vmem_to_hbm [thread:$0]  %s2716, 256, %s20, [#allocation5], 128, 128, 8
        $region188: #{distill_wrapper_forward.5} parent=99 // pred_fallthru
          _
        // Predicated region
        $region189: #{distill_wrapper_forward.5} parent=99 // pred_check
          %p2722 = pneg %p543
        $region190: #{distill_wrapper_forward.5} parent=99 // pred_check_branch
          %2724 = sbr.rel (%p2722) target = $region192
        $region191: #{distill_wrapper_forward.5} parent=99 // pred_region
          %2725 = dma.done [#allocation5], 256
        $region192: #{distill_wrapper_forward.5} parent=99 // pred_fallthru
          _
      $region100: #{distill_wrapper_forward.5} parent=5 // pred_fallthru
        _
      %p2726 = scmp.le.s32.totalorder 2, %s50
      // Predicated region
      $region193: #{distill_wrapper_forward.5} parent=5 // pred_check
        %p2727 = pneg %p2726
      $region194: #{distill_wrapper_forward.5} parent=5 // pred_check_branch
        %2729 = sbr.rel (%p2727) target = $region196
      $region195: #{distill_wrapper_forward.5} parent=5 // pred_region
        %s2730 = ssub.s32 %s50, 2
      $region196: #{distill_wrapper_forward.5} parent=5 // pred_fallthru
        _
    $region6: #{distill_wrapper_forward.5} parent=1 // loop_footer
      %s54 = sadd.s32 1, %s50
    $region7: #{distill_wrapper_forward.5} parent=1 // loop_footer_branch
      %49 = sbr.rel target = $region3
    $region8: #{distill_wrapper_forward.5} parent=1 // loop_exit
      _
    %2731 = vsyncpa [#allocation4], 1
    %s2732 = scalar_lea.sflag [#allocation4], 1
    %2733 = vsyncpa %s2732, 1
    %2734 = vsyncpa [#allocation7], 1
    %2735 = vsyncpa [#allocation10], 1
    %2736 = vsyncpa [#allocation13], 1
    %2737 = vsyncpa [#allocation16], 1
    %2738 = vsyncpa [#allocation19], 1
    %s2739 = scalar_lea.sflag [#allocation19], 1
    %2740 = vsyncpa %s2739, 1
    %2741 = vsyncpa [#allocation22], 1
    %s2742 = scalar_lea.sflag [#allocation22], 1
    %2743 = vsyncpa %s2742, 1
    %2744 = vsyncpa [#allocation25], 1
    %s2745 = scalar_lea.sflag [#allocation25], 1
    %2746 = vsyncpa %s2745, 1
    %2747 = vsyncpa [#allocation28], 1
    %s2748 = scalar_lea.sflag [#allocation28], 1
    %2749 = vsyncpa %s2748, 1
    %2750 = vsyncpa [#allocation31], 1
    %s2751 = scalar_lea.sflag [#allocation31], 1
    %2752 = vsyncpa %s2751, 1
    %2753 = vsyncpa [#allocation34], 1
    %s2754 = scalar_lea.sflag [#allocation34], 1
    %2755 = vsyncpa %s2754, 1
    %2756 = vsyncpa [#allocation5], 1
    %s2757 = scalar_lea.sflag [#allocation5], 1
    %2758 = vsyncpa %s2757, 1

</llo_original>
